<compile_context>
chip_gen: v5e
topology: v5e:2x2
jax: 0.10.0
libtpu: 0.0.40
codegen_flags: <defaults>
</compile_context>

<pallas_src>
import math

import jax
import jax.numpy as jnp
from jax import lax
from jax.experimental import pallas as pl
from jax.experimental.pallas import tpu as pltpu

_SMEM_SPEC = pl.BlockSpec(memory_space=pltpu.MemorySpace.SMEM)
_VMEM_LIMIT = 32 * 1024 * 1024


def _round_up(x, m):
    return (x + m - 1) // m * m


# ---------------- kernel 1: fused stem / Kzx / G / mean (prep) --------------- #

def _prep_kernel(xt_ref, ws_ref, bcol_ref, zs_ref, hz_ref, bmat_ref, alpha_ref,
                 os_ref, augi_ref, augj_ref, kzx_ref, g_ref, mean_ref):
    log_os = os_ref[0, 0]
    half_log_os = os_ref[0, 1]

    # Stem with the ARD 1/lengthscale already folded into W and b (wrapper):
    #   f = diag(1/ls) (W^T x^T + b^T)   -> (D, T), lane-dense.
    f = (jnp.dot(ws_ref[...], xt_ref[...], preferred_element_type=jnp.float32)
         + bcol_ref[...])

    # Shifted half-norms: h = 0.5 ||f||^2 - 0.5 log(outputscale)   -> (1, T).
    hf = 0.5 * jnp.sum(f * f, axis=0, keepdims=True) - half_log_os

    # K(Z, X) with outputscale folded into the exponent; min(., log_os) is the
    # max(sq, 0) clamp:  exp(min(z.f - hz - hf, log_os)) == os * exp(-0.5 max(d2,0)).
    neg_half_sq = (jnp.dot(zs_ref[...], f, preferred_element_type=jnp.float32)
                   - hz_ref[...] - hf)                             # (M, T)
    kzx = jnp.exp(jnp.minimum(neg_half_sq, log_os))
    kzx_ref[...] = kzx

    # G^T = B @ Kzx   (B = Lzz^{-T}(S - I)Lzz^{-1}, symmetric, precomputed).
    g_ref[...] = jnp.dot(bmat_ref[...], kzx, preferred_element_type=jnp.float32)

    # Predictive mean, lane-dense (1, T):  mean = alpha^T Kzx.
    mean_ref[...] = jnp.dot(alpha_ref[...], kzx,
                            preferred_element_type=jnp.float32)

    # Augmented feature slabs so the cov kernel's single MXU contraction gives
    #   f_i.f_j - h_i - h_j   directly (no per-element norm adds, no (N,1)
    # column arrays, no transposes anywhere):
    #   aug_i = [f; -h; 1],  aug_j = [f; 1; -h]
    d = f.shape[0]
    ones = jnp.ones((1, f.shape[1]), jnp.float32)
    augi_ref[0:d, :] = f
    augi_ref[d:d + 1, :] = -hf
    augi_ref[d + 1:d + 2, :] = ones
    augj_ref[0:d, :] = f
    augj_ref[d:d + 1, :] = ones
    augj_ref[d + 1:d + 2, :] = -hf


def _prep_call(x_t, ws_t, b_col, z_s, hz_col, bmat, alpha_row, os_smem, tile):
    in_dim, n_pad = x_t.shape
    d = ws_t.shape[0]
    m = z_s.shape[0]
    da = d + 2
    rep = lambda i: (0, 0)
    col = lambda i: (0, i)
    return pl.pallas_call(
        _prep_kernel,
        grid_spec=pltpu.PrefetchScalarGridSpec(
            num_scalar_prefetch=0,
            grid=(n_pad // tile,),
            in_specs=[
                pl.BlockSpec((in_dim, tile), col),   # x^T column tile
                pl.BlockSpec((d, in_dim), rep),      # stem W^T (ARD-scaled)
                pl.BlockSpec((d, 1), rep),           # stem bias (ARD-scaled)
                pl.BlockSpec((m, d), rep),           # scaled inducing points
                pl.BlockSpec((m, 1), rep),           # shifted inducing half-norms
                pl.BlockSpec((m, m), rep),           # B
                pl.BlockSpec((1, m), rep),           # alpha (row layout)
                _SMEM_SPEC,                          # [log_os, 0.5*log_os]
            ],
            out_specs=[
                pl.BlockSpec((da, tile), col),       # aug_i = [f; -h; 1]
                pl.BlockSpec((da, tile), col),       # aug_j = [f; 1; -h]
                pl.BlockSpec((m, tile), col),        # K(Z, X)
                pl.BlockSpec((m, tile), col),        # G^T = B Kzx
                pl.BlockSpec((1, tile), col),        # predictive mean (lane-dense)
            ],
        ),
        out_shape=(
            jax.ShapeDtypeStruct((da, n_pad), jnp.float32),
            jax.ShapeDtypeStruct((da, n_pad), jnp.float32),
            jax.ShapeDtypeStruct((m, n_pad), jnp.float32),
            jax.ShapeDtypeStruct((m, n_pad), jnp.float32),
            jax.ShapeDtypeStruct((1, n_pad), jnp.float32),
        ),
        compiler_params=pltpu.CompilerParams(
            dimension_semantics=("parallel",),
            vmem_limit_bytes=_VMEM_LIMIT),
    )(x_t, ws_t, b_col, z_s, hz_col, bmat, alpha_row, os_smem)


# -------------- kernel 2: fused Kxx + predictive covariance tile ------------- #

def _cov_kernel(ai_ref, aj_ref, gi_ref, kj_ref, os_ref, o_ref):
    log_os = os_ref[0, 0]

    # Kxx tile: the augmented contraction yields f_i.f_j - h_i - h_j in one MXU
    # pass (TN dimension numbers: contract the sublane/K axis of both slabs).
    neg_half_sq = lax.dot_general(
        ai_ref[...], aj_ref[...], (((0,), (0,)), ((), ())),
        preferred_element_type=jnp.float32)                       # (TI, TJ)
    kxx = jnp.exp(jnp.minimum(neg_half_sq, log_os))

    # interp^T (S - I) interp tile  ==  (G^T_i)^T Kzx_j.
    proj = lax.dot_general(
        gi_ref[...], kj_ref[...], (((0,), (0,)), ((), ())),
        preferred_element_type=jnp.float32)

    base = kxx + proj
    is_diag = pl.program_id(0) == pl.program_id(1)

    # gpytorch adds jitter_val (1e-4) to the data-data covariance; fuse it into
    # the single store on diagonal tiles only (no read-modify-write).
    @pl.when(is_diag)
    def _():
        ti, tj = o_ref.shape
        r = lax.broadcasted_iota(jnp.int32, (ti, tj), 0)
        c = lax.broadcasted_iota(jnp.int32, (ti, tj), 1)
        o_ref[...] = base + jnp.where(r == c, jnp.float32(1e-4), jnp.float32(0.0))

    @pl.when(jnp.logical_not(is_diag))
    def _():
        o_ref[...] = base


def _cov_call(aug_i, aug_j, g_t, kzx, os_smem, tile):
    da, n_pad = aug_i.shape
    m = kzx.shape[0]
    return pl.pallas_call(
        _cov_kernel,
        grid_spec=pltpu.PrefetchScalarGridSpec(
            num_scalar_prefetch=0,
            grid=(n_pad // tile, n_pad // tile),     # i outer, j inner
            in_specs=[
                pl.BlockSpec((da, tile), lambda i, j: (0, i)),   # aug_i (rows)
                pl.BlockSpec((da, tile), lambda i, j: (0, j)),   # aug_j (cols)
                pl.BlockSpec((m, tile), lambda i, j: (0, i)),    # G^T rows
                pl.BlockSpec((m, tile), lambda i, j: (0, j)),    # Kzx cols
                _SMEM_SPEC,                                      # [log_os, ...]
            ],
            out_specs=pl.BlockSpec((tile, tile), lambda i, j: (i, j)),
        ),
        out_shape=jax.ShapeDtypeStruct((n_pad, n_pad), jnp.float32),
        compiler_params=pltpu.CompilerParams(
            dimension_semantics=("parallel", "parallel"),   # megacore sharding
            vmem_limit_bytes=_VMEM_LIMIT),
    )(aug_i, aug_j, g_t, kzx, os_smem)


# ------------------------------- forward glue -------------------------------- #

@jax.jit
def online_svgp_forward(params, inputs):
    """Mirror of OnlineSVGPRegression.forward: returns (pred_mean, pred_cov)."""
    in_dim = params["stem_w"].shape[0]
    x = inputs.reshape(-1, in_dim).astype(jnp.float32)     # view(-1, stem.input_dim)
    n = x.shape[0]

    w = params["stem_w"].astype(jnp.float32)                # (in_dim, D)
    b = params["stem_b"].astype(jnp.float32)                # (1, D)
    z = params["inducing_points"].astype(jnp.float32)       # (M, D)
    m = z.shape[0]

    inv_ls = (1.0 / params["lengthscale"]).astype(jnp.float32)   # (1, D) ARD
    oscale = params["outputscale"].astype(jnp.float32)           # (1, 1)
    log_os = jnp.log(oscale[0, 0])

    # ---- parameter-only path: M x M / D-sized, independent of N ----
    ws_t = (w * inv_ls).T                                    # (D, in_dim)
    b_col = (b * inv_ls).T                                   # (D, 1)
    z_s = z * inv_ls                                         # (M, D)
    zn2 = jnp.sum(z_s * z_s, axis=-1, keepdims=True)         # (M, 1)
    hz_col = 0.5 * zn2 - 0.5 * log_os                        # shifted half-norms
    sq_zz = jnp.maximum(zn2 + zn2.T - 2.0 * (z_s @ z_s.T), 0.0)
    kzz = oscale[0, 0] * jnp.exp(-0.5 * sq_zz)
    # TODO(synk): Cholesky / triangular solve have no Pallas TPU primitive; this
    # tiny parameter-only factorization stays in plain JAX.
    eye_m = jnp.eye(m, dtype=jnp.float32)
    lzz = jnp.linalg.cholesky(kzz + 1e-4 * eye_m)
    linv = jax.scipy.linalg.solve_triangular(lzz, eye_m, lower=True)  # Lzz^{-1}
    v_chol = jnp.tril(params["chol_variational_covar"].astype(jnp.float32))
    s_minus_i = v_chol @ v_chol.T - eye_m                    # S - I (whitened)
    bmat = linv.T @ s_minus_i @ linv                         # (M, M), symmetric
    alpha_row = params["variational_mean"].astype(jnp.float32).T @ linv   # (1, M)
    os_smem = jnp.stack([log_os, 0.5 * log_os]).reshape(1, 2)

    # ---- tiled N-scaling hot path (lane-dense, feature-major layouts) ----
    n_pad = _round_up(max(n, 1), 512)                        # never drop below 512
    tile_cov = 1024 if n_pad % 1024 == 0 else 512
    tile_prep = 512
    for t in (4096, 2048, 1024):
        if n_pad % t == 0:
            tile_prep = t
            break

    x_t = jnp.pad(x, ((0, n_pad - n), (0, 0))).T             # (in_dim, n_pad)

    aug_i, aug_j, kzx, g_t, mean_row = _prep_call(
        x_t, ws_t, b_col, z_s, hz_col, bmat, alpha_row, os_smem, tile_prep)

    cov_full = _cov_call(aug_i, aug_j, g_t, kzx, os_smem, tile_cov)

    return mean_row[0, :n], cov_full[:n, :n]


# ----------------------- plain-JAX reference (for checks) -------------------- #

def _reference_forward(params, inputs):
    in_dim = params["stem_w"].shape[0]
    x = inputs.reshape(-1, in_dim).astype(jnp.float32)
    feats = x @ params["stem_w"] + params["stem_b"]
    inv_ls = 1.0 / params["lengthscale"]
    os_ = params["outputscale"][0, 0]
    z = params["inducing_points"]
    m = z.shape[0]

    def rbf(a, bb):
        a = a * inv_ls
        bb = bb * inv_ls
        a2 = jnp.sum(a * a, -1, keepdims=True)
        b2 = jnp.sum(bb * bb, -1, keepdims=True)
        sq = jnp.maximum(a2 + b2.T - 2.0 * (a @ bb.T), 0.0)
        return os_ * jnp.exp(-0.5 * sq)

    kzz = rbf(z, z)
    kzx = rbf(z, feats)
    kxx = rbf(feats, feats)
    lzz = jnp.linalg.cholesky(kzz + 1e-4 * jnp.eye(m, dtype=jnp.float32))
    interp = jax.scipy.linalg.solve_triangular(lzz, kzx, lower=True)
    v_chol = jnp.tril(params["chol_variational_covar"])
    mid = v_chol @ v_chol.T - jnp.eye(m, dtype=jnp.float32)
    mean = (interp.T @ params["variational_mean"])[:, 0]
    n = feats.shape[0]
    cov = kxx + 1e-4 * jnp.eye(n, dtype=jnp.float32) + interp.T @ mid @ interp
    return mean, cov


# ------------------------ deterministic parameter init ----------------------- #

def init_params(input_dim, output_dim, num_inducing, key):
    k_w, k_z, k_vm, k_vc = jax.random.split(key, 4)
    softplus0 = math.log(2.0)  # gpytorch raw param = 0 -> softplus(0)
    return {
        "stem_w": (jax.random.normal(k_w, (input_dim, output_dim), jnp.float32)
                   / math.sqrt(input_dim)),
        "stem_b": jnp.zeros((1, output_dim), jnp.float32),
        "inducing_points": jax.random.uniform(
            k_z, (num_inducing, output_dim), jnp.float32, minval=-1.0, maxval=1.0),
        "lengthscale": jnp.full((1, output_dim), softplus0, jnp.float32),
        "outputscale": jnp.full((1, 1), softplus0, jnp.float32),
        "variational_mean": 0.1 * jax.random.normal(
            k_vm, (num_inducing, 1), jnp.float32),
        "chol_variational_covar": (
            jnp.eye(num_inducing, dtype=jnp.float32)
            + 0.05 * jnp.tril(jax.random.normal(
                k_vc, (num_inducing, num_inducing), jnp.float32))),
    }


if __name__ == "__main__":
    INPUT_DIM = 16     # stem.input_dim
    OUTPUT_DIM = 8     # stem.output_dim (GP feature dim)
    NUM_INDUCING = 16

    key = jax.random.PRNGKey(0)
    k_params, k_x = jax.random.split(key)
    params = init_params(INPUT_DIM, OUTPUT_DIM, NUM_INDUCING, k_params)

    # inputs get flattened to (-1, stem.input_dim) = (8, 16) inside forward
    x = jax.random.normal(k_x, (2, 4, INPUT_DIM), jnp.float32)

    mean, cov = online_svgp_forward(params, x)
    mean = jax.block_until_ready(mean)
    cov = jax.block_until_ready(cov)

    n = x.reshape(-1, INPUT_DIM).shape[0]
    assert mean.shape == (n,), mean.shape
    assert cov.shape == (n, n), cov.shape
    assert bool(jnp.all(jnp.isfinite(mean))) and bool(jnp.all(jnp.isfinite(cov)))
    assert bool(jnp.all(jnp.diag(cov) > 0.0))

    ref_mean, ref_cov = _reference_forward(params, x)
    assert bool(jnp.allclose(mean, ref_mean, atol=5e-4, rtol=2e-3)), (
        float(jnp.max(jnp.abs(mean - ref_mean))))
    assert bool(jnp.allclose(cov, ref_cov, atol=5e-4, rtol=2e-3)), (
        float(jnp.max(jnp.abs(cov - ref_cov))))

    print("KERNEL_OK")
</pallas_src>

<mosaic_0001>
module attributes {stable_mosaic.version = 11 : i64} {
  func.func @_prep_kernel(%arg0: i32, %arg1: memref<16x512xf32, #tpu.memory_space<vmem>>, %arg2: memref<8x16xf32, #tpu.memory_space<vmem>>, %arg3: memref<8x1xf32, #tpu.memory_space<vmem>>, %arg4: memref<16x8xf32, #tpu.memory_space<vmem>>, %arg5: memref<16x1xf32, #tpu.memory_space<vmem>>, %arg6: memref<16x16xf32, #tpu.memory_space<vmem>>, %arg7: memref<1x16xf32, #tpu.memory_space<vmem>>, %arg8: memref<1x2xf32, #tpu.memory_space<smem>>, %arg9: memref<10x512xf32, #tpu.memory_space<vmem>>, %arg10: memref<10x512xf32, #tpu.memory_space<vmem>>, %arg11: memref<16x512xf32, #tpu.memory_space<vmem>>, %arg12: memref<16x512xf32, #tpu.memory_space<vmem>>, %arg13: memref<1x512xf32, #tpu.memory_space<vmem>>) attributes {dimension_semantics = [#tpu.dimension_semantics<parallel>], iteration_bounds = array<i64: 1>, scalar_prefetch = 0 : i64, scratch_operands = 0 : i64, tpu.core_type = #tpu.core_type<tc>, window_params = [{transform_indices = @transform_0, window_bounds = array<i64: 16, 512>}, {pipeline_mode = #tpu.pipeline_mode<synchronous>, transform_indices = @transform_1, window_bounds = array<i64: 8, 16>}, {pipeline_mode = #tpu.pipeline_mode<synchronous>, transform_indices = @transform_2, window_bounds = array<i64: 8, 1>}, {pipeline_mode = #tpu.pipeline_mode<synchronous>, transform_indices = @transform_3, window_bounds = array<i64: 16, 8>}, {pipeline_mode = #tpu.pipeline_mode<synchronous>, transform_indices = @transform_4, window_bounds = array<i64: 16, 1>}, {pipeline_mode = #tpu.pipeline_mode<synchronous>, transform_indices = @transform_5, window_bounds = array<i64: 16, 16>}, {pipeline_mode = #tpu.pipeline_mode<synchronous>, transform_indices = @transform_6, window_bounds = array<i64: 1, 16>}, {transform_indices = @transform_7, window_bounds = array<i64: 1, 2>}, {transform_indices = @transform_8, window_bounds = array<i64: 10, 512>}, {transform_indices = @transform_9, window_bounds = array<i64: 10, 512>}, {transform_indices = @transform_10, window_bounds = array<i64: 16, 512>}, {transform_indices = @transform_11, window_bounds = array<i64: 16, 512>}, {transform_indices = @transform_12, window_bounds = array<i64: 1, 512>}]} {
    %c0 = arith.constant 0 : index
    %c0_0 = arith.constant 0 : index
    %0 = memref.load %arg8[%c0, %c0_0] : memref<1x2xf32, #tpu.memory_space<smem>>
    %c0_1 = arith.constant 0 : index
    %c1 = arith.constant 1 : index
    %1 = memref.load %arg8[%c0_1, %c1] : memref<1x2xf32, #tpu.memory_space<smem>>
    %c0_2 = arith.constant 0 : index
    %c0_3 = arith.constant 0 : index
    %2 = vector.load %arg2[%c0_2, %c0_3] : memref<8x16xf32, #tpu.memory_space<vmem>>, vector<8x16xf32>
    %c0_4 = arith.constant 0 : index
    %c0_5 = arith.constant 0 : index
    %3 = vector.load %arg1[%c0_4, %c0_5] : memref<16x512xf32, #tpu.memory_space<vmem>>, vector<16x512xf32>
    %cst = arith.constant dense<0.000000e+00> : vector<8x512xf32>
    %4 = tpu.matmul %2, %3, %cst {dimension_numbers = #tpu.dot_dimension_numbers<[1], [0], [0], [1], [0, 0, 1, 1], [], []>} : vector<8x16xf32>, vector<16x512xf32>, vector<8x512xf32> -> vector<8x512xf32>
    %c0_6 = arith.constant 0 : index
    %c0_7 = arith.constant 0 : index
    %5 = vector.load %arg3[%c0_6, %c0_7] : memref<8x1xf32, #tpu.memory_space<vmem>>, vector<8x1xf32>
    %6 = vector.broadcast %5 : vector<8x1xf32> to vector<8x512xf32>
    %7 = arith.addf %4, %6 : vector<8x512xf32>
    %8 = arith.mulf %7, %7 : vector<8x512xf32>
    %cst_8 = arith.constant dense<0.000000e+00> : vector<512xf32>
    %9 = vector.multi_reduction <add>, %8, %cst_8 [0] : vector<8x512xf32> to vector<512xf32>
    %10 = vector.shape_cast %9 : vector<512xf32> to vector<1x512xf32>
    %cst_9 = arith.constant 5.000000e-01 : f32
    %11 = vector.broadcast %cst_9 : f32 to vector<1x512xf32>
    %12 = arith.mulf %11, %10 : vector<1x512xf32>
    %13 = vector.broadcast %1 : f32 to vector<1x512xf32>
    %14 = arith.subf %12, %13 : vector<1x512xf32>
    %c0_10 = arith.constant 0 : index
    %c0_11 = arith.constant 0 : index
    %15 = vector.load %arg4[%c0_10, %c0_11] : memref<16x8xf32, #tpu.memory_space<vmem>>, vector<16x8xf32>
    %cst_12 = arith.constant dense<0.000000e+00> : vector<16x512xf32>
    %16 = tpu.matmul %15, %7, %cst_12 {dimension_numbers = #tpu.dot_dimension_numbers<[1], [0], [0], [1], [0, 0, 1, 1], [], []>} : vector<16x8xf32>, vector<8x512xf32>, vector<16x512xf32> -> vector<16x512xf32>
    %c0_13 = arith.constant 0 : index
    %c0_14 = arith.constant 0 : index
    %17 = vector.load %arg5[%c0_13, %c0_14] : memref<16x1xf32, #tpu.memory_space<vmem>>, vector<16x1xf32>
    %18 = vector.broadcast %17 : vector<16x1xf32> to vector<16x512xf32>
    %19 = arith.subf %16, %18 : vector<16x512xf32>
    %20 = vector.broadcast %14 : vector<1x512xf32> to vector<16x512xf32>
    %21 = arith.subf %19, %20 : vector<16x512xf32>
    %22 = vector.broadcast %0 : f32 to vector<16x512xf32>
    %23 = arith.minimumf %21, %22 : vector<16x512xf32>
    %24 = math.exp %23 : vector<16x512xf32>
    %c0_15 = arith.constant 0 : index
    %c0_16 = arith.constant 0 : index
    %25 = vector.load %arg11[%c0_15, %c0_16] : memref<16x512xf32, #tpu.memory_space<vmem>>, vector<16x512xf32>
    tpu.vector_store %arg11[%c0_15, %c0_16], %24 {strides = array<i32>} : memref<16x512xf32, #tpu.memory_space<vmem>>, vector<16x512xf32>,
    %c0_17 = arith.constant 0 : index
    %c0_18 = arith.constant 0 : index
    %26 = vector.load %arg6[%c0_17, %c0_18] : memref<16x16xf32, #tpu.memory_space<vmem>>, vector<16x16xf32>
    %cst_19 = arith.constant dense<0.000000e+00> : vector<16x512xf32>
    %27 = tpu.matmul %26, %24, %cst_19 {dimension_numbers = #tpu.dot_dimension_numbers<[1], [0], [0], [1], [0, 0, 1, 1], [], []>} : vector<16x16xf32>, vector<16x512xf32>, vector<16x512xf32> -> vector<16x512xf32>
    %c0_20 = arith.constant 0 : index
    %c0_21 = arith.constant 0 : index
    %28 = vector.load %arg12[%c0_20, %c0_21] : memref<16x512xf32, #tpu.memory_space<vmem>>, vector<16x512xf32>
    tpu.vector_store %arg12[%c0_20, %c0_21], %27 {strides = array<i32>} : memref<16x512xf32, #tpu.memory_space<vmem>>, vector<16x512xf32>,
    %c0_22 = arith.constant 0 : index
    %c0_23 = arith.constant 0 : index
    %29 = vector.load %arg7[%c0_22, %c0_23] : memref<1x16xf32, #tpu.memory_space<vmem>>, vector<1x16xf32>
    %cst_24 = arith.constant dense<0.000000e+00> : vector<1x512xf32>
    %30 = tpu.matmul %29, %24, %cst_24 {dimension_numbers = #tpu.dot_dimension_numbers<[1], [0], [0], [1], [0, 0, 1, 1], [], []>} : vector<1x16xf32>, vector<16x512xf32>, vector<1x512xf32> -> vector<1x512xf32>
    %c0_25 = arith.constant 0 : index
    %c0_26 = arith.constant 0 : index
    %31 = vector.load %arg13[%c0_25, %c0_26] : memref<1x512xf32, #tpu.memory_space<vmem>>, vector<1x512xf32>
    tpu.vector_store %arg13[%c0_25, %c0_26], %30 {strides = array<i32>} : memref<1x512xf32, #tpu.memory_space<vmem>>, vector<1x512xf32>,
    %cst_27 = arith.constant 1.000000e+00 : f32
    %32 = vector.broadcast %cst_27 : f32 to vector<1x512xf32>
    %c0_28 = arith.constant 0 : index
    %c0_29 = arith.constant 0 : index
    %33 = vector.load %arg9[%c0_28, %c0_29] : memref<10x512xf32, #tpu.memory_space<vmem>>, vector<8x512xf32>
    tpu.vector_store %arg9[%c0_28, %c0_29], %7 {strides = array<i32>} : memref<10x512xf32, #tpu.memory_space<vmem>>, vector<8x512xf32>,
    %cst_30 = arith.constant 0.000000e+00 : f32
    %34 = vector.broadcast %cst_30 : f32 to vector<1x512xf32>
    %35 = arith.subf %34, %14 : vector<1x512xf32>
    %c8 = arith.constant 8 : index
    %c0_31 = arith.constant 0 : index
    %36 = vector.load %arg9[%c8, %c0_31] : memref<10x512xf32, #tpu.memory_space<vmem>>, vector<1x512xf32>
    tpu.vector_store %arg9[%c8, %c0_31], %35 {strides = array<i32>} : memref<10x512xf32, #tpu.memory_space<vmem>>, vector<1x512xf32>,
    %c9 = arith.constant 9 : index
    %c0_32 = arith.constant 0 : index
    %37 = vector.load %arg9[%c9, %c0_32] : memref<10x512xf32, #tpu.memory_space<vmem>>, vector<1x512xf32>
    tpu.vector_store %arg9[%c9, %c0_32], %32 {strides = array<i32>} : memref<10x512xf32, #tpu.memory_space<vmem>>, vector<1x512xf32>,
    %c0_33 = arith.constant 0 : index
    %c0_34 = arith.constant 0 : index
    %38 = vector.load %arg10[%c0_33, %c0_34] : memref<10x512xf32, #tpu.memory_space<vmem>>, vector<8x512xf32>
    tpu.vector_store %arg10[%c0_33, %c0_34], %7 {strides = array<i32>} : memref<10x512xf32, #tpu.memory_space<vmem>>, vector<8x512xf32>,
    %c8_35 = arith.constant 8 : index
    %c0_36 = arith.constant 0 : index
    %39 = vector.load %arg10[%c8_35, %c0_36] : memref<10x512xf32, #tpu.memory_space<vmem>>, vector<1x512xf32>
    tpu.vector_store %arg10[%c8_35, %c0_36], %32 {strides = array<i32>} : memref<10x512xf32, #tpu.memory_space<vmem>>, vector<1x512xf32>,
    %cst_37 = arith.constant 0.000000e+00 : f32
    %40 = vector.broadcast %cst_37 : f32 to vector<1x512xf32>
    %41 = arith.subf %40, %14 : vector<1x512xf32>
    %c9_38 = arith.constant 9 : index
    %c0_39 = arith.constant 0 : index
    %42 = vector.load %arg10[%c9_38, %c0_39] : memref<10x512xf32, #tpu.memory_space<vmem>>, vector<1x512xf32>
    tpu.vector_store %arg10[%c9_38, %c0_39], %41 {strides = array<i32>} : memref<10x512xf32, #tpu.memory_space<vmem>>, vector<1x512xf32>,
    return
  }
  func.func @transform_0(%arg0: i32) -> (i32, i32) {
    %c0_i32 = arith.constant 0 : i32
    %c0_i32_0 = arith.constant 0 : i32
    return %c0_i32, %arg0 : i32, i32
  }
  func.func @transform_1(%arg0: i32) -> (i32, i32) {
    %c0_i32 = arith.constant 0 : i32
    %c0_i32_0 = arith.constant 0 : i32
    %c0_i32_1 = arith.constant 0 : i32
    return %c0_i32, %c0_i32_0 : i32, i32
  }
  func.func @transform_2(%arg0: i32) -> (i32, i32) {
    %c0_i32 = arith.constant 0 : i32
    %c0_i32_0 = arith.constant 0 : i32
    %c0_i32_1 = arith.constant 0 : i32
    return %c0_i32, %c0_i32_0 : i32, i32
  }
  func.func @transform_3(%arg0: i32) -> (i32, i32) {
    %c0_i32 = arith.constant 0 : i32
    %c0_i32_0 = arith.constant 0 : i32
    %c0_i32_1 = arith.constant 0 : i32
    return %c0_i32, %c0_i32_0 : i32, i32
  }
  func.func @transform_4(%arg0: i32) -> (i32, i32) {
    %c0_i32 = arith.constant 0 : i32
    %c0_i32_0 = arith.constant 0 : i32
    %c0_i32_1 = arith.constant 0 : i32
    return %c0_i32, %c0_i32_0 : i32, i32
  }
  func.func @transform_5(%arg0: i32) -> (i32, i32) {
    %c0_i32 = arith.constant 0 : i32
    %c0_i32_0 = arith.constant 0 : i32
    %c0_i32_1 = arith.constant 0 : i32
    return %c0_i32, %c0_i32_0 : i32, i32
  }
  func.func @transform_6(%arg0: i32) -> (i32, i32) {
    %c0_i32 = arith.constant 0 : i32
    %c0_i32_0 = arith.constant 0 : i32
    %c0_i32_1 = arith.constant 0 : i32
    return %c0_i32, %c0_i32_0 : i32, i32
  }
  func.func @transform_7(%arg0: i32) -> (i32, i32) {
    %c0_i32 = arith.constant 0 : i32
    %c0_i32_0 = arith.constant 0 : i32
    %c0_i32_1 = arith.constant 0 : i32
    return %c0_i32, %c0_i32_0 : i32, i32
  }
  func.func @transform_8(%arg0: i32) -> (i32, i32) {
    %c0_i32 = arith.constant 0 : i32
    %c0_i32_0 = arith.constant 0 : i32
    return %c0_i32, %arg0 : i32, i32
  }
  func.func @transform_9(%arg0: i32) -> (i32, i32) {
    %c0_i32 = arith.constant 0 : i32
    %c0_i32_0 = arith.constant 0 : i32
    return %c0_i32, %arg0 : i32, i32
  }
  func.func @transform_10(%arg0: i32) -> (i32, i32) {
    %c0_i32 = arith.constant 0 : i32
    %c0_i32_0 = arith.constant 0 : i32
    return %c0_i32, %arg0 : i32, i32
  }
  func.func @transform_11(%arg0: i32) -> (i32, i32) {
    %c0_i32 = arith.constant 0 : i32
    %c0_i32_0 = arith.constant 0 : i32
    return %c0_i32, %arg0 : i32, i32
  }
  func.func @transform_12(%arg0: i32) -> (i32, i32) {
    %c0_i32 = arith.constant 0 : i32
    %c0_i32_0 = arith.constant 0 : i32
    return %c0_i32, %arg0 : i32, i32
  }
}

module attributes {stable_mosaic.version = 11 : i64} {
  func.func @_cov_kernel(%arg0: i32, %arg1: i32, %arg2: memref<10x512xf32, #tpu.memory_space<vmem>>, %arg3: memref<10x512xf32, #tpu.memory_space<vmem>>, %arg4: memref<16x512xf32, #tpu.memory_space<vmem>>, %arg5: memref<16x512xf32, #tpu.memory_space<vmem>>, %arg6: memref<1x2xf32, #tpu.memory_space<smem>>, %arg7: memref<512x512xf32, #tpu.memory_space<vmem>>) attributes {dimension_semantics = [#tpu.dimension_semantics<parallel>, #tpu.dimension_semantics<parallel>], iteration_bounds = array<i64: 1, 1>, scalar_prefetch = 0 : i64, scratch_operands = 0 : i64, tpu.core_type = #tpu.core_type<tc>, window_params = [{transform_indices = @transform_0, window_bounds = array<i64: 10, 512>}, {transform_indices = @transform_1, window_bounds = array<i64: 10, 512>}, {transform_indices = @transform_2, window_bounds = array<i64: 16, 512>}, {transform_indices = @transform_3, window_bounds = array<i64: 16, 512>}, {transform_indices = @transform_4, window_bounds = array<i64: 1, 2>}, {transform_indices = @transform_5, window_bounds = array<i64: 512, 512>}]} {
    %c0 = arith.constant 0 : index
    %c0_0 = arith.constant 0 : index
    %0 = memref.load %arg6[%c0, %c0_0] : memref<1x2xf32, #tpu.memory_space<smem>>
    %c0_1 = arith.constant 0 : index
    %c0_2 = arith.constant 0 : index
    %1 = vector.load %arg2[%c0_1, %c0_2] : memref<10x512xf32, #tpu.memory_space<vmem>>, vector<10x512xf32>
    %c0_3 = arith.constant 0 : index
    %c0_4 = arith.constant 0 : index
    %2 = vector.load %arg3[%c0_3, %c0_4] : memref<10x512xf32, #tpu.memory_space<vmem>>, vector<10x512xf32>
    %cst = arith.constant dense<0.000000e+00> : vector<512x512xf32>
    %3 = tpu.matmul %1, %2, %cst {dimension_numbers = #tpu.dot_dimension_numbers<[0], [0], [1], [1], [0, 1, 1, 1], [], []>} : vector<10x512xf32>, vector<10x512xf32>, vector<512x512xf32> -> vector<512x512xf32>
    %4 = vector.broadcast %0 : f32 to vector<512x512xf32>
    %5 = arith.minimumf %3, %4 : vector<512x512xf32>
    %6 = math.exp %5 : vector<512x512xf32>
    %c0_5 = arith.constant 0 : index
    %c0_6 = arith.constant 0 : index
    %7 = vector.load %arg4[%c0_5, %c0_6] : memref<16x512xf32, #tpu.memory_space<vmem>>, vector<16x512xf32>
    %c0_7 = arith.constant 0 : index
    %c0_8 = arith.constant 0 : index
    %8 = vector.load %arg5[%c0_7, %c0_8] : memref<16x512xf32, #tpu.memory_space<vmem>>, vector<16x512xf32>
    %cst_9 = arith.constant dense<0.000000e+00> : vector<512x512xf32>
    %9 = tpu.matmul %7, %8, %cst_9 {dimension_numbers = #tpu.dot_dimension_numbers<[0], [0], [1], [1], [0, 1, 1, 1], [], []>} : vector<16x512xf32>, vector<16x512xf32>, vector<512x512xf32> -> vector<512x512xf32>
    %10 = arith.addf %6, %9 : vector<512x512xf32>
    %11 = arith.cmpi eq, %arg0, %arg1 : i32
    %12 = arith.extui %11 : i1 to i32
    %c0_i32 = arith.constant 0 : i32
    %13 = arith.cmpi ne, %12, %c0_i32 : i32
    scf.if %13 {
      %17 = tpu.iota {dimensions = array<i32: 0>} : vector<512x512xi32>
      %18 = tpu.iota {dimensions = array<i32: 1>} : vector<512x512xi32>
      %19 = arith.cmpi eq, %17, %18 : vector<512x512xi32>
      %cst_11 = arith.constant 9.99999974E-5 : f32
      %cst_12 = arith.constant 0.000000e+00 : f32
      %20 = vector.broadcast %cst_11 : f32 to vector<512x512xf32>
      %21 = vector.broadcast %cst_12 : f32 to vector<512x512xf32>
      %22 = arith.select %19, %20, %21 : vector<512x512xi1>, vector<512x512xf32>
      %23 = arith.addf %10, %22 : vector<512x512xf32>
      %c0_13 = arith.constant 0 : index
      %c0_14 = arith.constant 0 : index
      %24 = vector.load %arg7[%c0_13, %c0_14] : memref<512x512xf32, #tpu.memory_space<vmem>>, vector<512x512xf32>
      tpu.vector_store %arg7[%c0_13, %c0_14], %23 {strides = array<i32>} : memref<512x512xf32, #tpu.memory_space<vmem>>, vector<512x512xf32>,
    } else {
    }
    %true = arith.constant true
    %14 = arith.xori %11, %true : i1
    %15 = arith.extui %14 : i1 to i32
    %c0_i32_10 = arith.constant 0 : i32
    %16 = arith.cmpi ne, %15, %c0_i32_10 : i32
    scf.if %16 {
      %c0_11 = arith.constant 0 : index
      %c0_12 = arith.constant 0 : index
      %17 = vector.load %arg7[%c0_11, %c0_12] : memref<512x512xf32, #tpu.memory_space<vmem>>, vector<512x512xf32>
      tpu.vector_store %arg7[%c0_11, %c0_12], %10 {strides = array<i32>} : memref<512x512xf32, #tpu.memory_space<vmem>>, vector<512x512xf32>,
    } else {
    }
    return
  }
  func.func @transform_0(%arg0: i32, %arg1: i32) -> (i32, i32) {
    %c0_i32 = arith.constant 0 : i32
    %c0_i32_0 = arith.constant 0 : i32
    return %c0_i32, %arg0 : i32, i32
  }
  func.func @transform_1(%arg0: i32, %arg1: i32) -> (i32, i32) {
    %c0_i32 = arith.constant 0 : i32
    %c0_i32_0 = arith.constant 0 : i32
    return %c0_i32, %arg1 : i32, i32
  }
  func.func @transform_2(%arg0: i32, %arg1: i32) -> (i32, i32) {
    %c0_i32 = arith.constant 0 : i32
    %c0_i32_0 = arith.constant 0 : i32
    return %c0_i32, %arg0 : i32, i32
  }
  func.func @transform_3(%arg0: i32, %arg1: i32) -> (i32, i32) {
    %c0_i32 = arith.constant 0 : i32
    %c0_i32_0 = arith.constant 0 : i32
    return %c0_i32, %arg1 : i32, i32
  }
  func.func @transform_4(%arg0: i32, %arg1: i32) -> (i32, i32) {
    %c0_i32 = arith.constant 0 : i32
    %c0_i32_0 = arith.constant 0 : i32
    %c0_i32_1 = arith.constant 0 : i32
    return %c0_i32, %c0_i32_0 : i32, i32
  }
  func.func @transform_5(%arg0: i32, %arg1: i32) -> (i32, i32) {
    %c0_i32 = arith.constant 0 : i32
    return %arg0, %arg1 : i32, i32
  }
}

</mosaic_0001>

<llo_original>
// kernel: custom-call.4
$region0: #{custom-call.4}
  %s0 = inlined_call_operand.vmem [shape: f32[16,16], index: 0, kind: input, shape index: {}]
  %s1 = inlined_call_operand.vmem [shape: f32[16,16], index: 1, kind: output, shape index: {}]
  $region1: #{custom-call.4} parent=0
    #allocation0 [shape = 'u8[8192]{0}', space=vmem, size = 0x2000, scoped, tag = 'operand span for operand 0']
    #allocation1 [shape = 'u8[8192]{0}', space=vmem, size = 0x2000, scoped, tag = 'operand span for operand 1']
    // Predicated region
    $region2: #{custom-call.4} parent=1 // pred_check
      _
    $region3: #{custom-call.4} parent=1 // pred_check_branch
      %3 = sbr.rel (0) target = $region5
    $region4: #{custom-call.4} parent=1 // pred_region
      // Predicated region
      $region6: #{custom-call.4} parent=4 // pred_check
        _
      $region7: #{custom-call.4} parent=4 // pred_check_branch
        %5 = sbr.rel (0) target = $region9
      $region8: #{custom-call.4} parent=4 // pred_region
        // Predicated region
        $region21: #{custom-call.4} parent=8 // pred_check
          _
        $region22: #{custom-call.4} parent=8 // pred_check_branch
          %23 = sbr.rel (0) target = $region24
        $region23: #{custom-call.4} parent=8 // pred_region
          loop: start=0, step=1, limit=1
          $region25: #{custom-call.4} parent=23 // loop_pre_header
            _
          $region26: #{custom-call.4} parent=23 // loop_header
            %s25 = sphi 0, %s29
            %p26 = scmp.ge.s32.totalorder %s25, 1
            %s30 = sphi %s0, %s0
            %s31 = sphi [#allocation0], [#allocation0]
          $region27: #{custom-call.4} parent=23 // loop_header_branch
            %28 = sbr.rel (%p26) target = $region31
          $region28: #{custom-call.4} parent=23 // loop_body
            %v32 = vld [vmem:[%s30] sm:$0xff]
            %33 = vst [vmem:[%s31] sm:$0xff] %v32
            %v34 = vld [vmem:[%s30 + $0x8] sm:$0xff]
            %35 = vst [vmem:[%s31 + $0x8] sm:$0xff] %v34
          $region29: #{custom-call.4} parent=23 // loop_footer
            %s29 = sadd.s32 1, %s25
          $region30: #{custom-call.4} parent=23 // loop_footer_branch
            %24 = sbr.rel target = $region26
          $region31: #{custom-call.4} parent=23 // loop_exit
            _
        $region24: #{custom-call.4} parent=8 // pred_fallthru
          _
        // Predicated region
        $region32: #{custom-call.4} parent=8 // pred_check
          _
        $region33: #{custom-call.4} parent=8 // pred_check_branch
          %37 = sbr.rel target = $region35
        $region34: #{custom-call.4} parent=8 // pred_region
          _
        $region35: #{custom-call.4} parent=8 // pred_fallthru
          _
      $region9: #{custom-call.4} parent=4 // pred_fallthru
        _
      // Predicated region
      $region10: #{custom-call.4} parent=4 // pred_check
        _
      $region11: #{custom-call.4} parent=4 // pred_check_branch
        %7 = sbr.rel target = $region13
      $region12: #{custom-call.4} parent=4 // pred_region
        %s9 = ssub.s32 256, 1
        loop: start=0, step=1, limit=1
        $region14: #{custom-call.4} parent=12 // loop_pre_header
          _
        $region15: #{custom-call.4} parent=12 // loop_header
          %s11 = sphi 0, %s15
          %p12 = scmp.ge.s32.totalorder %s11, 1
          %s16 = sphi %s0, %s0
          %s17 = sphi [#allocation0], [#allocation0]
        $region16: #{custom-call.4} parent=12 // loop_header_branch
          %14 = sbr.rel (%p12) target = $region20
        $region17: #{custom-call.4} parent=12 // loop_body
          %v18 = vld [vmem:[%s16] sm:%s9]
          %19 = vst [vmem:[%s17] sm:%s9] %v18
          %v20 = vld [vmem:[%s16 + $0x8] sm:%s9]
          %21 = vst [vmem:[%s17 + $0x8] sm:%s9] %v20
        $region18: #{custom-call.4} parent=12 // loop_footer
          %s15 = sadd.s32 1, %s11
        $region19: #{custom-call.4} parent=12 // loop_footer_branch
          %10 = sbr.rel target = $region15
        $region20: #{custom-call.4} parent=12 // loop_exit
          _
      $region13: #{custom-call.4} parent=4 // pred_fallthru
        _
    $region5: #{custom-call.4} parent=1 // pred_fallthru
      _
    %38 = vnop
    %39 = vst [vmem:[#allocation1] sm:$0xff] 0.0
    %s40 = scalar_lea.vmem [#allocation1], 8
    %41 = vst [vmem:[%s40] sm:$0xff] 0.0
    %vm42 = vcmask 7168
    %v43 = vld [vmem:[#allocation1] ss:$0 sm:$0xff]
    %v44 = vld [vmem:[#allocation0] ss:$0 sm:$0xff]
    %v45 = vmul.f32 %v43, %v43
    %46 = vadd.xlane.f32.xlu0 %v45
    %v47 = vpop.xlane.xlu0 %46
    %v48 = vsub.f32 %v44, %v47
    %v49 = vrsqrt.pop %v48
    %v50 = vmul.f32 %v49, %v48
    %v51 = vmul.f32 %v50, %v49
    %v52 = vmul.f32 0.5, %v51
    %v53 = vsub.f32 1.5, %v52
    %v54 = vmul.f32 %v49, %v53
    %vm55 = vweird.f32 %v48
    %vm56 = vweird.f32 %v49
    %vm57 = vmor %vm55, %vm56
    %v58 = vsel %vm57, %v49, %v54
    %v59 = vld [vmem:[#allocation0] sm:$0xff]
    %v60 = vld [vmem:[#allocation1] sm:$0xff]
    %v61 = vmul.f32 %v60, %v43
    %62 = vadd.xlane.f32.xlu0 %v61
    %v63 = vpop.xlane.xlu0 %62
    %v64 = vsub.f32 %v59, %v63
    %v65 = vmul.f32 %v64, %v58
    %v66 = vsel %vm42, %v65, 0.0
    %v67 = vadd.f32 %v60, %v66
    %68 = vst [vmem:[#allocation1] sm:$0xff] %v67
    %s69 = scalar_lea.vmem [#allocation0], 8
    %v70 = vld [vmem:[%s69] sm:$0xff]
    %s71 = scalar_lea.vmem [#allocation1], 8
    %v72 = vld [vmem:[%s71] sm:$0xff]
    %v73 = vmul.f32 %v72, %v43
    %74 = vadd.xlane.f32.xlu0 %v73
    %v75 = vpop.xlane.xlu0 %74
    %v76 = vsub.f32 %v70, %v75
    %v77 = vmul.f32 %v76, %v58
    %v78 = vsel %vm42, %v77, 0.0
    %v79 = vadd.f32 %v72, %v78
    %s80 = scalar_lea.vmem [#allocation1], 8
    %81 = vst [vmem:[%s80] sm:$0xff] %v79
    %vm82 = vcmask 15368
    %s83 = scalar_lea.vmem [#allocation1], 1
    %v84 = vld [vmem:[%s83] ss:$0 sm:$0xff]
    %s85 = scalar_lea.vmem [#allocation0], 1
    %v86 = vld [vmem:[%s85] ss:$0 sm:$0xff]
    %v87 = vmul.f32 %v84, %v84
    %88 = vadd.xlane.f32.xlu0 %v87
    %v89 = vpop.xlane.xlu0 %88
    %v90 = vsub.f32 %v86, %v89
    %v91 = vrsqrt.pop %v90
    %v92 = vmul.f32 %v91, %v90
    %v93 = vmul.f32 %v92, %v91
    %v94 = vmul.f32 0.5, %v93
    %v95 = vsub.f32 1.5, %v94
    %v96 = vmul.f32 %v91, %v95
    %vm97 = vweird.f32 %v90
    %vm98 = vweird.f32 %v91
    %vm99 = vmor %vm97, %vm98
    %v100 = vsel %vm99, %v91, %v96
    %v101 = vld [vmem:[#allocation0] sm:$0xff]
    %v102 = vld [vmem:[#allocation1] sm:$0xff]
    %v103 = vmul.f32 %v102, %v84
    %104 = vadd.xlane.f32.xlu0 %v103
    %v105 = vpop.xlane.xlu0 %104
    %v106 = vsub.f32 %v101, %v105
    %v107 = vmul.f32 %v106, %v100
    %vm108 = vcmask 1047553
    %vm109 = vmand %vm82, %vm108
    %v110 = vsel %vm109, %v107, 0.0
    %v111 = vadd.f32 %v102, %v110
    %112 = vst [vmem:[#allocation1] sm:$0xff] %v111
    %s113 = scalar_lea.vmem [#allocation0], 8
    %v114 = vld [vmem:[%s113] sm:$0xff]
    %s115 = scalar_lea.vmem [#allocation1], 8
    %v116 = vld [vmem:[%s115] sm:$0xff]
    %v117 = vmul.f32 %v116, %v84
    %118 = vadd.xlane.f32.xlu0 %v117
    %v119 = vpop.xlane.xlu0 %118
    %v120 = vsub.f32 %v114, %v119
    %v121 = vmul.f32 %v120, %v100
    %v122 = vsel %vm82, %v121, 0.0
    %v123 = vadd.f32 %v116, %v122
    %s124 = scalar_lea.vmem [#allocation1], 8
    %125 = vst [vmem:[%s124] sm:$0xff] %v123
    %vm126 = vcmask 23568
    %s127 = scalar_lea.vmem [#allocation1], 2
    %v128 = vld [vmem:[%s127] ss:$0 sm:$0xff]
    %s129 = scalar_lea.vmem [#allocation0], 2
    %v130 = vld [vmem:[%s129] ss:$0 sm:$0xff]
    %v131 = vmul.f32 %v128, %v128
    %132 = vadd.xlane.f32.xlu0 %v131
    %v133 = vpop.xlane.xlu0 %132
    %v134 = vsub.f32 %v130, %v133
    %v135 = vrsqrt.pop %v134
    %v136 = vmul.f32 %v135, %v134
    %v137 = vmul.f32 %v136, %v135
    %v138 = vmul.f32 0.5, %v137
    %v139 = vsub.f32 1.5, %v138
    %v140 = vmul.f32 %v135, %v139
    %vm141 = vweird.f32 %v134
    %vm142 = vweird.f32 %v135
    %vm143 = vmor %vm141, %vm142
    %v144 = vsel %vm143, %v135, %v140
    %v145 = vld [vmem:[#allocation0] sm:$0xff]
    %v146 = vld [vmem:[#allocation1] sm:$0xff]
    %v147 = vmul.f32 %v146, %v128
    %148 = vadd.xlane.f32.xlu0 %v147
    %v149 = vpop.xlane.xlu0 %148
    %v150 = vsub.f32 %v145, %v149
    %v151 = vmul.f32 %v150, %v144
    %vm152 = vcmask 1047554
    %vm153 = vmand %vm126, %vm152
    %v154 = vsel %vm153, %v151, 0.0
    %v155 = vadd.f32 %v146, %v154
    %156 = vst [vmem:[#allocation1] sm:$0xff] %v155
    %s157 = scalar_lea.vmem [#allocation0], 8
    %v158 = vld [vmem:[%s157] sm:$0xff]
    %s159 = scalar_lea.vmem [#allocation1], 8
    %v160 = vld [vmem:[%s159] sm:$0xff]
    %v161 = vmul.f32 %v160, %v128
    %162 = vadd.xlane.f32.xlu0 %v161
    %v163 = vpop.xlane.xlu0 %162
    %v164 = vsub.f32 %v158, %v163
    %v165 = vmul.f32 %v164, %v144
    %v166 = vsel %vm126, %v165, 0.0
    %v167 = vadd.f32 %v160, %v166
    %s168 = scalar_lea.vmem [#allocation1], 8
    %169 = vst [vmem:[%s168] sm:$0xff] %v167
    %vm170 = vcmask 31768
    %s171 = scalar_lea.vmem [#allocation1], 3
    %v172 = vld [vmem:[%s171] ss:$0 sm:$0xff]
    %s173 = scalar_lea.vmem [#allocation0], 3
    %v174 = vld [vmem:[%s173] ss:$0 sm:$0xff]
    %v175 = vmul.f32 %v172, %v172
    %176 = vadd.xlane.f32.xlu0 %v175
    %v177 = vpop.xlane.xlu0 %176
    %v178 = vsub.f32 %v174, %v177
    %v179 = vrsqrt.pop %v178
    %v180 = vmul.f32 %v179, %v178
    %v181 = vmul.f32 %v180, %v179
    %v182 = vmul.f32 0.5, %v181
    %v183 = vsub.f32 1.5, %v182
    %v184 = vmul.f32 %v179, %v183
    %vm185 = vweird.f32 %v178
    %vm186 = vweird.f32 %v179
    %vm187 = vmor %vm185, %vm186
    %v188 = vsel %vm187, %v179, %v184
    %v189 = vld [vmem:[#allocation0] sm:$0xff]
    %v190 = vld [vmem:[#allocation1] sm:$0xff]
    %v191 = vmul.f32 %v190, %v172
    %192 = vadd.xlane.f32.xlu0 %v191
    %v193 = vpop.xlane.xlu0 %192
    %v194 = vsub.f32 %v189, %v193
    %v195 = vmul.f32 %v194, %v188
    %vm196 = vcmask 1047555
    %vm197 = vmand %vm170, %vm196
    %v198 = vsel %vm197, %v195, 0.0
    %v199 = vadd.f32 %v190, %v198
    %200 = vst [vmem:[#allocation1] sm:$0xff] %v199
    %s201 = scalar_lea.vmem [#allocation0], 8
    %v202 = vld [vmem:[%s201] sm:$0xff]
    %s203 = scalar_lea.vmem [#allocation1], 8
    %v204 = vld [vmem:[%s203] sm:$0xff]
    %v205 = vmul.f32 %v204, %v172
    %206 = vadd.xlane.f32.xlu0 %v205
    %v207 = vpop.xlane.xlu0 %206
    %v208 = vsub.f32 %v202, %v207
    %v209 = vmul.f32 %v208, %v188
    %v210 = vsel %vm170, %v209, 0.0
    %v211 = vadd.f32 %v204, %v210
    %s212 = scalar_lea.vmem [#allocation1], 8
    %213 = vst [vmem:[%s212] sm:$0xff] %v211
    %vm214 = vcmask 39968
    %s215 = scalar_lea.vmem [#allocation1], 4
    %v216 = vld [vmem:[%s215] ss:$0 sm:$0xff]
    %s217 = scalar_lea.vmem [#allocation0], 4
    %v218 = vld [vmem:[%s217] ss:$0 sm:$0xff]
    %v219 = vmul.f32 %v216, %v216
    %220 = vadd.xlane.f32.xlu0 %v219
    %v221 = vpop.xlane.xlu0 %220
    %v222 = vsub.f32 %v218, %v221
    %v223 = vrsqrt.pop %v222
    %v224 = vmul.f32 %v223, %v222
    %v225 = vmul.f32 %v224, %v223
    %v226 = vmul.f32 0.5, %v225
    %v227 = vsub.f32 1.5, %v226
    %v228 = vmul.f32 %v223, %v227
    %vm229 = vweird.f32 %v222
    %vm230 = vweird.f32 %v223
    %vm231 = vmor %vm229, %vm230
    %v232 = vsel %vm231, %v223, %v228
    %v233 = vld [vmem:[#allocation0] sm:$0xff]
    %v234 = vld [vmem:[#allocation1] sm:$0xff]
    %v235 = vmul.f32 %v234, %v216
    %236 = vadd.xlane.f32.xlu0 %v235
    %v237 = vpop.xlane.xlu0 %236
    %v238 = vsub.f32 %v233, %v237
    %v239 = vmul.f32 %v238, %v232
    %vm240 = vcmask 1047556
    %vm241 = vmand %vm214, %vm240
    %v242 = vsel %vm241, %v239, 0.0
    %v243 = vadd.f32 %v234, %v242
    %244 = vst [vmem:[#allocation1] sm:$0xff] %v243
    %s245 = scalar_lea.vmem [#allocation0], 8
    %v246 = vld [vmem:[%s245] sm:$0xff]
    %s247 = scalar_lea.vmem [#allocation1], 8
    %v248 = vld [vmem:[%s247] sm:$0xff]
    %v249 = vmul.f32 %v248, %v216
    %250 = vadd.xlane.f32.xlu0 %v249
    %v251 = vpop.xlane.xlu0 %250
    %v252 = vsub.f32 %v246, %v251
    %v253 = vmul.f32 %v252, %v232
    %v254 = vsel %vm214, %v253, 0.0
    %v255 = vadd.f32 %v248, %v254
    %s256 = scalar_lea.vmem [#allocation1], 8
    %257 = vst [vmem:[%s256] sm:$0xff] %v255
    %vm258 = vcmask 48168
    %s259 = scalar_lea.vmem [#allocation1], 5
    %v260 = vld [vmem:[%s259] ss:$0 sm:$0xff]
    %s261 = scalar_lea.vmem [#allocation0], 5
    %v262 = vld [vmem:[%s261] ss:$0 sm:$0xff]
    %v263 = vmul.f32 %v260, %v260
    %264 = vadd.xlane.f32.xlu0 %v263
    %v265 = vpop.xlane.xlu0 %264
    %v266 = vsub.f32 %v262, %v265
    %v267 = vrsqrt.pop %v266
    %v268 = vmul.f32 %v267, %v266
    %v269 = vmul.f32 %v268, %v267
    %v270 = vmul.f32 0.5, %v269
    %v271 = vsub.f32 1.5, %v270
    %v272 = vmul.f32 %v267, %v271
    %vm273 = vweird.f32 %v266
    %vm274 = vweird.f32 %v267
    %vm275 = vmor %vm273, %vm274
    %v276 = vsel %vm275, %v267, %v272
    %v277 = vld [vmem:[#allocation0] sm:$0xff]
    %v278 = vld [vmem:[#allocation1] sm:$0xff]
    %v279 = vmul.f32 %v278, %v260
    %280 = vadd.xlane.f32.xlu0 %v279
    %v281 = vpop.xlane.xlu0 %280
    %v282 = vsub.f32 %v277, %v281
    %v283 = vmul.f32 %v282, %v276
    %vm284 = vcmask 1047557
    %vm285 = vmand %vm258, %vm284
    %v286 = vsel %vm285, %v283, 0.0
    %v287 = vadd.f32 %v278, %v286
    %288 = vst [vmem:[#allocation1] sm:$0xff] %v287
    %s289 = scalar_lea.vmem [#allocation0], 8
    %v290 = vld [vmem:[%s289] sm:$0xff]
    %s291 = scalar_lea.vmem [#allocation1], 8
    %v292 = vld [vmem:[%s291] sm:$0xff]
    %v293 = vmul.f32 %v292, %v260
    %294 = vadd.xlane.f32.xlu0 %v293
    %v295 = vpop.xlane.xlu0 %294
    %v296 = vsub.f32 %v290, %v295
    %v297 = vmul.f32 %v296, %v276
    %v298 = vsel %vm258, %v297, 0.0
    %v299 = vadd.f32 %v292, %v298
    %s300 = scalar_lea.vmem [#allocation1], 8
    %301 = vst [vmem:[%s300] sm:$0xff] %v299
    %vm302 = vcmask 56368
    %s303 = scalar_lea.vmem [#allocation1], 6
    %v304 = vld [vmem:[%s303] ss:$0 sm:$0xff]
    %s305 = scalar_lea.vmem [#allocation0], 6
    %v306 = vld [vmem:[%s305] ss:$0 sm:$0xff]
    %v307 = vmul.f32 %v304, %v304
    %308 = vadd.xlane.f32.xlu0 %v307
    %v309 = vpop.xlane.xlu0 %308
    %v310 = vsub.f32 %v306, %v309
    %v311 = vrsqrt.pop %v310
    %v312 = vmul.f32 %v311, %v310
    %v313 = vmul.f32 %v312, %v311
    %v314 = vmul.f32 0.5, %v313
    %v315 = vsub.f32 1.5, %v314
    %v316 = vmul.f32 %v311, %v315
    %vm317 = vweird.f32 %v310
    %vm318 = vweird.f32 %v311
    %vm319 = vmor %vm317, %vm318
    %v320 = vsel %vm319, %v311, %v316
    %v321 = vld [vmem:[#allocation0] sm:$0xff]
    %v322 = vld [vmem:[#allocation1] sm:$0xff]
    %v323 = vmul.f32 %v322, %v304
    %324 = vadd.xlane.f32.xlu0 %v323
    %v325 = vpop.xlane.xlu0 %324
    %v326 = vsub.f32 %v321, %v325
    %v327 = vmul.f32 %v326, %v320
    %vm328 = vcmask 1047558
    %vm329 = vmand %vm302, %vm328
    %v330 = vsel %vm329, %v327, 0.0
    %v331 = vadd.f32 %v322, %v330
    %332 = vst [vmem:[#allocation1] sm:$0xff] %v331
    %s333 = scalar_lea.vmem [#allocation0], 8
    %v334 = vld [vmem:[%s333] sm:$0xff]
    %s335 = scalar_lea.vmem [#allocation1], 8
    %v336 = vld [vmem:[%s335] sm:$0xff]
    %v337 = vmul.f32 %v336, %v304
    %338 = vadd.xlane.f32.xlu0 %v337
    %v339 = vpop.xlane.xlu0 %338
    %v340 = vsub.f32 %v334, %v339
    %v341 = vmul.f32 %v340, %v320
    %v342 = vsel %vm302, %v341, 0.0
    %v343 = vadd.f32 %v336, %v342
    %s344 = scalar_lea.vmem [#allocation1], 8
    %345 = vst [vmem:[%s344] sm:$0xff] %v343
    %vm346 = vcmask 64568
    %s347 = scalar_lea.vmem [#allocation1], 7
    %v348 = vld [vmem:[%s347] ss:$0 sm:$0xff]
    %s349 = scalar_lea.vmem [#allocation0], 7
    %v350 = vld [vmem:[%s349] ss:$0 sm:$0xff]
    %v351 = vmul.f32 %v348, %v348
    %352 = vadd.xlane.f32.xlu0 %v351
    %v353 = vpop.xlane.xlu0 %352
    %v354 = vsub.f32 %v350, %v353
    %v355 = vrsqrt.pop %v354
    %v356 = vmul.f32 %v355, %v354
    %v357 = vmul.f32 %v356, %v355
    %v358 = vmul.f32 0.5, %v357
    %v359 = vsub.f32 1.5, %v358
    %v360 = vmul.f32 %v355, %v359
    %vm361 = vweird.f32 %v354
    %vm362 = vweird.f32 %v355
    %vm363 = vmor %vm361, %vm362
    %v364 = vsel %vm363, %v355, %v360
    %v365 = vld [vmem:[#allocation0] sm:$0xff]
    %v366 = vld [vmem:[#allocation1] sm:$0xff]
    %v367 = vmul.f32 %v366, %v348
    %368 = vadd.xlane.f32.xlu0 %v367
    %v369 = vpop.xlane.xlu0 %368
    %v370 = vsub.f32 %v365, %v369
    %v371 = vmul.f32 %v370, %v364
    %vm372 = vcmask 1047559
    %vm373 = vmand %vm346, %vm372
    %v374 = vsel %vm373, %v371, 0.0
    %v375 = vadd.f32 %v366, %v374
    %376 = vst [vmem:[#allocation1] sm:$0xff] %v375
    %s377 = scalar_lea.vmem [#allocation0], 8
    %v378 = vld [vmem:[%s377] sm:$0xff]
    %s379 = scalar_lea.vmem [#allocation1], 8
    %v380 = vld [vmem:[%s379] sm:$0xff]
    %v381 = vmul.f32 %v380, %v348
    %382 = vadd.xlane.f32.xlu0 %v381
    %v383 = vpop.xlane.xlu0 %382
    %v384 = vsub.f32 %v378, %v383
    %v385 = vmul.f32 %v384, %v364
    %v386 = vsel %vm346, %v385, 0.0
    %v387 = vadd.f32 %v380, %v386
    %s388 = scalar_lea.vmem [#allocation1], 8
    %389 = vst [vmem:[%s388] sm:$0xff] %v387
    %vm390 = vcmask 72768
    %s391 = scalar_lea.vmem [#allocation1], 8
    %v392 = vld [vmem:[%s391] ss:$0 sm:$0xff]
    %s393 = scalar_lea.vmem [#allocation0], 8
    %v394 = vld [vmem:[%s393] ss:$0 sm:$0xff]
    %v395 = vmul.f32 %v392, %v392
    %396 = vadd.xlane.f32.xlu0 %v395
    %v397 = vpop.xlane.xlu0 %396
    %v398 = vsub.f32 %v394, %v397
    %v399 = vrsqrt.pop %v398
    %v400 = vmul.f32 %v399, %v398
    %v401 = vmul.f32 %v400, %v399
    %v402 = vmul.f32 0.5, %v401
    %v403 = vsub.f32 1.5, %v402
    %v404 = vmul.f32 %v399, %v403
    %vm405 = vweird.f32 %v398
    %vm406 = vweird.f32 %v399
    %vm407 = vmor %vm405, %vm406
    %v408 = vsel %vm407, %v399, %v404
    %s409 = scalar_lea.vmem [#allocation0], 8
    %v410 = vld [vmem:[%s409] sm:$0xff]
    %s411 = scalar_lea.vmem [#allocation1], 8
    %v412 = vld [vmem:[%s411] sm:$0xff]
    %v413 = vmul.f32 %v412, %v392
    %414 = vadd.xlane.f32.xlu0 %v413
    %v415 = vpop.xlane.xlu0 %414
    %v416 = vsub.f32 %v410, %v415
    %v417 = vmul.f32 %v416, %v408
    %v418 = vsel %vm390, %v417, 0.0
    %v419 = vadd.f32 %v412, %v418
    %s420 = scalar_lea.vmem [#allocation1], 8
    %421 = vst [vmem:[%s420] sm:$0xff] %v419
    %vm422 = vcmask 80968
    %s423 = scalar_lea.vmem [#allocation1], 9
    %v424 = vld [vmem:[%s423] ss:$0 sm:$0xff]
    %s425 = scalar_lea.vmem [#allocation0], 9
    %v426 = vld [vmem:[%s425] ss:$0 sm:$0xff]
    %v427 = vmul.f32 %v424, %v424
    %428 = vadd.xlane.f32.xlu0 %v427
    %v429 = vpop.xlane.xlu0 %428
    %v430 = vsub.f32 %v426, %v429
    %v431 = vrsqrt.pop %v430
    %v432 = vmul.f32 %v431, %v430
    %v433 = vmul.f32 %v432, %v431
    %v434 = vmul.f32 0.5, %v433
    %v435 = vsub.f32 1.5, %v434
    %v436 = vmul.f32 %v431, %v435
    %vm437 = vweird.f32 %v430
    %vm438 = vweird.f32 %v431
    %vm439 = vmor %vm437, %vm438
    %v440 = vsel %vm439, %v431, %v436
    %s441 = scalar_lea.vmem [#allocation0], 8
    %v442 = vld [vmem:[%s441] sm:$0xff]
    %s443 = scalar_lea.vmem [#allocation1], 8
    %v444 = vld [vmem:[%s443] sm:$0xff]
    %v445 = vmul.f32 %v444, %v424
    %446 = vadd.xlane.f32.xlu0 %v445
    %v447 = vpop.xlane.xlu0 %446
    %v448 = vsub.f32 %v442, %v447
    %v449 = vmul.f32 %v448, %v440
    %vm450 = vcmask 1047553
    %vm451 = vmand %vm422, %vm450
    %v452 = vsel %vm451, %v449, 0.0
    %v453 = vadd.f32 %v444, %v452
    %s454 = scalar_lea.vmem [#allocation1], 8
    %455 = vst [vmem:[%s454] sm:$0xff] %v453
    %vm456 = vcmask 89168
    %s457 = scalar_lea.vmem [#allocation1], 10
    %v458 = vld [vmem:[%s457] ss:$0 sm:$0xff]
    %s459 = scalar_lea.vmem [#allocation0], 10
    %v460 = vld [vmem:[%s459] ss:$0 sm:$0xff]
    %v461 = vmul.f32 %v458, %v458
    %462 = vadd.xlane.f32.xlu0 %v461
    %v463 = vpop.xlane.xlu0 %462
    %v464 = vsub.f32 %v460, %v463
    %v465 = vrsqrt.pop %v464
    %v466 = vmul.f32 %v465, %v464
    %v467 = vmul.f32 %v466, %v465
    %v468 = vmul.f32 0.5, %v467
    %v469 = vsub.f32 1.5, %v468
    %v470 = vmul.f32 %v465, %v469
    %vm471 = vweird.f32 %v464
    %vm472 = vweird.f32 %v465
    %vm473 = vmor %vm471, %vm472
    %v474 = vsel %vm473, %v465, %v470
    %s475 = scalar_lea.vmem [#allocation0], 8
    %v476 = vld [vmem:[%s475] sm:$0xff]
    %s477 = scalar_lea.vmem [#allocation1], 8
    %v478 = vld [vmem:[%s477] sm:$0xff]
    %v479 = vmul.f32 %v478, %v458
    %480 = vadd.xlane.f32.xlu0 %v479
    %v481 = vpop.xlane.xlu0 %480
    %v482 = vsub.f32 %v476, %v481
    %v483 = vmul.f32 %v482, %v474
    %vm484 = vcmask 1047554
    %vm485 = vmand %vm456, %vm484
    %v486 = vsel %vm485, %v483, 0.0
    %v487 = vadd.f32 %v478, %v486
    %s488 = scalar_lea.vmem [#allocation1], 8
    %489 = vst [vmem:[%s488] sm:$0xff] %v487
    %vm490 = vcmask 97368
    %s491 = scalar_lea.vmem [#allocation1], 11
    %v492 = vld [vmem:[%s491] ss:$0 sm:$0xff]
    %s493 = scalar_lea.vmem [#allocation0], 11
    %v494 = vld [vmem:[%s493] ss:$0 sm:$0xff]
    %v495 = vmul.f32 %v492, %v492
    %496 = vadd.xlane.f32.xlu0 %v495
    %v497 = vpop.xlane.xlu0 %496
    %v498 = vsub.f32 %v494, %v497
    %v499 = vrsqrt.pop %v498
    %v500 = vmul.f32 %v499, %v498
    %v501 = vmul.f32 %v500, %v499
    %v502 = vmul.f32 0.5, %v501
    %v503 = vsub.f32 1.5, %v502
    %v504 = vmul.f32 %v499, %v503
    %vm505 = vweird.f32 %v498
    %vm506 = vweird.f32 %v499
    %vm507 = vmor %vm505, %vm506
    %v508 = vsel %vm507, %v499, %v504
    %s509 = scalar_lea.vmem [#allocation0], 8
    %v510 = vld [vmem:[%s509] sm:$0xff]
    %s511 = scalar_lea.vmem [#allocation1], 8
    %v512 = vld [vmem:[%s511] sm:$0xff]
    %v513 = vmul.f32 %v512, %v492
    %514 = vadd.xlane.f32.xlu0 %v513
    %v515 = vpop.xlane.xlu0 %514
    %v516 = vsub.f32 %v510, %v515
    %v517 = vmul.f32 %v516, %v508
    %vm518 = vcmask 1047555
    %vm519 = vmand %vm490, %vm518
    %v520 = vsel %vm519, %v517, 0.0
    %v521 = vadd.f32 %v512, %v520
    %s522 = scalar_lea.vmem [#allocation1], 8
    %523 = vst [vmem:[%s522] sm:$0xff] %v521
    %vm524 = vcmask 105568
    %s525 = scalar_lea.vmem [#allocation1], 12
    %v526 = vld [vmem:[%s525] ss:$0 sm:$0xff]
    %s527 = scalar_lea.vmem [#allocation0], 12
    %v528 = vld [vmem:[%s527] ss:$0 sm:$0xff]
    %v529 = vmul.f32 %v526, %v526
    %530 = vadd.xlane.f32.xlu0 %v529
    %v531 = vpop.xlane.xlu0 %530
    %v532 = vsub.f32 %v528, %v531
    %v533 = vrsqrt.pop %v532
    %v534 = vmul.f32 %v533, %v532
    %v535 = vmul.f32 %v534, %v533
    %v536 = vmul.f32 0.5, %v535
    %v537 = vsub.f32 1.5, %v536
    %v538 = vmul.f32 %v533, %v537
    %vm539 = vweird.f32 %v532
    %vm540 = vweird.f32 %v533
    %vm541 = vmor %vm539, %vm540
    %v542 = vsel %vm541, %v533, %v538
    %s543 = scalar_lea.vmem [#allocation0], 8
    %v544 = vld [vmem:[%s543] sm:$0xff]
    %s545 = scalar_lea.vmem [#allocation1], 8
    %v546 = vld [vmem:[%s545] sm:$0xff]
    %v547 = vmul.f32 %v546, %v526
    %548 = vadd.xlane.f32.xlu0 %v547
    %v549 = vpop.xlane.xlu0 %548
    %v550 = vsub.f32 %v544, %v549
    %v551 = vmul.f32 %v550, %v542
    %vm552 = vcmask 1047556
    %vm553 = vmand %vm524, %vm552
    %v554 = vsel %vm553, %v551, 0.0
    %v555 = vadd.f32 %v546, %v554
    %s556 = scalar_lea.vmem [#allocation1], 8
    %557 = vst [vmem:[%s556] sm:$0xff] %v555
    %vm558 = vcmask 113768
    %s559 = scalar_lea.vmem [#allocation1], 13
    %v560 = vld [vmem:[%s559] ss:$0 sm:$0xff]
    %s561 = scalar_lea.vmem [#allocation0], 13
    %v562 = vld [vmem:[%s561] ss:$0 sm:$0xff]
    %v563 = vmul.f32 %v560, %v560
    %564 = vadd.xlane.f32.xlu0 %v563
    %v565 = vpop.xlane.xlu0 %564
    %v566 = vsub.f32 %v562, %v565
    %v567 = vrsqrt.pop %v566
    %v568 = vmul.f32 %v567, %v566
    %v569 = vmul.f32 %v568, %v567
    %v570 = vmul.f32 0.5, %v569
    %v571 = vsub.f32 1.5, %v570
    %v572 = vmul.f32 %v567, %v571
    %vm573 = vweird.f32 %v566
    %vm574 = vweird.f32 %v567
    %vm575 = vmor %vm573, %vm574
    %v576 = vsel %vm575, %v567, %v572
    %s577 = scalar_lea.vmem [#allocation0], 8
    %v578 = vld [vmem:[%s577] sm:$0xff]
    %s579 = scalar_lea.vmem [#allocation1], 8
    %v580 = vld [vmem:[%s579] sm:$0xff]
    %v581 = vmul.f32 %v580, %v560
    %582 = vadd.xlane.f32.xlu0 %v581
    %v583 = vpop.xlane.xlu0 %582
    %v584 = vsub.f32 %v578, %v583
    %v585 = vmul.f32 %v584, %v576
    %vm586 = vcmask 1047557
    %vm587 = vmand %vm558, %vm586
    %v588 = vsel %vm587, %v585, 0.0
    %v589 = vadd.f32 %v580, %v588
    %s590 = scalar_lea.vmem [#allocation1], 8
    %591 = vst [vmem:[%s590] sm:$0xff] %v589
    %vm592 = vcmask 121968
    %s593 = scalar_lea.vmem [#allocation1], 14
    %v594 = vld [vmem:[%s593] ss:$0 sm:$0xff]
    %s595 = scalar_lea.vmem [#allocation0], 14
    %v596 = vld [vmem:[%s595] ss:$0 sm:$0xff]
    %v597 = vmul.f32 %v594, %v594
    %598 = vadd.xlane.f32.xlu0 %v597
    %v599 = vpop.xlane.xlu0 %598
    %v600 = vsub.f32 %v596, %v599
    %v601 = vrsqrt.pop %v600
    %v602 = vmul.f32 %v601, %v600
    %v603 = vmul.f32 %v602, %v601
    %v604 = vmul.f32 0.5, %v603
    %v605 = vsub.f32 1.5, %v604
    %v606 = vmul.f32 %v601, %v605
    %vm607 = vweird.f32 %v600
    %vm608 = vweird.f32 %v601
    %vm609 = vmor %vm607, %vm608
    %v610 = vsel %vm609, %v601, %v606
    %s611 = scalar_lea.vmem [#allocation0], 8
    %v612 = vld [vmem:[%s611] sm:$0xff]
    %s613 = scalar_lea.vmem [#allocation1], 8
    %v614 = vld [vmem:[%s613] sm:$0xff]
    %v615 = vmul.f32 %v614, %v594
    %616 = vadd.xlane.f32.xlu0 %v615
    %v617 = vpop.xlane.xlu0 %616
    %v618 = vsub.f32 %v612, %v617
    %v619 = vmul.f32 %v618, %v610
    %vm620 = vcmask 1047558
    %vm621 = vmand %vm592, %vm620
    %v622 = vsel %vm621, %v619, 0.0
    %v623 = vadd.f32 %v614, %v622
    %s624 = scalar_lea.vmem [#allocation1], 8
    %625 = vst [vmem:[%s624] sm:$0xff] %v623
    %vm626 = vcmask 130168
    %s627 = scalar_lea.vmem [#allocation1], 15
    %v628 = vld [vmem:[%s627] ss:$0 sm:$0xff]
    %s629 = scalar_lea.vmem [#allocation0], 15
    %v630 = vld [vmem:[%s629] ss:$0 sm:$0xff]
    %v631 = vmul.f32 %v628, %v628
    %632 = vadd.xlane.f32.xlu0 %v631
    %v633 = vpop.xlane.xlu0 %632
    %v634 = vsub.f32 %v630, %v633
    %v635 = vrsqrt.pop %v634
    %v636 = vmul.f32 %v635, %v634
    %v637 = vmul.f32 %v636, %v635
    %v638 = vmul.f32 0.5, %v637
    %v639 = vsub.f32 1.5, %v638
    %v640 = vmul.f32 %v635, %v639
    %vm641 = vweird.f32 %v634
    %vm642 = vweird.f32 %v635
    %vm643 = vmor %vm641, %vm642
    %v644 = vsel %vm643, %v635, %v640
    %s645 = scalar_lea.vmem [#allocation0], 8
    %v646 = vld [vmem:[%s645] sm:$0xff]
    %s647 = scalar_lea.vmem [#allocation1], 8
    %v648 = vld [vmem:[%s647] sm:$0xff]
    %v649 = vmul.f32 %v648, %v628
    %650 = vadd.xlane.f32.xlu0 %v649
    %v651 = vpop.xlane.xlu0 %650
    %v652 = vsub.f32 %v646, %v651
    %v653 = vmul.f32 %v652, %v644
    %vm654 = vcmask 1047559
    %vm655 = vmand %vm626, %vm654
    %v656 = vsel %vm655, %v653, 0.0
    %v657 = vadd.f32 %v648, %v656
    %s658 = scalar_lea.vmem [#allocation1], 8
    %659 = vst [vmem:[%s658] sm:$0xff] %v657
    // Predicated region
    $region36: #{custom-call.4} parent=1 // pred_check
      _
    $region37: #{custom-call.4} parent=1 // pred_check_branch
      %661 = sbr.rel (0) target = $region39
    $region38: #{custom-call.4} parent=1 // pred_region
      // Predicated region
      $region40: #{custom-call.4} parent=38 // pred_check
        _
      $region41: #{custom-call.4} parent=38 // pred_check_branch
        %663 = sbr.rel (0) target = $region43
      $region42: #{custom-call.4} parent=38 // pred_region
        // Predicated region
        $region55: #{custom-call.4} parent=42 // pred_check
          _
        $region56: #{custom-call.4} parent=42 // pred_check_branch
          %681 = sbr.rel (0) target = $region58
        $region57: #{custom-call.4} parent=42 // pred_region
          loop: start=0, step=1, limit=1
          $region59: #{custom-call.4} parent=57 // loop_pre_header
            _
          $region60: #{custom-call.4} parent=57 // loop_header
            %s683 = sphi 0, %s687
            %p684 = scmp.ge.s32.totalorder %s683, 1
            %s688 = sphi [#allocation1], [#allocation1]
            %s689 = sphi %s1, %s1
          $region61: #{custom-call.4} parent=57 // loop_header_branch
            %686 = sbr.rel (%p684) target = $region65
          $region62: #{custom-call.4} parent=57 // loop_body
            %v690 = vld [vmem:[%s688] sm:$0xff]
            %691 = vst [vmem:[%s689] sm:$0xff] %v690
            %v692 = vld [vmem:[%s688 + $0x8] sm:$0xff]
            %693 = vst [vmem:[%s689 + $0x8] sm:$0xff] %v692
          $region63: #{custom-call.4} parent=57 // loop_footer
            %s687 = sadd.s32 1, %s683
          $region64: #{custom-call.4} parent=57 // loop_footer_branch
            %682 = sbr.rel target = $region60
          $region65: #{custom-call.4} parent=57 // loop_exit
            _
        $region58: #{custom-call.4} parent=42 // pred_fallthru
          _
        // Predicated region
        $region66: #{custom-call.4} parent=42 // pred_check
          _
        $region67: #{custom-call.4} parent=42 // pred_check_branch
          %695 = sbr.rel target = $region69
        $region68: #{custom-call.4} parent=42 // pred_region
          _
        $region69: #{custom-call.4} parent=42 // pred_fallthru
          _
      $region43: #{custom-call.4} parent=38 // pred_fallthru
        _
      // Predicated region
      $region44: #{custom-call.4} parent=38 // pred_check
        _
      $region45: #{custom-call.4} parent=38 // pred_check_branch
        %665 = sbr.rel target = $region47
      $region46: #{custom-call.4} parent=38 // pred_region
        %s667 = ssub.s32 256, 1
        loop: start=0, step=1, limit=1
        $region48: #{custom-call.4} parent=46 // loop_pre_header
          _
        $region49: #{custom-call.4} parent=46 // loop_header
          %s669 = sphi 0, %s673
          %p670 = scmp.ge.s32.totalorder %s669, 1
          %s674 = sphi [#allocation1], [#allocation1]
          %s675 = sphi %s1, %s1
        $region50: #{custom-call.4} parent=46 // loop_header_branch
          %672 = sbr.rel (%p670) target = $region54
        $region51: #{custom-call.4} parent=46 // loop_body
          %v676 = vld [vmem:[%s674] sm:%s667]
          %677 = vst [vmem:[%s675] sm:%s667] %v676
          %v678 = vld [vmem:[%s674 + $0x8] sm:%s667]
          %679 = vst [vmem:[%s675 + $0x8] sm:%s667] %v678
        $region52: #{custom-call.4} parent=46 // loop_footer
          %s673 = sadd.s32 1, %s669
        $region53: #{custom-call.4} parent=46 // loop_footer_branch
          %668 = sbr.rel target = $region49
        $region54: #{custom-call.4} parent=46 // loop_exit
          _
      $region47: #{custom-call.4} parent=38 // pred_fallthru
        _
    $region39: #{custom-call.4} parent=1 // pred_fallthru
      _
    %696 = vnop

// kernel: custom-call.5
$region0: #{custom-call.5}
  %s0 = inlined_call_operand.vmem [shape: f32[1,16,16], index: 0, kind: input, shape index: {}]
  %s1 = inlined_call_operand.vmem [shape: f32[1,16,16], index: 1, kind: output, shape index: {}]
  $region1: #{custom-call.5} parent=0
    #allocation0 [shape = 'u8[8192]{0}', space=vmem, size = 0x2000, scoped, tag = 'operand span for operand 0']
    #allocation1 [shape = 'u8[8192]{0}', space=vmem, size = 0x2000, scoped, tag = 'operand span for operand 1']
    #allocation2 [shape = 'f32[16,16]{1,0}', space=vmem, size = 0x2000, scoped, tag = 'rescaled input a']
    // Predicated region
    $region2: #{custom-call.5} parent=1 // pred_check
      _
    $region3: #{custom-call.5} parent=1 // pred_check_branch
      %3 = sbr.rel (0) target = $region5
    $region4: #{custom-call.5} parent=1 // pred_region
      // Predicated region
      $region6: #{custom-call.5} parent=4 // pred_check
        _
      $region7: #{custom-call.5} parent=4 // pred_check_branch
        %5 = sbr.rel (0) target = $region9
      $region8: #{custom-call.5} parent=4 // pred_region
        // Predicated region
        $region21: #{custom-call.5} parent=8 // pred_check
          _
        $region22: #{custom-call.5} parent=8 // pred_check_branch
          %23 = sbr.rel (0) target = $region24
        $region23: #{custom-call.5} parent=8 // pred_region
          loop: start=0, step=1, limit=1
          $region25: #{custom-call.5} parent=23 // loop_pre_header
            _
          $region26: #{custom-call.5} parent=23 // loop_header
            %s25 = sphi 0, %s29
            %p26 = scmp.ge.s32.totalorder %s25, 1
            %s30 = sphi %s0, %s0
            %s31 = sphi [#allocation0], [#allocation0]
          $region27: #{custom-call.5} parent=23 // loop_header_branch
            %28 = sbr.rel (%p26) target = $region31
          $region28: #{custom-call.5} parent=23 // loop_body
            %v32 = vld [vmem:[%s30] sm:$0xff]
            %33 = vst [vmem:[%s31] sm:$0xff] %v32
            %v34 = vld [vmem:[%s30 + $0x8] sm:$0xff]
            %35 = vst [vmem:[%s31 + $0x8] sm:$0xff] %v34
          $region29: #{custom-call.5} parent=23 // loop_footer
            %s29 = sadd.s32 1, %s25
          $region30: #{custom-call.5} parent=23 // loop_footer_branch
            %24 = sbr.rel target = $region26
          $region31: #{custom-call.5} parent=23 // loop_exit
            _
        $region24: #{custom-call.5} parent=8 // pred_fallthru
          _
        // Predicated region
        $region32: #{custom-call.5} parent=8 // pred_check
          _
        $region33: #{custom-call.5} parent=8 // pred_check_branch
          %37 = sbr.rel target = $region35
        $region34: #{custom-call.5} parent=8 // pred_region
          _
        $region35: #{custom-call.5} parent=8 // pred_fallthru
          _
      $region9: #{custom-call.5} parent=4 // pred_fallthru
        _
      // Predicated region
      $region10: #{custom-call.5} parent=4 // pred_check
        _
      $region11: #{custom-call.5} parent=4 // pred_check_branch
        %7 = sbr.rel target = $region13
      $region12: #{custom-call.5} parent=4 // pred_region
        %s9 = ssub.s32 256, 1
        loop: start=0, step=1, limit=1
        $region14: #{custom-call.5} parent=12 // loop_pre_header
          _
        $region15: #{custom-call.5} parent=12 // loop_header
          %s11 = sphi 0, %s15
          %p12 = scmp.ge.s32.totalorder %s11, 1
          %s16 = sphi %s0, %s0
          %s17 = sphi [#allocation0], [#allocation0]
        $region16: #{custom-call.5} parent=12 // loop_header_branch
          %14 = sbr.rel (%p12) target = $region20
        $region17: #{custom-call.5} parent=12 // loop_body
          %v18 = vld [vmem:[%s16] sm:%s9]
          %19 = vst [vmem:[%s17] sm:%s9] %v18
          %v20 = vld [vmem:[%s16 + $0x8] sm:%s9]
          %21 = vst [vmem:[%s17 + $0x8] sm:%s9] %v20
        $region18: #{custom-call.5} parent=12 // loop_footer
          %s15 = sadd.s32 1, %s11
        $region19: #{custom-call.5} parent=12 // loop_footer_branch
          %10 = sbr.rel target = $region15
        $region20: #{custom-call.5} parent=12 // loop_exit
          _
      $region13: #{custom-call.5} parent=4 // pred_fallthru
        _
    $region5: #{custom-call.5} parent=1 // pred_fallthru
      _
    %38 = vnop
    %v39 = vlaneseq
    %v40 = vand.u32 %v39, 127
    %vm41 = vcmp.lt.s32.totalorder %v40, 16
    %v42 = vlaneseq
    %v43 = vshrl.u32 %v42, 7
    %vm45 = vcmp.eq.s32.totalorder %v43, %v40
    %v46 = vld [vmem:[#allocation0] sm:$0xff]
    %v47 = vsel %vm45, %v46, 0.0
    %48 = vadd.xlane.f32.xlu0 %v47
    %v49 = vpop.xlane.xlu0 %48
    %vm50 = vcmp.ge.s32.totalorder %v43, %v40
    %vm51 = vmand %vm50, %vm41
    %v52 = vsel %vm51, %v46, 0.0
    %v53 = vrcp.pop %v49
    %v54 = vmul.f32 %v49, %v53
    %v55 = vsub.f32 1.0, %v54
    %v56 = vmul.f32 %v53, %v55
    %v57 = vadd.f32 %v53, %v56
    %vm58 = vweird.f32 %v49
    %vm59 = vweird.f32 %v53
    %vm60 = vmor %vm58, %vm59
    %v61 = vsel %vm60, %v53, %v57
    %v62 = vand.u32 2147483647, %v49
    %vm63 = vcmp.eq.f32.partialorder %v62, 8.507059e+37
    %v64 = vand.u32 %v49, 2147483648
    %v65 = vor.u32 1.1754944e-38, %v64
    %v66 = vsel %vm63, %v65, %v61
    %v67 = vmul.f32 %v52, %v66
    %68 = vst [vmem:[#allocation2] sm:$0xff] %v67
    %s69 = scalar_lea.vmem [#allocation0], 8
    %s70 = scalar_lea.vmem [#allocation2], 8
    %v71 = vlaneseq
    %v72 = vshrl.u32 %v71, 7
    %v73 = vadd.s32 %v72, 8
    %vm74 = vcmp.eq.s32.totalorder %v73, %v40
    %v75 = vld [vmem:[%s69] sm:$0xff]
    %v76 = vsel %vm74, %v75, 0.0
    %77 = vadd.xlane.f32.xlu0 %v76
    %v78 = vpop.xlane.xlu0 %77
    %vm79 = vcmp.ge.s32.totalorder %v73, %v40
    %vm80 = vmand %vm79, %vm41
    %v81 = vsel %vm80, %v75, 0.0
    %v82 = vrcp.pop %v78
    %v83 = vmul.f32 %v78, %v82
    %v84 = vsub.f32 1.0, %v83
    %v85 = vmul.f32 %v82, %v84
    %v86 = vadd.f32 %v82, %v85
    %vm87 = vweird.f32 %v78
    %vm88 = vweird.f32 %v82
    %vm89 = vmor %vm87, %vm88
    %v90 = vsel %vm89, %v82, %v86
    %v91 = vand.u32 2147483647, %v78
    %vm92 = vcmp.eq.f32.partialorder %v91, 8.507059e+37
    %v93 = vand.u32 %v78, 2147483648
    %v94 = vor.u32 1.1754944e-38, %v93
    %v95 = vsel %vm92, %v94, %v90
    %v96 = vmul.f32 %v81, %v95
    %97 = vst [vmem:[%s70] sm:$0xff] %v96
    %v98 = vlaneseq
    %v99 = vand.u32 %v98, 127
    %v100 = vlaneseq
    %v101 = vshrl.u32 %v100, 7
    %vm103 = vcmp.eq.s32.totalorder %v99, %v101
    %v104 = vlaneseq
    %v105 = vand.u32 %v104, 127
    %vm106 = vcmp.eq.s32.totalorder %v105, 0
    %v107 = vsel %vm106, 1.0, -1.0
    %v108 = vsel %vm103, %v107, 0.0
    %v109 = vlaneseq
    %v110 = vand.u32 %v109, 127
    %v111 = vlaneseq
    %v112 = vshrl.u32 %v111, 7
    %v113 = vadd.s32 %v112, 8
    %vm114 = vcmp.eq.s32.totalorder %v110, %v113
    %v115 = vsel %vm114, -1.0, 0.0
    %s116 = scalar_lea.vmem [#allocation2], 1
    %v117 = vld [vmem:[%s116] ss:$0 sm:$0xff]
    %v118 = vxor.u32 %v117, 2147483648
    %v119 = vlaneseq
    %v120 = vand.u32 %v119, 127
    %vm121 = vcmp.eq.s32.totalorder %v120, 1
    %v122 = vmul.f32 %v118, %v108
    %123 = vadd.xlane.f32.xlu0 %v122
    %v124 = vpop.xlane.xlu0 %123
    %v125 = vsel %vm121, %v124, %v108
    %s126 = scalar_lea.vmem [#allocation2], 2
    %v127 = vld [vmem:[%s126] ss:$0 sm:$0xff]
    %v128 = vxor.u32 %v127, 2147483648
    %v129 = vlaneseq
    %v130 = vand.u32 %v129, 127
    %vm131 = vcmp.eq.s32.totalorder %v130, 2
    %v132 = vmul.f32 %v128, %v125
    %133 = vadd.xlane.f32.xlu0 %v132
    %v134 = vpop.xlane.xlu0 %133
    %v135 = vsel %vm131, %v134, %v125
    %s136 = scalar_lea.vmem [#allocation2], 3
    %v137 = vld [vmem:[%s136] ss:$0 sm:$0xff]
    %v138 = vxor.u32 %v137, 2147483648
    %v139 = vlaneseq
    %v140 = vand.u32 %v139, 127
    %vm141 = vcmp.eq.s32.totalorder %v140, 3
    %v142 = vmul.f32 %v138, %v135
    %143 = vadd.xlane.f32.xlu0 %v142
    %v144 = vpop.xlane.xlu0 %143
    %v145 = vsel %vm141, %v144, %v135
    %s146 = scalar_lea.vmem [#allocation2], 4
    %v147 = vld [vmem:[%s146] ss:$0 sm:$0xff]
    %v148 = vxor.u32 %v147, 2147483648
    %v149 = vlaneseq
    %v150 = vand.u32 %v149, 127
    %vm151 = vcmp.eq.s32.totalorder %v150, 4
    %v152 = vmul.f32 %v148, %v145
    %153 = vadd.xlane.f32.xlu0 %v152
    %v154 = vpop.xlane.xlu0 %153
    %v155 = vsel %vm151, %v154, %v145
    %s156 = scalar_lea.vmem [#allocation2], 5
    %v157 = vld [vmem:[%s156] ss:$0 sm:$0xff]
    %v158 = vxor.u32 %v157, 2147483648
    %v159 = vlaneseq
    %v160 = vand.u32 %v159, 127
    %vm161 = vcmp.eq.s32.totalorder %v160, 5
    %v162 = vmul.f32 %v158, %v155
    %163 = vadd.xlane.f32.xlu0 %v162
    %v164 = vpop.xlane.xlu0 %163
    %v165 = vsel %vm161, %v164, %v155
    %s166 = scalar_lea.vmem [#allocation2], 6
    %v167 = vld [vmem:[%s166] ss:$0 sm:$0xff]
    %v168 = vxor.u32 %v167, 2147483648
    %v169 = vlaneseq
    %v170 = vand.u32 %v169, 127
    %vm171 = vcmp.eq.s32.totalorder %v170, 6
    %v172 = vmul.f32 %v168, %v165
    %173 = vadd.xlane.f32.xlu0 %v172
    %v174 = vpop.xlane.xlu0 %173
    %v175 = vsel %vm171, %v174, %v165
    %s176 = scalar_lea.vmem [#allocation2], 7
    %v177 = vld [vmem:[%s176] ss:$0 sm:$0xff]
    %v178 = vxor.u32 %v177, 2147483648
    %v179 = vlaneseq
    %v180 = vand.u32 %v179, 127
    %vm181 = vcmp.eq.s32.totalorder %v180, 7
    %v182 = vmul.f32 %v178, %v175
    %183 = vadd.xlane.f32.xlu0 %v182
    %v184 = vpop.xlane.xlu0 %183
    %v185 = vsel %vm181, %v184, %v175
    %s186 = scalar_lea.vmem [#allocation2], 8
    %v187 = vld [vmem:[%s186] ss:$0 sm:$0xff]
    %v188 = vxor.u32 %v187, 2147483648
    %v189 = vlaneseq
    %v190 = vand.u32 %v189, 127
    %vm191 = vcmp.eq.s32.totalorder %v190, 8
    %v192 = vmul.f32 %v188, %v185
    %193 = vadd.xlane.f32.xlu0 %v192
    %v194 = vpop.xlane.xlu0 %193
    %v195 = vsel %vm191, %v194, %v185
    %v196 = vmul.f32 %v188, %v115
    %197 = vadd.xlane.f32.xlu0 %v196
    %v198 = vpop.xlane.xlu0 %197
    %v199 = vsel %vm191, %v198, %v115
    %s200 = scalar_lea.vmem [#allocation2], 9
    %v201 = vld [vmem:[%s200] ss:$0 sm:$0xff]
    %v202 = vxor.u32 %v201, 2147483648
    %v203 = vlaneseq
    %v204 = vand.u32 %v203, 127
    %vm205 = vcmp.eq.s32.totalorder %v204, 9
    %v206 = vmul.f32 %v202, %v195
    %207 = vadd.xlane.f32.xlu0 %v206
    %v208 = vpop.xlane.xlu0 %207
    %v209 = vsel %vm205, %v208, %v195
    %v210 = vmul.f32 %v202, %v199
    %211 = vadd.xlane.f32.xlu0 %v210
    %v212 = vpop.xlane.xlu0 %211
    %v213 = vsel %vm205, %v212, %v199
    %s214 = scalar_lea.vmem [#allocation2], 10
    %v215 = vld [vmem:[%s214] ss:$0 sm:$0xff]
    %v216 = vxor.u32 %v215, 2147483648
    %v217 = vlaneseq
    %v218 = vand.u32 %v217, 127
    %vm219 = vcmp.eq.s32.totalorder %v218, 10
    %v220 = vmul.f32 %v216, %v209
    %221 = vadd.xlane.f32.xlu0 %v220
    %v222 = vpop.xlane.xlu0 %221
    %v223 = vsel %vm219, %v222, %v209
    %v224 = vmul.f32 %v216, %v213
    %225 = vadd.xlane.f32.xlu0 %v224
    %v226 = vpop.xlane.xlu0 %225
    %v227 = vsel %vm219, %v226, %v213
    %s228 = scalar_lea.vmem [#allocation2], 11
    %v229 = vld [vmem:[%s228] ss:$0 sm:$0xff]
    %v230 = vxor.u32 %v229, 2147483648
    %v231 = vlaneseq
    %v232 = vand.u32 %v231, 127
    %vm233 = vcmp.eq.s32.totalorder %v232, 11
    %v234 = vmul.f32 %v230, %v223
    %235 = vadd.xlane.f32.xlu0 %v234
    %v236 = vpop.xlane.xlu0 %235
    %v237 = vsel %vm233, %v236, %v223
    %v238 = vmul.f32 %v230, %v227
    %239 = vadd.xlane.f32.xlu0 %v238
    %v240 = vpop.xlane.xlu0 %239
    %v241 = vsel %vm233, %v240, %v227
    %s242 = scalar_lea.vmem [#allocation2], 12
    %v243 = vld [vmem:[%s242] ss:$0 sm:$0xff]
    %v244 = vxor.u32 %v243, 2147483648
    %v245 = vlaneseq
    %v246 = vand.u32 %v245, 127
    %vm247 = vcmp.eq.s32.totalorder %v246, 12
    %v248 = vmul.f32 %v244, %v237
    %249 = vadd.xlane.f32.xlu0 %v248
    %v250 = vpop.xlane.xlu0 %249
    %v251 = vsel %vm247, %v250, %v237
    %v252 = vmul.f32 %v244, %v241
    %253 = vadd.xlane.f32.xlu0 %v252
    %v254 = vpop.xlane.xlu0 %253
    %v255 = vsel %vm247, %v254, %v241
    %s256 = scalar_lea.vmem [#allocation2], 13
    %v257 = vld [vmem:[%s256] ss:$0 sm:$0xff]
    %v258 = vxor.u32 %v257, 2147483648
    %v259 = vlaneseq
    %v260 = vand.u32 %v259, 127
    %vm261 = vcmp.eq.s32.totalorder %v260, 13
    %v262 = vmul.f32 %v258, %v251
    %263 = vadd.xlane.f32.xlu0 %v262
    %v264 = vpop.xlane.xlu0 %263
    %v265 = vsel %vm261, %v264, %v251
    %v266 = vmul.f32 %v258, %v255
    %267 = vadd.xlane.f32.xlu0 %v266
    %v268 = vpop.xlane.xlu0 %267
    %v269 = vsel %vm261, %v268, %v255
    %s270 = scalar_lea.vmem [#allocation2], 14
    %v271 = vld [vmem:[%s270] ss:$0 sm:$0xff]
    %v272 = vxor.u32 %v271, 2147483648
    %v273 = vlaneseq
    %v274 = vand.u32 %v273, 127
    %vm275 = vcmp.eq.s32.totalorder %v274, 14
    %v276 = vmul.f32 %v272, %v265
    %277 = vadd.xlane.f32.xlu0 %v276
    %v278 = vpop.xlane.xlu0 %277
    %v279 = vsel %vm275, %v278, %v265
    %v280 = vmul.f32 %v272, %v269
    %281 = vadd.xlane.f32.xlu0 %v280
    %v282 = vpop.xlane.xlu0 %281
    %v283 = vsel %vm275, %v282, %v269
    %s284 = scalar_lea.vmem [#allocation2], 15
    %v285 = vld [vmem:[%s284] ss:$0 sm:$0xff]
    %v286 = vxor.u32 %v285, 2147483648
    %v287 = vlaneseq
    %v288 = vand.u32 %v287, 127
    %vm289 = vcmp.eq.s32.totalorder %v288, 15
    %v290 = vmul.f32 %v286, %v279
    %291 = vadd.xlane.f32.xlu0 %v290
    %v292 = vpop.xlane.xlu0 %291
    %v293 = vsel %vm289, %v292, %v279
    %v294 = vmul.f32 %v286, %v283
    %295 = vadd.xlane.f32.xlu0 %v294
    %v296 = vpop.xlane.xlu0 %295
    %v297 = vsel %vm289, %v296, %v283
    %v298 = vrcp.pop %v49
    %v299 = vmul.f32 %v49, %v298
    %v300 = vsub.f32 1.0, %v299
    %v301 = vmul.f32 %v298, %v300
    %v302 = vadd.f32 %v298, %v301
    %vm303 = vweird.f32 %v49
    %vm304 = vweird.f32 %v298
    %vm305 = vmor %vm303, %vm304
    %v306 = vsel %vm305, %v298, %v302
    %v307 = vand.u32 2147483647, %v49
    %vm308 = vcmp.eq.f32.partialorder %v307, 8.507059e+37
    %v309 = vand.u32 %v49, 2147483648
    %v310 = vor.u32 1.1754944e-38, %v309
    %v311 = vsel %vm308, %v310, %v306
    %v312 = vmul.f32 %v293, %v311
    %vm313 = vweird.f32 %v49
    %v314 = vsel %vm313, %v293, %v312
    %315 = vst [vmem:[#allocation1] sm:$0xff] %v314
    %v316 = vrcp.pop %v78
    %v317 = vmul.f32 %v78, %v316
    %v318 = vsub.f32 1.0, %v317
    %v319 = vmul.f32 %v316, %v318
    %v320 = vadd.f32 %v316, %v319
    %vm321 = vweird.f32 %v78
    %vm322 = vweird.f32 %v316
    %vm323 = vmor %vm321, %vm322
    %v324 = vsel %vm323, %v316, %v320
    %v325 = vand.u32 2147483647, %v78
    %vm326 = vcmp.eq.f32.partialorder %v325, 8.507059e+37
    %v327 = vand.u32 %v78, 2147483648
    %v328 = vor.u32 1.1754944e-38, %v327
    %v329 = vsel %vm326, %v328, %v324
    %v330 = vmul.f32 %v297, %v329
    %vm331 = vweird.f32 %v78
    %v332 = vsel %vm331, %v297, %v330
    %s333 = scalar_lea.vmem [#allocation1], 8
    %334 = vst [vmem:[%s333] sm:$0xff] %v332
    // Predicated region
    $region36: #{custom-call.5} parent=1 // pred_check
      _
    $region37: #{custom-call.5} parent=1 // pred_check_branch
      %336 = sbr.rel (0) target = $region39
    $region38: #{custom-call.5} parent=1 // pred_region
      // Predicated region
      $region40: #{custom-call.5} parent=38 // pred_check
        _
      $region41: #{custom-call.5} parent=38 // pred_check_branch
        %338 = sbr.rel (0) target = $region43
      $region42: #{custom-call.5} parent=38 // pred_region
        // Predicated region
        $region55: #{custom-call.5} parent=42 // pred_check
          _
        $region56: #{custom-call.5} parent=42 // pred_check_branch
          %356 = sbr.rel (0) target = $region58
        $region57: #{custom-call.5} parent=42 // pred_region
          loop: start=0, step=1, limit=1
          $region59: #{custom-call.5} parent=57 // loop_pre_header
            _
          $region60: #{custom-call.5} parent=57 // loop_header
            %s358 = sphi 0, %s362
            %p359 = scmp.ge.s32.totalorder %s358, 1
            %s363 = sphi [#allocation1], [#allocation1]
            %s364 = sphi %s1, %s1
          $region61: #{custom-call.5} parent=57 // loop_header_branch
            %361 = sbr.rel (%p359) target = $region65
          $region62: #{custom-call.5} parent=57 // loop_body
            %v365 = vld [vmem:[%s363] sm:$0xff]
            %366 = vst [vmem:[%s364] sm:$0xff] %v365
            %v367 = vld [vmem:[%s363 + $0x8] sm:$0xff]
            %368 = vst [vmem:[%s364 + $0x8] sm:$0xff] %v367
          $region63: #{custom-call.5} parent=57 // loop_footer
            %s362 = sadd.s32 1, %s358
          $region64: #{custom-call.5} parent=57 // loop_footer_branch
            %357 = sbr.rel target = $region60
          $region65: #{custom-call.5} parent=57 // loop_exit
            _
        $region58: #{custom-call.5} parent=42 // pred_fallthru
          _
        // Predicated region
        $region66: #{custom-call.5} parent=42 // pred_check
          _
        $region67: #{custom-call.5} parent=42 // pred_check_branch
          %370 = sbr.rel target = $region69
        $region68: #{custom-call.5} parent=42 // pred_region
          _
        $region69: #{custom-call.5} parent=42 // pred_fallthru
          _
      $region43: #{custom-call.5} parent=38 // pred_fallthru
        _
      // Predicated region
      $region44: #{custom-call.5} parent=38 // pred_check
        _
      $region45: #{custom-call.5} parent=38 // pred_check_branch
        %340 = sbr.rel target = $region47
      $region46: #{custom-call.5} parent=38 // pred_region
        %s342 = ssub.s32 256, 1
        loop: start=0, step=1, limit=1
        $region48: #{custom-call.5} parent=46 // loop_pre_header
          _
        $region49: #{custom-call.5} parent=46 // loop_header
          %s344 = sphi 0, %s348
          %p345 = scmp.ge.s32.totalorder %s344, 1
          %s349 = sphi [#allocation1], [#allocation1]
          %s350 = sphi %s1, %s1
        $region50: #{custom-call.5} parent=46 // loop_header_branch
          %347 = sbr.rel (%p345) target = $region54
        $region51: #{custom-call.5} parent=46 // loop_body
          %v351 = vld [vmem:[%s349] sm:%s342]
          %352 = vst [vmem:[%s350] sm:%s342] %v351
          %v353 = vld [vmem:[%s349 + $0x8] sm:%s342]
          %354 = vst [vmem:[%s350 + $0x8] sm:%s342] %v353
        $region52: #{custom-call.5} parent=46 // loop_footer
          %s348 = sadd.s32 1, %s344
        $region53: #{custom-call.5} parent=46 // loop_footer_branch
          %343 = sbr.rel target = $region49
        $region54: #{custom-call.5} parent=46 // loop_exit
          _
      $region47: #{custom-call.5} parent=38 // pred_fallthru
        _
    $region39: #{custom-call.5} parent=1 // pred_fallthru
      _
    %371 = vnop

// kernel: online_svgp_forward.2
$region0: #{online_svgp_forward.2}
  #allocation0 [shape = 'u32[]', space=smem, size = 0x4, offset = 0x4, fixed_abs, tag = 'smem constant byte address 0x4 - core index']
  #allocation1 [shape = 'u32[72,128]{1,0:T(1,128)}', space=vmem, size = 0x9000, scoped, tag = 'internal scratch']
  %s0 = inlined_call_operand.vmem [shape: f32[16,512], index: 0, kind: input, shape index: {}]
  %s1 = inlined_call_operand.vmem [shape: f32[8,16], index: 1, kind: input, shape index: {}]
  %s2 = inlined_call_operand.vmem [shape: f32[8,1], index: 2, kind: input, shape index: {}]
  %s3 = inlined_call_operand.vmem [shape: f32[16,8], index: 3, kind: input, shape index: {}]
  %s4 = inlined_call_operand.vmem [shape: f32[16,1], index: 4, kind: input, shape index: {}]
  %s5 = inlined_call_operand.vmem [shape: f32[16,16], index: 5, kind: input, shape index: {}]
  %s6 = inlined_call_operand.vmem [shape: f32[1,16], index: 6, kind: input, shape index: {}]
  %s7 = inlined_call_operand.vmem [shape: f32[1,2], index: 7, kind: input, shape index: {}]
  %s8 = inlined_call_operand.vmem [shape: f32[10,512], index: 8, kind: output, shape index: {0}]
  %s9 = inlined_call_operand.vmem [shape: f32[10,512], index: 9, kind: output, shape index: {1}]
  %s10 = inlined_call_operand.vmem [shape: f32[16,512], index: 10, kind: output, shape index: {2}]
  %s11 = inlined_call_operand.vmem [shape: f32[16,512], index: 11, kind: output, shape index: {3}]
  %s12 = inlined_call_operand.vmem [shape: f32[1,512], index: 12, kind: output, shape index: {4}]
  %13 = xla_tuple %s8, %s9, %s10, %s11, %s12
  %s14 = sld [smem:[#allocation0]]
  $region78: #{online_svgp_forward.2} parent=0
    _
  %s16 = ssub.s32 1, %s14
  %s17 = scalar_select 0, %s16, %s14
  $region1: #{online_svgp_forward.2} parent=0
    #allocation2 [shape = 'u8[512]{0}', space=smem, size = 0x200, scoped, tag = 'input window, operand 7, single buffered']
    #allocation3 [shape = 's32[1]{0}', space=sflag, size = 0x4, scoped, tag = 'scoped memory for online_svgp_forward.2']
    %18 = vsyncpa [#allocation3], 0
    // Predicated region
    $region2: #{online_svgp_forward.2} parent=1 // pred_check
      _
    $region3: #{online_svgp_forward.2} parent=1 // pred_check_branch
      %20 = sbr.rel (0) target = $region5
    $region4: #{online_svgp_forward.2} parent=1 // pred_region
      _
    $region5: #{online_svgp_forward.2} parent=1 // pred_fallthru
      _
    // Predicated region
    $region6: #{online_svgp_forward.2} parent=1 // pred_check
      _
    $region7: #{online_svgp_forward.2} parent=1 // pred_check_branch
      %22 = sbr.rel (0) target = $region9
    $region8: #{online_svgp_forward.2} parent=1 // pred_region
      _
    $region9: #{online_svgp_forward.2} parent=1 // pred_fallthru
      _
    // Predicated region
    $region10: #{online_svgp_forward.2} parent=1 // pred_check
      _
    $region11: #{online_svgp_forward.2} parent=1 // pred_check_branch
      %24 = sbr.rel (0) target = $region13
    $region12: #{online_svgp_forward.2} parent=1 // pred_region
      _
    $region13: #{online_svgp_forward.2} parent=1 // pred_fallthru
      _
    // Predicated region
    $region14: #{online_svgp_forward.2} parent=1 // pred_check
      _
    $region15: #{online_svgp_forward.2} parent=1 // pred_check_branch
      %26 = sbr.rel (0) target = $region17
    $region16: #{online_svgp_forward.2} parent=1 // pred_region
      _
    $region17: #{online_svgp_forward.2} parent=1 // pred_fallthru
      _
    // Predicated region
    $region18: #{online_svgp_forward.2} parent=1 // pred_check
      _
    $region19: #{online_svgp_forward.2} parent=1 // pred_check_branch
      %28 = sbr.rel (0) target = $region21
    $region20: #{online_svgp_forward.2} parent=1 // pred_region
      _
    $region21: #{online_svgp_forward.2} parent=1 // pred_fallthru
      _
    // Predicated region
    $region22: #{online_svgp_forward.2} parent=1 // pred_check
      _
    $region23: #{online_svgp_forward.2} parent=1 // pred_check_branch
      %30 = sbr.rel (0) target = $region25
    $region24: #{online_svgp_forward.2} parent=1 // pred_region
      _
    $region25: #{online_svgp_forward.2} parent=1 // pred_fallthru
      _
    // Predicated region
    $region26: #{online_svgp_forward.2} parent=1 // pred_check
      _
    $region27: #{online_svgp_forward.2} parent=1 // pred_check_branch
      %32 = sbr.rel (0) target = $region29
    $region28: #{online_svgp_forward.2} parent=1 // pred_region
      _
    $region29: #{online_svgp_forward.2} parent=1 // pred_fallthru
      _
    // Predicated region
    $region30: #{online_svgp_forward.2} parent=1 // pred_check
      _
    $region31: #{online_svgp_forward.2} parent=1 // pred_check_branch
      %34 = sbr.rel (0) target = $region33
    $region32: #{online_svgp_forward.2} parent=1 // pred_region
      %36 = vsyncadd [#allocation3], 0
      %s38 = sshll.u32 %s7, 4
      %s39 = int_to_ptr.vmem [resolvable:$true] %s38
      %41 = dma.vmem_to_smem %s39, 16, [#allocation2], [#allocation3]
    $region33: #{online_svgp_forward.2} parent=1 // pred_fallthru
      _
    // Predicated region
    $region34: #{online_svgp_forward.2} parent=1 // pred_check
      _
    $region35: #{online_svgp_forward.2} parent=1 // pred_check_branch
      %43 = sbr.rel (0) target = $region37
    $region36: #{online_svgp_forward.2} parent=1 // pred_region
      %45 = dma.done [#allocation3], 16
    $region37: #{online_svgp_forward.2} parent=1 // pred_fallthru
      _
    %46 = sfence
    %s47 = sld [smem:[#allocation2]]
    %s48 = sld [smem:[#allocation2 + $0x1]]
    %v49 = vld [vmem:[%s1] sm:$0xff]
    %v50 = vld [vmem:[%s0] sm:$0xff]
    %v51 = vld [vmem:[%s0 + $0x8] sm:$0xff]
    %v52 = vld [vmem:[%s0 + $0x10] sm:$0xff]
    %v53 = vld [vmem:[%s0 + $0x18] sm:$0xff]
    %v54 = vld [vmem:[%s0 + $0x20] sm:$0xff]
    %v55 = vld [vmem:[%s0 + $0x28] sm:$0xff]
    %v56 = vld [vmem:[%s0 + $0x30] sm:$0xff]
    %v57 = vld [vmem:[%s0 + $0x38] sm:$0xff]
    %v58 = vld [vmem:[%s2] sm:$0xff]
    %60 = vset.pattern.permute.xlu0 0
    %61 = vperm.xlu0 %60, %v58
    %v62 = vpop.permute.xlu0 %61
    %vm64 = vcmask 130048
    %v66 = vsel %vm64, %v49, 0
    %68 = vmatpush.msra.mxu0 0.0
    %69 = vmatpush.msra.mxu0 0.0
    %70 = vmatpush.msra.mxu0 0.0
    %71 = vmatpush.msra.mxu0 0.0
    %72 = vmatpush.msra.mxu0 0.0
    %73 = vmatpush.msra.mxu0 0.0
    %74 = vmatpush.msra.mxu0 0.0
    %75 = vmatpush.msra.mxu0 0.0
    %76 = vmatpush.msra.mxu0 0.0
    %77 = vmatpush.msra.mxu0 0.0
    %78 = vmatpush.msra.mxu0 0.0
    %79 = vmatpush.msra.mxu0 0.0
    %80 = vmatpush.msra.mxu0 0.0
    %81 = vmatpush.msra.mxu0 0.0
    %82 = vmatpush.msra.mxu0 %v54
    %83 = vmatpush.msra.mxu0 %v50
    %84 = vmatmul.f32.gmra.mxu0 %v66
    %v85 = vpop.f32.mrf.mxu0
    %v86 = vadd.f32 %v62, %v85
    %87 = vdwg.mxu0
    %88 = vmatpush.msra.mxu0 0.0
    %89 = vmatpush.msra.mxu0 0.0
    %90 = vmatpush.msra.mxu0 0.0
    %91 = vmatpush.msra.mxu0 0.0
    %92 = vmatpush.msra.mxu0 0.0
    %93 = vmatpush.msra.mxu0 0.0
    %94 = vmatpush.msra.mxu0 0.0
    %95 = vmatpush.msra.mxu0 0.0
    %96 = vmatpush.msra.mxu0 0.0
    %97 = vmatpush.msra.mxu0 0.0
    %98 = vmatpush.msra.mxu0 0.0
    %99 = vmatpush.msra.mxu0 0.0
    %100 = vmatpush.msra.mxu0 0.0
    %101 = vmatpush.msra.mxu0 0.0
    %102 = vmatpush.msra.mxu0 %v55
    %103 = vmatpush.msra.mxu0 %v51
    %104 = vmatmul.f32.gmra.mxu0 %v66
    %v105 = vpop.f32.mrf.mxu0
    %v106 = vadd.f32 %v62, %v105
    %107 = vdwg.mxu0
    %108 = vmatpush.msra.mxu0 0.0
    %109 = vmatpush.msra.mxu0 0.0
    %110 = vmatpush.msra.mxu0 0.0
    %111 = vmatpush.msra.mxu0 0.0
    %112 = vmatpush.msra.mxu0 0.0
    %113 = vmatpush.msra.mxu0 0.0
    %114 = vmatpush.msra.mxu0 0.0
    %115 = vmatpush.msra.mxu0 0.0
    %116 = vmatpush.msra.mxu0 0.0
    %117 = vmatpush.msra.mxu0 0.0
    %118 = vmatpush.msra.mxu0 0.0
    %119 = vmatpush.msra.mxu0 0.0
    %120 = vmatpush.msra.mxu0 0.0
    %121 = vmatpush.msra.mxu0 0.0
    %122 = vmatpush.msra.mxu0 %v56
    %123 = vmatpush.msra.mxu0 %v52
    %124 = vmatmul.f32.gmra.mxu0 %v66
    %v125 = vpop.f32.mrf.mxu0
    %v126 = vadd.f32 %v62, %v125
    %127 = vdwg.mxu0
    %128 = vmatpush.msra.mxu0 0.0
    %129 = vmatpush.msra.mxu0 0.0
    %130 = vmatpush.msra.mxu0 0.0
    %131 = vmatpush.msra.mxu0 0.0
    %132 = vmatpush.msra.mxu0 0.0
    %133 = vmatpush.msra.mxu0 0.0
    %134 = vmatpush.msra.mxu0 0.0
    %135 = vmatpush.msra.mxu0 0.0
    %136 = vmatpush.msra.mxu0 0.0
    %137 = vmatpush.msra.mxu0 0.0
    %138 = vmatpush.msra.mxu0 0.0
    %139 = vmatpush.msra.mxu0 0.0
    %140 = vmatpush.msra.mxu0 0.0
    %141 = vmatpush.msra.mxu0 0.0
    %142 = vmatpush.msra.mxu0 %v57
    %143 = vmatpush.msra.mxu0 %v53
    %144 = vmatmul.f32.gmra.mxu0 %v66
    %v145 = vpop.f32.mrf.mxu0
    %v146 = vadd.f32 %v62, %v145
    %147 = vdwg.mxu0
    %v148 = vmul.f32 %v86, %v86
    %v149 = vmul.f32 %v106, %v106
    %v150 = vmul.f32 %v126, %v126
    %v151 = vmul.f32 %v146, %v146
    %v152 = vrot.slane %v148, 4
    %v153 = vadd.f32 %v148, %v152
    %v154 = vrot.slane %v153, 2
    %v155 = vadd.f32 %v153, %v154
    %v156 = vrot.slane %v155, 1
    %v157 = vadd.f32 %v155, %v156
    %v158 = vrot.slane %v149, 4
    %v159 = vadd.f32 %v149, %v158
    %v160 = vrot.slane %v159, 2
    %v161 = vadd.f32 %v159, %v160
    %v162 = vrot.slane %v161, 1
    %v163 = vadd.f32 %v161, %v162
    %v164 = vrot.slane %v150, 4
    %v165 = vadd.f32 %v150, %v164
    %v166 = vrot.slane %v165, 2
    %v167 = vadd.f32 %v165, %v166
    %v168 = vrot.slane %v167, 1
    %v169 = vadd.f32 %v167, %v168
    %v170 = vrot.slane %v151, 4
    %v171 = vadd.f32 %v151, %v170
    %v172 = vrot.slane %v171, 2
    %v173 = vadd.f32 %v171, %v172
    %v174 = vrot.slane %v173, 1
    %v175 = vadd.f32 %v173, %v174
    %v176 = vmul.f32 %v157, 0.5
    %v177 = vmul.f32 %v163, 0.5
    %v178 = vmul.f32 %v169, 0.5
    %v179 = vmul.f32 %v175, 0.5
    %v180 = vstv %s48
    %v181 = vsub.f32 %v176, %v180
    %v182 = vsub.f32 %v177, %v180
    %v183 = vsub.f32 %v178, %v180
    %v184 = vsub.f32 %v179, %v180
    %v185 = vld [vmem:[%s3] sm:$0xff]
    %v186 = vld [vmem:[%s3 + $0x8] sm:$0xff]
    %vm187 = vcmask 64512
    %v189 = vsel %vm187, %v185, 0
    %v192 = vsel %vm187, %v186, 0
    %194 = vmatpush.msra.mxu0 0.0
    %195 = vmatpush.msra.mxu0 0.0
    %196 = vmatpush.msra.mxu0 0.0
    %197 = vmatpush.msra.mxu0 0.0
    %198 = vmatpush.msra.mxu0 0.0
    %199 = vmatpush.msra.mxu0 0.0
    %200 = vmatpush.msra.mxu0 0.0
    %201 = vmatpush.msra.mxu0 0.0
    %202 = vmatpush.msra.mxu0 0.0
    %203 = vmatpush.msra.mxu0 0.0
    %204 = vmatpush.msra.mxu0 0.0
    %205 = vmatpush.msra.mxu0 0.0
    %206 = vmatpush.msra.mxu0 0.0
    %207 = vmatpush.msra.mxu0 0.0
    %208 = vmatpush.msra.mxu0 0.0
    %209 = vmatpush.msra.mxu0 %v86
    %210 = vmatmul.f32.gmra.mxu0 %v189
    %v211 = vpop.f32.mrf.mxu0
    %v212 = vadd.f32 0.0, %v211
    %213 = vmatmul.f32.gmra.mxu0 %v192
    %v214 = vpop.f32.mrf.mxu0
    %v215 = vadd.f32 0.0, %v214
    %216 = vdwg.mxu0
    %217 = vmatpush.msra.mxu0 0.0
    %218 = vmatpush.msra.mxu0 0.0
    %219 = vmatpush.msra.mxu0 0.0
    %220 = vmatpush.msra.mxu0 0.0
    %221 = vmatpush.msra.mxu0 0.0
    %222 = vmatpush.msra.mxu0 0.0
    %223 = vmatpush.msra.mxu0 0.0
    %224 = vmatpush.msra.mxu0 0.0
    %225 = vmatpush.msra.mxu0 0.0
    %226 = vmatpush.msra.mxu0 0.0
    %227 = vmatpush.msra.mxu0 0.0
    %228 = vmatpush.msra.mxu0 0.0
    %229 = vmatpush.msra.mxu0 0.0
    %230 = vmatpush.msra.mxu0 0.0
    %231 = vmatpush.msra.mxu0 0.0
    %232 = vmatpush.msra.mxu0 %v106
    %233 = vmatmul.f32.gmra.mxu0 %v189
    %v234 = vpop.f32.mrf.mxu0
    %v235 = vadd.f32 0.0, %v234
    %236 = vmatmul.f32.gmra.mxu0 %v192
    %v237 = vpop.f32.mrf.mxu0
    %v238 = vadd.f32 0.0, %v237
    %239 = vdwg.mxu0
    %240 = vmatpush.msra.mxu0 0.0
    %241 = vmatpush.msra.mxu0 0.0
    %242 = vmatpush.msra.mxu0 0.0
    %243 = vmatpush.msra.mxu0 0.0
    %244 = vmatpush.msra.mxu0 0.0
    %245 = vmatpush.msra.mxu0 0.0
    %246 = vmatpush.msra.mxu0 0.0
    %247 = vmatpush.msra.mxu0 0.0
    %248 = vmatpush.msra.mxu0 0.0
    %249 = vmatpush.msra.mxu0 0.0
    %250 = vmatpush.msra.mxu0 0.0
    %251 = vmatpush.msra.mxu0 0.0
    %252 = vmatpush.msra.mxu0 0.0
    %253 = vmatpush.msra.mxu0 0.0
    %254 = vmatpush.msra.mxu0 0.0
    %255 = vmatpush.msra.mxu0 %v126
    %256 = vmatmul.f32.gmra.mxu0 %v189
    %v257 = vpop.f32.mrf.mxu0
    %v258 = vadd.f32 0.0, %v257
    %259 = vmatmul.f32.gmra.mxu0 %v192
    %v260 = vpop.f32.mrf.mxu0
    %v261 = vadd.f32 0.0, %v260
    %262 = vdwg.mxu0
    %263 = vmatpush.msra.mxu0 0.0
    %264 = vmatpush.msra.mxu0 0.0
    %265 = vmatpush.msra.mxu0 0.0
    %266 = vmatpush.msra.mxu0 0.0
    %267 = vmatpush.msra.mxu0 0.0
    %268 = vmatpush.msra.mxu0 0.0
    %269 = vmatpush.msra.mxu0 0.0
    %270 = vmatpush.msra.mxu0 0.0
    %271 = vmatpush.msra.mxu0 0.0
    %272 = vmatpush.msra.mxu0 0.0
    %273 = vmatpush.msra.mxu0 0.0
    %274 = vmatpush.msra.mxu0 0.0
    %275 = vmatpush.msra.mxu0 0.0
    %276 = vmatpush.msra.mxu0 0.0
    %277 = vmatpush.msra.mxu0 0.0
    %278 = vmatpush.msra.mxu0 %v146
    %279 = vmatmul.f32.gmra.mxu0 %v189
    %v280 = vpop.f32.mrf.mxu0
    %v281 = vadd.f32 0.0, %v280
    %282 = vmatmul.f32.gmra.mxu0 %v192
    %v283 = vpop.f32.mrf.mxu0
    %v284 = vadd.f32 0.0, %v283
    %285 = vdwg.mxu0
    %v286 = vld [vmem:[%s4] sm:$0xff]
    %v287 = vld [vmem:[%s4 + $0x8] sm:$0xff]
    %289 = vset.pattern.permute.xlu0 0
    %290 = vperm.xlu0 %289, %v286
    %v291 = vpop.permute.xlu0 %290
    %294 = vset.pattern.permute.xlu0 0
    %295 = vperm.xlu0 %294, %v287
    %v296 = vpop.permute.xlu0 %295
    %v298 = vsub.f32 %v212, %v291
    %v299 = vsub.f32 %v235, %v291
    %v300 = vsub.f32 %v258, %v291
    %v301 = vsub.f32 %v281, %v291
    %v302 = vsub.f32 %v215, %v296
    %v303 = vsub.f32 %v238, %v296
    %v304 = vsub.f32 %v261, %v296
    %v305 = vsub.f32 %v284, %v296
    %v306 = vsub.f32 %v298, %v181
    %v307 = vsub.f32 %v299, %v182
    %v308 = vsub.f32 %v300, %v183
    %v309 = vsub.f32 %v301, %v184
    %v310 = vsub.f32 %v302, %v181
    %v311 = vsub.f32 %v303, %v182
    %v312 = vsub.f32 %v304, %v183
    %v313 = vsub.f32 %v305, %v184
    %v314 = vstv %s47
    %v315 = vmin.f32 %v306, %v314
    %v316 = vmin.f32 %v307, %v314
    %v317 = vmin.f32 %v308, %v314
    %v318 = vmin.f32 %v309, %v314
    %v319 = vmin.f32 %v310, %v314
    %v320 = vmin.f32 %v311, %v314
    %v321 = vmin.f32 %v312, %v314
    %v322 = vmin.f32 %v313, %v314
    %v323 = vmul.f32 %v315, 1.442695
    %v324 = vpow.pop %v323
    %v325 = vmul.f32 %v316, 1.442695
    %v326 = vpow.pop %v325
    %v327 = vmul.f32 %v317, 1.442695
    %v328 = vpow.pop %v327
    %v329 = vmul.f32 %v318, 1.442695
    %v330 = vpow.pop %v329
    %v331 = vmul.f32 %v319, 1.442695
    %v332 = vpow.pop %v331
    %v333 = vmul.f32 %v320, 1.442695
    %v334 = vpow.pop %v333
    %v335 = vmul.f32 %v321, 1.442695
    %v336 = vpow.pop %v335
    %v337 = vmul.f32 %v322, 1.442695
    %v338 = vpow.pop %v337
    %339 = vst [vmem:[%s10] sm:$0xff] %v324
    %340 = vst [vmem:[%s10 + $0x8] sm:$0xff] %v326
    %341 = vst [vmem:[%s10 + $0x10] sm:$0xff] %v328
    %342 = vst [vmem:[%s10 + $0x18] sm:$0xff] %v330
    %343 = vst [vmem:[%s10 + $0x20] sm:$0xff] %v332
    %344 = vst [vmem:[%s10 + $0x28] sm:$0xff] %v334
    %345 = vst [vmem:[%s10 + $0x30] sm:$0xff] %v336
    %346 = vst [vmem:[%s10 + $0x38] sm:$0xff] %v338
    %v347 = vld [vmem:[%s5] sm:$0xff]
    %v348 = vld [vmem:[%s5 + $0x8] sm:$0xff]
    %v350 = vsel %vm64, %v347, 0
    %v353 = vsel %vm64, %v348, 0
    %355 = vmatpush.msra.mxu0 0.0
    %356 = vmatpush.msra.mxu0 0.0
    %357 = vmatpush.msra.mxu0 0.0
    %358 = vmatpush.msra.mxu0 0.0
    %359 = vmatpush.msra.mxu0 0.0
    %360 = vmatpush.msra.mxu0 0.0
    %361 = vmatpush.msra.mxu0 0.0
    %362 = vmatpush.msra.mxu0 0.0
    %363 = vmatpush.msra.mxu0 0.0
    %364 = vmatpush.msra.mxu0 0.0
    %365 = vmatpush.msra.mxu0 0.0
    %366 = vmatpush.msra.mxu0 0.0
    %367 = vmatpush.msra.mxu0 0.0
    %368 = vmatpush.msra.mxu0 0.0
    %369 = vmatpush.msra.mxu0 %v332
    %370 = vmatpush.msra.mxu0 %v324
    %371 = vmatmul.f32.gmra.mxu0 %v350
    %v372 = vpop.f32.mrf.mxu0
    %v373 = vadd.f32 0.0, %v372
    %374 = vmatmul.f32.gmra.mxu0 %v353
    %v375 = vpop.f32.mrf.mxu0
    %v376 = vadd.f32 0.0, %v375
    %377 = vdwg.mxu0
    %378 = vmatpush.msra.mxu0 0.0
    %379 = vmatpush.msra.mxu0 0.0
    %380 = vmatpush.msra.mxu0 0.0
    %381 = vmatpush.msra.mxu0 0.0
    %382 = vmatpush.msra.mxu0 0.0
    %383 = vmatpush.msra.mxu0 0.0
    %384 = vmatpush.msra.mxu0 0.0
    %385 = vmatpush.msra.mxu0 0.0
    %386 = vmatpush.msra.mxu0 0.0
    %387 = vmatpush.msra.mxu0 0.0
    %388 = vmatpush.msra.mxu0 0.0
    %389 = vmatpush.msra.mxu0 0.0
    %390 = vmatpush.msra.mxu0 0.0
    %391 = vmatpush.msra.mxu0 0.0
    %392 = vmatpush.msra.mxu0 %v334
    %393 = vmatpush.msra.mxu0 %v326
    %394 = vmatmul.f32.gmra.mxu0 %v350
    %v395 = vpop.f32.mrf.mxu0
    %v396 = vadd.f32 0.0, %v395
    %397 = vmatmul.f32.gmra.mxu0 %v353
    %v398 = vpop.f32.mrf.mxu0
    %v399 = vadd.f32 0.0, %v398
    %400 = vdwg.mxu0
    %401 = vmatpush.msra.mxu0 0.0
    %402 = vmatpush.msra.mxu0 0.0
    %403 = vmatpush.msra.mxu0 0.0
    %404 = vmatpush.msra.mxu0 0.0
    %405 = vmatpush.msra.mxu0 0.0
    %406 = vmatpush.msra.mxu0 0.0
    %407 = vmatpush.msra.mxu0 0.0
    %408 = vmatpush.msra.mxu0 0.0
    %409 = vmatpush.msra.mxu0 0.0
    %410 = vmatpush.msra.mxu0 0.0
    %411 = vmatpush.msra.mxu0 0.0
    %412 = vmatpush.msra.mxu0 0.0
    %413 = vmatpush.msra.mxu0 0.0
    %414 = vmatpush.msra.mxu0 0.0
    %415 = vmatpush.msra.mxu0 %v336
    %416 = vmatpush.msra.mxu0 %v328
    %417 = vmatmul.f32.gmra.mxu0 %v350
    %v418 = vpop.f32.mrf.mxu0
    %v419 = vadd.f32 0.0, %v418
    %420 = vmatmul.f32.gmra.mxu0 %v353
    %v421 = vpop.f32.mrf.mxu0
    %v422 = vadd.f32 0.0, %v421
    %423 = vdwg.mxu0
    %424 = vmatpush.msra.mxu0 0.0
    %425 = vmatpush.msra.mxu0 0.0
    %426 = vmatpush.msra.mxu0 0.0
    %427 = vmatpush.msra.mxu0 0.0
    %428 = vmatpush.msra.mxu0 0.0
    %429 = vmatpush.msra.mxu0 0.0
    %430 = vmatpush.msra.mxu0 0.0
    %431 = vmatpush.msra.mxu0 0.0
    %432 = vmatpush.msra.mxu0 0.0
    %433 = vmatpush.msra.mxu0 0.0
    %434 = vmatpush.msra.mxu0 0.0
    %435 = vmatpush.msra.mxu0 0.0
    %436 = vmatpush.msra.mxu0 0.0
    %437 = vmatpush.msra.mxu0 0.0
    %438 = vmatpush.msra.mxu0 %v338
    %439 = vmatpush.msra.mxu0 %v330
    %440 = vmatmul.f32.gmra.mxu0 %v350
    %v441 = vpop.f32.mrf.mxu0
    %v442 = vadd.f32 0.0, %v441
    %443 = vmatmul.f32.gmra.mxu0 %v353
    %v444 = vpop.f32.mrf.mxu0
    %v445 = vadd.f32 0.0, %v444
    %446 = vdwg.mxu0
    %447 = vst [vmem:[%s11] sm:$0xff] %v373
    %448 = vst [vmem:[%s11 + $0x8] sm:$0xff] %v396
    %449 = vst [vmem:[%s11 + $0x10] sm:$0xff] %v419
    %450 = vst [vmem:[%s11 + $0x18] sm:$0xff] %v442
    %451 = vst [vmem:[%s11 + $0x20] sm:$0xff] %v376
    %452 = vst [vmem:[%s11 + $0x28] sm:$0xff] %v399
    %453 = vst [vmem:[%s11 + $0x30] sm:$0xff] %v422
    %454 = vst [vmem:[%s11 + $0x38] sm:$0xff] %v445
    %v455 = vld [vmem:[%s6] sm:$0x1]
    %v457 = vsel %vm64, %v455, 0
    %459 = vmatpush.msra.mxu0 0.0
    %460 = vmatpush.msra.mxu0 0.0
    %461 = vmatpush.msra.mxu0 0.0
    %462 = vmatpush.msra.mxu0 0.0
    %463 = vmatpush.msra.mxu0 0.0
    %464 = vmatpush.msra.mxu0 0.0
    %465 = vmatpush.msra.mxu0 0.0
    %466 = vmatpush.msra.mxu0 0.0
    %467 = vmatpush.msra.mxu0 0.0
    %468 = vmatpush.msra.mxu0 0.0
    %469 = vmatpush.msra.mxu0 0.0
    %470 = vmatpush.msra.mxu0 0.0
    %471 = vmatpush.msra.mxu0 0.0
    %472 = vmatpush.msra.mxu0 0.0
    %473 = vmatpush.msra.mxu0 %v332
    %474 = vmatpush.msra.mxu0 %v324
    %475 = vmatmul.f32.gmra.mxu0 %v457
    %v476 = vpop.f32.mrf.mxu0
    %v477 = vadd.f32 0.0, %v476
    %478 = vdwg.mxu0
    %479 = vmatpush.msra.mxu0 0.0
    %480 = vmatpush.msra.mxu0 0.0
    %481 = vmatpush.msra.mxu0 0.0
    %482 = vmatpush.msra.mxu0 0.0
    %483 = vmatpush.msra.mxu0 0.0
    %484 = vmatpush.msra.mxu0 0.0
    %485 = vmatpush.msra.mxu0 0.0
    %486 = vmatpush.msra.mxu0 0.0
    %487 = vmatpush.msra.mxu0 0.0
    %488 = vmatpush.msra.mxu0 0.0
    %489 = vmatpush.msra.mxu0 0.0
    %490 = vmatpush.msra.mxu0 0.0
    %491 = vmatpush.msra.mxu0 0.0
    %492 = vmatpush.msra.mxu0 0.0
    %493 = vmatpush.msra.mxu0 %v334
    %494 = vmatpush.msra.mxu0 %v326
    %495 = vmatmul.f32.gmra.mxu0 %v457
    %v496 = vpop.f32.mrf.mxu0
    %v497 = vadd.f32 0.0, %v496
    %498 = vdwg.mxu0
    %499 = vmatpush.msra.mxu0 0.0
    %500 = vmatpush.msra.mxu0 0.0
    %501 = vmatpush.msra.mxu0 0.0
    %502 = vmatpush.msra.mxu0 0.0
    %503 = vmatpush.msra.mxu0 0.0
    %504 = vmatpush.msra.mxu0 0.0
    %505 = vmatpush.msra.mxu0 0.0
    %506 = vmatpush.msra.mxu0 0.0
    %507 = vmatpush.msra.mxu0 0.0
    %508 = vmatpush.msra.mxu0 0.0
    %509 = vmatpush.msra.mxu0 0.0
    %510 = vmatpush.msra.mxu0 0.0
    %511 = vmatpush.msra.mxu0 0.0
    %512 = vmatpush.msra.mxu0 0.0
    %513 = vmatpush.msra.mxu0 %v336
    %514 = vmatpush.msra.mxu0 %v328
    %515 = vmatmul.f32.gmra.mxu0 %v457
    %v516 = vpop.f32.mrf.mxu0
    %v517 = vadd.f32 0.0, %v516
    %518 = vdwg.mxu0
    %519 = vmatpush.msra.mxu0 0.0
    %520 = vmatpush.msra.mxu0 0.0
    %521 = vmatpush.msra.mxu0 0.0
    %522 = vmatpush.msra.mxu0 0.0
    %523 = vmatpush.msra.mxu0 0.0
    %524 = vmatpush.msra.mxu0 0.0
    %525 = vmatpush.msra.mxu0 0.0
    %526 = vmatpush.msra.mxu0 0.0
    %527 = vmatpush.msra.mxu0 0.0
    %528 = vmatpush.msra.mxu0 0.0
    %529 = vmatpush.msra.mxu0 0.0
    %530 = vmatpush.msra.mxu0 0.0
    %531 = vmatpush.msra.mxu0 0.0
    %532 = vmatpush.msra.mxu0 0.0
    %533 = vmatpush.msra.mxu0 %v338
    %534 = vmatpush.msra.mxu0 %v330
    %535 = vmatmul.f32.gmra.mxu0 %v457
    %v536 = vpop.f32.mrf.mxu0
    %v537 = vadd.f32 0.0, %v536
    %538 = vdwg.mxu0
    %v543 = vrot.slane %v497, 7
    %v544 = vrot.slane %v517, 6
    %v545 = vrot.slane %v537, 5
    %vm546 = vcmask 1040384
    %v547 = vsel %vm546, %v477, %v543
    %vm548 = vcmask 1042434
    %v549 = vsel %vm548, %v544, %v545
    %vm550 = vcmask 1041408
    %v551 = vsel %vm550, %v547, %v549
    %v553 = vlaneseq
    %vm554 = vcmp.ge.s32.totalorder %v553, 0
    %vm555 = vcmp.lt.s32.totalorder %v553, 512
    %vm556 = vmand %vm554, %vm555
    %557 = vst.msk [vmem:[%s12] sm:$0xf] %vm556, %v551
    %558 = vst [vmem:[%s8] sm:$0xff] %v86
    %559 = vst [vmem:[%s8 + $0x8] sm:$0xff] %v106
    %560 = vst [vmem:[%s8 + $0x10] sm:$0xff] %v126
    %561 = vst [vmem:[%s8 + $0x18] sm:$0xff] %v146
    %v562 = vsub.f32 0.0, %v181
    %v563 = vsub.f32 0.0, %v182
    %v564 = vsub.f32 0.0, %v183
    %v565 = vsub.f32 0.0, %v184
    %v570 = vrot.slane %v563, 7
    %v571 = vrot.slane %v564, 6
    %v572 = vrot.slane %v565, 5
    %v573 = vsel %vm546, %v562, %v570
    %v574 = vsel %vm548, %v571, %v572
    %v575 = vsel %vm550, %v573, %v574
    %s577 = scalar_lea.vmem %s8, 32
    %578 = vst.msk [vmem:[%s577] ss:$8 sm:$0xf] %vm556, %v575
    %579 = vst.msk [vmem:[%s577] ss:$8 sm:$0x0] %vm556, %v575
    %s580 = scalar_lea.vmem %s8, 33
    %581 = vst.msk [vmem:[%s580] ss:$8 sm:$0xf] %vm556, 1.0
    %582 = vst.msk [vmem:[%s580] ss:$8 sm:$0x0] %vm556, 1.0
    %583 = vst [vmem:[%s9] sm:$0xff] %v86
    %584 = vst [vmem:[%s9 + $0x8] sm:$0xff] %v106
    %585 = vst [vmem:[%s9 + $0x10] sm:$0xff] %v126
    %586 = vst [vmem:[%s9 + $0x18] sm:$0xff] %v146
    %s587 = scalar_lea.vmem %s9, 32
    %588 = vst.msk [vmem:[%s587] ss:$8 sm:$0xf] %vm556, 1.0
    %589 = vst.msk [vmem:[%s587] ss:$8 sm:$0x0] %vm556, 1.0
    %s590 = scalar_lea.vmem %s9, 33
    %591 = vst.msk [vmem:[%s590] ss:$8 sm:$0xf] %vm556, %v575
    %592 = vst.msk [vmem:[%s590] ss:$8 sm:$0x0] %vm556, %v575
    // Predicated region
    $region38: #{online_svgp_forward.2} parent=1 // pred_check
      _
    $region39: #{online_svgp_forward.2} parent=1 // pred_check_branch
      %594 = sbr.rel (0) target = $region41
    $region40: #{online_svgp_forward.2} parent=1 // pred_region
      _
    $region41: #{online_svgp_forward.2} parent=1 // pred_fallthru
      _
    // Predicated region
    $region42: #{online_svgp_forward.2} parent=1 // pred_check
      _
    $region43: #{online_svgp_forward.2} parent=1 // pred_check_branch
      %596 = sbr.rel (0) target = $region45
    $region44: #{online_svgp_forward.2} parent=1 // pred_region
      _
    $region45: #{online_svgp_forward.2} parent=1 // pred_fallthru
      _
    // Predicated region
    $region46: #{online_svgp_forward.2} parent=1 // pred_check
      _
    $region47: #{online_svgp_forward.2} parent=1 // pred_check_branch
      %598 = sbr.rel (0) target = $region49
    $region48: #{online_svgp_forward.2} parent=1 // pred_region
      _
    $region49: #{online_svgp_forward.2} parent=1 // pred_fallthru
      _
    // Predicated region
    $region50: #{online_svgp_forward.2} parent=1 // pred_check
      _
    $region51: #{online_svgp_forward.2} parent=1 // pred_check_branch
      %600 = sbr.rel (0) target = $region53
    $region52: #{online_svgp_forward.2} parent=1 // pred_region
      _
    $region53: #{online_svgp_forward.2} parent=1 // pred_fallthru
      _
    // Predicated region
    $region54: #{online_svgp_forward.2} parent=1 // pred_check
      _
    $region55: #{online_svgp_forward.2} parent=1 // pred_check_branch
      %602 = sbr.rel (0) target = $region57
    $region56: #{online_svgp_forward.2} parent=1 // pred_region
      _
    $region57: #{online_svgp_forward.2} parent=1 // pred_fallthru
      _
    // Predicated region
    $region58: #{online_svgp_forward.2} parent=1 // pred_check
      _
    $region59: #{online_svgp_forward.2} parent=1 // pred_check_branch
      %604 = sbr.rel (0) target = $region61
    $region60: #{online_svgp_forward.2} parent=1 // pred_region
      _
    $region61: #{online_svgp_forward.2} parent=1 // pred_fallthru
      _
    // Predicated region
    $region62: #{online_svgp_forward.2} parent=1 // pred_check
      _
    $region63: #{online_svgp_forward.2} parent=1 // pred_check_branch
      %606 = sbr.rel (0) target = $region65
    $region64: #{online_svgp_forward.2} parent=1 // pred_region
      _
    $region65: #{online_svgp_forward.2} parent=1 // pred_fallthru
      _
    // Predicated region
    $region66: #{online_svgp_forward.2} parent=1 // pred_check
      _
    $region67: #{online_svgp_forward.2} parent=1 // pred_check_branch
      %608 = sbr.rel (0) target = $region69
    $region68: #{online_svgp_forward.2} parent=1 // pred_region
      _
    $region69: #{online_svgp_forward.2} parent=1 // pred_fallthru
      _
    // Predicated region
    $region70: #{online_svgp_forward.2} parent=1 // pred_check
      _
    $region71: #{online_svgp_forward.2} parent=1 // pred_check_branch
      %610 = sbr.rel (0) target = $region73
    $region72: #{online_svgp_forward.2} parent=1 // pred_region
      _
    $region73: #{online_svgp_forward.2} parent=1 // pred_fallthru
      _
    // Predicated region
    $region74: #{online_svgp_forward.2} parent=1 // pred_check
      _
    $region75: #{online_svgp_forward.2} parent=1 // pred_check_branch
      %612 = sbr.rel (0) target = $region77
    $region76: #{online_svgp_forward.2} parent=1 // pred_region
      _
    $region77: #{online_svgp_forward.2} parent=1 // pred_fallthru
      _
    %613 = vsyncpa [#allocation3], 1

// kernel: online_svgp_forward.3
$region0: #{online_svgp_forward.3}
  #allocation0 [shape = 'u32[]', space=smem, size = 0x4, offset = 0x4, fixed_abs, tag = 'smem constant byte address 0x4 - core index']
  #allocation1 [shape = 'u32[72,128]{1,0:T(1,128)}', space=vmem, size = 0x9000, scoped, tag = 'internal scratch']
  %s0 = inlined_call_operand.vmem [shape: f32[10,512], index: 0, kind: input, shape index: {}]
  %s1 = inlined_call_operand.vmem [shape: f32[10,512], index: 1, kind: input, shape index: {}]
  %s2 = inlined_call_operand.vmem [shape: f32[16,512], index: 2, kind: input, shape index: {}]
  %s3 = inlined_call_operand.vmem [shape: f32[16,512], index: 3, kind: input, shape index: {}]
  %s4 = inlined_call_operand.vmem [shape: f32[1,2], index: 4, kind: input, shape index: {}]
  %s5 = inlined_call_operand.vmem [shape: f32[512,512], index: 5, kind: output, shape index: {}]
  %s6 = sld [smem:[#allocation0]]
  $region42: #{online_svgp_forward.3} parent=0
    _
  %s8 = ssub.s32 1, %s6
  %s9 = scalar_select 0, %s8, %s6
  $region1: #{online_svgp_forward.3} parent=0
    #allocation2 [shape = 'u8[512]{0}', space=smem, size = 0x200, scoped, tag = 'input window, operand 4, single buffered']
    #allocation3 [shape = 's32[1]{0}', space=sflag, size = 0x4, scoped, tag = 'scoped memory for online_svgp_forward.3']
    %10 = vsyncpa [#allocation3], 0
    // Predicated region
    $region2: #{online_svgp_forward.3} parent=1 // pred_check
      _
    $region3: #{online_svgp_forward.3} parent=1 // pred_check_branch
      %12 = sbr.rel (0) target = $region5
    $region4: #{online_svgp_forward.3} parent=1 // pred_region
      _
    $region5: #{online_svgp_forward.3} parent=1 // pred_fallthru
      _
    // Predicated region
    $region6: #{online_svgp_forward.3} parent=1 // pred_check
      _
    $region7: #{online_svgp_forward.3} parent=1 // pred_check_branch
      %14 = sbr.rel (0) target = $region9
    $region8: #{online_svgp_forward.3} parent=1 // pred_region
      _
    $region9: #{online_svgp_forward.3} parent=1 // pred_fallthru
      _
    // Predicated region
    $region10: #{online_svgp_forward.3} parent=1 // pred_check
      _
    $region11: #{online_svgp_forward.3} parent=1 // pred_check_branch
      %16 = sbr.rel (0) target = $region13
    $region12: #{online_svgp_forward.3} parent=1 // pred_region
      _
    $region13: #{online_svgp_forward.3} parent=1 // pred_fallthru
      _
    // Predicated region
    $region14: #{online_svgp_forward.3} parent=1 // pred_check
      _
    $region15: #{online_svgp_forward.3} parent=1 // pred_check_branch
      %18 = sbr.rel (0) target = $region17
    $region16: #{online_svgp_forward.3} parent=1 // pred_region
      _
    $region17: #{online_svgp_forward.3} parent=1 // pred_fallthru
      _
    // Predicated region
    $region18: #{online_svgp_forward.3} parent=1 // pred_check
      _
    $region19: #{online_svgp_forward.3} parent=1 // pred_check_branch
      %20 = sbr.rel (0) target = $region21
    $region20: #{online_svgp_forward.3} parent=1 // pred_region
      %22 = vsyncadd [#allocation3], 0
      %s24 = sshll.u32 %s4, 4
      %s25 = int_to_ptr.vmem [resolvable:$true] %s24
      %27 = dma.vmem_to_smem %s25, 16, [#allocation2], [#allocation3]
    $region21: #{online_svgp_forward.3} parent=1 // pred_fallthru
      _
    // Predicated region
    $region22: #{online_svgp_forward.3} parent=1 // pred_check
      _
    $region23: #{online_svgp_forward.3} parent=1 // pred_check_branch
      %29 = sbr.rel (0) target = $region25
    $region24: #{online_svgp_forward.3} parent=1 // pred_region
      %31 = dma.done [#allocation3], 16
    $region25: #{online_svgp_forward.3} parent=1 // pred_fallthru
      _
    %32 = sfence
    %s33 = sld [smem:[#allocation2]]
    %v34 = vld [vmem:[%s0] sm:$0xff]
    %v35 = vld [vmem:[%s0 + $0x8] sm:$0xff]
    %v36 = vld [vmem:[%s0 + $0x10] sm:$0xff]
    %v37 = vld [vmem:[%s0 + $0x18] sm:$0xff]
    %v38 = vld [vmem:[%s0 + $0x20] sm:$0x3]
    %v39 = vld [vmem:[%s0 + $0x28] sm:$0x3]
    %v40 = vld [vmem:[%s0 + $0x30] sm:$0x3]
    %v41 = vld [vmem:[%s0 + $0x38] sm:$0x3]
    %v42 = vld [vmem:[%s1] sm:$0xff]
    %v43 = vld [vmem:[%s1 + $0x8] sm:$0xff]
    %v44 = vld [vmem:[%s1 + $0x10] sm:$0xff]
    %v45 = vld [vmem:[%s1 + $0x18] sm:$0xff]
    %v46 = vld [vmem:[%s1 + $0x20] sm:$0x3]
    %v47 = vld [vmem:[%s1 + $0x28] sm:$0x3]
    %v48 = vld [vmem:[%s1 + $0x30] sm:$0x3]
    %v49 = vld [vmem:[%s1 + $0x38] sm:$0x3]
    %50 = vxpose.xlu0.b32.start [1/16] %v34, 128
    %51 = vxpose.xlu0.b32.cont [2/16] %v38, 128
    %52 = vxpose.xlu0.b32.cont [3/16] 0.0, 128
    %53 = vxpose.xlu0.b32.cont [4/16] 0.0, 128
    %54 = vxpose.xlu0.b32.cont [5/16] 0.0, 128
    %55 = vxpose.xlu0.b32.cont [6/16] 0.0, 128
    %56 = vxpose.xlu0.b32.cont [7/16] 0.0, 128
    %57 = vxpose.xlu0.b32.cont [8/16] 0.0, 128
    %58 = vxpose.xlu0.b32.cont [9/16] 0.0, 128
    %59 = vxpose.xlu0.b32.cont [10/16] 0.0, 128
    %60 = vxpose.xlu0.b32.cont [11/16] 0.0, 128
    %61 = vxpose.xlu0.b32.cont [12/16] 0.0, 128
    %62 = vxpose.xlu0.b32.cont [13/16] 0.0, 128
    %63 = vxpose.xlu0.b32.cont [14/16] 0.0, 128
    %64 = vxpose.xlu0.b32.cont [15/16] 0.0, 128
    %65 = vxpose.xlu0.b32.end [16/16] 0.0, 128
    %v66 = vpop.trf.xlu0
    %v67 = vpop.trf.xlu0
    %v68 = vpop.trf.xlu0
    %v69 = vpop.trf.xlu0
    %v70 = vpop.trf.xlu0
    %v71 = vpop.trf.xlu0
    %v72 = vpop.trf.xlu0
    %v73 = vpop.trf.xlu0
    %v74 = vpop.trf.xlu0
    %v75 = vpop.trf.xlu0
    %v76 = vpop.trf.xlu0
    %v77 = vpop.trf.xlu0
    %v78 = vpop.trf.xlu0
    %v79 = vpop.trf.xlu0
    %v80 = vpop.trf.xlu0
    %v81 = vpop.trf.xlu0
    %82 = vxpose.xlu0.b32.start [1/16] %v35, 128
    %83 = vxpose.xlu0.b32.cont [2/16] %v39, 128
    %84 = vxpose.xlu0.b32.cont [3/16] 0.0, 128
    %85 = vxpose.xlu0.b32.cont [4/16] 0.0, 128
    %86 = vxpose.xlu0.b32.cont [5/16] 0.0, 128
    %87 = vxpose.xlu0.b32.cont [6/16] 0.0, 128
    %88 = vxpose.xlu0.b32.cont [7/16] 0.0, 128
    %89 = vxpose.xlu0.b32.cont [8/16] 0.0, 128
    %90 = vxpose.xlu0.b32.cont [9/16] 0.0, 128
    %91 = vxpose.xlu0.b32.cont [10/16] 0.0, 128
    %92 = vxpose.xlu0.b32.cont [11/16] 0.0, 128
    %93 = vxpose.xlu0.b32.cont [12/16] 0.0, 128
    %94 = vxpose.xlu0.b32.cont [13/16] 0.0, 128
    %95 = vxpose.xlu0.b32.cont [14/16] 0.0, 128
    %96 = vxpose.xlu0.b32.cont [15/16] 0.0, 128
    %97 = vxpose.xlu0.b32.end [16/16] 0.0, 128
    %v98 = vpop.trf.xlu0
    %v99 = vpop.trf.xlu0
    %v100 = vpop.trf.xlu0
    %v101 = vpop.trf.xlu0
    %v102 = vpop.trf.xlu0
    %v103 = vpop.trf.xlu0
    %v104 = vpop.trf.xlu0
    %v105 = vpop.trf.xlu0
    %v106 = vpop.trf.xlu0
    %v107 = vpop.trf.xlu0
    %v108 = vpop.trf.xlu0
    %v109 = vpop.trf.xlu0
    %v110 = vpop.trf.xlu0
    %v111 = vpop.trf.xlu0
    %v112 = vpop.trf.xlu0
    %v113 = vpop.trf.xlu0
    %114 = vxpose.xlu0.b32.start [1/16] %v36, 128
    %115 = vxpose.xlu0.b32.cont [2/16] %v40, 128
    %116 = vxpose.xlu0.b32.cont [3/16] 0.0, 128
    %117 = vxpose.xlu0.b32.cont [4/16] 0.0, 128
    %118 = vxpose.xlu0.b32.cont [5/16] 0.0, 128
    %119 = vxpose.xlu0.b32.cont [6/16] 0.0, 128
    %120 = vxpose.xlu0.b32.cont [7/16] 0.0, 128
    %121 = vxpose.xlu0.b32.cont [8/16] 0.0, 128
    %122 = vxpose.xlu0.b32.cont [9/16] 0.0, 128
    %123 = vxpose.xlu0.b32.cont [10/16] 0.0, 128
    %124 = vxpose.xlu0.b32.cont [11/16] 0.0, 128
    %125 = vxpose.xlu0.b32.cont [12/16] 0.0, 128
    %126 = vxpose.xlu0.b32.cont [13/16] 0.0, 128
    %127 = vxpose.xlu0.b32.cont [14/16] 0.0, 128
    %128 = vxpose.xlu0.b32.cont [15/16] 0.0, 128
    %129 = vxpose.xlu0.b32.end [16/16] 0.0, 128
    %v130 = vpop.trf.xlu0
    %v131 = vpop.trf.xlu0
    %v132 = vpop.trf.xlu0
    %v133 = vpop.trf.xlu0
    %v134 = vpop.trf.xlu0
    %v135 = vpop.trf.xlu0
    %v136 = vpop.trf.xlu0
    %v137 = vpop.trf.xlu0
    %v138 = vpop.trf.xlu0
    %v139 = vpop.trf.xlu0
    %v140 = vpop.trf.xlu0
    %v141 = vpop.trf.xlu0
    %v142 = vpop.trf.xlu0
    %v143 = vpop.trf.xlu0
    %v144 = vpop.trf.xlu0
    %v145 = vpop.trf.xlu0
    %146 = vxpose.xlu0.b32.start [1/16] %v37, 128
    %147 = vxpose.xlu0.b32.cont [2/16] %v41, 128
    %148 = vxpose.xlu0.b32.cont [3/16] 0.0, 128
    %149 = vxpose.xlu0.b32.cont [4/16] 0.0, 128
    %150 = vxpose.xlu0.b32.cont [5/16] 0.0, 128
    %151 = vxpose.xlu0.b32.cont [6/16] 0.0, 128
    %152 = vxpose.xlu0.b32.cont [7/16] 0.0, 128
    %153 = vxpose.xlu0.b32.cont [8/16] 0.0, 128
    %154 = vxpose.xlu0.b32.cont [9/16] 0.0, 128
    %155 = vxpose.xlu0.b32.cont [10/16] 0.0, 128
    %156 = vxpose.xlu0.b32.cont [11/16] 0.0, 128
    %157 = vxpose.xlu0.b32.cont [12/16] 0.0, 128
    %158 = vxpose.xlu0.b32.cont [13/16] 0.0, 128
    %159 = vxpose.xlu0.b32.cont [14/16] 0.0, 128
    %160 = vxpose.xlu0.b32.cont [15/16] 0.0, 128
    %161 = vxpose.xlu0.b32.end [16/16] 0.0, 128
    %v162 = vpop.trf.xlu0
    %v163 = vpop.trf.xlu0
    %v164 = vpop.trf.xlu0
    %v165 = vpop.trf.xlu0
    %v166 = vpop.trf.xlu0
    %v167 = vpop.trf.xlu0
    %v168 = vpop.trf.xlu0
    %v169 = vpop.trf.xlu0
    %v170 = vpop.trf.xlu0
    %v171 = vpop.trf.xlu0
    %v172 = vpop.trf.xlu0
    %v173 = vpop.trf.xlu0
    %v174 = vpop.trf.xlu0
    %v175 = vpop.trf.xlu0
    %v176 = vpop.trf.xlu0
    %v177 = vpop.trf.xlu0
    %vm178 = vcmask 80896
    %v180 = vsel %vm178, %v66, 0
    %v183 = vsel %vm178, %v67, 0
    %v186 = vsel %vm178, %v68, 0
    %v189 = vsel %vm178, %v69, 0
    %v192 = vsel %vm178, %v70, 0
    %v195 = vsel %vm178, %v71, 0
    %v198 = vsel %vm178, %v72, 0
    %v201 = vsel %vm178, %v73, 0
    %v204 = vsel %vm178, %v74, 0
    %v207 = vsel %vm178, %v75, 0
    %v210 = vsel %vm178, %v76, 0
    %v213 = vsel %vm178, %v77, 0
    %v216 = vsel %vm178, %v78, 0
    %v219 = vsel %vm178, %v79, 0
    %v222 = vsel %vm178, %v80, 0
    %v225 = vsel %vm178, %v81, 0
    %v228 = vsel %vm178, %v98, 0
    %v231 = vsel %vm178, %v99, 0
    %v234 = vsel %vm178, %v100, 0
    %v237 = vsel %vm178, %v101, 0
    %v240 = vsel %vm178, %v102, 0
    %v243 = vsel %vm178, %v103, 0
    %v246 = vsel %vm178, %v104, 0
    %v249 = vsel %vm178, %v105, 0
    %v252 = vsel %vm178, %v106, 0
    %v255 = vsel %vm178, %v107, 0
    %v258 = vsel %vm178, %v108, 0
    %v261 = vsel %vm178, %v109, 0
    %v264 = vsel %vm178, %v110, 0
    %v267 = vsel %vm178, %v111, 0
    %v270 = vsel %vm178, %v112, 0
    %v273 = vsel %vm178, %v113, 0
    %v276 = vsel %vm178, %v130, 0
    %v279 = vsel %vm178, %v131, 0
    %v282 = vsel %vm178, %v132, 0
    %v285 = vsel %vm178, %v133, 0
    %v288 = vsel %vm178, %v134, 0
    %v291 = vsel %vm178, %v135, 0
    %v294 = vsel %vm178, %v136, 0
    %v297 = vsel %vm178, %v137, 0
    %v300 = vsel %vm178, %v138, 0
    %v303 = vsel %vm178, %v139, 0
    %v306 = vsel %vm178, %v140, 0
    %v309 = vsel %vm178, %v141, 0
    %v312 = vsel %vm178, %v142, 0
    %v315 = vsel %vm178, %v143, 0
    %v318 = vsel %vm178, %v144, 0
    %v321 = vsel %vm178, %v145, 0
    %v324 = vsel %vm178, %v162, 0
    %v327 = vsel %vm178, %v163, 0
    %v330 = vsel %vm178, %v164, 0
    %v333 = vsel %vm178, %v165, 0
    %v336 = vsel %vm178, %v166, 0
    %v339 = vsel %vm178, %v167, 0
    %v342 = vsel %vm178, %v168, 0
    %v345 = vsel %vm178, %v169, 0
    %v348 = vsel %vm178, %v170, 0
    %v351 = vsel %vm178, %v171, 0
    %v354 = vsel %vm178, %v172, 0
    %v357 = vsel %vm178, %v173, 0
    %v360 = vsel %vm178, %v174, 0
    %v363 = vsel %vm178, %v175, 0
    %v366 = vsel %vm178, %v176, 0
    %v369 = vsel %vm178, %v177, 0
    %vm371 = vcmask 1041408
    %v373 = vsel %vm371, %v46, 0
    %v376 = vsel %vm371, %v47, 0
    %v379 = vsel %vm371, %v48, 0
    %v382 = vsel %vm371, %v49, 0
    %384 = vmatpush.msra.mxu0 0.0
    %385 = vmatpush.msra.mxu0 0.0
    %386 = vmatpush.msra.mxu0 0.0
    %387 = vmatpush.msra.mxu0 0.0
    %388 = vmatpush.msra.mxu0 0.0
    %389 = vmatpush.msra.mxu0 0.0
    %390 = vmatpush.msra.mxu0 0.0
    %391 = vmatpush.msra.mxu0 0.0
    %392 = vmatpush.msra.mxu0 0.0
    %393 = vmatpush.msra.mxu0 0.0
    %394 = vmatpush.msra.mxu0 0.0
    %395 = vmatpush.msra.mxu0 0.0
    %396 = vmatpush.msra.mxu0 0.0
    %397 = vmatpush.msra.mxu0 0.0
    %398 = vmatpush.msra.mxu0 %v373
    %399 = vmatpush.msra.mxu0 %v42
    %400 = vmatmul.f32.gmra.mxu0 %v180
    %v401 = vpop.f32.mrf.mxu0
    %v402 = vadd.f32 0.0, %v401
    %403 = vmatmul.f32.gmra.mxu0 %v183
    %v404 = vpop.f32.mrf.mxu0
    %v405 = vadd.f32 0.0, %v404
    %406 = vmatmul.f32.gmra.mxu0 %v186
    %v407 = vpop.f32.mrf.mxu0
    %v408 = vadd.f32 0.0, %v407
    %409 = vmatmul.f32.gmra.mxu0 %v189
    %v410 = vpop.f32.mrf.mxu0
    %v411 = vadd.f32 0.0, %v410
    %412 = vmatmul.f32.gmra.mxu0 %v192
    %v413 = vpop.f32.mrf.mxu0
    %v414 = vadd.f32 0.0, %v413
    %415 = vmatmul.f32.gmra.mxu0 %v195
    %v416 = vpop.f32.mrf.mxu0
    %v417 = vadd.f32 0.0, %v416
    %418 = vmatmul.f32.gmra.mxu0 %v198
    %v419 = vpop.f32.mrf.mxu0
    %v420 = vadd.f32 0.0, %v419
    %421 = vmatmul.f32.gmra.mxu0 %v201
    %v422 = vpop.f32.mrf.mxu0
    %v423 = vadd.f32 0.0, %v422
    %424 = vmatmul.f32.gmra.mxu0 %v204
    %v425 = vpop.f32.mrf.mxu0
    %v426 = vadd.f32 0.0, %v425
    %427 = vmatmul.f32.gmra.mxu0 %v207
    %v428 = vpop.f32.mrf.mxu0
    %v429 = vadd.f32 0.0, %v428
    %430 = vmatmul.f32.gmra.mxu0 %v210
    %v431 = vpop.f32.mrf.mxu0
    %v432 = vadd.f32 0.0, %v431
    %433 = vmatmul.f32.gmra.mxu0 %v213
    %v434 = vpop.f32.mrf.mxu0
    %v435 = vadd.f32 0.0, %v434
    %436 = vmatmul.f32.gmra.mxu0 %v216
    %v437 = vpop.f32.mrf.mxu0
    %v438 = vadd.f32 0.0, %v437
    %439 = vmatmul.f32.gmra.mxu0 %v219
    %v440 = vpop.f32.mrf.mxu0
    %v441 = vadd.f32 0.0, %v440
    %442 = vmatmul.f32.gmra.mxu0 %v222
    %v443 = vpop.f32.mrf.mxu0
    %v444 = vadd.f32 0.0, %v443
    %445 = vmatmul.f32.gmra.mxu0 %v225
    %v446 = vpop.f32.mrf.mxu0
    %v447 = vadd.f32 0.0, %v446
    %448 = vmatmul.f32.gmra.mxu0 %v228
    %v449 = vpop.f32.mrf.mxu0
    %v450 = vadd.f32 0.0, %v449
    %451 = vmatmul.f32.gmra.mxu0 %v231
    %v452 = vpop.f32.mrf.mxu0
    %v453 = vadd.f32 0.0, %v452
    %454 = vmatmul.f32.gmra.mxu0 %v234
    %v455 = vpop.f32.mrf.mxu0
    %v456 = vadd.f32 0.0, %v455
    %457 = vmatmul.f32.gmra.mxu0 %v237
    %v458 = vpop.f32.mrf.mxu0
    %v459 = vadd.f32 0.0, %v458
    %460 = vmatmul.f32.gmra.mxu0 %v240
    %v461 = vpop.f32.mrf.mxu0
    %v462 = vadd.f32 0.0, %v461
    %463 = vmatmul.f32.gmra.mxu0 %v243
    %v464 = vpop.f32.mrf.mxu0
    %v465 = vadd.f32 0.0, %v464
    %466 = vmatmul.f32.gmra.mxu0 %v246
    %v467 = vpop.f32.mrf.mxu0
    %v468 = vadd.f32 0.0, %v467
    %469 = vmatmul.f32.gmra.mxu0 %v249
    %v470 = vpop.f32.mrf.mxu0
    %v471 = vadd.f32 0.0, %v470
    %472 = vmatmul.f32.gmra.mxu0 %v252
    %v473 = vpop.f32.mrf.mxu0
    %v474 = vadd.f32 0.0, %v473
    %475 = vmatmul.f32.gmra.mxu0 %v255
    %v476 = vpop.f32.mrf.mxu0
    %v477 = vadd.f32 0.0, %v476
    %478 = vmatmul.f32.gmra.mxu0 %v258
    %v479 = vpop.f32.mrf.mxu0
    %v480 = vadd.f32 0.0, %v479
    %481 = vmatmul.f32.gmra.mxu0 %v261
    %v482 = vpop.f32.mrf.mxu0
    %v483 = vadd.f32 0.0, %v482
    %484 = vmatmul.f32.gmra.mxu0 %v264
    %v485 = vpop.f32.mrf.mxu0
    %v486 = vadd.f32 0.0, %v485
    %487 = vmatmul.f32.gmra.mxu0 %v267
    %v488 = vpop.f32.mrf.mxu0
    %v489 = vadd.f32 0.0, %v488
    %490 = vmatmul.f32.gmra.mxu0 %v270
    %v491 = vpop.f32.mrf.mxu0
    %v492 = vadd.f32 0.0, %v491
    %493 = vmatmul.f32.gmra.mxu0 %v273
    %v494 = vpop.f32.mrf.mxu0
    %v495 = vadd.f32 0.0, %v494
    %496 = vmatmul.f32.gmra.mxu0 %v276
    %v497 = vpop.f32.mrf.mxu0
    %v498 = vadd.f32 0.0, %v497
    %499 = vmatmul.f32.gmra.mxu0 %v279
    %v500 = vpop.f32.mrf.mxu0
    %v501 = vadd.f32 0.0, %v500
    %502 = vmatmul.f32.gmra.mxu0 %v282
    %v503 = vpop.f32.mrf.mxu0
    %v504 = vadd.f32 0.0, %v503
    %505 = vmatmul.f32.gmra.mxu0 %v285
    %v506 = vpop.f32.mrf.mxu0
    %v507 = vadd.f32 0.0, %v506
    %508 = vmatmul.f32.gmra.mxu0 %v288
    %v509 = vpop.f32.mrf.mxu0
    %v510 = vadd.f32 0.0, %v509
    %511 = vmatmul.f32.gmra.mxu0 %v291
    %v512 = vpop.f32.mrf.mxu0
    %v513 = vadd.f32 0.0, %v512
    %514 = vmatmul.f32.gmra.mxu0 %v294
    %v515 = vpop.f32.mrf.mxu0
    %v516 = vadd.f32 0.0, %v515
    %517 = vmatmul.f32.gmra.mxu0 %v297
    %v518 = vpop.f32.mrf.mxu0
    %v519 = vadd.f32 0.0, %v518
    %520 = vmatmul.f32.gmra.mxu0 %v300
    %v521 = vpop.f32.mrf.mxu0
    %v522 = vadd.f32 0.0, %v521
    %523 = vmatmul.f32.gmra.mxu0 %v303
    %v524 = vpop.f32.mrf.mxu0
    %v525 = vadd.f32 0.0, %v524
    %526 = vmatmul.f32.gmra.mxu0 %v306
    %v527 = vpop.f32.mrf.mxu0
    %v528 = vadd.f32 0.0, %v527
    %529 = vmatmul.f32.gmra.mxu0 %v309
    %v530 = vpop.f32.mrf.mxu0
    %v531 = vadd.f32 0.0, %v530
    %532 = vmatmul.f32.gmra.mxu0 %v312
    %v533 = vpop.f32.mrf.mxu0
    %v534 = vadd.f32 0.0, %v533
    %535 = vmatmul.f32.gmra.mxu0 %v315
    %v536 = vpop.f32.mrf.mxu0
    %v537 = vadd.f32 0.0, %v536
    %538 = vmatmul.f32.gmra.mxu0 %v318
    %v539 = vpop.f32.mrf.mxu0
    %v540 = vadd.f32 0.0, %v539
    %541 = vmatmul.f32.gmra.mxu0 %v321
    %v542 = vpop.f32.mrf.mxu0
    %v543 = vadd.f32 0.0, %v542
    %544 = vmatmul.f32.gmra.mxu0 %v324
    %v545 = vpop.f32.mrf.mxu0
    %v546 = vadd.f32 0.0, %v545
    %547 = vmatmul.f32.gmra.mxu0 %v327
    %v548 = vpop.f32.mrf.mxu0
    %v549 = vadd.f32 0.0, %v548
    %550 = vmatmul.f32.gmra.mxu0 %v330
    %v551 = vpop.f32.mrf.mxu0
    %v552 = vadd.f32 0.0, %v551
    %553 = vmatmul.f32.gmra.mxu0 %v333
    %v554 = vpop.f32.mrf.mxu0
    %v555 = vadd.f32 0.0, %v554
    %556 = vmatmul.f32.gmra.mxu0 %v336
    %v557 = vpop.f32.mrf.mxu0
    %v558 = vadd.f32 0.0, %v557
    %559 = vmatmul.f32.gmra.mxu0 %v339
    %v560 = vpop.f32.mrf.mxu0
    %v561 = vadd.f32 0.0, %v560
    %562 = vmatmul.f32.gmra.mxu0 %v342
    %v563 = vpop.f32.mrf.mxu0
    %v564 = vadd.f32 0.0, %v563
    %565 = vmatmul.f32.gmra.mxu0 %v345
    %v566 = vpop.f32.mrf.mxu0
    %v567 = vadd.f32 0.0, %v566
    %568 = vmatmul.f32.gmra.mxu0 %v348
    %v569 = vpop.f32.mrf.mxu0
    %v570 = vadd.f32 0.0, %v569
    %571 = vmatmul.f32.gmra.mxu0 %v351
    %v572 = vpop.f32.mrf.mxu0
    %v573 = vadd.f32 0.0, %v572
    %574 = vmatmul.f32.gmra.mxu0 %v354
    %v575 = vpop.f32.mrf.mxu0
    %v576 = vadd.f32 0.0, %v575
    %577 = vmatmul.f32.gmra.mxu0 %v357
    %v578 = vpop.f32.mrf.mxu0
    %v579 = vadd.f32 0.0, %v578
    %580 = vmatmul.f32.gmra.mxu0 %v360
    %v581 = vpop.f32.mrf.mxu0
    %v582 = vadd.f32 0.0, %v581
    %583 = vmatmul.f32.gmra.mxu0 %v363
    %v584 = vpop.f32.mrf.mxu0
    %v585 = vadd.f32 0.0, %v584
    %586 = vmatmul.f32.gmra.mxu0 %v366
    %v587 = vpop.f32.mrf.mxu0
    %v588 = vadd.f32 0.0, %v587
    %589 = vmatmul.f32.gmra.mxu0 %v369
    %v590 = vpop.f32.mrf.mxu0
    %v591 = vadd.f32 0.0, %v590
    %592 = vdwg.mxu0
    %593 = vmatpush.msra.mxu0 0.0
    %594 = vmatpush.msra.mxu0 0.0
    %595 = vmatpush.msra.mxu0 0.0
    %596 = vmatpush.msra.mxu0 0.0
    %597 = vmatpush.msra.mxu0 0.0
    %598 = vmatpush.msra.mxu0 0.0
    %599 = vmatpush.msra.mxu0 0.0
    %600 = vmatpush.msra.mxu0 0.0
    %601 = vmatpush.msra.mxu0 0.0
    %602 = vmatpush.msra.mxu0 0.0
    %603 = vmatpush.msra.mxu0 0.0
    %604 = vmatpush.msra.mxu0 0.0
    %605 = vmatpush.msra.mxu0 0.0
    %606 = vmatpush.msra.mxu0 0.0
    %607 = vmatpush.msra.mxu0 %v376
    %608 = vmatpush.msra.mxu0 %v43
    %609 = vmatmul.f32.gmra.mxu0 %v180
    %v610 = vpop.f32.mrf.mxu0
    %v611 = vadd.f32 0.0, %v610
    %612 = vmatmul.f32.gmra.mxu0 %v183
    %v613 = vpop.f32.mrf.mxu0
    %v614 = vadd.f32 0.0, %v613
    %615 = vmatmul.f32.gmra.mxu0 %v186
    %v616 = vpop.f32.mrf.mxu0
    %v617 = vadd.f32 0.0, %v616
    %618 = vmatmul.f32.gmra.mxu0 %v189
    %v619 = vpop.f32.mrf.mxu0
    %v620 = vadd.f32 0.0, %v619
    %621 = vmatmul.f32.gmra.mxu0 %v192
    %v622 = vpop.f32.mrf.mxu0
    %v623 = vadd.f32 0.0, %v622
    %624 = vmatmul.f32.gmra.mxu0 %v195
    %v625 = vpop.f32.mrf.mxu0
    %v626 = vadd.f32 0.0, %v625
    %627 = vmatmul.f32.gmra.mxu0 %v198
    %v628 = vpop.f32.mrf.mxu0
    %v629 = vadd.f32 0.0, %v628
    %630 = vmatmul.f32.gmra.mxu0 %v201
    %v631 = vpop.f32.mrf.mxu0
    %v632 = vadd.f32 0.0, %v631
    %633 = vmatmul.f32.gmra.mxu0 %v204
    %v634 = vpop.f32.mrf.mxu0
    %v635 = vadd.f32 0.0, %v634
    %636 = vmatmul.f32.gmra.mxu0 %v207
    %v637 = vpop.f32.mrf.mxu0
    %v638 = vadd.f32 0.0, %v637
    %639 = vmatmul.f32.gmra.mxu0 %v210
    %v640 = vpop.f32.mrf.mxu0
    %v641 = vadd.f32 0.0, %v640
    %642 = vmatmul.f32.gmra.mxu0 %v213
    %v643 = vpop.f32.mrf.mxu0
    %v644 = vadd.f32 0.0, %v643
    %645 = vmatmul.f32.gmra.mxu0 %v216
    %v646 = vpop.f32.mrf.mxu0
    %v647 = vadd.f32 0.0, %v646
    %648 = vmatmul.f32.gmra.mxu0 %v219
    %v649 = vpop.f32.mrf.mxu0
    %v650 = vadd.f32 0.0, %v649
    %651 = vmatmul.f32.gmra.mxu0 %v222
    %v652 = vpop.f32.mrf.mxu0
    %v653 = vadd.f32 0.0, %v652
    %654 = vmatmul.f32.gmra.mxu0 %v225
    %v655 = vpop.f32.mrf.mxu0
    %v656 = vadd.f32 0.0, %v655
    %657 = vmatmul.f32.gmra.mxu0 %v228
    %v658 = vpop.f32.mrf.mxu0
    %v659 = vadd.f32 0.0, %v658
    %660 = vmatmul.f32.gmra.mxu0 %v231
    %v661 = vpop.f32.mrf.mxu0
    %v662 = vadd.f32 0.0, %v661
    %663 = vmatmul.f32.gmra.mxu0 %v234
    %v664 = vpop.f32.mrf.mxu0
    %v665 = vadd.f32 0.0, %v664
    %666 = vmatmul.f32.gmra.mxu0 %v237
    %v667 = vpop.f32.mrf.mxu0
    %v668 = vadd.f32 0.0, %v667
    %669 = vmatmul.f32.gmra.mxu0 %v240
    %v670 = vpop.f32.mrf.mxu0
    %v671 = vadd.f32 0.0, %v670
    %672 = vmatmul.f32.gmra.mxu0 %v243
    %v673 = vpop.f32.mrf.mxu0
    %v674 = vadd.f32 0.0, %v673
    %675 = vmatmul.f32.gmra.mxu0 %v246
    %v676 = vpop.f32.mrf.mxu0
    %v677 = vadd.f32 0.0, %v676
    %678 = vmatmul.f32.gmra.mxu0 %v249
    %v679 = vpop.f32.mrf.mxu0
    %v680 = vadd.f32 0.0, %v679
    %681 = vmatmul.f32.gmra.mxu0 %v252
    %v682 = vpop.f32.mrf.mxu0
    %v683 = vadd.f32 0.0, %v682
    %684 = vmatmul.f32.gmra.mxu0 %v255
    %v685 = vpop.f32.mrf.mxu0
    %v686 = vadd.f32 0.0, %v685
    %687 = vmatmul.f32.gmra.mxu0 %v258
    %v688 = vpop.f32.mrf.mxu0
    %v689 = vadd.f32 0.0, %v688
    %690 = vmatmul.f32.gmra.mxu0 %v261
    %v691 = vpop.f32.mrf.mxu0
    %v692 = vadd.f32 0.0, %v691
    %693 = vmatmul.f32.gmra.mxu0 %v264
    %v694 = vpop.f32.mrf.mxu0
    %v695 = vadd.f32 0.0, %v694
    %696 = vmatmul.f32.gmra.mxu0 %v267
    %v697 = vpop.f32.mrf.mxu0
    %v698 = vadd.f32 0.0, %v697
    %699 = vmatmul.f32.gmra.mxu0 %v270
    %v700 = vpop.f32.mrf.mxu0
    %v701 = vadd.f32 0.0, %v700
    %702 = vmatmul.f32.gmra.mxu0 %v273
    %v703 = vpop.f32.mrf.mxu0
    %v704 = vadd.f32 0.0, %v703
    %705 = vmatmul.f32.gmra.mxu0 %v276
    %v706 = vpop.f32.mrf.mxu0
    %v707 = vadd.f32 0.0, %v706
    %708 = vmatmul.f32.gmra.mxu0 %v279
    %v709 = vpop.f32.mrf.mxu0
    %v710 = vadd.f32 0.0, %v709
    %711 = vmatmul.f32.gmra.mxu0 %v282
    %v712 = vpop.f32.mrf.mxu0
    %v713 = vadd.f32 0.0, %v712
    %714 = vmatmul.f32.gmra.mxu0 %v285
    %v715 = vpop.f32.mrf.mxu0
    %v716 = vadd.f32 0.0, %v715
    %717 = vmatmul.f32.gmra.mxu0 %v288
    %v718 = vpop.f32.mrf.mxu0
    %v719 = vadd.f32 0.0, %v718
    %720 = vmatmul.f32.gmra.mxu0 %v291
    %v721 = vpop.f32.mrf.mxu0
    %v722 = vadd.f32 0.0, %v721
    %723 = vmatmul.f32.gmra.mxu0 %v294
    %v724 = vpop.f32.mrf.mxu0
    %v725 = vadd.f32 0.0, %v724
    %726 = vmatmul.f32.gmra.mxu0 %v297
    %v727 = vpop.f32.mrf.mxu0
    %v728 = vadd.f32 0.0, %v727
    %729 = vmatmul.f32.gmra.mxu0 %v300
    %v730 = vpop.f32.mrf.mxu0
    %v731 = vadd.f32 0.0, %v730
    %732 = vmatmul.f32.gmra.mxu0 %v303
    %v733 = vpop.f32.mrf.mxu0
    %v734 = vadd.f32 0.0, %v733
    %735 = vmatmul.f32.gmra.mxu0 %v306
    %v736 = vpop.f32.mrf.mxu0
    %v737 = vadd.f32 0.0, %v736
    %738 = vmatmul.f32.gmra.mxu0 %v309
    %v739 = vpop.f32.mrf.mxu0
    %v740 = vadd.f32 0.0, %v739
    %741 = vmatmul.f32.gmra.mxu0 %v312
    %v742 = vpop.f32.mrf.mxu0
    %v743 = vadd.f32 0.0, %v742
    %744 = vmatmul.f32.gmra.mxu0 %v315
    %v745 = vpop.f32.mrf.mxu0
    %v746 = vadd.f32 0.0, %v745
    %747 = vmatmul.f32.gmra.mxu0 %v318
    %v748 = vpop.f32.mrf.mxu0
    %v749 = vadd.f32 0.0, %v748
    %750 = vmatmul.f32.gmra.mxu0 %v321
    %v751 = vpop.f32.mrf.mxu0
    %v752 = vadd.f32 0.0, %v751
    %753 = vmatmul.f32.gmra.mxu0 %v324
    %v754 = vpop.f32.mrf.mxu0
    %v755 = vadd.f32 0.0, %v754
    %756 = vmatmul.f32.gmra.mxu0 %v327
    %v757 = vpop.f32.mrf.mxu0
    %v758 = vadd.f32 0.0, %v757
    %759 = vmatmul.f32.gmra.mxu0 %v330
    %v760 = vpop.f32.mrf.mxu0
    %v761 = vadd.f32 0.0, %v760
    %762 = vmatmul.f32.gmra.mxu0 %v333
    %v763 = vpop.f32.mrf.mxu0
    %v764 = vadd.f32 0.0, %v763
    %765 = vmatmul.f32.gmra.mxu0 %v336
    %v766 = vpop.f32.mrf.mxu0
    %v767 = vadd.f32 0.0, %v766
    %768 = vmatmul.f32.gmra.mxu0 %v339
    %v769 = vpop.f32.mrf.mxu0
    %v770 = vadd.f32 0.0, %v769
    %771 = vmatmul.f32.gmra.mxu0 %v342
    %v772 = vpop.f32.mrf.mxu0
    %v773 = vadd.f32 0.0, %v772
    %774 = vmatmul.f32.gmra.mxu0 %v345
    %v775 = vpop.f32.mrf.mxu0
    %v776 = vadd.f32 0.0, %v775
    %777 = vmatmul.f32.gmra.mxu0 %v348
    %v778 = vpop.f32.mrf.mxu0
    %v779 = vadd.f32 0.0, %v778
    %780 = vmatmul.f32.gmra.mxu0 %v351
    %v781 = vpop.f32.mrf.mxu0
    %v782 = vadd.f32 0.0, %v781
    %783 = vmatmul.f32.gmra.mxu0 %v354
    %v784 = vpop.f32.mrf.mxu0
    %v785 = vadd.f32 0.0, %v784
    %786 = vmatmul.f32.gmra.mxu0 %v357
    %v787 = vpop.f32.mrf.mxu0
    %v788 = vadd.f32 0.0, %v787
    %789 = vmatmul.f32.gmra.mxu0 %v360
    %v790 = vpop.f32.mrf.mxu0
    %v791 = vadd.f32 0.0, %v790
    %792 = vmatmul.f32.gmra.mxu0 %v363
    %v793 = vpop.f32.mrf.mxu0
    %v794 = vadd.f32 0.0, %v793
    %795 = vmatmul.f32.gmra.mxu0 %v366
    %v796 = vpop.f32.mrf.mxu0
    %v797 = vadd.f32 0.0, %v796
    %798 = vmatmul.f32.gmra.mxu0 %v369
    %v799 = vpop.f32.mrf.mxu0
    %v800 = vadd.f32 0.0, %v799
    %801 = vdwg.mxu0
    %802 = vmatpush.msra.mxu0 0.0
    %803 = vmatpush.msra.mxu0 0.0
    %804 = vmatpush.msra.mxu0 0.0
    %805 = vmatpush.msra.mxu0 0.0
    %806 = vmatpush.msra.mxu0 0.0
    %807 = vmatpush.msra.mxu0 0.0
    %808 = vmatpush.msra.mxu0 0.0
    %809 = vmatpush.msra.mxu0 0.0
    %810 = vmatpush.msra.mxu0 0.0
    %811 = vmatpush.msra.mxu0 0.0
    %812 = vmatpush.msra.mxu0 0.0
    %813 = vmatpush.msra.mxu0 0.0
    %814 = vmatpush.msra.mxu0 0.0
    %815 = vmatpush.msra.mxu0 0.0
    %816 = vmatpush.msra.mxu0 %v379
    %817 = vmatpush.msra.mxu0 %v44
    %818 = vmatmul.f32.gmra.mxu0 %v180
    %v819 = vpop.f32.mrf.mxu0
    %v820 = vadd.f32 0.0, %v819
    %821 = vmatmul.f32.gmra.mxu0 %v183
    %v822 = vpop.f32.mrf.mxu0
    %v823 = vadd.f32 0.0, %v822
    %824 = vmatmul.f32.gmra.mxu0 %v186
    %v825 = vpop.f32.mrf.mxu0
    %v826 = vadd.f32 0.0, %v825
    %827 = vmatmul.f32.gmra.mxu0 %v189
    %v828 = vpop.f32.mrf.mxu0
    %v829 = vadd.f32 0.0, %v828
    %830 = vmatmul.f32.gmra.mxu0 %v192
    %v831 = vpop.f32.mrf.mxu0
    %v832 = vadd.f32 0.0, %v831
    %833 = vmatmul.f32.gmra.mxu0 %v195
    %v834 = vpop.f32.mrf.mxu0
    %v835 = vadd.f32 0.0, %v834
    %836 = vmatmul.f32.gmra.mxu0 %v198
    %v837 = vpop.f32.mrf.mxu0
    %v838 = vadd.f32 0.0, %v837
    %839 = vmatmul.f32.gmra.mxu0 %v201
    %v840 = vpop.f32.mrf.mxu0
    %v841 = vadd.f32 0.0, %v840
    %842 = vmatmul.f32.gmra.mxu0 %v204
    %v843 = vpop.f32.mrf.mxu0
    %v844 = vadd.f32 0.0, %v843
    %845 = vmatmul.f32.gmra.mxu0 %v207
    %v846 = vpop.f32.mrf.mxu0
    %v847 = vadd.f32 0.0, %v846
    %848 = vmatmul.f32.gmra.mxu0 %v210
    %v849 = vpop.f32.mrf.mxu0
    %v850 = vadd.f32 0.0, %v849
    %851 = vmatmul.f32.gmra.mxu0 %v213
    %v852 = vpop.f32.mrf.mxu0
    %v853 = vadd.f32 0.0, %v852
    %854 = vmatmul.f32.gmra.mxu0 %v216
    %v855 = vpop.f32.mrf.mxu0
    %v856 = vadd.f32 0.0, %v855
    %857 = vmatmul.f32.gmra.mxu0 %v219
    %v858 = vpop.f32.mrf.mxu0
    %v859 = vadd.f32 0.0, %v858
    %860 = vmatmul.f32.gmra.mxu0 %v222
    %v861 = vpop.f32.mrf.mxu0
    %v862 = vadd.f32 0.0, %v861
    %863 = vmatmul.f32.gmra.mxu0 %v225
    %v864 = vpop.f32.mrf.mxu0
    %v865 = vadd.f32 0.0, %v864
    %866 = vmatmul.f32.gmra.mxu0 %v228
    %v867 = vpop.f32.mrf.mxu0
    %v868 = vadd.f32 0.0, %v867
    %869 = vmatmul.f32.gmra.mxu0 %v231
    %v870 = vpop.f32.mrf.mxu0
    %v871 = vadd.f32 0.0, %v870
    %872 = vmatmul.f32.gmra.mxu0 %v234
    %v873 = vpop.f32.mrf.mxu0
    %v874 = vadd.f32 0.0, %v873
    %875 = vmatmul.f32.gmra.mxu0 %v237
    %v876 = vpop.f32.mrf.mxu0
    %v877 = vadd.f32 0.0, %v876
    %878 = vmatmul.f32.gmra.mxu0 %v240
    %v879 = vpop.f32.mrf.mxu0
    %v880 = vadd.f32 0.0, %v879
    %881 = vmatmul.f32.gmra.mxu0 %v243
    %v882 = vpop.f32.mrf.mxu0
    %v883 = vadd.f32 0.0, %v882
    %884 = vmatmul.f32.gmra.mxu0 %v246
    %v885 = vpop.f32.mrf.mxu0
    %v886 = vadd.f32 0.0, %v885
    %887 = vmatmul.f32.gmra.mxu0 %v249
    %v888 = vpop.f32.mrf.mxu0
    %v889 = vadd.f32 0.0, %v888
    %890 = vmatmul.f32.gmra.mxu0 %v252
    %v891 = vpop.f32.mrf.mxu0
    %v892 = vadd.f32 0.0, %v891
    %893 = vmatmul.f32.gmra.mxu0 %v255
    %v894 = vpop.f32.mrf.mxu0
    %v895 = vadd.f32 0.0, %v894
    %896 = vmatmul.f32.gmra.mxu0 %v258
    %v897 = vpop.f32.mrf.mxu0
    %v898 = vadd.f32 0.0, %v897
    %899 = vmatmul.f32.gmra.mxu0 %v261
    %v900 = vpop.f32.mrf.mxu0
    %v901 = vadd.f32 0.0, %v900
    %902 = vmatmul.f32.gmra.mxu0 %v264
    %v903 = vpop.f32.mrf.mxu0
    %v904 = vadd.f32 0.0, %v903
    %905 = vmatmul.f32.gmra.mxu0 %v267
    %v906 = vpop.f32.mrf.mxu0
    %v907 = vadd.f32 0.0, %v906
    %908 = vmatmul.f32.gmra.mxu0 %v270
    %v909 = vpop.f32.mrf.mxu0
    %v910 = vadd.f32 0.0, %v909
    %911 = vmatmul.f32.gmra.mxu0 %v273
    %v912 = vpop.f32.mrf.mxu0
    %v913 = vadd.f32 0.0, %v912
    %914 = vmatmul.f32.gmra.mxu0 %v276
    %v915 = vpop.f32.mrf.mxu0
    %v916 = vadd.f32 0.0, %v915
    %917 = vmatmul.f32.gmra.mxu0 %v279
    %v918 = vpop.f32.mrf.mxu0
    %v919 = vadd.f32 0.0, %v918
    %920 = vmatmul.f32.gmra.mxu0 %v282
    %v921 = vpop.f32.mrf.mxu0
    %v922 = vadd.f32 0.0, %v921
    %923 = vmatmul.f32.gmra.mxu0 %v285
    %v924 = vpop.f32.mrf.mxu0
    %v925 = vadd.f32 0.0, %v924
    %926 = vmatmul.f32.gmra.mxu0 %v288
    %v927 = vpop.f32.mrf.mxu0
    %v928 = vadd.f32 0.0, %v927
    %929 = vmatmul.f32.gmra.mxu0 %v291
    %v930 = vpop.f32.mrf.mxu0
    %v931 = vadd.f32 0.0, %v930
    %932 = vmatmul.f32.gmra.mxu0 %v294
    %v933 = vpop.f32.mrf.mxu0
    %v934 = vadd.f32 0.0, %v933
    %935 = vmatmul.f32.gmra.mxu0 %v297
    %v936 = vpop.f32.mrf.mxu0
    %v937 = vadd.f32 0.0, %v936
    %938 = vmatmul.f32.gmra.mxu0 %v300
    %v939 = vpop.f32.mrf.mxu0
    %v940 = vadd.f32 0.0, %v939
    %941 = vmatmul.f32.gmra.mxu0 %v303
    %v942 = vpop.f32.mrf.mxu0
    %v943 = vadd.f32 0.0, %v942
    %944 = vmatmul.f32.gmra.mxu0 %v306
    %v945 = vpop.f32.mrf.mxu0
    %v946 = vadd.f32 0.0, %v945
    %947 = vmatmul.f32.gmra.mxu0 %v309
    %v948 = vpop.f32.mrf.mxu0
    %v949 = vadd.f32 0.0, %v948
    %950 = vmatmul.f32.gmra.mxu0 %v312
    %v951 = vpop.f32.mrf.mxu0
    %v952 = vadd.f32 0.0, %v951
    %953 = vmatmul.f32.gmra.mxu0 %v315
    %v954 = vpop.f32.mrf.mxu0
    %v955 = vadd.f32 0.0, %v954
    %956 = vmatmul.f32.gmra.mxu0 %v318
    %v957 = vpop.f32.mrf.mxu0
    %v958 = vadd.f32 0.0, %v957
    %959 = vmatmul.f32.gmra.mxu0 %v321
    %v960 = vpop.f32.mrf.mxu0
    %v961 = vadd.f32 0.0, %v960
    %962 = vmatmul.f32.gmra.mxu0 %v324
    %v963 = vpop.f32.mrf.mxu0
    %v964 = vadd.f32 0.0, %v963
    %965 = vmatmul.f32.gmra.mxu0 %v327
    %v966 = vpop.f32.mrf.mxu0
    %v967 = vadd.f32 0.0, %v966
    %968 = vmatmul.f32.gmra.mxu0 %v330
    %v969 = vpop.f32.mrf.mxu0
    %v970 = vadd.f32 0.0, %v969
    %971 = vmatmul.f32.gmra.mxu0 %v333
    %v972 = vpop.f32.mrf.mxu0
    %v973 = vadd.f32 0.0, %v972
    %974 = vmatmul.f32.gmra.mxu0 %v336
    %v975 = vpop.f32.mrf.mxu0
    %v976 = vadd.f32 0.0, %v975
    %977 = vmatmul.f32.gmra.mxu0 %v339
    %v978 = vpop.f32.mrf.mxu0
    %v979 = vadd.f32 0.0, %v978
    %980 = vmatmul.f32.gmra.mxu0 %v342
    %v981 = vpop.f32.mrf.mxu0
    %v982 = vadd.f32 0.0, %v981
    %983 = vmatmul.f32.gmra.mxu0 %v345
    %v984 = vpop.f32.mrf.mxu0
    %v985 = vadd.f32 0.0, %v984
    %986 = vmatmul.f32.gmra.mxu0 %v348
    %v987 = vpop.f32.mrf.mxu0
    %v988 = vadd.f32 0.0, %v987
    %989 = vmatmul.f32.gmra.mxu0 %v351
    %v990 = vpop.f32.mrf.mxu0
    %v991 = vadd.f32 0.0, %v990
    %992 = vmatmul.f32.gmra.mxu0 %v354
    %v993 = vpop.f32.mrf.mxu0
    %v994 = vadd.f32 0.0, %v993
    %995 = vmatmul.f32.gmra.mxu0 %v357
    %v996 = vpop.f32.mrf.mxu0
    %v997 = vadd.f32 0.0, %v996
    %998 = vmatmul.f32.gmra.mxu0 %v360
    %v999 = vpop.f32.mrf.mxu0
    %v1000 = vadd.f32 0.0, %v999
    %1001 = vmatmul.f32.gmra.mxu0 %v363
    %v1002 = vpop.f32.mrf.mxu0
    %v1003 = vadd.f32 0.0, %v1002
    %1004 = vmatmul.f32.gmra.mxu0 %v366
    %v1005 = vpop.f32.mrf.mxu0
    %v1006 = vadd.f32 0.0, %v1005
    %1007 = vmatmul.f32.gmra.mxu0 %v369
    %v1008 = vpop.f32.mrf.mxu0
    %v1009 = vadd.f32 0.0, %v1008
    %1010 = vdwg.mxu0
    %1011 = vmatpush.msra.mxu0 0.0
    %1012 = vmatpush.msra.mxu0 0.0
    %1013 = vmatpush.msra.mxu0 0.0
    %1014 = vmatpush.msra.mxu0 0.0
    %1015 = vmatpush.msra.mxu0 0.0
    %1016 = vmatpush.msra.mxu0 0.0
    %1017 = vmatpush.msra.mxu0 0.0
    %1018 = vmatpush.msra.mxu0 0.0
    %1019 = vmatpush.msra.mxu0 0.0
    %1020 = vmatpush.msra.mxu0 0.0
    %1021 = vmatpush.msra.mxu0 0.0
    %1022 = vmatpush.msra.mxu0 0.0
    %1023 = vmatpush.msra.mxu0 0.0
    %1024 = vmatpush.msra.mxu0 0.0
    %1025 = vmatpush.msra.mxu0 %v382
    %1026 = vmatpush.msra.mxu0 %v45
    %1027 = vmatmul.f32.gmra.mxu0 %v180
    %v1028 = vpop.f32.mrf.mxu0
    %v1029 = vadd.f32 0.0, %v1028
    %1030 = vmatmul.f32.gmra.mxu0 %v183
    %v1031 = vpop.f32.mrf.mxu0
    %v1032 = vadd.f32 0.0, %v1031
    %1033 = vmatmul.f32.gmra.mxu0 %v186
    %v1034 = vpop.f32.mrf.mxu0
    %v1035 = vadd.f32 0.0, %v1034
    %1036 = vmatmul.f32.gmra.mxu0 %v189
    %v1037 = vpop.f32.mrf.mxu0
    %v1038 = vadd.f32 0.0, %v1037
    %1039 = vmatmul.f32.gmra.mxu0 %v192
    %v1040 = vpop.f32.mrf.mxu0
    %v1041 = vadd.f32 0.0, %v1040
    %1042 = vmatmul.f32.gmra.mxu0 %v195
    %v1043 = vpop.f32.mrf.mxu0
    %v1044 = vadd.f32 0.0, %v1043
    %1045 = vmatmul.f32.gmra.mxu0 %v198
    %v1046 = vpop.f32.mrf.mxu0
    %v1047 = vadd.f32 0.0, %v1046
    %1048 = vmatmul.f32.gmra.mxu0 %v201
    %v1049 = vpop.f32.mrf.mxu0
    %v1050 = vadd.f32 0.0, %v1049
    %1051 = vmatmul.f32.gmra.mxu0 %v204
    %v1052 = vpop.f32.mrf.mxu0
    %v1053 = vadd.f32 0.0, %v1052
    %1054 = vmatmul.f32.gmra.mxu0 %v207
    %v1055 = vpop.f32.mrf.mxu0
    %v1056 = vadd.f32 0.0, %v1055
    %1057 = vmatmul.f32.gmra.mxu0 %v210
    %v1058 = vpop.f32.mrf.mxu0
    %v1059 = vadd.f32 0.0, %v1058
    %1060 = vmatmul.f32.gmra.mxu0 %v213
    %v1061 = vpop.f32.mrf.mxu0
    %v1062 = vadd.f32 0.0, %v1061
    %1063 = vmatmul.f32.gmra.mxu0 %v216
    %v1064 = vpop.f32.mrf.mxu0
    %v1065 = vadd.f32 0.0, %v1064
    %1066 = vmatmul.f32.gmra.mxu0 %v219
    %v1067 = vpop.f32.mrf.mxu0
    %v1068 = vadd.f32 0.0, %v1067
    %1069 = vmatmul.f32.gmra.mxu0 %v222
    %v1070 = vpop.f32.mrf.mxu0
    %v1071 = vadd.f32 0.0, %v1070
    %1072 = vmatmul.f32.gmra.mxu0 %v225
    %v1073 = vpop.f32.mrf.mxu0
    %v1074 = vadd.f32 0.0, %v1073
    %1075 = vmatmul.f32.gmra.mxu0 %v228
    %v1076 = vpop.f32.mrf.mxu0
    %v1077 = vadd.f32 0.0, %v1076
    %1078 = vmatmul.f32.gmra.mxu0 %v231
    %v1079 = vpop.f32.mrf.mxu0
    %v1080 = vadd.f32 0.0, %v1079
    %1081 = vmatmul.f32.gmra.mxu0 %v234
    %v1082 = vpop.f32.mrf.mxu0
    %v1083 = vadd.f32 0.0, %v1082
    %1084 = vmatmul.f32.gmra.mxu0 %v237
    %v1085 = vpop.f32.mrf.mxu0
    %v1086 = vadd.f32 0.0, %v1085
    %1087 = vmatmul.f32.gmra.mxu0 %v240
    %v1088 = vpop.f32.mrf.mxu0
    %v1089 = vadd.f32 0.0, %v1088
    %1090 = vmatmul.f32.gmra.mxu0 %v243
    %v1091 = vpop.f32.mrf.mxu0
    %v1092 = vadd.f32 0.0, %v1091
    %1093 = vmatmul.f32.gmra.mxu0 %v246
    %v1094 = vpop.f32.mrf.mxu0
    %v1095 = vadd.f32 0.0, %v1094
    %1096 = vmatmul.f32.gmra.mxu0 %v249
    %v1097 = vpop.f32.mrf.mxu0
    %v1098 = vadd.f32 0.0, %v1097
    %1099 = vmatmul.f32.gmra.mxu0 %v252
    %v1100 = vpop.f32.mrf.mxu0
    %v1101 = vadd.f32 0.0, %v1100
    %1102 = vmatmul.f32.gmra.mxu0 %v255
    %v1103 = vpop.f32.mrf.mxu0
    %v1104 = vadd.f32 0.0, %v1103
    %1105 = vmatmul.f32.gmra.mxu0 %v258
    %v1106 = vpop.f32.mrf.mxu0
    %v1107 = vadd.f32 0.0, %v1106
    %1108 = vmatmul.f32.gmra.mxu0 %v261
    %v1109 = vpop.f32.mrf.mxu0
    %v1110 = vadd.f32 0.0, %v1109
    %1111 = vmatmul.f32.gmra.mxu0 %v264
    %v1112 = vpop.f32.mrf.mxu0
    %v1113 = vadd.f32 0.0, %v1112
    %1114 = vmatmul.f32.gmra.mxu0 %v267
    %v1115 = vpop.f32.mrf.mxu0
    %v1116 = vadd.f32 0.0, %v1115
    %1117 = vmatmul.f32.gmra.mxu0 %v270
    %v1118 = vpop.f32.mrf.mxu0
    %v1119 = vadd.f32 0.0, %v1118
    %1120 = vmatmul.f32.gmra.mxu0 %v273
    %v1121 = vpop.f32.mrf.mxu0
    %v1122 = vadd.f32 0.0, %v1121
    %1123 = vmatmul.f32.gmra.mxu0 %v276
    %v1124 = vpop.f32.mrf.mxu0
    %v1125 = vadd.f32 0.0, %v1124
    %1126 = vmatmul.f32.gmra.mxu0 %v279
    %v1127 = vpop.f32.mrf.mxu0
    %v1128 = vadd.f32 0.0, %v1127
    %1129 = vmatmul.f32.gmra.mxu0 %v282
    %v1130 = vpop.f32.mrf.mxu0
    %v1131 = vadd.f32 0.0, %v1130
    %1132 = vmatmul.f32.gmra.mxu0 %v285
    %v1133 = vpop.f32.mrf.mxu0
    %v1134 = vadd.f32 0.0, %v1133
    %1135 = vmatmul.f32.gmra.mxu0 %v288
    %v1136 = vpop.f32.mrf.mxu0
    %v1137 = vadd.f32 0.0, %v1136
    %1138 = vmatmul.f32.gmra.mxu0 %v291
    %v1139 = vpop.f32.mrf.mxu0
    %v1140 = vadd.f32 0.0, %v1139
    %1141 = vmatmul.f32.gmra.mxu0 %v294
    %v1142 = vpop.f32.mrf.mxu0
    %v1143 = vadd.f32 0.0, %v1142
    %1144 = vmatmul.f32.gmra.mxu0 %v297
    %v1145 = vpop.f32.mrf.mxu0
    %v1146 = vadd.f32 0.0, %v1145
    %1147 = vmatmul.f32.gmra.mxu0 %v300
    %v1148 = vpop.f32.mrf.mxu0
    %v1149 = vadd.f32 0.0, %v1148
    %1150 = vmatmul.f32.gmra.mxu0 %v303
    %v1151 = vpop.f32.mrf.mxu0
    %v1152 = vadd.f32 0.0, %v1151
    %1153 = vmatmul.f32.gmra.mxu0 %v306
    %v1154 = vpop.f32.mrf.mxu0
    %v1155 = vadd.f32 0.0, %v1154
    %1156 = vmatmul.f32.gmra.mxu0 %v309
    %v1157 = vpop.f32.mrf.mxu0
    %v1158 = vadd.f32 0.0, %v1157
    %1159 = vmatmul.f32.gmra.mxu0 %v312
    %v1160 = vpop.f32.mrf.mxu0
    %v1161 = vadd.f32 0.0, %v1160
    %1162 = vmatmul.f32.gmra.mxu0 %v315
    %v1163 = vpop.f32.mrf.mxu0
    %v1164 = vadd.f32 0.0, %v1163
    %1165 = vmatmul.f32.gmra.mxu0 %v318
    %v1166 = vpop.f32.mrf.mxu0
    %v1167 = vadd.f32 0.0, %v1166
    %1168 = vmatmul.f32.gmra.mxu0 %v321
    %v1169 = vpop.f32.mrf.mxu0
    %v1170 = vadd.f32 0.0, %v1169
    %1171 = vmatmul.f32.gmra.mxu0 %v324
    %v1172 = vpop.f32.mrf.mxu0
    %v1173 = vadd.f32 0.0, %v1172
    %1174 = vmatmul.f32.gmra.mxu0 %v327
    %v1175 = vpop.f32.mrf.mxu0
    %v1176 = vadd.f32 0.0, %v1175
    %1177 = vmatmul.f32.gmra.mxu0 %v330
    %v1178 = vpop.f32.mrf.mxu0
    %v1179 = vadd.f32 0.0, %v1178
    %1180 = vmatmul.f32.gmra.mxu0 %v333
    %v1181 = vpop.f32.mrf.mxu0
    %v1182 = vadd.f32 0.0, %v1181
    %1183 = vmatmul.f32.gmra.mxu0 %v336
    %v1184 = vpop.f32.mrf.mxu0
    %v1185 = vadd.f32 0.0, %v1184
    %1186 = vmatmul.f32.gmra.mxu0 %v339
    %v1187 = vpop.f32.mrf.mxu0
    %v1188 = vadd.f32 0.0, %v1187
    %1189 = vmatmul.f32.gmra.mxu0 %v342
    %v1190 = vpop.f32.mrf.mxu0
    %v1191 = vadd.f32 0.0, %v1190
    %1192 = vmatmul.f32.gmra.mxu0 %v345
    %v1193 = vpop.f32.mrf.mxu0
    %v1194 = vadd.f32 0.0, %v1193
    %1195 = vmatmul.f32.gmra.mxu0 %v348
    %v1196 = vpop.f32.mrf.mxu0
    %v1197 = vadd.f32 0.0, %v1196
    %1198 = vmatmul.f32.gmra.mxu0 %v351
    %v1199 = vpop.f32.mrf.mxu0
    %v1200 = vadd.f32 0.0, %v1199
    %1201 = vmatmul.f32.gmra.mxu0 %v354
    %v1202 = vpop.f32.mrf.mxu0
    %v1203 = vadd.f32 0.0, %v1202
    %1204 = vmatmul.f32.gmra.mxu0 %v357
    %v1205 = vpop.f32.mrf.mxu0
    %v1206 = vadd.f32 0.0, %v1205
    %1207 = vmatmul.f32.gmra.mxu0 %v360
    %v1208 = vpop.f32.mrf.mxu0
    %v1209 = vadd.f32 0.0, %v1208
    %1210 = vmatmul.f32.gmra.mxu0 %v363
    %v1211 = vpop.f32.mrf.mxu0
    %v1212 = vadd.f32 0.0, %v1211
    %1213 = vmatmul.f32.gmra.mxu0 %v366
    %v1214 = vpop.f32.mrf.mxu0
    %v1215 = vadd.f32 0.0, %v1214
    %1216 = vmatmul.f32.gmra.mxu0 %v369
    %v1217 = vpop.f32.mrf.mxu0
    %v1218 = vadd.f32 0.0, %v1217
    %1219 = vdwg.mxu0
    %v1220 = vstv %s33
    %v1221 = vmin.f32 %v402, %v1220
    %v1222 = vmin.f32 %v611, %v1220
    %v1223 = vmin.f32 %v820, %v1220
    %v1224 = vmin.f32 %v1029, %v1220
    %v1225 = vmin.f32 %v405, %v1220
    %v1226 = vmin.f32 %v614, %v1220
    %v1227 = vmin.f32 %v823, %v1220
    %v1228 = vmin.f32 %v1032, %v1220
    %v1229 = vmin.f32 %v408, %v1220
    %v1230 = vmin.f32 %v617, %v1220
    %v1231 = vmin.f32 %v826, %v1220
    %v1232 = vmin.f32 %v1035, %v1220
    %v1233 = vmin.f32 %v411, %v1220
    %v1234 = vmin.f32 %v620, %v1220
    %v1235 = vmin.f32 %v829, %v1220
    %v1236 = vmin.f32 %v1038, %v1220
    %v1237 = vmin.f32 %v414, %v1220
    %v1238 = vmin.f32 %v623, %v1220
    %v1239 = vmin.f32 %v832, %v1220
    %v1240 = vmin.f32 %v1041, %v1220
    %v1241 = vmin.f32 %v417, %v1220
    %v1242 = vmin.f32 %v626, %v1220
    %v1243 = vmin.f32 %v835, %v1220
    %v1244 = vmin.f32 %v1044, %v1220
    %v1245 = vmin.f32 %v420, %v1220
    %v1246 = vmin.f32 %v629, %v1220
    %v1247 = vmin.f32 %v838, %v1220
    %v1248 = vmin.f32 %v1047, %v1220
    %v1249 = vmin.f32 %v423, %v1220
    %v1250 = vmin.f32 %v632, %v1220
    %v1251 = vmin.f32 %v841, %v1220
    %v1252 = vmin.f32 %v1050, %v1220
    %v1253 = vmin.f32 %v426, %v1220
    %v1254 = vmin.f32 %v635, %v1220
    %v1255 = vmin.f32 %v844, %v1220
    %v1256 = vmin.f32 %v1053, %v1220
    %v1257 = vmin.f32 %v429, %v1220
    %v1258 = vmin.f32 %v638, %v1220
    %v1259 = vmin.f32 %v847, %v1220
    %v1260 = vmin.f32 %v1056, %v1220
    %v1261 = vmin.f32 %v432, %v1220
    %v1262 = vmin.f32 %v641, %v1220
    %v1263 = vmin.f32 %v850, %v1220
    %v1264 = vmin.f32 %v1059, %v1220
    %v1265 = vmin.f32 %v435, %v1220
    %v1266 = vmin.f32 %v644, %v1220
    %v1267 = vmin.f32 %v853, %v1220
    %v1268 = vmin.f32 %v1062, %v1220
    %v1269 = vmin.f32 %v438, %v1220
    %v1270 = vmin.f32 %v647, %v1220
    %v1271 = vmin.f32 %v856, %v1220
    %v1272 = vmin.f32 %v1065, %v1220
    %v1273 = vmin.f32 %v441, %v1220
    %v1274 = vmin.f32 %v650, %v1220
    %v1275 = vmin.f32 %v859, %v1220
    %v1276 = vmin.f32 %v1068, %v1220
    %v1277 = vmin.f32 %v444, %v1220
    %v1278 = vmin.f32 %v653, %v1220
    %v1279 = vmin.f32 %v862, %v1220
    %v1280 = vmin.f32 %v1071, %v1220
    %v1281 = vmin.f32 %v447, %v1220
    %v1282 = vmin.f32 %v656, %v1220
    %v1283 = vmin.f32 %v865, %v1220
    %v1284 = vmin.f32 %v1074, %v1220
    %v1285 = vmin.f32 %v450, %v1220
    %v1286 = vmin.f32 %v659, %v1220
    %v1287 = vmin.f32 %v868, %v1220
    %v1288 = vmin.f32 %v1077, %v1220
    %v1289 = vmin.f32 %v453, %v1220
    %v1290 = vmin.f32 %v662, %v1220
    %v1291 = vmin.f32 %v871, %v1220
    %v1292 = vmin.f32 %v1080, %v1220
    %v1293 = vmin.f32 %v456, %v1220
    %v1294 = vmin.f32 %v665, %v1220
    %v1295 = vmin.f32 %v874, %v1220
    %v1296 = vmin.f32 %v1083, %v1220
    %v1297 = vmin.f32 %v459, %v1220
    %v1298 = vmin.f32 %v668, %v1220
    %v1299 = vmin.f32 %v877, %v1220
    %v1300 = vmin.f32 %v1086, %v1220
    %v1301 = vmin.f32 %v462, %v1220
    %v1302 = vmin.f32 %v671, %v1220
    %v1303 = vmin.f32 %v880, %v1220
    %v1304 = vmin.f32 %v1089, %v1220
    %v1305 = vmin.f32 %v465, %v1220
    %v1306 = vmin.f32 %v674, %v1220
    %v1307 = vmin.f32 %v883, %v1220
    %v1308 = vmin.f32 %v1092, %v1220
    %v1309 = vmin.f32 %v468, %v1220
    %v1310 = vmin.f32 %v677, %v1220
    %v1311 = vmin.f32 %v886, %v1220
    %v1312 = vmin.f32 %v1095, %v1220
    %v1313 = vmin.f32 %v471, %v1220
    %v1314 = vmin.f32 %v680, %v1220
    %v1315 = vmin.f32 %v889, %v1220
    %v1316 = vmin.f32 %v1098, %v1220
    %v1317 = vmin.f32 %v474, %v1220
    %v1318 = vmin.f32 %v683, %v1220
    %v1319 = vmin.f32 %v892, %v1220
    %v1320 = vmin.f32 %v1101, %v1220
    %v1321 = vmin.f32 %v477, %v1220
    %v1322 = vmin.f32 %v686, %v1220
    %v1323 = vmin.f32 %v895, %v1220
    %v1324 = vmin.f32 %v1104, %v1220
    %v1325 = vmin.f32 %v480, %v1220
    %v1326 = vmin.f32 %v689, %v1220
    %v1327 = vmin.f32 %v898, %v1220
    %v1328 = vmin.f32 %v1107, %v1220
    %v1329 = vmin.f32 %v483, %v1220
    %v1330 = vmin.f32 %v692, %v1220
    %v1331 = vmin.f32 %v901, %v1220
    %v1332 = vmin.f32 %v1110, %v1220
    %v1333 = vmin.f32 %v486, %v1220
    %v1334 = vmin.f32 %v695, %v1220
    %v1335 = vmin.f32 %v904, %v1220
    %v1336 = vmin.f32 %v1113, %v1220
    %v1337 = vmin.f32 %v489, %v1220
    %v1338 = vmin.f32 %v698, %v1220
    %v1339 = vmin.f32 %v907, %v1220
    %v1340 = vmin.f32 %v1116, %v1220
    %v1341 = vmin.f32 %v492, %v1220
    %v1342 = vmin.f32 %v701, %v1220
    %v1343 = vmin.f32 %v910, %v1220
    %v1344 = vmin.f32 %v1119, %v1220
    %v1345 = vmin.f32 %v495, %v1220
    %v1346 = vmin.f32 %v704, %v1220
    %v1347 = vmin.f32 %v913, %v1220
    %v1348 = vmin.f32 %v1122, %v1220
    %v1349 = vmin.f32 %v498, %v1220
    %v1350 = vmin.f32 %v707, %v1220
    %v1351 = vmin.f32 %v916, %v1220
    %v1352 = vmin.f32 %v1125, %v1220
    %v1353 = vmin.f32 %v501, %v1220
    %v1354 = vmin.f32 %v710, %v1220
    %v1355 = vmin.f32 %v919, %v1220
    %v1356 = vmin.f32 %v1128, %v1220
    %v1357 = vmin.f32 %v504, %v1220
    %v1358 = vmin.f32 %v713, %v1220
    %v1359 = vmin.f32 %v922, %v1220
    %v1360 = vmin.f32 %v1131, %v1220
    %v1361 = vmin.f32 %v507, %v1220
    %v1362 = vmin.f32 %v716, %v1220
    %v1363 = vmin.f32 %v925, %v1220
    %v1364 = vmin.f32 %v1134, %v1220
    %v1365 = vmin.f32 %v510, %v1220
    %v1366 = vmin.f32 %v719, %v1220
    %v1367 = vmin.f32 %v928, %v1220
    %v1368 = vmin.f32 %v1137, %v1220
    %v1369 = vmin.f32 %v513, %v1220
    %v1370 = vmin.f32 %v722, %v1220
    %v1371 = vmin.f32 %v931, %v1220
    %v1372 = vmin.f32 %v1140, %v1220
    %v1373 = vmin.f32 %v516, %v1220
    %v1374 = vmin.f32 %v725, %v1220
    %v1375 = vmin.f32 %v934, %v1220
    %v1376 = vmin.f32 %v1143, %v1220
    %v1377 = vmin.f32 %v519, %v1220
    %v1378 = vmin.f32 %v728, %v1220
    %v1379 = vmin.f32 %v937, %v1220
    %v1380 = vmin.f32 %v1146, %v1220
    %v1381 = vmin.f32 %v522, %v1220
    %v1382 = vmin.f32 %v731, %v1220
    %v1383 = vmin.f32 %v940, %v1220
    %v1384 = vmin.f32 %v1149, %v1220
    %v1385 = vmin.f32 %v525, %v1220
    %v1386 = vmin.f32 %v734, %v1220
    %v1387 = vmin.f32 %v943, %v1220
    %v1388 = vmin.f32 %v1152, %v1220
    %v1389 = vmin.f32 %v528, %v1220
    %v1390 = vmin.f32 %v737, %v1220
    %v1391 = vmin.f32 %v946, %v1220
    %v1392 = vmin.f32 %v1155, %v1220
    %v1393 = vmin.f32 %v531, %v1220
    %v1394 = vmin.f32 %v740, %v1220
    %v1395 = vmin.f32 %v949, %v1220
    %v1396 = vmin.f32 %v1158, %v1220
    %v1397 = vmin.f32 %v534, %v1220
    %v1398 = vmin.f32 %v743, %v1220
    %v1399 = vmin.f32 %v952, %v1220
    %v1400 = vmin.f32 %v1161, %v1220
    %v1401 = vmin.f32 %v537, %v1220
    %v1402 = vmin.f32 %v746, %v1220
    %v1403 = vmin.f32 %v955, %v1220
    %v1404 = vmin.f32 %v1164, %v1220
    %v1405 = vmin.f32 %v540, %v1220
    %v1406 = vmin.f32 %v749, %v1220
    %v1407 = vmin.f32 %v958, %v1220
    %v1408 = vmin.f32 %v1167, %v1220
    %v1409 = vmin.f32 %v543, %v1220
    %v1410 = vmin.f32 %v752, %v1220
    %v1411 = vmin.f32 %v961, %v1220
    %v1412 = vmin.f32 %v1170, %v1220
    %v1413 = vmin.f32 %v546, %v1220
    %v1414 = vmin.f32 %v755, %v1220
    %v1415 = vmin.f32 %v964, %v1220
    %v1416 = vmin.f32 %v1173, %v1220
    %v1417 = vmin.f32 %v549, %v1220
    %v1418 = vmin.f32 %v758, %v1220
    %v1419 = vmin.f32 %v967, %v1220
    %v1420 = vmin.f32 %v1176, %v1220
    %v1421 = vmin.f32 %v552, %v1220
    %v1422 = vmin.f32 %v761, %v1220
    %v1423 = vmin.f32 %v970, %v1220
    %v1424 = vmin.f32 %v1179, %v1220
    %v1425 = vmin.f32 %v555, %v1220
    %v1426 = vmin.f32 %v764, %v1220
    %v1427 = vmin.f32 %v973, %v1220
    %v1428 = vmin.f32 %v1182, %v1220
    %v1429 = vmin.f32 %v558, %v1220
    %v1430 = vmin.f32 %v767, %v1220
    %v1431 = vmin.f32 %v976, %v1220
    %v1432 = vmin.f32 %v1185, %v1220
    %v1433 = vmin.f32 %v561, %v1220
    %v1434 = vmin.f32 %v770, %v1220
    %v1435 = vmin.f32 %v979, %v1220
    %v1436 = vmin.f32 %v1188, %v1220
    %v1437 = vmin.f32 %v564, %v1220
    %v1438 = vmin.f32 %v773, %v1220
    %v1439 = vmin.f32 %v982, %v1220
    %v1440 = vmin.f32 %v1191, %v1220
    %v1441 = vmin.f32 %v567, %v1220
    %v1442 = vmin.f32 %v776, %v1220
    %v1443 = vmin.f32 %v985, %v1220
    %v1444 = vmin.f32 %v1194, %v1220
    %v1445 = vmin.f32 %v570, %v1220
    %v1446 = vmin.f32 %v779, %v1220
    %v1447 = vmin.f32 %v988, %v1220
    %v1448 = vmin.f32 %v1197, %v1220
    %v1449 = vmin.f32 %v573, %v1220
    %v1450 = vmin.f32 %v782, %v1220
    %v1451 = vmin.f32 %v991, %v1220
    %v1452 = vmin.f32 %v1200, %v1220
    %v1453 = vmin.f32 %v576, %v1220
    %v1454 = vmin.f32 %v785, %v1220
    %v1455 = vmin.f32 %v994, %v1220
    %v1456 = vmin.f32 %v1203, %v1220
    %v1457 = vmin.f32 %v579, %v1220
    %v1458 = vmin.f32 %v788, %v1220
    %v1459 = vmin.f32 %v997, %v1220
    %v1460 = vmin.f32 %v1206, %v1220
    %v1461 = vmin.f32 %v582, %v1220
    %v1462 = vmin.f32 %v791, %v1220
    %v1463 = vmin.f32 %v1000, %v1220
    %v1464 = vmin.f32 %v1209, %v1220
    %v1465 = vmin.f32 %v585, %v1220
    %v1466 = vmin.f32 %v794, %v1220
    %v1467 = vmin.f32 %v1003, %v1220
    %v1468 = vmin.f32 %v1212, %v1220
    %v1469 = vmin.f32 %v588, %v1220
    %v1470 = vmin.f32 %v797, %v1220
    %v1471 = vmin.f32 %v1006, %v1220
    %v1472 = vmin.f32 %v1215, %v1220
    %v1473 = vmin.f32 %v591, %v1220
    %v1474 = vmin.f32 %v800, %v1220
    %v1475 = vmin.f32 %v1009, %v1220
    %v1476 = vmin.f32 %v1218, %v1220
    %v1477 = vmul.f32 %v1221, 1.442695
    %v1478 = vpow.pop %v1477
    %v1479 = vmul.f32 %v1222, 1.442695
    %v1480 = vpow.pop %v1479
    %v1481 = vmul.f32 %v1223, 1.442695
    %v1482 = vpow.pop %v1481
    %v1483 = vmul.f32 %v1224, 1.442695
    %v1484 = vpow.pop %v1483
    %v1485 = vmul.f32 %v1225, 1.442695
    %v1486 = vpow.pop %v1485
    %v1487 = vmul.f32 %v1226, 1.442695
    %v1488 = vpow.pop %v1487
    %v1489 = vmul.f32 %v1227, 1.442695
    %v1490 = vpow.pop %v1489
    %v1491 = vmul.f32 %v1228, 1.442695
    %v1492 = vpow.pop %v1491
    %v1493 = vmul.f32 %v1229, 1.442695
    %v1494 = vpow.pop %v1493
    %v1495 = vmul.f32 %v1230, 1.442695
    %v1496 = vpow.pop %v1495
    %v1497 = vmul.f32 %v1231, 1.442695
    %v1498 = vpow.pop %v1497
    %v1499 = vmul.f32 %v1232, 1.442695
    %v1500 = vpow.pop %v1499
    %v1501 = vmul.f32 %v1233, 1.442695
    %v1502 = vpow.pop %v1501
    %v1503 = vmul.f32 %v1234, 1.442695
    %v1504 = vpow.pop %v1503
    %v1505 = vmul.f32 %v1235, 1.442695
    %v1506 = vpow.pop %v1505
    %v1507 = vmul.f32 %v1236, 1.442695
    %v1508 = vpow.pop %v1507
    %v1509 = vmul.f32 %v1237, 1.442695
    %v1510 = vpow.pop %v1509
    %v1511 = vmul.f32 %v1238, 1.442695
    %v1512 = vpow.pop %v1511
    %v1513 = vmul.f32 %v1239, 1.442695
    %v1514 = vpow.pop %v1513
    %v1515 = vmul.f32 %v1240, 1.442695
    %v1516 = vpow.pop %v1515
    %v1517 = vmul.f32 %v1241, 1.442695
    %v1518 = vpow.pop %v1517
    %v1519 = vmul.f32 %v1242, 1.442695
    %v1520 = vpow.pop %v1519
    %v1521 = vmul.f32 %v1243, 1.442695
    %v1522 = vpow.pop %v1521
    %v1523 = vmul.f32 %v1244, 1.442695
    %v1524 = vpow.pop %v1523
    %v1525 = vmul.f32 %v1245, 1.442695
    %v1526 = vpow.pop %v1525
    %v1527 = vmul.f32 %v1246, 1.442695
    %v1528 = vpow.pop %v1527
    %v1529 = vmul.f32 %v1247, 1.442695
    %v1530 = vpow.pop %v1529
    %v1531 = vmul.f32 %v1248, 1.442695
    %v1532 = vpow.pop %v1531
    %v1533 = vmul.f32 %v1249, 1.442695
    %v1534 = vpow.pop %v1533
    %v1535 = vmul.f32 %v1250, 1.442695
    %v1536 = vpow.pop %v1535
    %v1537 = vmul.f32 %v1251, 1.442695
    %v1538 = vpow.pop %v1537
    %v1539 = vmul.f32 %v1252, 1.442695
    %v1540 = vpow.pop %v1539
    %v1541 = vmul.f32 %v1253, 1.442695
    %v1542 = vpow.pop %v1541
    %v1543 = vmul.f32 %v1254, 1.442695
    %v1544 = vpow.pop %v1543
    %v1545 = vmul.f32 %v1255, 1.442695
    %v1546 = vpow.pop %v1545
    %v1547 = vmul.f32 %v1256, 1.442695
    %v1548 = vpow.pop %v1547
    %v1549 = vmul.f32 %v1257, 1.442695
    %v1550 = vpow.pop %v1549
    %v1551 = vmul.f32 %v1258, 1.442695
    %v1552 = vpow.pop %v1551
    %v1553 = vmul.f32 %v1259, 1.442695
    %v1554 = vpow.pop %v1553
    %v1555 = vmul.f32 %v1260, 1.442695
    %v1556 = vpow.pop %v1555
    %v1557 = vmul.f32 %v1261, 1.442695
    %v1558 = vpow.pop %v1557
    %v1559 = vmul.f32 %v1262, 1.442695
    %v1560 = vpow.pop %v1559
    %v1561 = vmul.f32 %v1263, 1.442695
    %v1562 = vpow.pop %v1561
    %v1563 = vmul.f32 %v1264, 1.442695
    %v1564 = vpow.pop %v1563
    %v1565 = vmul.f32 %v1265, 1.442695
    %v1566 = vpow.pop %v1565
    %v1567 = vmul.f32 %v1266, 1.442695
    %v1568 = vpow.pop %v1567
    %v1569 = vmul.f32 %v1267, 1.442695
    %v1570 = vpow.pop %v1569
    %v1571 = vmul.f32 %v1268, 1.442695
    %v1572 = vpow.pop %v1571
    %v1573 = vmul.f32 %v1269, 1.442695
    %v1574 = vpow.pop %v1573
    %v1575 = vmul.f32 %v1270, 1.442695
    %v1576 = vpow.pop %v1575
    %v1577 = vmul.f32 %v1271, 1.442695
    %v1578 = vpow.pop %v1577
    %v1579 = vmul.f32 %v1272, 1.442695
    %v1580 = vpow.pop %v1579
    %v1581 = vmul.f32 %v1273, 1.442695
    %v1582 = vpow.pop %v1581
    %v1583 = vmul.f32 %v1274, 1.442695
    %v1584 = vpow.pop %v1583
    %v1585 = vmul.f32 %v1275, 1.442695
    %v1586 = vpow.pop %v1585
    %v1587 = vmul.f32 %v1276, 1.442695
    %v1588 = vpow.pop %v1587
    %v1589 = vmul.f32 %v1277, 1.442695
    %v1590 = vpow.pop %v1589
    %v1591 = vmul.f32 %v1278, 1.442695
    %v1592 = vpow.pop %v1591
    %v1593 = vmul.f32 %v1279, 1.442695
    %v1594 = vpow.pop %v1593
    %v1595 = vmul.f32 %v1280, 1.442695
    %v1596 = vpow.pop %v1595
    %v1597 = vmul.f32 %v1281, 1.442695
    %v1598 = vpow.pop %v1597
    %v1599 = vmul.f32 %v1282, 1.442695
    %v1600 = vpow.pop %v1599
    %v1601 = vmul.f32 %v1283, 1.442695
    %v1602 = vpow.pop %v1601
    %v1603 = vmul.f32 %v1284, 1.442695
    %v1604 = vpow.pop %v1603
    %v1605 = vmul.f32 %v1285, 1.442695
    %v1606 = vpow.pop %v1605
    %v1607 = vmul.f32 %v1286, 1.442695
    %v1608 = vpow.pop %v1607
    %v1609 = vmul.f32 %v1287, 1.442695
    %v1610 = vpow.pop %v1609
    %v1611 = vmul.f32 %v1288, 1.442695
    %v1612 = vpow.pop %v1611
    %v1613 = vmul.f32 %v1289, 1.442695
    %v1614 = vpow.pop %v1613
    %v1615 = vmul.f32 %v1290, 1.442695
    %v1616 = vpow.pop %v1615
    %v1617 = vmul.f32 %v1291, 1.442695
    %v1618 = vpow.pop %v1617
    %v1619 = vmul.f32 %v1292, 1.442695
    %v1620 = vpow.pop %v1619
    %v1621 = vmul.f32 %v1293, 1.442695
    %v1622 = vpow.pop %v1621
    %v1623 = vmul.f32 %v1294, 1.442695
    %v1624 = vpow.pop %v1623
    %v1625 = vmul.f32 %v1295, 1.442695
    %v1626 = vpow.pop %v1625
    %v1627 = vmul.f32 %v1296, 1.442695
    %v1628 = vpow.pop %v1627
    %v1629 = vmul.f32 %v1297, 1.442695
    %v1630 = vpow.pop %v1629
    %v1631 = vmul.f32 %v1298, 1.442695
    %v1632 = vpow.pop %v1631
    %v1633 = vmul.f32 %v1299, 1.442695
    %v1634 = vpow.pop %v1633
    %v1635 = vmul.f32 %v1300, 1.442695
    %v1636 = vpow.pop %v1635
    %v1637 = vmul.f32 %v1301, 1.442695
    %v1638 = vpow.pop %v1637
    %v1639 = vmul.f32 %v1302, 1.442695
    %v1640 = vpow.pop %v1639
    %v1641 = vmul.f32 %v1303, 1.442695
    %v1642 = vpow.pop %v1641
    %v1643 = vmul.f32 %v1304, 1.442695
    %v1644 = vpow.pop %v1643
    %v1645 = vmul.f32 %v1305, 1.442695
    %v1646 = vpow.pop %v1645
    %v1647 = vmul.f32 %v1306, 1.442695
    %v1648 = vpow.pop %v1647
    %v1649 = vmul.f32 %v1307, 1.442695
    %v1650 = vpow.pop %v1649
    %v1651 = vmul.f32 %v1308, 1.442695
    %v1652 = vpow.pop %v1651
    %v1653 = vmul.f32 %v1309, 1.442695
    %v1654 = vpow.pop %v1653
    %v1655 = vmul.f32 %v1310, 1.442695
    %v1656 = vpow.pop %v1655
    %v1657 = vmul.f32 %v1311, 1.442695
    %v1658 = vpow.pop %v1657
    %v1659 = vmul.f32 %v1312, 1.442695
    %v1660 = vpow.pop %v1659
    %v1661 = vmul.f32 %v1313, 1.442695
    %v1662 = vpow.pop %v1661
    %v1663 = vmul.f32 %v1314, 1.442695
    %v1664 = vpow.pop %v1663
    %v1665 = vmul.f32 %v1315, 1.442695
    %v1666 = vpow.pop %v1665
    %v1667 = vmul.f32 %v1316, 1.442695
    %v1668 = vpow.pop %v1667
    %v1669 = vmul.f32 %v1317, 1.442695
    %v1670 = vpow.pop %v1669
    %v1671 = vmul.f32 %v1318, 1.442695
    %v1672 = vpow.pop %v1671
    %v1673 = vmul.f32 %v1319, 1.442695
    %v1674 = vpow.pop %v1673
    %v1675 = vmul.f32 %v1320, 1.442695
    %v1676 = vpow.pop %v1675
    %v1677 = vmul.f32 %v1321, 1.442695
    %v1678 = vpow.pop %v1677
    %v1679 = vmul.f32 %v1322, 1.442695
    %v1680 = vpow.pop %v1679
    %v1681 = vmul.f32 %v1323, 1.442695
    %v1682 = vpow.pop %v1681
    %v1683 = vmul.f32 %v1324, 1.442695
    %v1684 = vpow.pop %v1683
    %v1685 = vmul.f32 %v1325, 1.442695
    %v1686 = vpow.pop %v1685
    %v1687 = vmul.f32 %v1326, 1.442695
    %v1688 = vpow.pop %v1687
    %v1689 = vmul.f32 %v1327, 1.442695
    %v1690 = vpow.pop %v1689
    %v1691 = vmul.f32 %v1328, 1.442695
    %v1692 = vpow.pop %v1691
    %v1693 = vmul.f32 %v1329, 1.442695
    %v1694 = vpow.pop %v1693
    %v1695 = vmul.f32 %v1330, 1.442695
    %v1696 = vpow.pop %v1695
    %v1697 = vmul.f32 %v1331, 1.442695
    %v1698 = vpow.pop %v1697
    %v1699 = vmul.f32 %v1332, 1.442695
    %v1700 = vpow.pop %v1699
    %v1701 = vmul.f32 %v1333, 1.442695
    %v1702 = vpow.pop %v1701
    %v1703 = vmul.f32 %v1334, 1.442695
    %v1704 = vpow.pop %v1703
    %v1705 = vmul.f32 %v1335, 1.442695
    %v1706 = vpow.pop %v1705
    %v1707 = vmul.f32 %v1336, 1.442695
    %v1708 = vpow.pop %v1707
    %v1709 = vmul.f32 %v1337, 1.442695
    %v1710 = vpow.pop %v1709
    %v1711 = vmul.f32 %v1338, 1.442695
    %v1712 = vpow.pop %v1711
    %v1713 = vmul.f32 %v1339, 1.442695
    %v1714 = vpow.pop %v1713
    %v1715 = vmul.f32 %v1340, 1.442695
    %v1716 = vpow.pop %v1715
    %v1717 = vmul.f32 %v1341, 1.442695
    %v1718 = vpow.pop %v1717
    %v1719 = vmul.f32 %v1342, 1.442695
    %v1720 = vpow.pop %v1719
    %v1721 = vmul.f32 %v1343, 1.442695
    %v1722 = vpow.pop %v1721
    %v1723 = vmul.f32 %v1344, 1.442695
    %v1724 = vpow.pop %v1723
    %v1725 = vmul.f32 %v1345, 1.442695
    %v1726 = vpow.pop %v1725
    %v1727 = vmul.f32 %v1346, 1.442695
    %v1728 = vpow.pop %v1727
    %v1729 = vmul.f32 %v1347, 1.442695
    %v1730 = vpow.pop %v1729
    %v1731 = vmul.f32 %v1348, 1.442695
    %v1732 = vpow.pop %v1731
    %v1733 = vmul.f32 %v1349, 1.442695
    %v1734 = vpow.pop %v1733
    %v1735 = vmul.f32 %v1350, 1.442695
    %v1736 = vpow.pop %v1735
    %v1737 = vmul.f32 %v1351, 1.442695
    %v1738 = vpow.pop %v1737
    %v1739 = vmul.f32 %v1352, 1.442695
    %v1740 = vpow.pop %v1739
    %v1741 = vmul.f32 %v1353, 1.442695
    %v1742 = vpow.pop %v1741
    %v1743 = vmul.f32 %v1354, 1.442695
    %v1744 = vpow.pop %v1743
    %v1745 = vmul.f32 %v1355, 1.442695
    %v1746 = vpow.pop %v1745
    %v1747 = vmul.f32 %v1356, 1.442695
    %v1748 = vpow.pop %v1747
    %v1749 = vmul.f32 %v1357, 1.442695
    %v1750 = vpow.pop %v1749
    %v1751 = vmul.f32 %v1358, 1.442695
    %v1752 = vpow.pop %v1751
    %v1753 = vmul.f32 %v1359, 1.442695
    %v1754 = vpow.pop %v1753
    %v1755 = vmul.f32 %v1360, 1.442695
    %v1756 = vpow.pop %v1755
    %v1757 = vmul.f32 %v1361, 1.442695
    %v1758 = vpow.pop %v1757
    %v1759 = vmul.f32 %v1362, 1.442695
    %v1760 = vpow.pop %v1759
    %v1761 = vmul.f32 %v1363, 1.442695
    %v1762 = vpow.pop %v1761
    %v1763 = vmul.f32 %v1364, 1.442695
    %v1764 = vpow.pop %v1763
    %v1765 = vmul.f32 %v1365, 1.442695
    %v1766 = vpow.pop %v1765
    %v1767 = vmul.f32 %v1366, 1.442695
    %v1768 = vpow.pop %v1767
    %v1769 = vmul.f32 %v1367, 1.442695
    %v1770 = vpow.pop %v1769
    %v1771 = vmul.f32 %v1368, 1.442695
    %v1772 = vpow.pop %v1771
    %v1773 = vmul.f32 %v1369, 1.442695
    %v1774 = vpow.pop %v1773
    %v1775 = vmul.f32 %v1370, 1.442695
    %v1776 = vpow.pop %v1775
    %v1777 = vmul.f32 %v1371, 1.442695
    %v1778 = vpow.pop %v1777
    %v1779 = vmul.f32 %v1372, 1.442695
    %v1780 = vpow.pop %v1779
    %v1781 = vmul.f32 %v1373, 1.442695
    %v1782 = vpow.pop %v1781
    %v1783 = vmul.f32 %v1374, 1.442695
    %v1784 = vpow.pop %v1783
    %v1785 = vmul.f32 %v1375, 1.442695
    %v1786 = vpow.pop %v1785
    %v1787 = vmul.f32 %v1376, 1.442695
    %v1788 = vpow.pop %v1787
    %v1789 = vmul.f32 %v1377, 1.442695
    %v1790 = vpow.pop %v1789
    %v1791 = vmul.f32 %v1378, 1.442695
    %v1792 = vpow.pop %v1791
    %v1793 = vmul.f32 %v1379, 1.442695
    %v1794 = vpow.pop %v1793
    %v1795 = vmul.f32 %v1380, 1.442695
    %v1796 = vpow.pop %v1795
    %v1797 = vmul.f32 %v1381, 1.442695
    %v1798 = vpow.pop %v1797
    %v1799 = vmul.f32 %v1382, 1.442695
    %v1800 = vpow.pop %v1799
    %v1801 = vmul.f32 %v1383, 1.442695
    %v1802 = vpow.pop %v1801
    %v1803 = vmul.f32 %v1384, 1.442695
    %v1804 = vpow.pop %v1803
    %v1805 = vmul.f32 %v1385, 1.442695
    %v1806 = vpow.pop %v1805
    %v1807 = vmul.f32 %v1386, 1.442695
    %v1808 = vpow.pop %v1807
    %v1809 = vmul.f32 %v1387, 1.442695
    %v1810 = vpow.pop %v1809
    %v1811 = vmul.f32 %v1388, 1.442695
    %v1812 = vpow.pop %v1811
    %v1813 = vmul.f32 %v1389, 1.442695
    %v1814 = vpow.pop %v1813
    %v1815 = vmul.f32 %v1390, 1.442695
    %v1816 = vpow.pop %v1815
    %v1817 = vmul.f32 %v1391, 1.442695
    %v1818 = vpow.pop %v1817
    %v1819 = vmul.f32 %v1392, 1.442695
    %v1820 = vpow.pop %v1819
    %v1821 = vmul.f32 %v1393, 1.442695
    %v1822 = vpow.pop %v1821
    %v1823 = vmul.f32 %v1394, 1.442695
    %v1824 = vpow.pop %v1823
    %v1825 = vmul.f32 %v1395, 1.442695
    %v1826 = vpow.pop %v1825
    %v1827 = vmul.f32 %v1396, 1.442695
    %v1828 = vpow.pop %v1827
    %v1829 = vmul.f32 %v1397, 1.442695
    %v1830 = vpow.pop %v1829
    %v1831 = vmul.f32 %v1398, 1.442695
    %v1832 = vpow.pop %v1831
    %v1833 = vmul.f32 %v1399, 1.442695
    %v1834 = vpow.pop %v1833
    %v1835 = vmul.f32 %v1400, 1.442695
    %v1836 = vpow.pop %v1835
    %v1837 = vmul.f32 %v1401, 1.442695
    %v1838 = vpow.pop %v1837
    %v1839 = vmul.f32 %v1402, 1.442695
    %v1840 = vpow.pop %v1839
    %v1841 = vmul.f32 %v1403, 1.442695
    %v1842 = vpow.pop %v1841
    %v1843 = vmul.f32 %v1404, 1.442695
    %v1844 = vpow.pop %v1843
    %v1845 = vmul.f32 %v1405, 1.442695
    %v1846 = vpow.pop %v1845
    %v1847 = vmul.f32 %v1406, 1.442695
    %v1848 = vpow.pop %v1847
    %v1849 = vmul.f32 %v1407, 1.442695
    %v1850 = vpow.pop %v1849
    %v1851 = vmul.f32 %v1408, 1.442695
    %v1852 = vpow.pop %v1851
    %v1853 = vmul.f32 %v1409, 1.442695
    %v1854 = vpow.pop %v1853
    %v1855 = vmul.f32 %v1410, 1.442695
    %v1856 = vpow.pop %v1855
    %v1857 = vmul.f32 %v1411, 1.442695
    %v1858 = vpow.pop %v1857
    %v1859 = vmul.f32 %v1412, 1.442695
    %v1860 = vpow.pop %v1859
    %v1861 = vmul.f32 %v1413, 1.442695
    %v1862 = vpow.pop %v1861
    %v1863 = vmul.f32 %v1414, 1.442695
    %v1864 = vpow.pop %v1863
    %v1865 = vmul.f32 %v1415, 1.442695
    %v1866 = vpow.pop %v1865
    %v1867 = vmul.f32 %v1416, 1.442695
    %v1868 = vpow.pop %v1867
    %v1869 = vmul.f32 %v1417, 1.442695
    %v1870 = vpow.pop %v1869
    %v1871 = vmul.f32 %v1418, 1.442695
    %v1872 = vpow.pop %v1871
    %v1873 = vmul.f32 %v1419, 1.442695
    %v1874 = vpow.pop %v1873
    %v1875 = vmul.f32 %v1420, 1.442695
    %v1876 = vpow.pop %v1875
    %v1877 = vmul.f32 %v1421, 1.442695
    %v1878 = vpow.pop %v1877
    %v1879 = vmul.f32 %v1422, 1.442695
    %v1880 = vpow.pop %v1879
    %v1881 = vmul.f32 %v1423, 1.442695
    %v1882 = vpow.pop %v1881
    %v1883 = vmul.f32 %v1424, 1.442695
    %v1884 = vpow.pop %v1883
    %v1885 = vmul.f32 %v1425, 1.442695
    %v1886 = vpow.pop %v1885
    %v1887 = vmul.f32 %v1426, 1.442695
    %v1888 = vpow.pop %v1887
    %v1889 = vmul.f32 %v1427, 1.442695
    %v1890 = vpow.pop %v1889
    %v1891 = vmul.f32 %v1428, 1.442695
    %v1892 = vpow.pop %v1891
    %v1893 = vmul.f32 %v1429, 1.442695
    %v1894 = vpow.pop %v1893
    %v1895 = vmul.f32 %v1430, 1.442695
    %v1896 = vpow.pop %v1895
    %v1897 = vmul.f32 %v1431, 1.442695
    %v1898 = vpow.pop %v1897
    %v1899 = vmul.f32 %v1432, 1.442695
    %v1900 = vpow.pop %v1899
    %v1901 = vmul.f32 %v1433, 1.442695
    %v1902 = vpow.pop %v1901
    %v1903 = vmul.f32 %v1434, 1.442695
    %v1904 = vpow.pop %v1903
    %v1905 = vmul.f32 %v1435, 1.442695
    %v1906 = vpow.pop %v1905
    %v1907 = vmul.f32 %v1436, 1.442695
    %v1908 = vpow.pop %v1907
    %v1909 = vmul.f32 %v1437, 1.442695
    %v1910 = vpow.pop %v1909
    %v1911 = vmul.f32 %v1438, 1.442695
    %v1912 = vpow.pop %v1911
    %v1913 = vmul.f32 %v1439, 1.442695
    %v1914 = vpow.pop %v1913
    %v1915 = vmul.f32 %v1440, 1.442695
    %v1916 = vpow.pop %v1915
    %v1917 = vmul.f32 %v1441, 1.442695
    %v1918 = vpow.pop %v1917
    %v1919 = vmul.f32 %v1442, 1.442695
    %v1920 = vpow.pop %v1919
    %v1921 = vmul.f32 %v1443, 1.442695
    %v1922 = vpow.pop %v1921
    %v1923 = vmul.f32 %v1444, 1.442695
    %v1924 = vpow.pop %v1923
    %v1925 = vmul.f32 %v1445, 1.442695
    %v1926 = vpow.pop %v1925
    %v1927 = vmul.f32 %v1446, 1.442695
    %v1928 = vpow.pop %v1927
    %v1929 = vmul.f32 %v1447, 1.442695
    %v1930 = vpow.pop %v1929
    %v1931 = vmul.f32 %v1448, 1.442695
    %v1932 = vpow.pop %v1931
    %v1933 = vmul.f32 %v1449, 1.442695
    %v1934 = vpow.pop %v1933
    %v1935 = vmul.f32 %v1450, 1.442695
    %v1936 = vpow.pop %v1935
    %v1937 = vmul.f32 %v1451, 1.442695
    %v1938 = vpow.pop %v1937
    %v1939 = vmul.f32 %v1452, 1.442695
    %v1940 = vpow.pop %v1939
    %v1941 = vmul.f32 %v1453, 1.442695
    %v1942 = vpow.pop %v1941
    %v1943 = vmul.f32 %v1454, 1.442695
    %v1944 = vpow.pop %v1943
    %v1945 = vmul.f32 %v1455, 1.442695
    %v1946 = vpow.pop %v1945
    %v1947 = vmul.f32 %v1456, 1.442695
    %v1948 = vpow.pop %v1947
    %v1949 = vmul.f32 %v1457, 1.442695
    %v1950 = vpow.pop %v1949
    %v1951 = vmul.f32 %v1458, 1.442695
    %v1952 = vpow.pop %v1951
    %v1953 = vmul.f32 %v1459, 1.442695
    %v1954 = vpow.pop %v1953
    %v1955 = vmul.f32 %v1460, 1.442695
    %v1956 = vpow.pop %v1955
    %v1957 = vmul.f32 %v1461, 1.442695
    %v1958 = vpow.pop %v1957
    %v1959 = vmul.f32 %v1462, 1.442695
    %v1960 = vpow.pop %v1959
    %v1961 = vmul.f32 %v1463, 1.442695
    %v1962 = vpow.pop %v1961
    %v1963 = vmul.f32 %v1464, 1.442695
    %v1964 = vpow.pop %v1963
    %v1965 = vmul.f32 %v1465, 1.442695
    %v1966 = vpow.pop %v1965
    %v1967 = vmul.f32 %v1466, 1.442695
    %v1968 = vpow.pop %v1967
    %v1969 = vmul.f32 %v1467, 1.442695
    %v1970 = vpow.pop %v1969
    %v1971 = vmul.f32 %v1468, 1.442695
    %v1972 = vpow.pop %v1971
    %v1973 = vmul.f32 %v1469, 1.442695
    %v1974 = vpow.pop %v1973
    %v1975 = vmul.f32 %v1470, 1.442695
    %v1976 = vpow.pop %v1975
    %v1977 = vmul.f32 %v1471, 1.442695
    %v1978 = vpow.pop %v1977
    %v1979 = vmul.f32 %v1472, 1.442695
    %v1980 = vpow.pop %v1979
    %v1981 = vmul.f32 %v1473, 1.442695
    %v1982 = vpow.pop %v1981
    %v1983 = vmul.f32 %v1474, 1.442695
    %v1984 = vpow.pop %v1983
    %v1985 = vmul.f32 %v1475, 1.442695
    %v1986 = vpow.pop %v1985
    %v1987 = vmul.f32 %v1476, 1.442695
    %v1988 = vpow.pop %v1987
    %v1989 = vld [vmem:[%s2] sm:$0xff]
    %v1990 = vld [vmem:[%s2 + $0x8] sm:$0xff]
    %v1991 = vld [vmem:[%s2 + $0x10] sm:$0xff]
    %v1992 = vld [vmem:[%s2 + $0x18] sm:$0xff]
    %v1993 = vld [vmem:[%s2 + $0x20] sm:$0xff]
    %v1994 = vld [vmem:[%s2 + $0x28] sm:$0xff]
    %v1995 = vld [vmem:[%s2 + $0x30] sm:$0xff]
    %v1996 = vld [vmem:[%s2 + $0x38] sm:$0xff]
    %v1997 = vld [vmem:[%s3] sm:$0xff]
    %v1998 = vld [vmem:[%s3 + $0x8] sm:$0xff]
    %v1999 = vld [vmem:[%s3 + $0x10] sm:$0xff]
    %v2000 = vld [vmem:[%s3 + $0x18] sm:$0xff]
    %v2001 = vld [vmem:[%s3 + $0x20] sm:$0xff]
    %v2002 = vld [vmem:[%s3 + $0x28] sm:$0xff]
    %v2003 = vld [vmem:[%s3 + $0x30] sm:$0xff]
    %v2004 = vld [vmem:[%s3 + $0x38] sm:$0xff]
    %2005 = vxpose.xlu0.b32.start [1/16] %v1989, 128
    %2006 = vxpose.xlu0.b32.cont [2/16] %v1993, 128
    %2007 = vxpose.xlu0.b32.cont [3/16] 0.0, 128
    %2008 = vxpose.xlu0.b32.cont [4/16] 0.0, 128
    %2009 = vxpose.xlu0.b32.cont [5/16] 0.0, 128
    %2010 = vxpose.xlu0.b32.cont [6/16] 0.0, 128
    %2011 = vxpose.xlu0.b32.cont [7/16] 0.0, 128
    %2012 = vxpose.xlu0.b32.cont [8/16] 0.0, 128
    %2013 = vxpose.xlu0.b32.cont [9/16] 0.0, 128
    %2014 = vxpose.xlu0.b32.cont [10/16] 0.0, 128
    %2015 = vxpose.xlu0.b32.cont [11/16] 0.0, 128
    %2016 = vxpose.xlu0.b32.cont [12/16] 0.0, 128
    %2017 = vxpose.xlu0.b32.cont [13/16] 0.0, 128
    %2018 = vxpose.xlu0.b32.cont [14/16] 0.0, 128
    %2019 = vxpose.xlu0.b32.cont [15/16] 0.0, 128
    %2020 = vxpose.xlu0.b32.end [16/16] 0.0, 128
    %v2021 = vpop.trf.xlu0
    %v2022 = vpop.trf.xlu0
    %v2023 = vpop.trf.xlu0
    %v2024 = vpop.trf.xlu0
    %v2025 = vpop.trf.xlu0
    %v2026 = vpop.trf.xlu0
    %v2027 = vpop.trf.xlu0
    %v2028 = vpop.trf.xlu0
    %v2029 = vpop.trf.xlu0
    %v2030 = vpop.trf.xlu0
    %v2031 = vpop.trf.xlu0
    %v2032 = vpop.trf.xlu0
    %v2033 = vpop.trf.xlu0
    %v2034 = vpop.trf.xlu0
    %v2035 = vpop.trf.xlu0
    %v2036 = vpop.trf.xlu0
    %2037 = vxpose.xlu0.b32.start [1/16] %v1990, 128
    %2038 = vxpose.xlu0.b32.cont [2/16] %v1994, 128
    %2039 = vxpose.xlu0.b32.cont [3/16] 0.0, 128
    %2040 = vxpose.xlu0.b32.cont [4/16] 0.0, 128
    %2041 = vxpose.xlu0.b32.cont [5/16] 0.0, 128
    %2042 = vxpose.xlu0.b32.cont [6/16] 0.0, 128
    %2043 = vxpose.xlu0.b32.cont [7/16] 0.0, 128
    %2044 = vxpose.xlu0.b32.cont [8/16] 0.0, 128
    %2045 = vxpose.xlu0.b32.cont [9/16] 0.0, 128
    %2046 = vxpose.xlu0.b32.cont [10/16] 0.0, 128
    %2047 = vxpose.xlu0.b32.cont [11/16] 0.0, 128
    %2048 = vxpose.xlu0.b32.cont [12/16] 0.0, 128
    %2049 = vxpose.xlu0.b32.cont [13/16] 0.0, 128
    %2050 = vxpose.xlu0.b32.cont [14/16] 0.0, 128
    %2051 = vxpose.xlu0.b32.cont [15/16] 0.0, 128
    %2052 = vxpose.xlu0.b32.end [16/16] 0.0, 128
    %v2053 = vpop.trf.xlu0
    %v2054 = vpop.trf.xlu0
    %v2055 = vpop.trf.xlu0
    %v2056 = vpop.trf.xlu0
    %v2057 = vpop.trf.xlu0
    %v2058 = vpop.trf.xlu0
    %v2059 = vpop.trf.xlu0
    %v2060 = vpop.trf.xlu0
    %v2061 = vpop.trf.xlu0
    %v2062 = vpop.trf.xlu0
    %v2063 = vpop.trf.xlu0
    %v2064 = vpop.trf.xlu0
    %v2065 = vpop.trf.xlu0
    %v2066 = vpop.trf.xlu0
    %v2067 = vpop.trf.xlu0
    %v2068 = vpop.trf.xlu0
    %2069 = vxpose.xlu0.b32.start [1/16] %v1991, 128
    %2070 = vxpose.xlu0.b32.cont [2/16] %v1995, 128
    %2071 = vxpose.xlu0.b32.cont [3/16] 0.0, 128
    %2072 = vxpose.xlu0.b32.cont [4/16] 0.0, 128
    %2073 = vxpose.xlu0.b32.cont [5/16] 0.0, 128
    %2074 = vxpose.xlu0.b32.cont [6/16] 0.0, 128
    %2075 = vxpose.xlu0.b32.cont [7/16] 0.0, 128
    %2076 = vxpose.xlu0.b32.cont [8/16] 0.0, 128
    %2077 = vxpose.xlu0.b32.cont [9/16] 0.0, 128
    %2078 = vxpose.xlu0.b32.cont [10/16] 0.0, 128
    %2079 = vxpose.xlu0.b32.cont [11/16] 0.0, 128
    %2080 = vxpose.xlu0.b32.cont [12/16] 0.0, 128
    %2081 = vxpose.xlu0.b32.cont [13/16] 0.0, 128
    %2082 = vxpose.xlu0.b32.cont [14/16] 0.0, 128
    %2083 = vxpose.xlu0.b32.cont [15/16] 0.0, 128
    %2084 = vxpose.xlu0.b32.end [16/16] 0.0, 128
    %v2085 = vpop.trf.xlu0
    %v2086 = vpop.trf.xlu0
    %v2087 = vpop.trf.xlu0
    %v2088 = vpop.trf.xlu0
    %v2089 = vpop.trf.xlu0
    %v2090 = vpop.trf.xlu0
    %v2091 = vpop.trf.xlu0
    %v2092 = vpop.trf.xlu0
    %v2093 = vpop.trf.xlu0
    %v2094 = vpop.trf.xlu0
    %v2095 = vpop.trf.xlu0
    %v2096 = vpop.trf.xlu0
    %v2097 = vpop.trf.xlu0
    %v2098 = vpop.trf.xlu0
    %v2099 = vpop.trf.xlu0
    %v2100 = vpop.trf.xlu0
    %2101 = vxpose.xlu0.b32.start [1/16] %v1992, 128
    %2102 = vxpose.xlu0.b32.cont [2/16] %v1996, 128
    %2103 = vxpose.xlu0.b32.cont [3/16] 0.0, 128
    %2104 = vxpose.xlu0.b32.cont [4/16] 0.0, 128
    %2105 = vxpose.xlu0.b32.cont [5/16] 0.0, 128
    %2106 = vxpose.xlu0.b32.cont [6/16] 0.0, 128
    %2107 = vxpose.xlu0.b32.cont [7/16] 0.0, 128
    %2108 = vxpose.xlu0.b32.cont [8/16] 0.0, 128
    %2109 = vxpose.xlu0.b32.cont [9/16] 0.0, 128
    %2110 = vxpose.xlu0.b32.cont [10/16] 0.0, 128
    %2111 = vxpose.xlu0.b32.cont [11/16] 0.0, 128
    %2112 = vxpose.xlu0.b32.cont [12/16] 0.0, 128
    %2113 = vxpose.xlu0.b32.cont [13/16] 0.0, 128
    %2114 = vxpose.xlu0.b32.cont [14/16] 0.0, 128
    %2115 = vxpose.xlu0.b32.cont [15/16] 0.0, 128
    %2116 = vxpose.xlu0.b32.end [16/16] 0.0, 128
    %v2117 = vpop.trf.xlu0
    %v2118 = vpop.trf.xlu0
    %v2119 = vpop.trf.xlu0
    %v2120 = vpop.trf.xlu0
    %v2121 = vpop.trf.xlu0
    %v2122 = vpop.trf.xlu0
    %v2123 = vpop.trf.xlu0
    %v2124 = vpop.trf.xlu0
    %v2125 = vpop.trf.xlu0
    %v2126 = vpop.trf.xlu0
    %v2127 = vpop.trf.xlu0
    %v2128 = vpop.trf.xlu0
    %v2129 = vpop.trf.xlu0
    %v2130 = vpop.trf.xlu0
    %v2131 = vpop.trf.xlu0
    %v2132 = vpop.trf.xlu0
    %vm2133 = vcmask 130048
    %v2135 = vsel %vm2133, %v2021, 0
    %v2138 = vsel %vm2133, %v2022, 0
    %v2141 = vsel %vm2133, %v2023, 0
    %v2144 = vsel %vm2133, %v2024, 0
    %v2147 = vsel %vm2133, %v2025, 0
    %v2150 = vsel %vm2133, %v2026, 0
    %v2153 = vsel %vm2133, %v2027, 0
    %v2156 = vsel %vm2133, %v2028, 0
    %v2159 = vsel %vm2133, %v2029, 0
    %v2162 = vsel %vm2133, %v2030, 0
    %v2165 = vsel %vm2133, %v2031, 0
    %v2168 = vsel %vm2133, %v2032, 0
    %v2171 = vsel %vm2133, %v2033, 0
    %v2174 = vsel %vm2133, %v2034, 0
    %v2177 = vsel %vm2133, %v2035, 0
    %v2180 = vsel %vm2133, %v2036, 0
    %v2183 = vsel %vm2133, %v2053, 0
    %v2186 = vsel %vm2133, %v2054, 0
    %v2189 = vsel %vm2133, %v2055, 0
    %v2192 = vsel %vm2133, %v2056, 0
    %v2195 = vsel %vm2133, %v2057, 0
    %v2198 = vsel %vm2133, %v2058, 0
    %v2201 = vsel %vm2133, %v2059, 0
    %v2204 = vsel %vm2133, %v2060, 0
    %v2207 = vsel %vm2133, %v2061, 0
    %v2210 = vsel %vm2133, %v2062, 0
    %v2213 = vsel %vm2133, %v2063, 0
    %v2216 = vsel %vm2133, %v2064, 0
    %v2219 = vsel %vm2133, %v2065, 0
    %v2222 = vsel %vm2133, %v2066, 0
    %v2225 = vsel %vm2133, %v2067, 0
    %v2228 = vsel %vm2133, %v2068, 0
    %v2231 = vsel %vm2133, %v2085, 0
    %v2234 = vsel %vm2133, %v2086, 0
    %v2237 = vsel %vm2133, %v2087, 0
    %v2240 = vsel %vm2133, %v2088, 0
    %v2243 = vsel %vm2133, %v2089, 0
    %v2246 = vsel %vm2133, %v2090, 0
    %v2249 = vsel %vm2133, %v2091, 0
    %v2252 = vsel %vm2133, %v2092, 0
    %v2255 = vsel %vm2133, %v2093, 0
    %v2258 = vsel %vm2133, %v2094, 0
    %v2261 = vsel %vm2133, %v2095, 0
    %v2264 = vsel %vm2133, %v2096, 0
    %v2267 = vsel %vm2133, %v2097, 0
    %v2270 = vsel %vm2133, %v2098, 0
    %v2273 = vsel %vm2133, %v2099, 0
    %v2276 = vsel %vm2133, %v2100, 0
    %v2279 = vsel %vm2133, %v2117, 0
    %v2282 = vsel %vm2133, %v2118, 0
    %v2285 = vsel %vm2133, %v2119, 0
    %v2288 = vsel %vm2133, %v2120, 0
    %v2291 = vsel %vm2133, %v2121, 0
    %v2294 = vsel %vm2133, %v2122, 0
    %v2297 = vsel %vm2133, %v2123, 0
    %v2300 = vsel %vm2133, %v2124, 0
    %v2303 = vsel %vm2133, %v2125, 0
    %v2306 = vsel %vm2133, %v2126, 0
    %v2309 = vsel %vm2133, %v2127, 0
    %v2312 = vsel %vm2133, %v2128, 0
    %v2315 = vsel %vm2133, %v2129, 0
    %v2318 = vsel %vm2133, %v2130, 0
    %v2321 = vsel %vm2133, %v2131, 0
    %v2324 = vsel %vm2133, %v2132, 0
    %2326 = vmatpush.msra.mxu0 0.0
    %2327 = vmatpush.msra.mxu0 0.0
    %2328 = vmatpush.msra.mxu0 0.0
    %2329 = vmatpush.msra.mxu0 0.0
    %2330 = vmatpush.msra.mxu0 0.0
    %2331 = vmatpush.msra.mxu0 0.0
    %2332 = vmatpush.msra.mxu0 0.0
    %2333 = vmatpush.msra.mxu0 0.0
    %2334 = vmatpush.msra.mxu0 0.0
    %2335 = vmatpush.msra.mxu0 0.0
    %2336 = vmatpush.msra.mxu0 0.0
    %2337 = vmatpush.msra.mxu0 0.0
    %2338 = vmatpush.msra.mxu0 0.0
    %2339 = vmatpush.msra.mxu0 0.0
    %2340 = vmatpush.msra.mxu0 %v2001
    %2341 = vmatpush.msra.mxu0 %v1997
    %2342 = vmatmul.f32.gmra.mxu0 %v2135
    %v2343 = vpop.f32.mrf.mxu0
    %v2344 = vadd.f32 0.0, %v2343
    %2345 = vmatmul.f32.gmra.mxu0 %v2138
    %v2346 = vpop.f32.mrf.mxu0
    %v2347 = vadd.f32 0.0, %v2346
    %2348 = vmatmul.f32.gmra.mxu0 %v2141
    %v2349 = vpop.f32.mrf.mxu0
    %v2350 = vadd.f32 0.0, %v2349
    %2351 = vmatmul.f32.gmra.mxu0 %v2144
    %v2352 = vpop.f32.mrf.mxu0
    %v2353 = vadd.f32 0.0, %v2352
    %2354 = vmatmul.f32.gmra.mxu0 %v2147
    %v2355 = vpop.f32.mrf.mxu0
    %v2356 = vadd.f32 0.0, %v2355
    %2357 = vmatmul.f32.gmra.mxu0 %v2150
    %v2358 = vpop.f32.mrf.mxu0
    %v2359 = vadd.f32 0.0, %v2358
    %2360 = vmatmul.f32.gmra.mxu0 %v2153
    %v2361 = vpop.f32.mrf.mxu0
    %v2362 = vadd.f32 0.0, %v2361
    %2363 = vmatmul.f32.gmra.mxu0 %v2156
    %v2364 = vpop.f32.mrf.mxu0
    %v2365 = vadd.f32 0.0, %v2364
    %2366 = vmatmul.f32.gmra.mxu0 %v2159
    %v2367 = vpop.f32.mrf.mxu0
    %v2368 = vadd.f32 0.0, %v2367
    %2369 = vmatmul.f32.gmra.mxu0 %v2162
    %v2370 = vpop.f32.mrf.mxu0
    %v2371 = vadd.f32 0.0, %v2370
    %2372 = vmatmul.f32.gmra.mxu0 %v2165
    %v2373 = vpop.f32.mrf.mxu0
    %v2374 = vadd.f32 0.0, %v2373
    %2375 = vmatmul.f32.gmra.mxu0 %v2168
    %v2376 = vpop.f32.mrf.mxu0
    %v2377 = vadd.f32 0.0, %v2376
    %2378 = vmatmul.f32.gmra.mxu0 %v2171
    %v2379 = vpop.f32.mrf.mxu0
    %v2380 = vadd.f32 0.0, %v2379
    %2381 = vmatmul.f32.gmra.mxu0 %v2174
    %v2382 = vpop.f32.mrf.mxu0
    %v2383 = vadd.f32 0.0, %v2382
    %2384 = vmatmul.f32.gmra.mxu0 %v2177
    %v2385 = vpop.f32.mrf.mxu0
    %v2386 = vadd.f32 0.0, %v2385
    %2387 = vmatmul.f32.gmra.mxu0 %v2180
    %v2388 = vpop.f32.mrf.mxu0
    %v2389 = vadd.f32 0.0, %v2388
    %2390 = vmatmul.f32.gmra.mxu0 %v2183
    %v2391 = vpop.f32.mrf.mxu0
    %v2392 = vadd.f32 0.0, %v2391
    %2393 = vmatmul.f32.gmra.mxu0 %v2186
    %v2394 = vpop.f32.mrf.mxu0
    %v2395 = vadd.f32 0.0, %v2394
    %2396 = vmatmul.f32.gmra.mxu0 %v2189
    %v2397 = vpop.f32.mrf.mxu0
    %v2398 = vadd.f32 0.0, %v2397
    %2399 = vmatmul.f32.gmra.mxu0 %v2192
    %v2400 = vpop.f32.mrf.mxu0
    %v2401 = vadd.f32 0.0, %v2400
    %2402 = vmatmul.f32.gmra.mxu0 %v2195
    %v2403 = vpop.f32.mrf.mxu0
    %v2404 = vadd.f32 0.0, %v2403
    %2405 = vmatmul.f32.gmra.mxu0 %v2198
    %v2406 = vpop.f32.mrf.mxu0
    %v2407 = vadd.f32 0.0, %v2406
    %2408 = vmatmul.f32.gmra.mxu0 %v2201
    %v2409 = vpop.f32.mrf.mxu0
    %v2410 = vadd.f32 0.0, %v2409
    %2411 = vmatmul.f32.gmra.mxu0 %v2204
    %v2412 = vpop.f32.mrf.mxu0
    %v2413 = vadd.f32 0.0, %v2412
    %2414 = vmatmul.f32.gmra.mxu0 %v2207
    %v2415 = vpop.f32.mrf.mxu0
    %v2416 = vadd.f32 0.0, %v2415
    %2417 = vmatmul.f32.gmra.mxu0 %v2210
    %v2418 = vpop.f32.mrf.mxu0
    %v2419 = vadd.f32 0.0, %v2418
    %2420 = vmatmul.f32.gmra.mxu0 %v2213
    %v2421 = vpop.f32.mrf.mxu0
    %v2422 = vadd.f32 0.0, %v2421
    %2423 = vmatmul.f32.gmra.mxu0 %v2216
    %v2424 = vpop.f32.mrf.mxu0
    %v2425 = vadd.f32 0.0, %v2424
    %2426 = vmatmul.f32.gmra.mxu0 %v2219
    %v2427 = vpop.f32.mrf.mxu0
    %v2428 = vadd.f32 0.0, %v2427
    %2429 = vmatmul.f32.gmra.mxu0 %v2222
    %v2430 = vpop.f32.mrf.mxu0
    %v2431 = vadd.f32 0.0, %v2430
    %2432 = vmatmul.f32.gmra.mxu0 %v2225
    %v2433 = vpop.f32.mrf.mxu0
    %v2434 = vadd.f32 0.0, %v2433
    %2435 = vmatmul.f32.gmra.mxu0 %v2228
    %v2436 = vpop.f32.mrf.mxu0
    %v2437 = vadd.f32 0.0, %v2436
    %2438 = vmatmul.f32.gmra.mxu0 %v2231
    %v2439 = vpop.f32.mrf.mxu0
    %v2440 = vadd.f32 0.0, %v2439
    %2441 = vmatmul.f32.gmra.mxu0 %v2234
    %v2442 = vpop.f32.mrf.mxu0
    %v2443 = vadd.f32 0.0, %v2442
    %2444 = vmatmul.f32.gmra.mxu0 %v2237
    %v2445 = vpop.f32.mrf.mxu0
    %v2446 = vadd.f32 0.0, %v2445
    %2447 = vmatmul.f32.gmra.mxu0 %v2240
    %v2448 = vpop.f32.mrf.mxu0
    %v2449 = vadd.f32 0.0, %v2448
    %2450 = vmatmul.f32.gmra.mxu0 %v2243
    %v2451 = vpop.f32.mrf.mxu0
    %v2452 = vadd.f32 0.0, %v2451
    %2453 = vmatmul.f32.gmra.mxu0 %v2246
    %v2454 = vpop.f32.mrf.mxu0
    %v2455 = vadd.f32 0.0, %v2454
    %2456 = vmatmul.f32.gmra.mxu0 %v2249
    %v2457 = vpop.f32.mrf.mxu0
    %v2458 = vadd.f32 0.0, %v2457
    %2459 = vmatmul.f32.gmra.mxu0 %v2252
    %v2460 = vpop.f32.mrf.mxu0
    %v2461 = vadd.f32 0.0, %v2460
    %2462 = vmatmul.f32.gmra.mxu0 %v2255
    %v2463 = vpop.f32.mrf.mxu0
    %v2464 = vadd.f32 0.0, %v2463
    %2465 = vmatmul.f32.gmra.mxu0 %v2258
    %v2466 = vpop.f32.mrf.mxu0
    %v2467 = vadd.f32 0.0, %v2466
    %2468 = vmatmul.f32.gmra.mxu0 %v2261
    %v2469 = vpop.f32.mrf.mxu0
    %v2470 = vadd.f32 0.0, %v2469
    %2471 = vmatmul.f32.gmra.mxu0 %v2264
    %v2472 = vpop.f32.mrf.mxu0
    %v2473 = vadd.f32 0.0, %v2472
    %2474 = vmatmul.f32.gmra.mxu0 %v2267
    %v2475 = vpop.f32.mrf.mxu0
    %v2476 = vadd.f32 0.0, %v2475
    %2477 = vmatmul.f32.gmra.mxu0 %v2270
    %v2478 = vpop.f32.mrf.mxu0
    %v2479 = vadd.f32 0.0, %v2478
    %2480 = vmatmul.f32.gmra.mxu0 %v2273
    %v2481 = vpop.f32.mrf.mxu0
    %v2482 = vadd.f32 0.0, %v2481
    %2483 = vmatmul.f32.gmra.mxu0 %v2276
    %v2484 = vpop.f32.mrf.mxu0
    %v2485 = vadd.f32 0.0, %v2484
    %2486 = vmatmul.f32.gmra.mxu0 %v2279
    %v2487 = vpop.f32.mrf.mxu0
    %v2488 = vadd.f32 0.0, %v2487
    %2489 = vmatmul.f32.gmra.mxu0 %v2282
    %v2490 = vpop.f32.mrf.mxu0
    %v2491 = vadd.f32 0.0, %v2490
    %2492 = vmatmul.f32.gmra.mxu0 %v2285
    %v2493 = vpop.f32.mrf.mxu0
    %v2494 = vadd.f32 0.0, %v2493
    %2495 = vmatmul.f32.gmra.mxu0 %v2288
    %v2496 = vpop.f32.mrf.mxu0
    %v2497 = vadd.f32 0.0, %v2496
    %2498 = vmatmul.f32.gmra.mxu0 %v2291
    %v2499 = vpop.f32.mrf.mxu0
    %v2500 = vadd.f32 0.0, %v2499
    %2501 = vmatmul.f32.gmra.mxu0 %v2294
    %v2502 = vpop.f32.mrf.mxu0
    %v2503 = vadd.f32 0.0, %v2502
    %2504 = vmatmul.f32.gmra.mxu0 %v2297
    %v2505 = vpop.f32.mrf.mxu0
    %v2506 = vadd.f32 0.0, %v2505
    %2507 = vmatmul.f32.gmra.mxu0 %v2300
    %v2508 = vpop.f32.mrf.mxu0
    %v2509 = vadd.f32 0.0, %v2508
    %2510 = vmatmul.f32.gmra.mxu0 %v2303
    %v2511 = vpop.f32.mrf.mxu0
    %v2512 = vadd.f32 0.0, %v2511
    %2513 = vmatmul.f32.gmra.mxu0 %v2306
    %v2514 = vpop.f32.mrf.mxu0
    %v2515 = vadd.f32 0.0, %v2514
    %2516 = vmatmul.f32.gmra.mxu0 %v2309
    %v2517 = vpop.f32.mrf.mxu0
    %v2518 = vadd.f32 0.0, %v2517
    %2519 = vmatmul.f32.gmra.mxu0 %v2312
    %v2520 = vpop.f32.mrf.mxu0
    %v2521 = vadd.f32 0.0, %v2520
    %2522 = vmatmul.f32.gmra.mxu0 %v2315
    %v2523 = vpop.f32.mrf.mxu0
    %v2524 = vadd.f32 0.0, %v2523
    %2525 = vmatmul.f32.gmra.mxu0 %v2318
    %v2526 = vpop.f32.mrf.mxu0
    %v2527 = vadd.f32 0.0, %v2526
    %2528 = vmatmul.f32.gmra.mxu0 %v2321
    %v2529 = vpop.f32.mrf.mxu0
    %v2530 = vadd.f32 0.0, %v2529
    %2531 = vmatmul.f32.gmra.mxu0 %v2324
    %v2532 = vpop.f32.mrf.mxu0
    %v2533 = vadd.f32 0.0, %v2532
    %2534 = vdwg.mxu0
    %2535 = vmatpush.msra.mxu0 0.0
    %2536 = vmatpush.msra.mxu0 0.0
    %2537 = vmatpush.msra.mxu0 0.0
    %2538 = vmatpush.msra.mxu0 0.0
    %2539 = vmatpush.msra.mxu0 0.0
    %2540 = vmatpush.msra.mxu0 0.0
    %2541 = vmatpush.msra.mxu0 0.0
    %2542 = vmatpush.msra.mxu0 0.0
    %2543 = vmatpush.msra.mxu0 0.0
    %2544 = vmatpush.msra.mxu0 0.0
    %2545 = vmatpush.msra.mxu0 0.0
    %2546 = vmatpush.msra.mxu0 0.0
    %2547 = vmatpush.msra.mxu0 0.0
    %2548 = vmatpush.msra.mxu0 0.0
    %2549 = vmatpush.msra.mxu0 %v2002
    %2550 = vmatpush.msra.mxu0 %v1998
    %2551 = vmatmul.f32.gmra.mxu0 %v2135
    %v2552 = vpop.f32.mrf.mxu0
    %v2553 = vadd.f32 0.0, %v2552
    %2554 = vmatmul.f32.gmra.mxu0 %v2138
    %v2555 = vpop.f32.mrf.mxu0
    %v2556 = vadd.f32 0.0, %v2555
    %2557 = vmatmul.f32.gmra.mxu0 %v2141
    %v2558 = vpop.f32.mrf.mxu0
    %v2559 = vadd.f32 0.0, %v2558
    %2560 = vmatmul.f32.gmra.mxu0 %v2144
    %v2561 = vpop.f32.mrf.mxu0
    %v2562 = vadd.f32 0.0, %v2561
    %2563 = vmatmul.f32.gmra.mxu0 %v2147
    %v2564 = vpop.f32.mrf.mxu0
    %v2565 = vadd.f32 0.0, %v2564
    %2566 = vmatmul.f32.gmra.mxu0 %v2150
    %v2567 = vpop.f32.mrf.mxu0
    %v2568 = vadd.f32 0.0, %v2567
    %2569 = vmatmul.f32.gmra.mxu0 %v2153
    %v2570 = vpop.f32.mrf.mxu0
    %v2571 = vadd.f32 0.0, %v2570
    %2572 = vmatmul.f32.gmra.mxu0 %v2156
    %v2573 = vpop.f32.mrf.mxu0
    %v2574 = vadd.f32 0.0, %v2573
    %2575 = vmatmul.f32.gmra.mxu0 %v2159
    %v2576 = vpop.f32.mrf.mxu0
    %v2577 = vadd.f32 0.0, %v2576
    %2578 = vmatmul.f32.gmra.mxu0 %v2162
    %v2579 = vpop.f32.mrf.mxu0
    %v2580 = vadd.f32 0.0, %v2579
    %2581 = vmatmul.f32.gmra.mxu0 %v2165
    %v2582 = vpop.f32.mrf.mxu0
    %v2583 = vadd.f32 0.0, %v2582
    %2584 = vmatmul.f32.gmra.mxu0 %v2168
    %v2585 = vpop.f32.mrf.mxu0
    %v2586 = vadd.f32 0.0, %v2585
    %2587 = vmatmul.f32.gmra.mxu0 %v2171
    %v2588 = vpop.f32.mrf.mxu0
    %v2589 = vadd.f32 0.0, %v2588
    %2590 = vmatmul.f32.gmra.mxu0 %v2174
    %v2591 = vpop.f32.mrf.mxu0
    %v2592 = vadd.f32 0.0, %v2591
    %2593 = vmatmul.f32.gmra.mxu0 %v2177
    %v2594 = vpop.f32.mrf.mxu0
    %v2595 = vadd.f32 0.0, %v2594
    %2596 = vmatmul.f32.gmra.mxu0 %v2180
    %v2597 = vpop.f32.mrf.mxu0
    %v2598 = vadd.f32 0.0, %v2597
    %2599 = vmatmul.f32.gmra.mxu0 %v2183
    %v2600 = vpop.f32.mrf.mxu0
    %v2601 = vadd.f32 0.0, %v2600
    %2602 = vmatmul.f32.gmra.mxu0 %v2186
    %v2603 = vpop.f32.mrf.mxu0
    %v2604 = vadd.f32 0.0, %v2603
    %2605 = vmatmul.f32.gmra.mxu0 %v2189
    %v2606 = vpop.f32.mrf.mxu0
    %v2607 = vadd.f32 0.0, %v2606
    %2608 = vmatmul.f32.gmra.mxu0 %v2192
    %v2609 = vpop.f32.mrf.mxu0
    %v2610 = vadd.f32 0.0, %v2609
    %2611 = vmatmul.f32.gmra.mxu0 %v2195
    %v2612 = vpop.f32.mrf.mxu0
    %v2613 = vadd.f32 0.0, %v2612
    %2614 = vmatmul.f32.gmra.mxu0 %v2198
    %v2615 = vpop.f32.mrf.mxu0
    %v2616 = vadd.f32 0.0, %v2615
    %2617 = vmatmul.f32.gmra.mxu0 %v2201
    %v2618 = vpop.f32.mrf.mxu0
    %v2619 = vadd.f32 0.0, %v2618
    %2620 = vmatmul.f32.gmra.mxu0 %v2204
    %v2621 = vpop.f32.mrf.mxu0
    %v2622 = vadd.f32 0.0, %v2621
    %2623 = vmatmul.f32.gmra.mxu0 %v2207
    %v2624 = vpop.f32.mrf.mxu0
    %v2625 = vadd.f32 0.0, %v2624
    %2626 = vmatmul.f32.gmra.mxu0 %v2210
    %v2627 = vpop.f32.mrf.mxu0
    %v2628 = vadd.f32 0.0, %v2627
    %2629 = vmatmul.f32.gmra.mxu0 %v2213
    %v2630 = vpop.f32.mrf.mxu0
    %v2631 = vadd.f32 0.0, %v2630
    %2632 = vmatmul.f32.gmra.mxu0 %v2216
    %v2633 = vpop.f32.mrf.mxu0
    %v2634 = vadd.f32 0.0, %v2633
    %2635 = vmatmul.f32.gmra.mxu0 %v2219
    %v2636 = vpop.f32.mrf.mxu0
    %v2637 = vadd.f32 0.0, %v2636
    %2638 = vmatmul.f32.gmra.mxu0 %v2222
    %v2639 = vpop.f32.mrf.mxu0
    %v2640 = vadd.f32 0.0, %v2639
    %2641 = vmatmul.f32.gmra.mxu0 %v2225
    %v2642 = vpop.f32.mrf.mxu0
    %v2643 = vadd.f32 0.0, %v2642
    %2644 = vmatmul.f32.gmra.mxu0 %v2228
    %v2645 = vpop.f32.mrf.mxu0
    %v2646 = vadd.f32 0.0, %v2645
    %2647 = vmatmul.f32.gmra.mxu0 %v2231
    %v2648 = vpop.f32.mrf.mxu0
    %v2649 = vadd.f32 0.0, %v2648
    %2650 = vmatmul.f32.gmra.mxu0 %v2234
    %v2651 = vpop.f32.mrf.mxu0
    %v2652 = vadd.f32 0.0, %v2651
    %2653 = vmatmul.f32.gmra.mxu0 %v2237
    %v2654 = vpop.f32.mrf.mxu0
    %v2655 = vadd.f32 0.0, %v2654
    %2656 = vmatmul.f32.gmra.mxu0 %v2240
    %v2657 = vpop.f32.mrf.mxu0
    %v2658 = vadd.f32 0.0, %v2657
    %2659 = vmatmul.f32.gmra.mxu0 %v2243
    %v2660 = vpop.f32.mrf.mxu0
    %v2661 = vadd.f32 0.0, %v2660
    %2662 = vmatmul.f32.gmra.mxu0 %v2246
    %v2663 = vpop.f32.mrf.mxu0
    %v2664 = vadd.f32 0.0, %v2663
    %2665 = vmatmul.f32.gmra.mxu0 %v2249
    %v2666 = vpop.f32.mrf.mxu0
    %v2667 = vadd.f32 0.0, %v2666
    %2668 = vmatmul.f32.gmra.mxu0 %v2252
    %v2669 = vpop.f32.mrf.mxu0
    %v2670 = vadd.f32 0.0, %v2669
    %2671 = vmatmul.f32.gmra.mxu0 %v2255
    %v2672 = vpop.f32.mrf.mxu0
    %v2673 = vadd.f32 0.0, %v2672
    %2674 = vmatmul.f32.gmra.mxu0 %v2258
    %v2675 = vpop.f32.mrf.mxu0
    %v2676 = vadd.f32 0.0, %v2675
    %2677 = vmatmul.f32.gmra.mxu0 %v2261
    %v2678 = vpop.f32.mrf.mxu0
    %v2679 = vadd.f32 0.0, %v2678
    %2680 = vmatmul.f32.gmra.mxu0 %v2264
    %v2681 = vpop.f32.mrf.mxu0
    %v2682 = vadd.f32 0.0, %v2681
    %2683 = vmatmul.f32.gmra.mxu0 %v2267
    %v2684 = vpop.f32.mrf.mxu0
    %v2685 = vadd.f32 0.0, %v2684
    %2686 = vmatmul.f32.gmra.mxu0 %v2270
    %v2687 = vpop.f32.mrf.mxu0
    %v2688 = vadd.f32 0.0, %v2687
    %2689 = vmatmul.f32.gmra.mxu0 %v2273
    %v2690 = vpop.f32.mrf.mxu0
    %v2691 = vadd.f32 0.0, %v2690
    %2692 = vmatmul.f32.gmra.mxu0 %v2276
    %v2693 = vpop.f32.mrf.mxu0
    %v2694 = vadd.f32 0.0, %v2693
    %2695 = vmatmul.f32.gmra.mxu0 %v2279
    %v2696 = vpop.f32.mrf.mxu0
    %v2697 = vadd.f32 0.0, %v2696
    %2698 = vmatmul.f32.gmra.mxu0 %v2282
    %v2699 = vpop.f32.mrf.mxu0
    %v2700 = vadd.f32 0.0, %v2699
    %2701 = vmatmul.f32.gmra.mxu0 %v2285
    %v2702 = vpop.f32.mrf.mxu0
    %v2703 = vadd.f32 0.0, %v2702
    %2704 = vmatmul.f32.gmra.mxu0 %v2288
    %v2705 = vpop.f32.mrf.mxu0
    %v2706 = vadd.f32 0.0, %v2705
    %2707 = vmatmul.f32.gmra.mxu0 %v2291
    %v2708 = vpop.f32.mrf.mxu0
    %v2709 = vadd.f32 0.0, %v2708
    %2710 = vmatmul.f32.gmra.mxu0 %v2294
    %v2711 = vpop.f32.mrf.mxu0
    %v2712 = vadd.f32 0.0, %v2711
    %2713 = vmatmul.f32.gmra.mxu0 %v2297
    %v2714 = vpop.f32.mrf.mxu0
    %v2715 = vadd.f32 0.0, %v2714
    %2716 = vmatmul.f32.gmra.mxu0 %v2300
    %v2717 = vpop.f32.mrf.mxu0
    %v2718 = vadd.f32 0.0, %v2717
    %2719 = vmatmul.f32.gmra.mxu0 %v2303
    %v2720 = vpop.f32.mrf.mxu0
    %v2721 = vadd.f32 0.0, %v2720
    %2722 = vmatmul.f32.gmra.mxu0 %v2306
    %v2723 = vpop.f32.mrf.mxu0
    %v2724 = vadd.f32 0.0, %v2723
    %2725 = vmatmul.f32.gmra.mxu0 %v2309
    %v2726 = vpop.f32.mrf.mxu0
    %v2727 = vadd.f32 0.0, %v2726
    %2728 = vmatmul.f32.gmra.mxu0 %v2312
    %v2729 = vpop.f32.mrf.mxu0
    %v2730 = vadd.f32 0.0, %v2729
    %2731 = vmatmul.f32.gmra.mxu0 %v2315
    %v2732 = vpop.f32.mrf.mxu0
    %v2733 = vadd.f32 0.0, %v2732
    %2734 = vmatmul.f32.gmra.mxu0 %v2318
    %v2735 = vpop.f32.mrf.mxu0
    %v2736 = vadd.f32 0.0, %v2735
    %2737 = vmatmul.f32.gmra.mxu0 %v2321
    %v2738 = vpop.f32.mrf.mxu0
    %v2739 = vadd.f32 0.0, %v2738
    %2740 = vmatmul.f32.gmra.mxu0 %v2324
    %v2741 = vpop.f32.mrf.mxu0
    %v2742 = vadd.f32 0.0, %v2741
    %2743 = vdwg.mxu0
    %2744 = vmatpush.msra.mxu0 0.0
    %2745 = vmatpush.msra.mxu0 0.0
    %2746 = vmatpush.msra.mxu0 0.0
    %2747 = vmatpush.msra.mxu0 0.0
    %2748 = vmatpush.msra.mxu0 0.0
    %2749 = vmatpush.msra.mxu0 0.0
    %2750 = vmatpush.msra.mxu0 0.0
    %2751 = vmatpush.msra.mxu0 0.0
    %2752 = vmatpush.msra.mxu0 0.0
    %2753 = vmatpush.msra.mxu0 0.0
    %2754 = vmatpush.msra.mxu0 0.0
    %2755 = vmatpush.msra.mxu0 0.0
    %2756 = vmatpush.msra.mxu0 0.0
    %2757 = vmatpush.msra.mxu0 0.0
    %2758 = vmatpush.msra.mxu0 %v2003
    %2759 = vmatpush.msra.mxu0 %v1999
    %2760 = vmatmul.f32.gmra.mxu0 %v2135
    %v2761 = vpop.f32.mrf.mxu0
    %v2762 = vadd.f32 0.0, %v2761
    %2763 = vmatmul.f32.gmra.mxu0 %v2138
    %v2764 = vpop.f32.mrf.mxu0
    %v2765 = vadd.f32 0.0, %v2764
    %2766 = vmatmul.f32.gmra.mxu0 %v2141
    %v2767 = vpop.f32.mrf.mxu0
    %v2768 = vadd.f32 0.0, %v2767
    %2769 = vmatmul.f32.gmra.mxu0 %v2144
    %v2770 = vpop.f32.mrf.mxu0
    %v2771 = vadd.f32 0.0, %v2770
    %2772 = vmatmul.f32.gmra.mxu0 %v2147
    %v2773 = vpop.f32.mrf.mxu0
    %v2774 = vadd.f32 0.0, %v2773
    %2775 = vmatmul.f32.gmra.mxu0 %v2150
    %v2776 = vpop.f32.mrf.mxu0
    %v2777 = vadd.f32 0.0, %v2776
    %2778 = vmatmul.f32.gmra.mxu0 %v2153
    %v2779 = vpop.f32.mrf.mxu0
    %v2780 = vadd.f32 0.0, %v2779
    %2781 = vmatmul.f32.gmra.mxu0 %v2156
    %v2782 = vpop.f32.mrf.mxu0
    %v2783 = vadd.f32 0.0, %v2782
    %2784 = vmatmul.f32.gmra.mxu0 %v2159
    %v2785 = vpop.f32.mrf.mxu0
    %v2786 = vadd.f32 0.0, %v2785
    %2787 = vmatmul.f32.gmra.mxu0 %v2162
    %v2788 = vpop.f32.mrf.mxu0
    %v2789 = vadd.f32 0.0, %v2788
    %2790 = vmatmul.f32.gmra.mxu0 %v2165
    %v2791 = vpop.f32.mrf.mxu0
    %v2792 = vadd.f32 0.0, %v2791
    %2793 = vmatmul.f32.gmra.mxu0 %v2168
    %v2794 = vpop.f32.mrf.mxu0
    %v2795 = vadd.f32 0.0, %v2794
    %2796 = vmatmul.f32.gmra.mxu0 %v2171
    %v2797 = vpop.f32.mrf.mxu0
    %v2798 = vadd.f32 0.0, %v2797
    %2799 = vmatmul.f32.gmra.mxu0 %v2174
    %v2800 = vpop.f32.mrf.mxu0
    %v2801 = vadd.f32 0.0, %v2800
    %2802 = vmatmul.f32.gmra.mxu0 %v2177
    %v2803 = vpop.f32.mrf.mxu0
    %v2804 = vadd.f32 0.0, %v2803
    %2805 = vmatmul.f32.gmra.mxu0 %v2180
    %v2806 = vpop.f32.mrf.mxu0
    %v2807 = vadd.f32 0.0, %v2806
    %2808 = vmatmul.f32.gmra.mxu0 %v2183
    %v2809 = vpop.f32.mrf.mxu0
    %v2810 = vadd.f32 0.0, %v2809
    %2811 = vmatmul.f32.gmra.mxu0 %v2186
    %v2812 = vpop.f32.mrf.mxu0
    %v2813 = vadd.f32 0.0, %v2812
    %2814 = vmatmul.f32.gmra.mxu0 %v2189
    %v2815 = vpop.f32.mrf.mxu0
    %v2816 = vadd.f32 0.0, %v2815
    %2817 = vmatmul.f32.gmra.mxu0 %v2192
    %v2818 = vpop.f32.mrf.mxu0
    %v2819 = vadd.f32 0.0, %v2818
    %2820 = vmatmul.f32.gmra.mxu0 %v2195
    %v2821 = vpop.f32.mrf.mxu0
    %v2822 = vadd.f32 0.0, %v2821
    %2823 = vmatmul.f32.gmra.mxu0 %v2198
    %v2824 = vpop.f32.mrf.mxu0
    %v2825 = vadd.f32 0.0, %v2824
    %2826 = vmatmul.f32.gmra.mxu0 %v2201
    %v2827 = vpop.f32.mrf.mxu0
    %v2828 = vadd.f32 0.0, %v2827
    %2829 = vmatmul.f32.gmra.mxu0 %v2204
    %v2830 = vpop.f32.mrf.mxu0
    %v2831 = vadd.f32 0.0, %v2830
    %2832 = vmatmul.f32.gmra.mxu0 %v2207
    %v2833 = vpop.f32.mrf.mxu0
    %v2834 = vadd.f32 0.0, %v2833
    %2835 = vmatmul.f32.gmra.mxu0 %v2210
    %v2836 = vpop.f32.mrf.mxu0
    %v2837 = vadd.f32 0.0, %v2836
    %2838 = vmatmul.f32.gmra.mxu0 %v2213
    %v2839 = vpop.f32.mrf.mxu0
    %v2840 = vadd.f32 0.0, %v2839
    %2841 = vmatmul.f32.gmra.mxu0 %v2216
    %v2842 = vpop.f32.mrf.mxu0
    %v2843 = vadd.f32 0.0, %v2842
    %2844 = vmatmul.f32.gmra.mxu0 %v2219
    %v2845 = vpop.f32.mrf.mxu0
    %v2846 = vadd.f32 0.0, %v2845
    %2847 = vmatmul.f32.gmra.mxu0 %v2222
    %v2848 = vpop.f32.mrf.mxu0
    %v2849 = vadd.f32 0.0, %v2848
    %2850 = vmatmul.f32.gmra.mxu0 %v2225
    %v2851 = vpop.f32.mrf.mxu0
    %v2852 = vadd.f32 0.0, %v2851
    %2853 = vmatmul.f32.gmra.mxu0 %v2228
    %v2854 = vpop.f32.mrf.mxu0
    %v2855 = vadd.f32 0.0, %v2854
    %2856 = vmatmul.f32.gmra.mxu0 %v2231
    %v2857 = vpop.f32.mrf.mxu0
    %v2858 = vadd.f32 0.0, %v2857
    %2859 = vmatmul.f32.gmra.mxu0 %v2234
    %v2860 = vpop.f32.mrf.mxu0
    %v2861 = vadd.f32 0.0, %v2860
    %2862 = vmatmul.f32.gmra.mxu0 %v2237
    %v2863 = vpop.f32.mrf.mxu0
    %v2864 = vadd.f32 0.0, %v2863
    %2865 = vmatmul.f32.gmra.mxu0 %v2240
    %v2866 = vpop.f32.mrf.mxu0
    %v2867 = vadd.f32 0.0, %v2866
    %2868 = vmatmul.f32.gmra.mxu0 %v2243
    %v2869 = vpop.f32.mrf.mxu0
    %v2870 = vadd.f32 0.0, %v2869
    %2871 = vmatmul.f32.gmra.mxu0 %v2246
    %v2872 = vpop.f32.mrf.mxu0
    %v2873 = vadd.f32 0.0, %v2872
    %2874 = vmatmul.f32.gmra.mxu0 %v2249
    %v2875 = vpop.f32.mrf.mxu0
    %v2876 = vadd.f32 0.0, %v2875
    %2877 = vmatmul.f32.gmra.mxu0 %v2252
    %v2878 = vpop.f32.mrf.mxu0
    %v2879 = vadd.f32 0.0, %v2878
    %2880 = vmatmul.f32.gmra.mxu0 %v2255
    %v2881 = vpop.f32.mrf.mxu0
    %v2882 = vadd.f32 0.0, %v2881
    %2883 = vmatmul.f32.gmra.mxu0 %v2258
    %v2884 = vpop.f32.mrf.mxu0
    %v2885 = vadd.f32 0.0, %v2884
    %2886 = vmatmul.f32.gmra.mxu0 %v2261
    %v2887 = vpop.f32.mrf.mxu0
    %v2888 = vadd.f32 0.0, %v2887
    %2889 = vmatmul.f32.gmra.mxu0 %v2264
    %v2890 = vpop.f32.mrf.mxu0
    %v2891 = vadd.f32 0.0, %v2890
    %2892 = vmatmul.f32.gmra.mxu0 %v2267
    %v2893 = vpop.f32.mrf.mxu0
    %v2894 = vadd.f32 0.0, %v2893
    %2895 = vmatmul.f32.gmra.mxu0 %v2270
    %v2896 = vpop.f32.mrf.mxu0
    %v2897 = vadd.f32 0.0, %v2896
    %2898 = vmatmul.f32.gmra.mxu0 %v2273
    %v2899 = vpop.f32.mrf.mxu0
    %v2900 = vadd.f32 0.0, %v2899
    %2901 = vmatmul.f32.gmra.mxu0 %v2276
    %v2902 = vpop.f32.mrf.mxu0
    %v2903 = vadd.f32 0.0, %v2902
    %2904 = vmatmul.f32.gmra.mxu0 %v2279
    %v2905 = vpop.f32.mrf.mxu0
    %v2906 = vadd.f32 0.0, %v2905
    %2907 = vmatmul.f32.gmra.mxu0 %v2282
    %v2908 = vpop.f32.mrf.mxu0
    %v2909 = vadd.f32 0.0, %v2908
    %2910 = vmatmul.f32.gmra.mxu0 %v2285
    %v2911 = vpop.f32.mrf.mxu0
    %v2912 = vadd.f32 0.0, %v2911
    %2913 = vmatmul.f32.gmra.mxu0 %v2288
    %v2914 = vpop.f32.mrf.mxu0
    %v2915 = vadd.f32 0.0, %v2914
    %2916 = vmatmul.f32.gmra.mxu0 %v2291
    %v2917 = vpop.f32.mrf.mxu0
    %v2918 = vadd.f32 0.0, %v2917
    %2919 = vmatmul.f32.gmra.mxu0 %v2294
    %v2920 = vpop.f32.mrf.mxu0
    %v2921 = vadd.f32 0.0, %v2920
    %2922 = vmatmul.f32.gmra.mxu0 %v2297
    %v2923 = vpop.f32.mrf.mxu0
    %v2924 = vadd.f32 0.0, %v2923
    %2925 = vmatmul.f32.gmra.mxu0 %v2300
    %v2926 = vpop.f32.mrf.mxu0
    %v2927 = vadd.f32 0.0, %v2926
    %2928 = vmatmul.f32.gmra.mxu0 %v2303
    %v2929 = vpop.f32.mrf.mxu0
    %v2930 = vadd.f32 0.0, %v2929
    %2931 = vmatmul.f32.gmra.mxu0 %v2306
    %v2932 = vpop.f32.mrf.mxu0
    %v2933 = vadd.f32 0.0, %v2932
    %2934 = vmatmul.f32.gmra.mxu0 %v2309
    %v2935 = vpop.f32.mrf.mxu0
    %v2936 = vadd.f32 0.0, %v2935
    %2937 = vmatmul.f32.gmra.mxu0 %v2312
    %v2938 = vpop.f32.mrf.mxu0
    %v2939 = vadd.f32 0.0, %v2938
    %2940 = vmatmul.f32.gmra.mxu0 %v2315
    %v2941 = vpop.f32.mrf.mxu0
    %v2942 = vadd.f32 0.0, %v2941
    %2943 = vmatmul.f32.gmra.mxu0 %v2318
    %v2944 = vpop.f32.mrf.mxu0
    %v2945 = vadd.f32 0.0, %v2944
    %2946 = vmatmul.f32.gmra.mxu0 %v2321
    %v2947 = vpop.f32.mrf.mxu0
    %v2948 = vadd.f32 0.0, %v2947
    %2949 = vmatmul.f32.gmra.mxu0 %v2324
    %v2950 = vpop.f32.mrf.mxu0
    %v2951 = vadd.f32 0.0, %v2950
    %2952 = vdwg.mxu0
    %2953 = vmatpush.msra.mxu0 0.0
    %2954 = vmatpush.msra.mxu0 0.0
    %2955 = vmatpush.msra.mxu0 0.0
    %2956 = vmatpush.msra.mxu0 0.0
    %2957 = vmatpush.msra.mxu0 0.0
    %2958 = vmatpush.msra.mxu0 0.0
    %2959 = vmatpush.msra.mxu0 0.0
    %2960 = vmatpush.msra.mxu0 0.0
    %2961 = vmatpush.msra.mxu0 0.0
    %2962 = vmatpush.msra.mxu0 0.0
    %2963 = vmatpush.msra.mxu0 0.0
    %2964 = vmatpush.msra.mxu0 0.0
    %2965 = vmatpush.msra.mxu0 0.0
    %2966 = vmatpush.msra.mxu0 0.0
    %2967 = vmatpush.msra.mxu0 %v2004
    %2968 = vmatpush.msra.mxu0 %v2000
    %2969 = vmatmul.f32.gmra.mxu0 %v2135
    %v2970 = vpop.f32.mrf.mxu0
    %v2971 = vadd.f32 0.0, %v2970
    %2972 = vmatmul.f32.gmra.mxu0 %v2138
    %v2973 = vpop.f32.mrf.mxu0
    %v2974 = vadd.f32 0.0, %v2973
    %2975 = vmatmul.f32.gmra.mxu0 %v2141
    %v2976 = vpop.f32.mrf.mxu0
    %v2977 = vadd.f32 0.0, %v2976
    %2978 = vmatmul.f32.gmra.mxu0 %v2144
    %v2979 = vpop.f32.mrf.mxu0
    %v2980 = vadd.f32 0.0, %v2979
    %2981 = vmatmul.f32.gmra.mxu0 %v2147
    %v2982 = vpop.f32.mrf.mxu0
    %v2983 = vadd.f32 0.0, %v2982
    %2984 = vmatmul.f32.gmra.mxu0 %v2150
    %v2985 = vpop.f32.mrf.mxu0
    %v2986 = vadd.f32 0.0, %v2985
    %2987 = vmatmul.f32.gmra.mxu0 %v2153
    %v2988 = vpop.f32.mrf.mxu0
    %v2989 = vadd.f32 0.0, %v2988
    %2990 = vmatmul.f32.gmra.mxu0 %v2156
    %v2991 = vpop.f32.mrf.mxu0
    %v2992 = vadd.f32 0.0, %v2991
    %2993 = vmatmul.f32.gmra.mxu0 %v2159
    %v2994 = vpop.f32.mrf.mxu0
    %v2995 = vadd.f32 0.0, %v2994
    %2996 = vmatmul.f32.gmra.mxu0 %v2162
    %v2997 = vpop.f32.mrf.mxu0
    %v2998 = vadd.f32 0.0, %v2997
    %2999 = vmatmul.f32.gmra.mxu0 %v2165
    %v3000 = vpop.f32.mrf.mxu0
    %v3001 = vadd.f32 0.0, %v3000
    %3002 = vmatmul.f32.gmra.mxu0 %v2168
    %v3003 = vpop.f32.mrf.mxu0
    %v3004 = vadd.f32 0.0, %v3003
    %3005 = vmatmul.f32.gmra.mxu0 %v2171
    %v3006 = vpop.f32.mrf.mxu0
    %v3007 = vadd.f32 0.0, %v3006
    %3008 = vmatmul.f32.gmra.mxu0 %v2174
    %v3009 = vpop.f32.mrf.mxu0
    %v3010 = vadd.f32 0.0, %v3009
    %3011 = vmatmul.f32.gmra.mxu0 %v2177
    %v3012 = vpop.f32.mrf.mxu0
    %v3013 = vadd.f32 0.0, %v3012
    %3014 = vmatmul.f32.gmra.mxu0 %v2180
    %v3015 = vpop.f32.mrf.mxu0
    %v3016 = vadd.f32 0.0, %v3015
    %3017 = vmatmul.f32.gmra.mxu0 %v2183
    %v3018 = vpop.f32.mrf.mxu0
    %v3019 = vadd.f32 0.0, %v3018
    %3020 = vmatmul.f32.gmra.mxu0 %v2186
    %v3021 = vpop.f32.mrf.mxu0
    %v3022 = vadd.f32 0.0, %v3021
    %3023 = vmatmul.f32.gmra.mxu0 %v2189
    %v3024 = vpop.f32.mrf.mxu0
    %v3025 = vadd.f32 0.0, %v3024
    %3026 = vmatmul.f32.gmra.mxu0 %v2192
    %v3027 = vpop.f32.mrf.mxu0
    %v3028 = vadd.f32 0.0, %v3027
    %3029 = vmatmul.f32.gmra.mxu0 %v2195
    %v3030 = vpop.f32.mrf.mxu0
    %v3031 = vadd.f32 0.0, %v3030
    %3032 = vmatmul.f32.gmra.mxu0 %v2198
    %v3033 = vpop.f32.mrf.mxu0
    %v3034 = vadd.f32 0.0, %v3033
    %3035 = vmatmul.f32.gmra.mxu0 %v2201
    %v3036 = vpop.f32.mrf.mxu0
    %v3037 = vadd.f32 0.0, %v3036
    %3038 = vmatmul.f32.gmra.mxu0 %v2204
    %v3039 = vpop.f32.mrf.mxu0
    %v3040 = vadd.f32 0.0, %v3039
    %3041 = vmatmul.f32.gmra.mxu0 %v2207
    %v3042 = vpop.f32.mrf.mxu0
    %v3043 = vadd.f32 0.0, %v3042
    %3044 = vmatmul.f32.gmra.mxu0 %v2210
    %v3045 = vpop.f32.mrf.mxu0
    %v3046 = vadd.f32 0.0, %v3045
    %3047 = vmatmul.f32.gmra.mxu0 %v2213
    %v3048 = vpop.f32.mrf.mxu0
    %v3049 = vadd.f32 0.0, %v3048
    %3050 = vmatmul.f32.gmra.mxu0 %v2216
    %v3051 = vpop.f32.mrf.mxu0
    %v3052 = vadd.f32 0.0, %v3051
    %3053 = vmatmul.f32.gmra.mxu0 %v2219
    %v3054 = vpop.f32.mrf.mxu0
    %v3055 = vadd.f32 0.0, %v3054
    %3056 = vmatmul.f32.gmra.mxu0 %v2222
    %v3057 = vpop.f32.mrf.mxu0
    %v3058 = vadd.f32 0.0, %v3057
    %3059 = vmatmul.f32.gmra.mxu0 %v2225
    %v3060 = vpop.f32.mrf.mxu0
    %v3061 = vadd.f32 0.0, %v3060
    %3062 = vmatmul.f32.gmra.mxu0 %v2228
    %v3063 = vpop.f32.mrf.mxu0
    %v3064 = vadd.f32 0.0, %v3063
    %3065 = vmatmul.f32.gmra.mxu0 %v2231
    %v3066 = vpop.f32.mrf.mxu0
    %v3067 = vadd.f32 0.0, %v3066
    %3068 = vmatmul.f32.gmra.mxu0 %v2234
    %v3069 = vpop.f32.mrf.mxu0
    %v3070 = vadd.f32 0.0, %v3069
    %3071 = vmatmul.f32.gmra.mxu0 %v2237
    %v3072 = vpop.f32.mrf.mxu0
    %v3073 = vadd.f32 0.0, %v3072
    %3074 = vmatmul.f32.gmra.mxu0 %v2240
    %v3075 = vpop.f32.mrf.mxu0
    %v3076 = vadd.f32 0.0, %v3075
    %3077 = vmatmul.f32.gmra.mxu0 %v2243
    %v3078 = vpop.f32.mrf.mxu0
    %v3079 = vadd.f32 0.0, %v3078
    %3080 = vmatmul.f32.gmra.mxu0 %v2246
    %v3081 = vpop.f32.mrf.mxu0
    %v3082 = vadd.f32 0.0, %v3081
    %3083 = vmatmul.f32.gmra.mxu0 %v2249
    %v3084 = vpop.f32.mrf.mxu0
    %v3085 = vadd.f32 0.0, %v3084
    %3086 = vmatmul.f32.gmra.mxu0 %v2252
    %v3087 = vpop.f32.mrf.mxu0
    %v3088 = vadd.f32 0.0, %v3087
    %3089 = vmatmul.f32.gmra.mxu0 %v2255
    %v3090 = vpop.f32.mrf.mxu0
    %v3091 = vadd.f32 0.0, %v3090
    %3092 = vmatmul.f32.gmra.mxu0 %v2258
    %v3093 = vpop.f32.mrf.mxu0
    %v3094 = vadd.f32 0.0, %v3093
    %3095 = vmatmul.f32.gmra.mxu0 %v2261
    %v3096 = vpop.f32.mrf.mxu0
    %v3097 = vadd.f32 0.0, %v3096
    %3098 = vmatmul.f32.gmra.mxu0 %v2264
    %v3099 = vpop.f32.mrf.mxu0
    %v3100 = vadd.f32 0.0, %v3099
    %3101 = vmatmul.f32.gmra.mxu0 %v2267
    %v3102 = vpop.f32.mrf.mxu0
    %v3103 = vadd.f32 0.0, %v3102
    %3104 = vmatmul.f32.gmra.mxu0 %v2270
    %v3105 = vpop.f32.mrf.mxu0
    %v3106 = vadd.f32 0.0, %v3105
    %3107 = vmatmul.f32.gmra.mxu0 %v2273
    %v3108 = vpop.f32.mrf.mxu0
    %v3109 = vadd.f32 0.0, %v3108
    %3110 = vmatmul.f32.gmra.mxu0 %v2276
    %v3111 = vpop.f32.mrf.mxu0
    %v3112 = vadd.f32 0.0, %v3111
    %3113 = vmatmul.f32.gmra.mxu0 %v2279
    %v3114 = vpop.f32.mrf.mxu0
    %v3115 = vadd.f32 0.0, %v3114
    %3116 = vmatmul.f32.gmra.mxu0 %v2282
    %v3117 = vpop.f32.mrf.mxu0
    %v3118 = vadd.f32 0.0, %v3117
    %3119 = vmatmul.f32.gmra.mxu0 %v2285
    %v3120 = vpop.f32.mrf.mxu0
    %v3121 = vadd.f32 0.0, %v3120
    %3122 = vmatmul.f32.gmra.mxu0 %v2288
    %v3123 = vpop.f32.mrf.mxu0
    %v3124 = vadd.f32 0.0, %v3123
    %3125 = vmatmul.f32.gmra.mxu0 %v2291
    %v3126 = vpop.f32.mrf.mxu0
    %v3127 = vadd.f32 0.0, %v3126
    %3128 = vmatmul.f32.gmra.mxu0 %v2294
    %v3129 = vpop.f32.mrf.mxu0
    %v3130 = vadd.f32 0.0, %v3129
    %3131 = vmatmul.f32.gmra.mxu0 %v2297
    %v3132 = vpop.f32.mrf.mxu0
    %v3133 = vadd.f32 0.0, %v3132
    %3134 = vmatmul.f32.gmra.mxu0 %v2300
    %v3135 = vpop.f32.mrf.mxu0
    %v3136 = vadd.f32 0.0, %v3135
    %3137 = vmatmul.f32.gmra.mxu0 %v2303
    %v3138 = vpop.f32.mrf.mxu0
    %v3139 = vadd.f32 0.0, %v3138
    %3140 = vmatmul.f32.gmra.mxu0 %v2306
    %v3141 = vpop.f32.mrf.mxu0
    %v3142 = vadd.f32 0.0, %v3141
    %3143 = vmatmul.f32.gmra.mxu0 %v2309
    %v3144 = vpop.f32.mrf.mxu0
    %v3145 = vadd.f32 0.0, %v3144
    %3146 = vmatmul.f32.gmra.mxu0 %v2312
    %v3147 = vpop.f32.mrf.mxu0
    %v3148 = vadd.f32 0.0, %v3147
    %3149 = vmatmul.f32.gmra.mxu0 %v2315
    %v3150 = vpop.f32.mrf.mxu0
    %v3151 = vadd.f32 0.0, %v3150
    %3152 = vmatmul.f32.gmra.mxu0 %v2318
    %v3153 = vpop.f32.mrf.mxu0
    %v3154 = vadd.f32 0.0, %v3153
    %3155 = vmatmul.f32.gmra.mxu0 %v2321
    %v3156 = vpop.f32.mrf.mxu0
    %v3157 = vadd.f32 0.0, %v3156
    %3158 = vmatmul.f32.gmra.mxu0 %v2324
    %v3159 = vpop.f32.mrf.mxu0
    %v3160 = vadd.f32 0.0, %v3159
    %3161 = vdwg.mxu0
    %v3162 = vadd.f32 %v1478, %v2344
    %v3163 = vadd.f32 %v1480, %v2553
    %v3164 = vadd.f32 %v1482, %v2762
    %v3165 = vadd.f32 %v1484, %v2971
    %v3166 = vadd.f32 %v1486, %v2347
    %v3167 = vadd.f32 %v1488, %v2556
    %v3168 = vadd.f32 %v1490, %v2765
    %v3169 = vadd.f32 %v1492, %v2974
    %v3170 = vadd.f32 %v1494, %v2350
    %v3171 = vadd.f32 %v1496, %v2559
    %v3172 = vadd.f32 %v1498, %v2768
    %v3173 = vadd.f32 %v1500, %v2977
    %v3174 = vadd.f32 %v1502, %v2353
    %v3175 = vadd.f32 %v1504, %v2562
    %v3176 = vadd.f32 %v1506, %v2771
    %v3177 = vadd.f32 %v1508, %v2980
    %v3178 = vadd.f32 %v1510, %v2356
    %v3179 = vadd.f32 %v1512, %v2565
    %v3180 = vadd.f32 %v1514, %v2774
    %v3181 = vadd.f32 %v1516, %v2983
    %v3182 = vadd.f32 %v1518, %v2359
    %v3183 = vadd.f32 %v1520, %v2568
    %v3184 = vadd.f32 %v1522, %v2777
    %v3185 = vadd.f32 %v1524, %v2986
    %v3186 = vadd.f32 %v1526, %v2362
    %v3187 = vadd.f32 %v1528, %v2571
    %v3188 = vadd.f32 %v1530, %v2780
    %v3189 = vadd.f32 %v1532, %v2989
    %v3190 = vadd.f32 %v1534, %v2365
    %v3191 = vadd.f32 %v1536, %v2574
    %v3192 = vadd.f32 %v1538, %v2783
    %v3193 = vadd.f32 %v1540, %v2992
    %v3194 = vadd.f32 %v1542, %v2368
    %v3195 = vadd.f32 %v1544, %v2577
    %v3196 = vadd.f32 %v1546, %v2786
    %v3197 = vadd.f32 %v1548, %v2995
    %v3198 = vadd.f32 %v1550, %v2371
    %v3199 = vadd.f32 %v1552, %v2580
    %v3200 = vadd.f32 %v1554, %v2789
    %v3201 = vadd.f32 %v1556, %v2998
    %v3202 = vadd.f32 %v1558, %v2374
    %v3203 = vadd.f32 %v1560, %v2583
    %v3204 = vadd.f32 %v1562, %v2792
    %v3205 = vadd.f32 %v1564, %v3001
    %v3206 = vadd.f32 %v1566, %v2377
    %v3207 = vadd.f32 %v1568, %v2586
    %v3208 = vadd.f32 %v1570, %v2795
    %v3209 = vadd.f32 %v1572, %v3004
    %v3210 = vadd.f32 %v1574, %v2380
    %v3211 = vadd.f32 %v1576, %v2589
    %v3212 = vadd.f32 %v1578, %v2798
    %v3213 = vadd.f32 %v1580, %v3007
    %v3214 = vadd.f32 %v1582, %v2383
    %v3215 = vadd.f32 %v1584, %v2592
    %v3216 = vadd.f32 %v1586, %v2801
    %v3217 = vadd.f32 %v1588, %v3010
    %v3218 = vadd.f32 %v1590, %v2386
    %v3219 = vadd.f32 %v1592, %v2595
    %v3220 = vadd.f32 %v1594, %v2804
    %v3221 = vadd.f32 %v1596, %v3013
    %v3222 = vadd.f32 %v1598, %v2389
    %v3223 = vadd.f32 %v1600, %v2598
    %v3224 = vadd.f32 %v1602, %v2807
    %v3225 = vadd.f32 %v1604, %v3016
    %v3226 = vadd.f32 %v1606, %v2392
    %v3227 = vadd.f32 %v1608, %v2601
    %v3228 = vadd.f32 %v1610, %v2810
    %v3229 = vadd.f32 %v1612, %v3019
    %v3230 = vadd.f32 %v1614, %v2395
    %v3231 = vadd.f32 %v1616, %v2604
    %v3232 = vadd.f32 %v1618, %v2813
    %v3233 = vadd.f32 %v1620, %v3022
    %v3234 = vadd.f32 %v1622, %v2398
    %v3235 = vadd.f32 %v1624, %v2607
    %v3236 = vadd.f32 %v1626, %v2816
    %v3237 = vadd.f32 %v1628, %v3025
    %v3238 = vadd.f32 %v1630, %v2401
    %v3239 = vadd.f32 %v1632, %v2610
    %v3240 = vadd.f32 %v1634, %v2819
    %v3241 = vadd.f32 %v1636, %v3028
    %v3242 = vadd.f32 %v1638, %v2404
    %v3243 = vadd.f32 %v1640, %v2613
    %v3244 = vadd.f32 %v1642, %v2822
    %v3245 = vadd.f32 %v1644, %v3031
    %v3246 = vadd.f32 %v1646, %v2407
    %v3247 = vadd.f32 %v1648, %v2616
    %v3248 = vadd.f32 %v1650, %v2825
    %v3249 = vadd.f32 %v1652, %v3034
    %v3250 = vadd.f32 %v1654, %v2410
    %v3251 = vadd.f32 %v1656, %v2619
    %v3252 = vadd.f32 %v1658, %v2828
    %v3253 = vadd.f32 %v1660, %v3037
    %v3254 = vadd.f32 %v1662, %v2413
    %v3255 = vadd.f32 %v1664, %v2622
    %v3256 = vadd.f32 %v1666, %v2831
    %v3257 = vadd.f32 %v1668, %v3040
    %v3258 = vadd.f32 %v1670, %v2416
    %v3259 = vadd.f32 %v1672, %v2625
    %v3260 = vadd.f32 %v1674, %v2834
    %v3261 = vadd.f32 %v1676, %v3043
    %v3262 = vadd.f32 %v1678, %v2419
    %v3263 = vadd.f32 %v1680, %v2628
    %v3264 = vadd.f32 %v1682, %v2837
    %v3265 = vadd.f32 %v1684, %v3046
    %v3266 = vadd.f32 %v1686, %v2422
    %v3267 = vadd.f32 %v1688, %v2631
    %v3268 = vadd.f32 %v1690, %v2840
    %v3269 = vadd.f32 %v1692, %v3049
    %v3270 = vadd.f32 %v1694, %v2425
    %v3271 = vadd.f32 %v1696, %v2634
    %v3272 = vadd.f32 %v1698, %v2843
    %v3273 = vadd.f32 %v1700, %v3052
    %v3274 = vadd.f32 %v1702, %v2428
    %v3275 = vadd.f32 %v1704, %v2637
    %v3276 = vadd.f32 %v1706, %v2846
    %v3277 = vadd.f32 %v1708, %v3055
    %v3278 = vadd.f32 %v1710, %v2431
    %v3279 = vadd.f32 %v1712, %v2640
    %v3280 = vadd.f32 %v1714, %v2849
    %v3281 = vadd.f32 %v1716, %v3058
    %v3282 = vadd.f32 %v1718, %v2434
    %v3283 = vadd.f32 %v1720, %v2643
    %v3284 = vadd.f32 %v1722, %v2852
    %v3285 = vadd.f32 %v1724, %v3061
    %v3286 = vadd.f32 %v1726, %v2437
    %v3287 = vadd.f32 %v1728, %v2646
    %v3288 = vadd.f32 %v1730, %v2855
    %v3289 = vadd.f32 %v1732, %v3064
    %v3290 = vadd.f32 %v1734, %v2440
    %v3291 = vadd.f32 %v1736, %v2649
    %v3292 = vadd.f32 %v1738, %v2858
    %v3293 = vadd.f32 %v1740, %v3067
    %v3294 = vadd.f32 %v1742, %v2443
    %v3295 = vadd.f32 %v1744, %v2652
    %v3296 = vadd.f32 %v1746, %v2861
    %v3297 = vadd.f32 %v1748, %v3070
    %v3298 = vadd.f32 %v1750, %v2446
    %v3299 = vadd.f32 %v1752, %v2655
    %v3300 = vadd.f32 %v1754, %v2864
    %v3301 = vadd.f32 %v1756, %v3073
    %v3302 = vadd.f32 %v1758, %v2449
    %v3303 = vadd.f32 %v1760, %v2658
    %v3304 = vadd.f32 %v1762, %v2867
    %v3305 = vadd.f32 %v1764, %v3076
    %v3306 = vadd.f32 %v1766, %v2452
    %v3307 = vadd.f32 %v1768, %v2661
    %v3308 = vadd.f32 %v1770, %v2870
    %v3309 = vadd.f32 %v1772, %v3079
    %v3310 = vadd.f32 %v1774, %v2455
    %v3311 = vadd.f32 %v1776, %v2664
    %v3312 = vadd.f32 %v1778, %v2873
    %v3313 = vadd.f32 %v1780, %v3082
    %v3314 = vadd.f32 %v1782, %v2458
    %v3315 = vadd.f32 %v1784, %v2667
    %v3316 = vadd.f32 %v1786, %v2876
    %v3317 = vadd.f32 %v1788, %v3085
    %v3318 = vadd.f32 %v1790, %v2461
    %v3319 = vadd.f32 %v1792, %v2670
    %v3320 = vadd.f32 %v1794, %v2879
    %v3321 = vadd.f32 %v1796, %v3088
    %v3322 = vadd.f32 %v1798, %v2464
    %v3323 = vadd.f32 %v1800, %v2673
    %v3324 = vadd.f32 %v1802, %v2882
    %v3325 = vadd.f32 %v1804, %v3091
    %v3326 = vadd.f32 %v1806, %v2467
    %v3327 = vadd.f32 %v1808, %v2676
    %v3328 = vadd.f32 %v1810, %v2885
    %v3329 = vadd.f32 %v1812, %v3094
    %v3330 = vadd.f32 %v1814, %v2470
    %v3331 = vadd.f32 %v1816, %v2679
    %v3332 = vadd.f32 %v1818, %v2888
    %v3333 = vadd.f32 %v1820, %v3097
    %v3334 = vadd.f32 %v1822, %v2473
    %v3335 = vadd.f32 %v1824, %v2682
    %v3336 = vadd.f32 %v1826, %v2891
    %v3337 = vadd.f32 %v1828, %v3100
    %v3338 = vadd.f32 %v1830, %v2476
    %v3339 = vadd.f32 %v1832, %v2685
    %v3340 = vadd.f32 %v1834, %v2894
    %v3341 = vadd.f32 %v1836, %v3103
    %v3342 = vadd.f32 %v1838, %v2479
    %v3343 = vadd.f32 %v1840, %v2688
    %v3344 = vadd.f32 %v1842, %v2897
    %v3345 = vadd.f32 %v1844, %v3106
    %v3346 = vadd.f32 %v1846, %v2482
    %v3347 = vadd.f32 %v1848, %v2691
    %v3348 = vadd.f32 %v1850, %v2900
    %v3349 = vadd.f32 %v1852, %v3109
    %v3350 = vadd.f32 %v1854, %v2485
    %v3351 = vadd.f32 %v1856, %v2694
    %v3352 = vadd.f32 %v1858, %v2903
    %v3353 = vadd.f32 %v1860, %v3112
    %v3354 = vadd.f32 %v1862, %v2488
    %v3355 = vadd.f32 %v1864, %v2697
    %v3356 = vadd.f32 %v1866, %v2906
    %v3357 = vadd.f32 %v1868, %v3115
    %v3358 = vadd.f32 %v1870, %v2491
    %v3359 = vadd.f32 %v1872, %v2700
    %v3360 = vadd.f32 %v1874, %v2909
    %v3361 = vadd.f32 %v1876, %v3118
    %v3362 = vadd.f32 %v1878, %v2494
    %v3363 = vadd.f32 %v1880, %v2703
    %v3364 = vadd.f32 %v1882, %v2912
    %v3365 = vadd.f32 %v1884, %v3121
    %v3366 = vadd.f32 %v1886, %v2497
    %v3367 = vadd.f32 %v1888, %v2706
    %v3368 = vadd.f32 %v1890, %v2915
    %v3369 = vadd.f32 %v1892, %v3124
    %v3370 = vadd.f32 %v1894, %v2500
    %v3371 = vadd.f32 %v1896, %v2709
    %v3372 = vadd.f32 %v1898, %v2918
    %v3373 = vadd.f32 %v1900, %v3127
    %v3374 = vadd.f32 %v1902, %v2503
    %v3375 = vadd.f32 %v1904, %v2712
    %v3376 = vadd.f32 %v1906, %v2921
    %v3377 = vadd.f32 %v1908, %v3130
    %v3378 = vadd.f32 %v1910, %v2506
    %v3379 = vadd.f32 %v1912, %v2715
    %v3380 = vadd.f32 %v1914, %v2924
    %v3381 = vadd.f32 %v1916, %v3133
    %v3382 = vadd.f32 %v1918, %v2509
    %v3383 = vadd.f32 %v1920, %v2718
    %v3384 = vadd.f32 %v1922, %v2927
    %v3385 = vadd.f32 %v1924, %v3136
    %v3386 = vadd.f32 %v1926, %v2512
    %v3387 = vadd.f32 %v1928, %v2721
    %v3388 = vadd.f32 %v1930, %v2930
    %v3389 = vadd.f32 %v1932, %v3139
    %v3390 = vadd.f32 %v1934, %v2515
    %v3391 = vadd.f32 %v1936, %v2724
    %v3392 = vadd.f32 %v1938, %v2933
    %v3393 = vadd.f32 %v1940, %v3142
    %v3394 = vadd.f32 %v1942, %v2518
    %v3395 = vadd.f32 %v1944, %v2727
    %v3396 = vadd.f32 %v1946, %v2936
    %v3397 = vadd.f32 %v1948, %v3145
    %v3398 = vadd.f32 %v1950, %v2521
    %v3399 = vadd.f32 %v1952, %v2730
    %v3400 = vadd.f32 %v1954, %v2939
    %v3401 = vadd.f32 %v1956, %v3148
    %v3402 = vadd.f32 %v1958, %v2524
    %v3403 = vadd.f32 %v1960, %v2733
    %v3404 = vadd.f32 %v1962, %v2942
    %v3405 = vadd.f32 %v1964, %v3151
    %v3406 = vadd.f32 %v1966, %v2527
    %v3407 = vadd.f32 %v1968, %v2736
    %v3408 = vadd.f32 %v1970, %v2945
    %v3409 = vadd.f32 %v1972, %v3154
    %v3410 = vadd.f32 %v1974, %v2530
    %v3411 = vadd.f32 %v1976, %v2739
    %v3412 = vadd.f32 %v1978, %v2948
    %v3413 = vadd.f32 %v1980, %v3157
    %v3414 = vadd.f32 %v1982, %v2533
    %v3415 = vadd.f32 %v1984, %v2742
    %v3416 = vadd.f32 %v1986, %v2951
    %v3417 = vadd.f32 %v1988, %v3160
    %p3418 = scmp.eq.s32.totalorder 0, 0
    // Predicated region
    $region26: #{online_svgp_forward.3} parent=1 // pred_check
      %p3419 = pneg %p3418
    $region27: #{online_svgp_forward.3} parent=1 // pred_check_branch
      %3421 = sbr.rel (%p3419) target = $region29
    $region28: #{online_svgp_forward.3} parent=1 // pred_region
      %v3422 = vlaneseq
      %v3423 = vshrl.u32 %v3422, 7
      %v3424 = vadd.s32 %v3423, 8
      %v3425 = vadd.s32 %v3423, 16
      %v3426 = vadd.s32 %v3423, 24
      %v3427 = vadd.s32 %v3423, 32
      %v3428 = vadd.s32 %v3423, 40
      %v3429 = vadd.s32 %v3423, 48
      %v3430 = vadd.s32 %v3423, 56
      %v3431 = vadd.s32 %v3423, 64
      %v3432 = vadd.s32 %v3423, 72
      %v3433 = vadd.s32 %v3423, 80
      %v3434 = vadd.s32 %v3423, 88
      %v3435 = vadd.s32 %v3423, 96
      %v3436 = vadd.s32 %v3423, 104
      %v3437 = vadd.s32 %v3423, 112
      %v3438 = vadd.s32 %v3423, 120
      %v3439 = vadd.s32 %v3423, 128
      %v3440 = vadd.s32 %v3423, 136
      %v3441 = vadd.s32 %v3423, 144
      %v3442 = vadd.s32 %v3423, 152
      %v3443 = vadd.s32 %v3423, 160
      %v3444 = vadd.s32 %v3423, 168
      %v3445 = vadd.s32 %v3423, 176
      %v3446 = vadd.s32 %v3423, 184
      %v3447 = vadd.s32 %v3423, 192
      %v3448 = vadd.s32 %v3423, 200
      %v3449 = vadd.s32 %v3423, 208
      %v3450 = vadd.s32 %v3423, 216
      %v3451 = vadd.s32 %v3423, 224
      %v3452 = vadd.s32 %v3423, 232
      %v3453 = vadd.s32 %v3423, 240
      %v3454 = vadd.s32 %v3423, 248
      %v3455 = vadd.s32 %v3423, 256
      %v3456 = vadd.s32 %v3423, 264
      %v3457 = vadd.s32 %v3423, 272
      %v3458 = vadd.s32 %v3423, 280
      %v3459 = vadd.s32 %v3423, 288
      %v3460 = vadd.s32 %v3423, 296
      %v3461 = vadd.s32 %v3423, 304
      %v3462 = vadd.s32 %v3423, 312
      %v3463 = vadd.s32 %v3423, 320
      %v3464 = vadd.s32 %v3423, 328
      %v3465 = vadd.s32 %v3423, 336
      %v3466 = vadd.s32 %v3423, 344
      %v3467 = vadd.s32 %v3423, 352
      %v3468 = vadd.s32 %v3423, 360
      %v3469 = vadd.s32 %v3423, 368
      %v3470 = vadd.s32 %v3423, 376
      %v3471 = vadd.s32 %v3423, 384
      %v3472 = vadd.s32 %v3423, 392
      %v3473 = vadd.s32 %v3423, 400
      %v3474 = vadd.s32 %v3423, 408
      %v3475 = vadd.s32 %v3423, 416
      %v3476 = vadd.s32 %v3423, 424
      %v3477 = vadd.s32 %v3423, 432
      %v3478 = vadd.s32 %v3423, 440
      %v3479 = vadd.s32 %v3423, 448
      %v3480 = vadd.s32 %v3423, 456
      %v3481 = vadd.s32 %v3423, 464
      %v3482 = vadd.s32 %v3423, 472
      %v3483 = vadd.s32 %v3423, 480
      %v3484 = vadd.s32 %v3423, 488
      %v3485 = vadd.s32 %v3423, 496
      %v3486 = vadd.s32 %v3423, 504
      %v3487 = vlaneseq
      %v3488 = vand.u32 %v3487, 127
      %v3489 = vadd.s32 %v3488, 128
      %v3490 = vadd.s32 %v3488, 256
      %v3491 = vadd.s32 %v3488, 384
      %vm3492 = vcmp.eq.s32.totalorder %v3423, %v3488
      %vm3493 = vcmp.eq.s32.totalorder %v3423, %v3489
      %vm3494 = vcmp.eq.s32.totalorder %v3423, %v3490
      %vm3495 = vcmp.eq.s32.totalorder %v3423, %v3491
      %vm3496 = vcmp.eq.s32.totalorder %v3424, %v3488
      %vm3497 = vcmp.eq.s32.totalorder %v3424, %v3489
      %vm3498 = vcmp.eq.s32.totalorder %v3424, %v3490
      %vm3499 = vcmp.eq.s32.totalorder %v3424, %v3491
      %vm3500 = vcmp.eq.s32.totalorder %v3425, %v3488
      %vm3501 = vcmp.eq.s32.totalorder %v3425, %v3489
      %vm3502 = vcmp.eq.s32.totalorder %v3425, %v3490
      %vm3503 = vcmp.eq.s32.totalorder %v3425, %v3491
      %vm3504 = vcmp.eq.s32.totalorder %v3426, %v3488
      %vm3505 = vcmp.eq.s32.totalorder %v3426, %v3489
      %vm3506 = vcmp.eq.s32.totalorder %v3426, %v3490
      %vm3507 = vcmp.eq.s32.totalorder %v3426, %v3491
      %vm3508 = vcmp.eq.s32.totalorder %v3427, %v3488
      %vm3509 = vcmp.eq.s32.totalorder %v3427, %v3489
      %vm3510 = vcmp.eq.s32.totalorder %v3427, %v3490
      %vm3511 = vcmp.eq.s32.totalorder %v3427, %v3491
      %vm3512 = vcmp.eq.s32.totalorder %v3428, %v3488
      %vm3513 = vcmp.eq.s32.totalorder %v3428, %v3489
      %vm3514 = vcmp.eq.s32.totalorder %v3428, %v3490
      %vm3515 = vcmp.eq.s32.totalorder %v3428, %v3491
      %vm3516 = vcmp.eq.s32.totalorder %v3429, %v3488
      %vm3517 = vcmp.eq.s32.totalorder %v3429, %v3489
      %vm3518 = vcmp.eq.s32.totalorder %v3429, %v3490
      %vm3519 = vcmp.eq.s32.totalorder %v3429, %v3491
      %vm3520 = vcmp.eq.s32.totalorder %v3430, %v3488
      %vm3521 = vcmp.eq.s32.totalorder %v3430, %v3489
      %vm3522 = vcmp.eq.s32.totalorder %v3430, %v3490
      %vm3523 = vcmp.eq.s32.totalorder %v3430, %v3491
      %vm3524 = vcmp.eq.s32.totalorder %v3431, %v3488
      %vm3525 = vcmp.eq.s32.totalorder %v3431, %v3489
      %vm3526 = vcmp.eq.s32.totalorder %v3431, %v3490
      %vm3527 = vcmp.eq.s32.totalorder %v3431, %v3491
      %vm3528 = vcmp.eq.s32.totalorder %v3432, %v3488
      %vm3529 = vcmp.eq.s32.totalorder %v3432, %v3489
      %vm3530 = vcmp.eq.s32.totalorder %v3432, %v3490
      %vm3531 = vcmp.eq.s32.totalorder %v3432, %v3491
      %vm3532 = vcmp.eq.s32.totalorder %v3433, %v3488
      %vm3533 = vcmp.eq.s32.totalorder %v3433, %v3489
      %vm3534 = vcmp.eq.s32.totalorder %v3433, %v3490
      %vm3535 = vcmp.eq.s32.totalorder %v3433, %v3491
      %vm3536 = vcmp.eq.s32.totalorder %v3434, %v3488
      %vm3537 = vcmp.eq.s32.totalorder %v3434, %v3489
      %vm3538 = vcmp.eq.s32.totalorder %v3434, %v3490
      %vm3539 = vcmp.eq.s32.totalorder %v3434, %v3491
      %vm3540 = vcmp.eq.s32.totalorder %v3435, %v3488
      %vm3541 = vcmp.eq.s32.totalorder %v3435, %v3489
      %vm3542 = vcmp.eq.s32.totalorder %v3435, %v3490
      %vm3543 = vcmp.eq.s32.totalorder %v3435, %v3491
      %vm3544 = vcmp.eq.s32.totalorder %v3436, %v3488
      %vm3545 = vcmp.eq.s32.totalorder %v3436, %v3489
      %vm3546 = vcmp.eq.s32.totalorder %v3436, %v3490
      %vm3547 = vcmp.eq.s32.totalorder %v3436, %v3491
      %vm3548 = vcmp.eq.s32.totalorder %v3437, %v3488
      %vm3549 = vcmp.eq.s32.totalorder %v3437, %v3489
      %vm3550 = vcmp.eq.s32.totalorder %v3437, %v3490
      %vm3551 = vcmp.eq.s32.totalorder %v3437, %v3491
      %vm3552 = vcmp.eq.s32.totalorder %v3438, %v3488
      %vm3553 = vcmp.eq.s32.totalorder %v3438, %v3489
      %vm3554 = vcmp.eq.s32.totalorder %v3438, %v3490
      %vm3555 = vcmp.eq.s32.totalorder %v3438, %v3491
      %vm3556 = vcmp.eq.s32.totalorder %v3439, %v3488
      %vm3557 = vcmp.eq.s32.totalorder %v3439, %v3489
      %vm3558 = vcmp.eq.s32.totalorder %v3439, %v3490
      %vm3559 = vcmp.eq.s32.totalorder %v3439, %v3491
      %vm3560 = vcmp.eq.s32.totalorder %v3440, %v3488
      %vm3561 = vcmp.eq.s32.totalorder %v3440, %v3489
      %vm3562 = vcmp.eq.s32.totalorder %v3440, %v3490
      %vm3563 = vcmp.eq.s32.totalorder %v3440, %v3491
      %vm3564 = vcmp.eq.s32.totalorder %v3441, %v3488
      %vm3565 = vcmp.eq.s32.totalorder %v3441, %v3489
      %vm3566 = vcmp.eq.s32.totalorder %v3441, %v3490
      %vm3567 = vcmp.eq.s32.totalorder %v3441, %v3491
      %vm3568 = vcmp.eq.s32.totalorder %v3442, %v3488
      %vm3569 = vcmp.eq.s32.totalorder %v3442, %v3489
      %vm3570 = vcmp.eq.s32.totalorder %v3442, %v3490
      %vm3571 = vcmp.eq.s32.totalorder %v3442, %v3491
      %vm3572 = vcmp.eq.s32.totalorder %v3443, %v3488
      %vm3573 = vcmp.eq.s32.totalorder %v3443, %v3489
      %vm3574 = vcmp.eq.s32.totalorder %v3443, %v3490
      %vm3575 = vcmp.eq.s32.totalorder %v3443, %v3491
      %vm3576 = vcmp.eq.s32.totalorder %v3444, %v3488
      %vm3577 = vcmp.eq.s32.totalorder %v3444, %v3489
      %vm3578 = vcmp.eq.s32.totalorder %v3444, %v3490
      %vm3579 = vcmp.eq.s32.totalorder %v3444, %v3491
      %vm3580 = vcmp.eq.s32.totalorder %v3445, %v3488
      %vm3581 = vcmp.eq.s32.totalorder %v3445, %v3489
      %vm3582 = vcmp.eq.s32.totalorder %v3445, %v3490
      %vm3583 = vcmp.eq.s32.totalorder %v3445, %v3491
      %vm3584 = vcmp.eq.s32.totalorder %v3446, %v3488
      %vm3585 = vcmp.eq.s32.totalorder %v3446, %v3489
      %vm3586 = vcmp.eq.s32.totalorder %v3446, %v3490
      %vm3587 = vcmp.eq.s32.totalorder %v3446, %v3491
      %vm3588 = vcmp.eq.s32.totalorder %v3447, %v3488
      %vm3589 = vcmp.eq.s32.totalorder %v3447, %v3489
      %vm3590 = vcmp.eq.s32.totalorder %v3447, %v3490
      %vm3591 = vcmp.eq.s32.totalorder %v3447, %v3491
      %vm3592 = vcmp.eq.s32.totalorder %v3448, %v3488
      %vm3593 = vcmp.eq.s32.totalorder %v3448, %v3489
      %vm3594 = vcmp.eq.s32.totalorder %v3448, %v3490
      %vm3595 = vcmp.eq.s32.totalorder %v3448, %v3491
      %vm3596 = vcmp.eq.s32.totalorder %v3449, %v3488
      %vm3597 = vcmp.eq.s32.totalorder %v3449, %v3489
      %vm3598 = vcmp.eq.s32.totalorder %v3449, %v3490
      %vm3599 = vcmp.eq.s32.totalorder %v3449, %v3491
      %vm3600 = vcmp.eq.s32.totalorder %v3450, %v3488
      %vm3601 = vcmp.eq.s32.totalorder %v3450, %v3489
      %vm3602 = vcmp.eq.s32.totalorder %v3450, %v3490
      %vm3603 = vcmp.eq.s32.totalorder %v3450, %v3491
      %vm3604 = vcmp.eq.s32.totalorder %v3451, %v3488
      %vm3605 = vcmp.eq.s32.totalorder %v3451, %v3489
      %vm3606 = vcmp.eq.s32.totalorder %v3451, %v3490
      %vm3607 = vcmp.eq.s32.totalorder %v3451, %v3491
      %vm3608 = vcmp.eq.s32.totalorder %v3452, %v3488
      %vm3609 = vcmp.eq.s32.totalorder %v3452, %v3489
      %vm3610 = vcmp.eq.s32.totalorder %v3452, %v3490
      %vm3611 = vcmp.eq.s32.totalorder %v3452, %v3491
      %vm3612 = vcmp.eq.s32.totalorder %v3453, %v3488
      %vm3613 = vcmp.eq.s32.totalorder %v3453, %v3489
      %vm3614 = vcmp.eq.s32.totalorder %v3453, %v3490
      %vm3615 = vcmp.eq.s32.totalorder %v3453, %v3491
      %vm3616 = vcmp.eq.s32.totalorder %v3454, %v3488
      %vm3617 = vcmp.eq.s32.totalorder %v3454, %v3489
      %vm3618 = vcmp.eq.s32.totalorder %v3454, %v3490
      %vm3619 = vcmp.eq.s32.totalorder %v3454, %v3491
      %vm3620 = vcmp.eq.s32.totalorder %v3455, %v3488
      %vm3621 = vcmp.eq.s32.totalorder %v3455, %v3489
      %vm3622 = vcmp.eq.s32.totalorder %v3455, %v3490
      %vm3623 = vcmp.eq.s32.totalorder %v3455, %v3491
      %vm3624 = vcmp.eq.s32.totalorder %v3456, %v3488
      %vm3625 = vcmp.eq.s32.totalorder %v3456, %v3489
      %vm3626 = vcmp.eq.s32.totalorder %v3456, %v3490
      %vm3627 = vcmp.eq.s32.totalorder %v3456, %v3491
      %vm3628 = vcmp.eq.s32.totalorder %v3457, %v3488
      %vm3629 = vcmp.eq.s32.totalorder %v3457, %v3489
      %vm3630 = vcmp.eq.s32.totalorder %v3457, %v3490
      %vm3631 = vcmp.eq.s32.totalorder %v3457, %v3491
      %vm3632 = vcmp.eq.s32.totalorder %v3458, %v3488
      %vm3633 = vcmp.eq.s32.totalorder %v3458, %v3489
      %vm3634 = vcmp.eq.s32.totalorder %v3458, %v3490
      %vm3635 = vcmp.eq.s32.totalorder %v3458, %v3491
      %vm3636 = vcmp.eq.s32.totalorder %v3459, %v3488
      %vm3637 = vcmp.eq.s32.totalorder %v3459, %v3489
      %vm3638 = vcmp.eq.s32.totalorder %v3459, %v3490
      %vm3639 = vcmp.eq.s32.totalorder %v3459, %v3491
      %vm3640 = vcmp.eq.s32.totalorder %v3460, %v3488
      %vm3641 = vcmp.eq.s32.totalorder %v3460, %v3489
      %vm3642 = vcmp.eq.s32.totalorder %v3460, %v3490
      %vm3643 = vcmp.eq.s32.totalorder %v3460, %v3491
      %vm3644 = vcmp.eq.s32.totalorder %v3461, %v3488
      %vm3645 = vcmp.eq.s32.totalorder %v3461, %v3489
      %vm3646 = vcmp.eq.s32.totalorder %v3461, %v3490
      %vm3647 = vcmp.eq.s32.totalorder %v3461, %v3491
      %vm3648 = vcmp.eq.s32.totalorder %v3462, %v3488
      %vm3649 = vcmp.eq.s32.totalorder %v3462, %v3489
      %vm3650 = vcmp.eq.s32.totalorder %v3462, %v3490
      %vm3651 = vcmp.eq.s32.totalorder %v3462, %v3491
      %vm3652 = vcmp.eq.s32.totalorder %v3463, %v3488
      %vm3653 = vcmp.eq.s32.totalorder %v3463, %v3489
      %vm3654 = vcmp.eq.s32.totalorder %v3463, %v3490
      %vm3655 = vcmp.eq.s32.totalorder %v3463, %v3491
      %vm3656 = vcmp.eq.s32.totalorder %v3464, %v3488
      %vm3657 = vcmp.eq.s32.totalorder %v3464, %v3489
      %vm3658 = vcmp.eq.s32.totalorder %v3464, %v3490
      %vm3659 = vcmp.eq.s32.totalorder %v3464, %v3491
      %vm3660 = vcmp.eq.s32.totalorder %v3465, %v3488
      %vm3661 = vcmp.eq.s32.totalorder %v3465, %v3489
      %vm3662 = vcmp.eq.s32.totalorder %v3465, %v3490
      %vm3663 = vcmp.eq.s32.totalorder %v3465, %v3491
      %vm3664 = vcmp.eq.s32.totalorder %v3466, %v3488
      %vm3665 = vcmp.eq.s32.totalorder %v3466, %v3489
      %vm3666 = vcmp.eq.s32.totalorder %v3466, %v3490
      %vm3667 = vcmp.eq.s32.totalorder %v3466, %v3491
      %vm3668 = vcmp.eq.s32.totalorder %v3467, %v3488
      %vm3669 = vcmp.eq.s32.totalorder %v3467, %v3489
      %vm3670 = vcmp.eq.s32.totalorder %v3467, %v3490
      %vm3671 = vcmp.eq.s32.totalorder %v3467, %v3491
      %vm3672 = vcmp.eq.s32.totalorder %v3468, %v3488
      %vm3673 = vcmp.eq.s32.totalorder %v3468, %v3489
      %vm3674 = vcmp.eq.s32.totalorder %v3468, %v3490
      %vm3675 = vcmp.eq.s32.totalorder %v3468, %v3491
      %vm3676 = vcmp.eq.s32.totalorder %v3469, %v3488
      %vm3677 = vcmp.eq.s32.totalorder %v3469, %v3489
      %vm3678 = vcmp.eq.s32.totalorder %v3469, %v3490
      %vm3679 = vcmp.eq.s32.totalorder %v3469, %v3491
      %vm3680 = vcmp.eq.s32.totalorder %v3470, %v3488
      %vm3681 = vcmp.eq.s32.totalorder %v3470, %v3489
      %vm3682 = vcmp.eq.s32.totalorder %v3470, %v3490
      %vm3683 = vcmp.eq.s32.totalorder %v3470, %v3491
      %vm3684 = vcmp.eq.s32.totalorder %v3471, %v3488
      %vm3685 = vcmp.eq.s32.totalorder %v3471, %v3489
      %vm3686 = vcmp.eq.s32.totalorder %v3471, %v3490
      %vm3687 = vcmp.eq.s32.totalorder %v3471, %v3491
      %vm3688 = vcmp.eq.s32.totalorder %v3472, %v3488
      %vm3689 = vcmp.eq.s32.totalorder %v3472, %v3489
      %vm3690 = vcmp.eq.s32.totalorder %v3472, %v3490
      %vm3691 = vcmp.eq.s32.totalorder %v3472, %v3491
      %vm3692 = vcmp.eq.s32.totalorder %v3473, %v3488
      %vm3693 = vcmp.eq.s32.totalorder %v3473, %v3489
      %vm3694 = vcmp.eq.s32.totalorder %v3473, %v3490
      %vm3695 = vcmp.eq.s32.totalorder %v3473, %v3491
      %vm3696 = vcmp.eq.s32.totalorder %v3474, %v3488
      %vm3697 = vcmp.eq.s32.totalorder %v3474, %v3489
      %vm3698 = vcmp.eq.s32.totalorder %v3474, %v3490
      %vm3699 = vcmp.eq.s32.totalorder %v3474, %v3491
      %vm3700 = vcmp.eq.s32.totalorder %v3475, %v3488
      %vm3701 = vcmp.eq.s32.totalorder %v3475, %v3489
      %vm3702 = vcmp.eq.s32.totalorder %v3475, %v3490
      %vm3703 = vcmp.eq.s32.totalorder %v3475, %v3491
      %vm3704 = vcmp.eq.s32.totalorder %v3476, %v3488
      %vm3705 = vcmp.eq.s32.totalorder %v3476, %v3489
      %vm3706 = vcmp.eq.s32.totalorder %v3476, %v3490
      %vm3707 = vcmp.eq.s32.totalorder %v3476, %v3491
      %vm3708 = vcmp.eq.s32.totalorder %v3477, %v3488
      %vm3709 = vcmp.eq.s32.totalorder %v3477, %v3489
      %vm3710 = vcmp.eq.s32.totalorder %v3477, %v3490
      %vm3711 = vcmp.eq.s32.totalorder %v3477, %v3491
      %vm3712 = vcmp.eq.s32.totalorder %v3478, %v3488
      %vm3713 = vcmp.eq.s32.totalorder %v3478, %v3489
      %vm3714 = vcmp.eq.s32.totalorder %v3478, %v3490
      %vm3715 = vcmp.eq.s32.totalorder %v3478, %v3491
      %vm3716 = vcmp.eq.s32.totalorder %v3479, %v3488
      %vm3717 = vcmp.eq.s32.totalorder %v3479, %v3489
      %vm3718 = vcmp.eq.s32.totalorder %v3479, %v3490
      %vm3719 = vcmp.eq.s32.totalorder %v3479, %v3491
      %vm3720 = vcmp.eq.s32.totalorder %v3480, %v3488
      %vm3721 = vcmp.eq.s32.totalorder %v3480, %v3489
      %vm3722 = vcmp.eq.s32.totalorder %v3480, %v3490
      %vm3723 = vcmp.eq.s32.totalorder %v3480, %v3491
      %vm3724 = vcmp.eq.s32.totalorder %v3481, %v3488
      %vm3725 = vcmp.eq.s32.totalorder %v3481, %v3489
      %vm3726 = vcmp.eq.s32.totalorder %v3481, %v3490
      %vm3727 = vcmp.eq.s32.totalorder %v3481, %v3491
      %vm3728 = vcmp.eq.s32.totalorder %v3482, %v3488
      %vm3729 = vcmp.eq.s32.totalorder %v3482, %v3489
      %vm3730 = vcmp.eq.s32.totalorder %v3482, %v3490
      %vm3731 = vcmp.eq.s32.totalorder %v3482, %v3491
      %vm3732 = vcmp.eq.s32.totalorder %v3483, %v3488
      %vm3733 = vcmp.eq.s32.totalorder %v3483, %v3489
      %vm3734 = vcmp.eq.s32.totalorder %v3483, %v3490
      %vm3735 = vcmp.eq.s32.totalorder %v3483, %v3491
      %vm3736 = vcmp.eq.s32.totalorder %v3484, %v3488
      %vm3737 = vcmp.eq.s32.totalorder %v3484, %v3489
      %vm3738 = vcmp.eq.s32.totalorder %v3484, %v3490
      %vm3739 = vcmp.eq.s32.totalorder %v3484, %v3491
      %vm3740 = vcmp.eq.s32.totalorder %v3485, %v3488
      %vm3741 = vcmp.eq.s32.totalorder %v3485, %v3489
      %vm3742 = vcmp.eq.s32.totalorder %v3485, %v3490
      %vm3743 = vcmp.eq.s32.totalorder %v3485, %v3491
      %vm3744 = vcmp.eq.s32.totalorder %v3486, %v3488
      %vm3745 = vcmp.eq.s32.totalorder %v3486, %v3489
      %vm3746 = vcmp.eq.s32.totalorder %v3486, %v3490
      %vm3747 = vcmp.eq.s32.totalorder %v3486, %v3491
      %v3748 = vsel %vm3492, 0.0001, 0.0
      %v3749 = vsel %vm3493, 0.0001, 0.0
      %v3750 = vsel %vm3494, 0.0001, 0.0
      %v3751 = vsel %vm3495, 0.0001, 0.0
      %v3752 = vsel %vm3496, 0.0001, 0.0
      %v3753 = vsel %vm3497, 0.0001, 0.0
      %v3754 = vsel %vm3498, 0.0001, 0.0
      %v3755 = vsel %vm3499, 0.0001, 0.0
      %v3756 = vsel %vm3500, 0.0001, 0.0
      %v3757 = vsel %vm3501, 0.0001, 0.0
      %v3758 = vsel %vm3502, 0.0001, 0.0
      %v3759 = vsel %vm3503, 0.0001, 0.0
      %v3760 = vsel %vm3504, 0.0001, 0.0
      %v3761 = vsel %vm3505, 0.0001, 0.0
      %v3762 = vsel %vm3506, 0.0001, 0.0
      %v3763 = vsel %vm3507, 0.0001, 0.0
      %v3764 = vsel %vm3508, 0.0001, 0.0
      %v3765 = vsel %vm3509, 0.0001, 0.0
      %v3766 = vsel %vm3510, 0.0001, 0.0
      %v3767 = vsel %vm3511, 0.0001, 0.0
      %v3768 = vsel %vm3512, 0.0001, 0.0
      %v3769 = vsel %vm3513, 0.0001, 0.0
      %v3770 = vsel %vm3514, 0.0001, 0.0
      %v3771 = vsel %vm3515, 0.0001, 0.0
      %v3772 = vsel %vm3516, 0.0001, 0.0
      %v3773 = vsel %vm3517, 0.0001, 0.0
      %v3774 = vsel %vm3518, 0.0001, 0.0
      %v3775 = vsel %vm3519, 0.0001, 0.0
      %v3776 = vsel %vm3520, 0.0001, 0.0
      %v3777 = vsel %vm3521, 0.0001, 0.0
      %v3778 = vsel %vm3522, 0.0001, 0.0
      %v3779 = vsel %vm3523, 0.0001, 0.0
      %v3780 = vsel %vm3524, 0.0001, 0.0
      %v3781 = vsel %vm3525, 0.0001, 0.0
      %v3782 = vsel %vm3526, 0.0001, 0.0
      %v3783 = vsel %vm3527, 0.0001, 0.0
      %v3784 = vsel %vm3528, 0.0001, 0.0
      %v3785 = vsel %vm3529, 0.0001, 0.0
      %v3786 = vsel %vm3530, 0.0001, 0.0
      %v3787 = vsel %vm3531, 0.0001, 0.0
      %v3788 = vsel %vm3532, 0.0001, 0.0
      %v3789 = vsel %vm3533, 0.0001, 0.0
      %v3790 = vsel %vm3534, 0.0001, 0.0
      %v3791 = vsel %vm3535, 0.0001, 0.0
      %v3792 = vsel %vm3536, 0.0001, 0.0
      %v3793 = vsel %vm3537, 0.0001, 0.0
      %v3794 = vsel %vm3538, 0.0001, 0.0
      %v3795 = vsel %vm3539, 0.0001, 0.0
      %v3796 = vsel %vm3540, 0.0001, 0.0
      %v3797 = vsel %vm3541, 0.0001, 0.0
      %v3798 = vsel %vm3542, 0.0001, 0.0
      %v3799 = vsel %vm3543, 0.0001, 0.0
      %v3800 = vsel %vm3544, 0.0001, 0.0
      %v3801 = vsel %vm3545, 0.0001, 0.0
      %v3802 = vsel %vm3546, 0.0001, 0.0
      %v3803 = vsel %vm3547, 0.0001, 0.0
      %v3804 = vsel %vm3548, 0.0001, 0.0
      %v3805 = vsel %vm3549, 0.0001, 0.0
      %v3806 = vsel %vm3550, 0.0001, 0.0
      %v3807 = vsel %vm3551, 0.0001, 0.0
      %v3808 = vsel %vm3552, 0.0001, 0.0
      %v3809 = vsel %vm3553, 0.0001, 0.0
      %v3810 = vsel %vm3554, 0.0001, 0.0
      %v3811 = vsel %vm3555, 0.0001, 0.0
      %v3812 = vsel %vm3556, 0.0001, 0.0
      %v3813 = vsel %vm3557, 0.0001, 0.0
      %v3814 = vsel %vm3558, 0.0001, 0.0
      %v3815 = vsel %vm3559, 0.0001, 0.0
      %v3816 = vsel %vm3560, 0.0001, 0.0
      %v3817 = vsel %vm3561, 0.0001, 0.0
      %v3818 = vsel %vm3562, 0.0001, 0.0
      %v3819 = vsel %vm3563, 0.0001, 0.0
      %v3820 = vsel %vm3564, 0.0001, 0.0
      %v3821 = vsel %vm3565, 0.0001, 0.0
      %v3822 = vsel %vm3566, 0.0001, 0.0
      %v3823 = vsel %vm3567, 0.0001, 0.0
      %v3824 = vsel %vm3568, 0.0001, 0.0
      %v3825 = vsel %vm3569, 0.0001, 0.0
      %v3826 = vsel %vm3570, 0.0001, 0.0
      %v3827 = vsel %vm3571, 0.0001, 0.0
      %v3828 = vsel %vm3572, 0.0001, 0.0
      %v3829 = vsel %vm3573, 0.0001, 0.0
      %v3830 = vsel %vm3574, 0.0001, 0.0
      %v3831 = vsel %vm3575, 0.0001, 0.0
      %v3832 = vsel %vm3576, 0.0001, 0.0
      %v3833 = vsel %vm3577, 0.0001, 0.0
      %v3834 = vsel %vm3578, 0.0001, 0.0
      %v3835 = vsel %vm3579, 0.0001, 0.0
      %v3836 = vsel %vm3580, 0.0001, 0.0
      %v3837 = vsel %vm3581, 0.0001, 0.0
      %v3838 = vsel %vm3582, 0.0001, 0.0
      %v3839 = vsel %vm3583, 0.0001, 0.0
      %v3840 = vsel %vm3584, 0.0001, 0.0
      %v3841 = vsel %vm3585, 0.0001, 0.0
      %v3842 = vsel %vm3586, 0.0001, 0.0
      %v3843 = vsel %vm3587, 0.0001, 0.0
      %v3844 = vsel %vm3588, 0.0001, 0.0
      %v3845 = vsel %vm3589, 0.0001, 0.0
      %v3846 = vsel %vm3590, 0.0001, 0.0
      %v3847 = vsel %vm3591, 0.0001, 0.0
      %v3848 = vsel %vm3592, 0.0001, 0.0
      %v3849 = vsel %vm3593, 0.0001, 0.0
      %v3850 = vsel %vm3594, 0.0001, 0.0
      %v3851 = vsel %vm3595, 0.0001, 0.0
      %v3852 = vsel %vm3596, 0.0001, 0.0
      %v3853 = vsel %vm3597, 0.0001, 0.0
      %v3854 = vsel %vm3598, 0.0001, 0.0
      %v3855 = vsel %vm3599, 0.0001, 0.0
      %v3856 = vsel %vm3600, 0.0001, 0.0
      %v3857 = vsel %vm3601, 0.0001, 0.0
      %v3858 = vsel %vm3602, 0.0001, 0.0
      %v3859 = vsel %vm3603, 0.0001, 0.0
      %v3860 = vsel %vm3604, 0.0001, 0.0
      %v3861 = vsel %vm3605, 0.0001, 0.0
      %v3862 = vsel %vm3606, 0.0001, 0.0
      %v3863 = vsel %vm3607, 0.0001, 0.0
      %v3864 = vsel %vm3608, 0.0001, 0.0
      %v3865 = vsel %vm3609, 0.0001, 0.0
      %v3866 = vsel %vm3610, 0.0001, 0.0
      %v3867 = vsel %vm3611, 0.0001, 0.0
      %v3868 = vsel %vm3612, 0.0001, 0.0
      %v3869 = vsel %vm3613, 0.0001, 0.0
      %v3870 = vsel %vm3614, 0.0001, 0.0
      %v3871 = vsel %vm3615, 0.0001, 0.0
      %v3872 = vsel %vm3616, 0.0001, 0.0
      %v3873 = vsel %vm3617, 0.0001, 0.0
      %v3874 = vsel %vm3618, 0.0001, 0.0
      %v3875 = vsel %vm3619, 0.0001, 0.0
      %v3876 = vsel %vm3620, 0.0001, 0.0
      %v3877 = vsel %vm3621, 0.0001, 0.0
      %v3878 = vsel %vm3622, 0.0001, 0.0
      %v3879 = vsel %vm3623, 0.0001, 0.0
      %v3880 = vsel %vm3624, 0.0001, 0.0
      %v3881 = vsel %vm3625, 0.0001, 0.0
      %v3882 = vsel %vm3626, 0.0001, 0.0
      %v3883 = vsel %vm3627, 0.0001, 0.0
      %v3884 = vsel %vm3628, 0.0001, 0.0
      %v3885 = vsel %vm3629, 0.0001, 0.0
      %v3886 = vsel %vm3630, 0.0001, 0.0
      %v3887 = vsel %vm3631, 0.0001, 0.0
      %v3888 = vsel %vm3632, 0.0001, 0.0
      %v3889 = vsel %vm3633, 0.0001, 0.0
      %v3890 = vsel %vm3634, 0.0001, 0.0
      %v3891 = vsel %vm3635, 0.0001, 0.0
      %v3892 = vsel %vm3636, 0.0001, 0.0
      %v3893 = vsel %vm3637, 0.0001, 0.0
      %v3894 = vsel %vm3638, 0.0001, 0.0
      %v3895 = vsel %vm3639, 0.0001, 0.0
      %v3896 = vsel %vm3640, 0.0001, 0.0
      %v3897 = vsel %vm3641, 0.0001, 0.0
      %v3898 = vsel %vm3642, 0.0001, 0.0
      %v3899 = vsel %vm3643, 0.0001, 0.0
      %v3900 = vsel %vm3644, 0.0001, 0.0
      %v3901 = vsel %vm3645, 0.0001, 0.0
      %v3902 = vsel %vm3646, 0.0001, 0.0
      %v3903 = vsel %vm3647, 0.0001, 0.0
      %v3904 = vsel %vm3648, 0.0001, 0.0
      %v3905 = vsel %vm3649, 0.0001, 0.0
      %v3906 = vsel %vm3650, 0.0001, 0.0
      %v3907 = vsel %vm3651, 0.0001, 0.0
      %v3908 = vsel %vm3652, 0.0001, 0.0
      %v3909 = vsel %vm3653, 0.0001, 0.0
      %v3910 = vsel %vm3654, 0.0001, 0.0
      %v3911 = vsel %vm3655, 0.0001, 0.0
      %v3912 = vsel %vm3656, 0.0001, 0.0
      %v3913 = vsel %vm3657, 0.0001, 0.0
      %v3914 = vsel %vm3658, 0.0001, 0.0
      %v3915 = vsel %vm3659, 0.0001, 0.0
      %v3916 = vsel %vm3660, 0.0001, 0.0
      %v3917 = vsel %vm3661, 0.0001, 0.0
      %v3918 = vsel %vm3662, 0.0001, 0.0
      %v3919 = vsel %vm3663, 0.0001, 0.0
      %v3920 = vsel %vm3664, 0.0001, 0.0
      %v3921 = vsel %vm3665, 0.0001, 0.0
      %v3922 = vsel %vm3666, 0.0001, 0.0
      %v3923 = vsel %vm3667, 0.0001, 0.0
      %v3924 = vsel %vm3668, 0.0001, 0.0
      %v3925 = vsel %vm3669, 0.0001, 0.0
      %v3926 = vsel %vm3670, 0.0001, 0.0
      %v3927 = vsel %vm3671, 0.0001, 0.0
      %v3928 = vsel %vm3672, 0.0001, 0.0
      %v3929 = vsel %vm3673, 0.0001, 0.0
      %v3930 = vsel %vm3674, 0.0001, 0.0
      %v3931 = vsel %vm3675, 0.0001, 0.0
      %v3932 = vsel %vm3676, 0.0001, 0.0
      %v3933 = vsel %vm3677, 0.0001, 0.0
      %v3934 = vsel %vm3678, 0.0001, 0.0
      %v3935 = vsel %vm3679, 0.0001, 0.0
      %v3936 = vsel %vm3680, 0.0001, 0.0
      %v3937 = vsel %vm3681, 0.0001, 0.0
      %v3938 = vsel %vm3682, 0.0001, 0.0
      %v3939 = vsel %vm3683, 0.0001, 0.0
      %v3940 = vsel %vm3684, 0.0001, 0.0
      %v3941 = vsel %vm3685, 0.0001, 0.0
      %v3942 = vsel %vm3686, 0.0001, 0.0
      %v3943 = vsel %vm3687, 0.0001, 0.0
      %v3944 = vsel %vm3688, 0.0001, 0.0
      %v3945 = vsel %vm3689, 0.0001, 0.0
      %v3946 = vsel %vm3690, 0.0001, 0.0
      %v3947 = vsel %vm3691, 0.0001, 0.0
      %v3948 = vsel %vm3692, 0.0001, 0.0
      %v3949 = vsel %vm3693, 0.0001, 0.0
      %v3950 = vsel %vm3694, 0.0001, 0.0
      %v3951 = vsel %vm3695, 0.0001, 0.0
      %v3952 = vsel %vm3696, 0.0001, 0.0
      %v3953 = vsel %vm3697, 0.0001, 0.0
      %v3954 = vsel %vm3698, 0.0001, 0.0
      %v3955 = vsel %vm3699, 0.0001, 0.0
      %v3956 = vsel %vm3700, 0.0001, 0.0
      %v3957 = vsel %vm3701, 0.0001, 0.0
      %v3958 = vsel %vm3702, 0.0001, 0.0
      %v3959 = vsel %vm3703, 0.0001, 0.0
      %v3960 = vsel %vm3704, 0.0001, 0.0
      %v3961 = vsel %vm3705, 0.0001, 0.0
      %v3962 = vsel %vm3706, 0.0001, 0.0
      %v3963 = vsel %vm3707, 0.0001, 0.0
      %v3964 = vsel %vm3708, 0.0001, 0.0
      %v3965 = vsel %vm3709, 0.0001, 0.0
      %v3966 = vsel %vm3710, 0.0001, 0.0
      %v3967 = vsel %vm3711, 0.0001, 0.0
      %v3968 = vsel %vm3712, 0.0001, 0.0
      %v3969 = vsel %vm3713, 0.0001, 0.0
      %v3970 = vsel %vm3714, 0.0001, 0.0
      %v3971 = vsel %vm3715, 0.0001, 0.0
      %v3972 = vsel %vm3716, 0.0001, 0.0
      %v3973 = vsel %vm3717, 0.0001, 0.0
      %v3974 = vsel %vm3718, 0.0001, 0.0
      %v3975 = vsel %vm3719, 0.0001, 0.0
      %v3976 = vsel %vm3720, 0.0001, 0.0
      %v3977 = vsel %vm3721, 0.0001, 0.0
      %v3978 = vsel %vm3722, 0.0001, 0.0
      %v3979 = vsel %vm3723, 0.0001, 0.0
      %v3980 = vsel %vm3724, 0.0001, 0.0
      %v3981 = vsel %vm3725, 0.0001, 0.0
      %v3982 = vsel %vm3726, 0.0001, 0.0
      %v3983 = vsel %vm3727, 0.0001, 0.0
      %v3984 = vsel %vm3728, 0.0001, 0.0
      %v3985 = vsel %vm3729, 0.0001, 0.0
      %v3986 = vsel %vm3730, 0.0001, 0.0
      %v3987 = vsel %vm3731, 0.0001, 0.0
      %v3988 = vsel %vm3732, 0.0001, 0.0
      %v3989 = vsel %vm3733, 0.0001, 0.0
      %v3990 = vsel %vm3734, 0.0001, 0.0
      %v3991 = vsel %vm3735, 0.0001, 0.0
      %v3992 = vsel %vm3736, 0.0001, 0.0
      %v3993 = vsel %vm3737, 0.0001, 0.0
      %v3994 = vsel %vm3738, 0.0001, 0.0
      %v3995 = vsel %vm3739, 0.0001, 0.0
      %v3996 = vsel %vm3740, 0.0001, 0.0
      %v3997 = vsel %vm3741, 0.0001, 0.0
      %v3998 = vsel %vm3742, 0.0001, 0.0
      %v3999 = vsel %vm3743, 0.0001, 0.0
      %v4000 = vsel %vm3744, 0.0001, 0.0
      %v4001 = vsel %vm3745, 0.0001, 0.0
      %v4002 = vsel %vm3746, 0.0001, 0.0
      %v4003 = vsel %vm3747, 0.0001, 0.0
      %v4004 = vadd.f32 %v3162, %v3748
      %v4005 = vadd.f32 %v3163, %v3749
      %v4006 = vadd.f32 %v3164, %v3750
      %v4007 = vadd.f32 %v3165, %v3751
      %v4008 = vadd.f32 %v3166, %v3752
      %v4009 = vadd.f32 %v3167, %v3753
      %v4010 = vadd.f32 %v3168, %v3754
      %v4011 = vadd.f32 %v3169, %v3755
      %v4012 = vadd.f32 %v3170, %v3756
      %v4013 = vadd.f32 %v3171, %v3757
      %v4014 = vadd.f32 %v3172, %v3758
      %v4015 = vadd.f32 %v3173, %v3759
      %v4016 = vadd.f32 %v3174, %v3760
      %v4017 = vadd.f32 %v3175, %v3761
      %v4018 = vadd.f32 %v3176, %v3762
      %v4019 = vadd.f32 %v3177, %v3763
      %v4020 = vadd.f32 %v3178, %v3764
      %v4021 = vadd.f32 %v3179, %v3765
      %v4022 = vadd.f32 %v3180, %v3766
      %v4023 = vadd.f32 %v3181, %v3767
      %v4024 = vadd.f32 %v3182, %v3768
      %v4025 = vadd.f32 %v3183, %v3769
      %v4026 = vadd.f32 %v3184, %v3770
      %v4027 = vadd.f32 %v3185, %v3771
      %v4028 = vadd.f32 %v3186, %v3772
      %v4029 = vadd.f32 %v3187, %v3773
      %v4030 = vadd.f32 %v3188, %v3774
      %v4031 = vadd.f32 %v3189, %v3775
      %v4032 = vadd.f32 %v3190, %v3776
      %v4033 = vadd.f32 %v3191, %v3777
      %v4034 = vadd.f32 %v3192, %v3778
      %v4035 = vadd.f32 %v3193, %v3779
      %v4036 = vadd.f32 %v3194, %v3780
      %v4037 = vadd.f32 %v3195, %v3781
      %v4038 = vadd.f32 %v3196, %v3782
      %v4039 = vadd.f32 %v3197, %v3783
      %v4040 = vadd.f32 %v3198, %v3784
      %v4041 = vadd.f32 %v3199, %v3785
      %v4042 = vadd.f32 %v3200, %v3786
      %v4043 = vadd.f32 %v3201, %v3787
      %v4044 = vadd.f32 %v3202, %v3788
      %v4045 = vadd.f32 %v3203, %v3789
      %v4046 = vadd.f32 %v3204, %v3790
      %v4047 = vadd.f32 %v3205, %v3791
      %v4048 = vadd.f32 %v3206, %v3792
      %v4049 = vadd.f32 %v3207, %v3793
      %v4050 = vadd.f32 %v3208, %v3794
      %v4051 = vadd.f32 %v3209, %v3795
      %v4052 = vadd.f32 %v3210, %v3796
      %v4053 = vadd.f32 %v3211, %v3797
      %v4054 = vadd.f32 %v3212, %v3798
      %v4055 = vadd.f32 %v3213, %v3799
      %v4056 = vadd.f32 %v3214, %v3800
      %v4057 = vadd.f32 %v3215, %v3801
      %v4058 = vadd.f32 %v3216, %v3802
      %v4059 = vadd.f32 %v3217, %v3803
      %v4060 = vadd.f32 %v3218, %v3804
      %v4061 = vadd.f32 %v3219, %v3805
      %v4062 = vadd.f32 %v3220, %v3806
      %v4063 = vadd.f32 %v3221, %v3807
      %v4064 = vadd.f32 %v3222, %v3808
      %v4065 = vadd.f32 %v3223, %v3809
      %v4066 = vadd.f32 %v3224, %v3810
      %v4067 = vadd.f32 %v3225, %v3811
      %v4068 = vadd.f32 %v3226, %v3812
      %v4069 = vadd.f32 %v3227, %v3813
      %v4070 = vadd.f32 %v3228, %v3814
      %v4071 = vadd.f32 %v3229, %v3815
      %v4072 = vadd.f32 %v3230, %v3816
      %v4073 = vadd.f32 %v3231, %v3817
      %v4074 = vadd.f32 %v3232, %v3818
      %v4075 = vadd.f32 %v3233, %v3819
      %v4076 = vadd.f32 %v3234, %v3820
      %v4077 = vadd.f32 %v3235, %v3821
      %v4078 = vadd.f32 %v3236, %v3822
      %v4079 = vadd.f32 %v3237, %v3823
      %v4080 = vadd.f32 %v3238, %v3824
      %v4081 = vadd.f32 %v3239, %v3825
      %v4082 = vadd.f32 %v3240, %v3826
      %v4083 = vadd.f32 %v3241, %v3827
      %v4084 = vadd.f32 %v3242, %v3828
      %v4085 = vadd.f32 %v3243, %v3829
      %v4086 = vadd.f32 %v3244, %v3830
      %v4087 = vadd.f32 %v3245, %v3831
      %v4088 = vadd.f32 %v3246, %v3832
      %v4089 = vadd.f32 %v3247, %v3833
      %v4090 = vadd.f32 %v3248, %v3834
      %v4091 = vadd.f32 %v3249, %v3835
      %v4092 = vadd.f32 %v3250, %v3836
      %v4093 = vadd.f32 %v3251, %v3837
      %v4094 = vadd.f32 %v3252, %v3838
      %v4095 = vadd.f32 %v3253, %v3839
      %v4096 = vadd.f32 %v3254, %v3840
      %v4097 = vadd.f32 %v3255, %v3841
      %v4098 = vadd.f32 %v3256, %v3842
      %v4099 = vadd.f32 %v3257, %v3843
      %v4100 = vadd.f32 %v3258, %v3844
      %v4101 = vadd.f32 %v3259, %v3845
      %v4102 = vadd.f32 %v3260, %v3846
      %v4103 = vadd.f32 %v3261, %v3847
      %v4104 = vadd.f32 %v3262, %v3848
      %v4105 = vadd.f32 %v3263, %v3849
      %v4106 = vadd.f32 %v3264, %v3850
      %v4107 = vadd.f32 %v3265, %v3851
      %v4108 = vadd.f32 %v3266, %v3852
      %v4109 = vadd.f32 %v3267, %v3853
      %v4110 = vadd.f32 %v3268, %v3854
      %v4111 = vadd.f32 %v3269, %v3855
      %v4112 = vadd.f32 %v3270, %v3856
      %v4113 = vadd.f32 %v3271, %v3857
      %v4114 = vadd.f32 %v3272, %v3858
      %v4115 = vadd.f32 %v3273, %v3859
      %v4116 = vadd.f32 %v3274, %v3860
      %v4117 = vadd.f32 %v3275, %v3861
      %v4118 = vadd.f32 %v3276, %v3862
      %v4119 = vadd.f32 %v3277, %v3863
      %v4120 = vadd.f32 %v3278, %v3864
      %v4121 = vadd.f32 %v3279, %v3865
      %v4122 = vadd.f32 %v3280, %v3866
      %v4123 = vadd.f32 %v3281, %v3867
      %v4124 = vadd.f32 %v3282, %v3868
      %v4125 = vadd.f32 %v3283, %v3869
      %v4126 = vadd.f32 %v3284, %v3870
      %v4127 = vadd.f32 %v3285, %v3871
      %v4128 = vadd.f32 %v3286, %v3872
      %v4129 = vadd.f32 %v3287, %v3873
      %v4130 = vadd.f32 %v3288, %v3874
      %v4131 = vadd.f32 %v3289, %v3875
      %v4132 = vadd.f32 %v3290, %v3876
      %v4133 = vadd.f32 %v3291, %v3877
      %v4134 = vadd.f32 %v3292, %v3878
      %v4135 = vadd.f32 %v3293, %v3879
      %v4136 = vadd.f32 %v3294, %v3880
      %v4137 = vadd.f32 %v3295, %v3881
      %v4138 = vadd.f32 %v3296, %v3882
      %v4139 = vadd.f32 %v3297, %v3883
      %v4140 = vadd.f32 %v3298, %v3884
      %v4141 = vadd.f32 %v3299, %v3885
      %v4142 = vadd.f32 %v3300, %v3886
      %v4143 = vadd.f32 %v3301, %v3887
      %v4144 = vadd.f32 %v3302, %v3888
      %v4145 = vadd.f32 %v3303, %v3889
      %v4146 = vadd.f32 %v3304, %v3890
      %v4147 = vadd.f32 %v3305, %v3891
      %v4148 = vadd.f32 %v3306, %v3892
      %v4149 = vadd.f32 %v3307, %v3893
      %v4150 = vadd.f32 %v3308, %v3894
      %v4151 = vadd.f32 %v3309, %v3895
      %v4152 = vadd.f32 %v3310, %v3896
      %v4153 = vadd.f32 %v3311, %v3897
      %v4154 = vadd.f32 %v3312, %v3898
      %v4155 = vadd.f32 %v3313, %v3899
      %v4156 = vadd.f32 %v3314, %v3900
      %v4157 = vadd.f32 %v3315, %v3901
      %v4158 = vadd.f32 %v3316, %v3902
      %v4159 = vadd.f32 %v3317, %v3903
      %v4160 = vadd.f32 %v3318, %v3904
      %v4161 = vadd.f32 %v3319, %v3905
      %v4162 = vadd.f32 %v3320, %v3906
      %v4163 = vadd.f32 %v3321, %v3907
      %v4164 = vadd.f32 %v3322, %v3908
      %v4165 = vadd.f32 %v3323, %v3909
      %v4166 = vadd.f32 %v3324, %v3910
      %v4167 = vadd.f32 %v3325, %v3911
      %v4168 = vadd.f32 %v3326, %v3912
      %v4169 = vadd.f32 %v3327, %v3913
      %v4170 = vadd.f32 %v3328, %v3914
      %v4171 = vadd.f32 %v3329, %v3915
      %v4172 = vadd.f32 %v3330, %v3916
      %v4173 = vadd.f32 %v3331, %v3917
      %v4174 = vadd.f32 %v3332, %v3918
      %v4175 = vadd.f32 %v3333, %v3919
      %v4176 = vadd.f32 %v3334, %v3920
      %v4177 = vadd.f32 %v3335, %v3921
      %v4178 = vadd.f32 %v3336, %v3922
      %v4179 = vadd.f32 %v3337, %v3923
      %v4180 = vadd.f32 %v3338, %v3924
      %v4181 = vadd.f32 %v3339, %v3925
      %v4182 = vadd.f32 %v3340, %v3926
      %v4183 = vadd.f32 %v3341, %v3927
      %v4184 = vadd.f32 %v3342, %v3928
      %v4185 = vadd.f32 %v3343, %v3929
      %v4186 = vadd.f32 %v3344, %v3930
      %v4187 = vadd.f32 %v3345, %v3931
      %v4188 = vadd.f32 %v3346, %v3932
      %v4189 = vadd.f32 %v3347, %v3933
      %v4190 = vadd.f32 %v3348, %v3934
      %v4191 = vadd.f32 %v3349, %v3935
      %v4192 = vadd.f32 %v3350, %v3936
      %v4193 = vadd.f32 %v3351, %v3937
      %v4194 = vadd.f32 %v3352, %v3938
      %v4195 = vadd.f32 %v3353, %v3939
      %v4196 = vadd.f32 %v3354, %v3940
      %v4197 = vadd.f32 %v3355, %v3941
      %v4198 = vadd.f32 %v3356, %v3942
      %v4199 = vadd.f32 %v3357, %v3943
      %v4200 = vadd.f32 %v3358, %v3944
      %v4201 = vadd.f32 %v3359, %v3945
      %v4202 = vadd.f32 %v3360, %v3946
      %v4203 = vadd.f32 %v3361, %v3947
      %v4204 = vadd.f32 %v3362, %v3948
      %v4205 = vadd.f32 %v3363, %v3949
      %v4206 = vadd.f32 %v3364, %v3950
      %v4207 = vadd.f32 %v3365, %v3951
      %v4208 = vadd.f32 %v3366, %v3952
      %v4209 = vadd.f32 %v3367, %v3953
      %v4210 = vadd.f32 %v3368, %v3954
      %v4211 = vadd.f32 %v3369, %v3955
      %v4212 = vadd.f32 %v3370, %v3956
      %v4213 = vadd.f32 %v3371, %v3957
      %v4214 = vadd.f32 %v3372, %v3958
      %v4215 = vadd.f32 %v3373, %v3959
      %v4216 = vadd.f32 %v3374, %v3960
      %v4217 = vadd.f32 %v3375, %v3961
      %v4218 = vadd.f32 %v3376, %v3962
      %v4219 = vadd.f32 %v3377, %v3963
      %v4220 = vadd.f32 %v3378, %v3964
      %v4221 = vadd.f32 %v3379, %v3965
      %v4222 = vadd.f32 %v3380, %v3966
      %v4223 = vadd.f32 %v3381, %v3967
      %v4224 = vadd.f32 %v3382, %v3968
      %v4225 = vadd.f32 %v3383, %v3969
      %v4226 = vadd.f32 %v3384, %v3970
      %v4227 = vadd.f32 %v3385, %v3971
      %v4228 = vadd.f32 %v3386, %v3972
      %v4229 = vadd.f32 %v3387, %v3973
      %v4230 = vadd.f32 %v3388, %v3974
      %v4231 = vadd.f32 %v3389, %v3975
      %v4232 = vadd.f32 %v3390, %v3976
      %v4233 = vadd.f32 %v3391, %v3977
      %v4234 = vadd.f32 %v3392, %v3978
      %v4235 = vadd.f32 %v3393, %v3979
      %v4236 = vadd.f32 %v3394, %v3980
      %v4237 = vadd.f32 %v3395, %v3981
      %v4238 = vadd.f32 %v3396, %v3982
      %v4239 = vadd.f32 %v3397, %v3983
      %v4240 = vadd.f32 %v3398, %v3984
      %v4241 = vadd.f32 %v3399, %v3985
      %v4242 = vadd.f32 %v3400, %v3986
      %v4243 = vadd.f32 %v3401, %v3987
      %v4244 = vadd.f32 %v3402, %v3988
      %v4245 = vadd.f32 %v3403, %v3989
      %v4246 = vadd.f32 %v3404, %v3990
      %v4247 = vadd.f32 %v3405, %v3991
      %v4248 = vadd.f32 %v3406, %v3992
      %v4249 = vadd.f32 %v3407, %v3993
      %v4250 = vadd.f32 %v3408, %v3994
      %v4251 = vadd.f32 %v3409, %v3995
      %v4252 = vadd.f32 %v3410, %v3996
      %v4253 = vadd.f32 %v3411, %v3997
      %v4254 = vadd.f32 %v3412, %v3998
      %v4255 = vadd.f32 %v3413, %v3999
      %v4256 = vadd.f32 %v3414, %v4000
      %v4257 = vadd.f32 %v3415, %v4001
      %v4258 = vadd.f32 %v3416, %v4002
      %v4259 = vadd.f32 %v3417, %v4003
      %4260 = vst [vmem:[%s5] sm:$0xff] %v4004
      %4261 = vst [vmem:[%s5 + $0x8] sm:$0xff] %v4005
      %4262 = vst [vmem:[%s5 + $0x10] sm:$0xff] %v4006
      %4263 = vst [vmem:[%s5 + $0x18] sm:$0xff] %v4007
      %4264 = vst [vmem:[%s5 + $0x20] sm:$0xff] %v4008
      %4265 = vst [vmem:[%s5 + $0x28] sm:$0xff] %v4009
      %4266 = vst [vmem:[%s5 + $0x30] sm:$0xff] %v4010
      %4267 = vst [vmem:[%s5 + $0x38] sm:$0xff] %v4011
      %4268 = vst [vmem:[%s5 + $0x40] sm:$0xff] %v4012
      %4269 = vst [vmem:[%s5 + $0x48] sm:$0xff] %v4013
      %4270 = vst [vmem:[%s5 + $0x50] sm:$0xff] %v4014
      %4271 = vst [vmem:[%s5 + $0x58] sm:$0xff] %v4015
      %4272 = vst [vmem:[%s5 + $0x60] sm:$0xff] %v4016
      %4273 = vst [vmem:[%s5 + $0x68] sm:$0xff] %v4017
      %4274 = vst [vmem:[%s5 + $0x70] sm:$0xff] %v4018
      %4275 = vst [vmem:[%s5 + $0x78] sm:$0xff] %v4019
      %4276 = vst [vmem:[%s5 + $0x80] sm:$0xff] %v4020
      %4277 = vst [vmem:[%s5 + $0x88] sm:$0xff] %v4021
      %4278 = vst [vmem:[%s5 + $0x90] sm:$0xff] %v4022
      %4279 = vst [vmem:[%s5 + $0x98] sm:$0xff] %v4023
      %4280 = vst [vmem:[%s5 + $0xa0] sm:$0xff] %v4024
      %4281 = vst [vmem:[%s5 + $0xa8] sm:$0xff] %v4025
      %4282 = vst [vmem:[%s5 + $0xb0] sm:$0xff] %v4026
      %4283 = vst [vmem:[%s5 + $0xb8] sm:$0xff] %v4027
      %4284 = vst [vmem:[%s5 + $0xc0] sm:$0xff] %v4028
      %4285 = vst [vmem:[%s5 + $0xc8] sm:$0xff] %v4029
      %4286 = vst [vmem:[%s5 + $0xd0] sm:$0xff] %v4030
      %4287 = vst [vmem:[%s5 + $0xd8] sm:$0xff] %v4031
      %4288 = vst [vmem:[%s5 + $0xe0] sm:$0xff] %v4032
      %4289 = vst [vmem:[%s5 + $0xe8] sm:$0xff] %v4033
      %4290 = vst [vmem:[%s5 + $0xf0] sm:$0xff] %v4034
      %4291 = vst [vmem:[%s5 + $0xf8] sm:$0xff] %v4035
      %4292 = vst [vmem:[%s5 + $0x100] sm:$0xff] %v4036
      %4293 = vst [vmem:[%s5 + $0x108] sm:$0xff] %v4037
      %4294 = vst [vmem:[%s5 + $0x110] sm:$0xff] %v4038
      %4295 = vst [vmem:[%s5 + $0x118] sm:$0xff] %v4039
      %4296 = vst [vmem:[%s5 + $0x120] sm:$0xff] %v4040
      %4297 = vst [vmem:[%s5 + $0x128] sm:$0xff] %v4041
      %4298 = vst [vmem:[%s5 + $0x130] sm:$0xff] %v4042
      %4299 = vst [vmem:[%s5 + $0x138] sm:$0xff] %v4043
      %4300 = vst [vmem:[%s5 + $0x140] sm:$0xff] %v4044
      %4301 = vst [vmem:[%s5 + $0x148] sm:$0xff] %v4045
      %4302 = vst [vmem:[%s5 + $0x150] sm:$0xff] %v4046
      %4303 = vst [vmem:[%s5 + $0x158] sm:$0xff] %v4047
      %4304 = vst [vmem:[%s5 + $0x160] sm:$0xff] %v4048
      %4305 = vst [vmem:[%s5 + $0x168] sm:$0xff] %v4049
      %4306 = vst [vmem:[%s5 + $0x170] sm:$0xff] %v4050
      %4307 = vst [vmem:[%s5 + $0x178] sm:$0xff] %v4051
      %4308 = vst [vmem:[%s5 + $0x180] sm:$0xff] %v4052
      %4309 = vst [vmem:[%s5 + $0x188] sm:$0xff] %v4053
      %4310 = vst [vmem:[%s5 + $0x190] sm:$0xff] %v4054
      %4311 = vst [vmem:[%s5 + $0x198] sm:$0xff] %v4055
      %4312 = vst [vmem:[%s5 + $0x1a0] sm:$0xff] %v4056
      %4313 = vst [vmem:[%s5 + $0x1a8] sm:$0xff] %v4057
      %4314 = vst [vmem:[%s5 + $0x1b0] sm:$0xff] %v4058
      %4315 = vst [vmem:[%s5 + $0x1b8] sm:$0xff] %v4059
      %4316 = vst [vmem:[%s5 + $0x1c0] sm:$0xff] %v4060
      %4317 = vst [vmem:[%s5 + $0x1c8] sm:$0xff] %v4061
      %4318 = vst [vmem:[%s5 + $0x1d0] sm:$0xff] %v4062
      %4319 = vst [vmem:[%s5 + $0x1d8] sm:$0xff] %v4063
      %4320 = vst [vmem:[%s5 + $0x1e0] sm:$0xff] %v4064
      %4321 = vst [vmem:[%s5 + $0x1e8] sm:$0xff] %v4065
      %4322 = vst [vmem:[%s5 + $0x1f0] sm:$0xff] %v4066
      %4323 = vst [vmem:[%s5 + $0x1f8] sm:$0xff] %v4067
      %4324 = vst [vmem:[%s5 + $0x200] sm:$0xff] %v4068
      %4325 = vst [vmem:[%s5 + $0x208] sm:$0xff] %v4069
      %4326 = vst [vmem:[%s5 + $0x210] sm:$0xff] %v4070
      %4327 = vst [vmem:[%s5 + $0x218] sm:$0xff] %v4071
      %4328 = vst [vmem:[%s5 + $0x220] sm:$0xff] %v4072
      %4329 = vst [vmem:[%s5 + $0x228] sm:$0xff] %v4073
      %4330 = vst [vmem:[%s5 + $0x230] sm:$0xff] %v4074
      %4331 = vst [vmem:[%s5 + $0x238] sm:$0xff] %v4075
      %4332 = vst [vmem:[%s5 + $0x240] sm:$0xff] %v4076
      %4333 = vst [vmem:[%s5 + $0x248] sm:$0xff] %v4077
      %4334 = vst [vmem:[%s5 + $0x250] sm:$0xff] %v4078
      %4335 = vst [vmem:[%s5 + $0x258] sm:$0xff] %v4079
      %4336 = vst [vmem:[%s5 + $0x260] sm:$0xff] %v4080
      %4337 = vst [vmem:[%s5 + $0x268] sm:$0xff] %v4081
      %4338 = vst [vmem:[%s5 + $0x270] sm:$0xff] %v4082
      %4339 = vst [vmem:[%s5 + $0x278] sm:$0xff] %v4083
      %4340 = vst [vmem:[%s5 + $0x280] sm:$0xff] %v4084
      %4341 = vst [vmem:[%s5 + $0x288] sm:$0xff] %v4085
      %4342 = vst [vmem:[%s5 + $0x290] sm:$0xff] %v4086
      %4343 = vst [vmem:[%s5 + $0x298] sm:$0xff] %v4087
      %4344 = vst [vmem:[%s5 + $0x2a0] sm:$0xff] %v4088
      %4345 = vst [vmem:[%s5 + $0x2a8] sm:$0xff] %v4089
      %4346 = vst [vmem:[%s5 + $0x2b0] sm:$0xff] %v4090
      %4347 = vst [vmem:[%s5 + $0x2b8] sm:$0xff] %v4091
      %4348 = vst [vmem:[%s5 + $0x2c0] sm:$0xff] %v4092
      %4349 = vst [vmem:[%s5 + $0x2c8] sm:$0xff] %v4093
      %4350 = vst [vmem:[%s5 + $0x2d0] sm:$0xff] %v4094
      %4351 = vst [vmem:[%s5 + $0x2d8] sm:$0xff] %v4095
      %4352 = vst [vmem:[%s5 + $0x2e0] sm:$0xff] %v4096
      %4353 = vst [vmem:[%s5 + $0x2e8] sm:$0xff] %v4097
      %4354 = vst [vmem:[%s5 + $0x2f0] sm:$0xff] %v4098
      %4355 = vst [vmem:[%s5 + $0x2f8] sm:$0xff] %v4099
      %4356 = vst [vmem:[%s5 + $0x300] sm:$0xff] %v4100
      %4357 = vst [vmem:[%s5 + $0x308] sm:$0xff] %v4101
      %4358 = vst [vmem:[%s5 + $0x310] sm:$0xff] %v4102
      %4359 = vst [vmem:[%s5 + $0x318] sm:$0xff] %v4103
      %4360 = vst [vmem:[%s5 + $0x320] sm:$0xff] %v4104
      %4361 = vst [vmem:[%s5 + $0x328] sm:$0xff] %v4105
      %4362 = vst [vmem:[%s5 + $0x330] sm:$0xff] %v4106
      %4363 = vst [vmem:[%s5 + $0x338] sm:$0xff] %v4107
      %4364 = vst [vmem:[%s5 + $0x340] sm:$0xff] %v4108
      %4365 = vst [vmem:[%s5 + $0x348] sm:$0xff] %v4109
      %4366 = vst [vmem:[%s5 + $0x350] sm:$0xff] %v4110
      %4367 = vst [vmem:[%s5 + $0x358] sm:$0xff] %v4111
      %4368 = vst [vmem:[%s5 + $0x360] sm:$0xff] %v4112
      %4369 = vst [vmem:[%s5 + $0x368] sm:$0xff] %v4113
      %4370 = vst [vmem:[%s5 + $0x370] sm:$0xff] %v4114
      %4371 = vst [vmem:[%s5 + $0x378] sm:$0xff] %v4115
      %4372 = vst [vmem:[%s5 + $0x380] sm:$0xff] %v4116
      %4373 = vst [vmem:[%s5 + $0x388] sm:$0xff] %v4117
      %4374 = vst [vmem:[%s5 + $0x390] sm:$0xff] %v4118
      %4375 = vst [vmem:[%s5 + $0x398] sm:$0xff] %v4119
      %4376 = vst [vmem:[%s5 + $0x3a0] sm:$0xff] %v4120
      %4377 = vst [vmem:[%s5 + $0x3a8] sm:$0xff] %v4121
      %4378 = vst [vmem:[%s5 + $0x3b0] sm:$0xff] %v4122
      %4379 = vst [vmem:[%s5 + $0x3b8] sm:$0xff] %v4123
      %4380 = vst [vmem:[%s5 + $0x3c0] sm:$0xff] %v4124
      %4381 = vst [vmem:[%s5 + $0x3c8] sm:$0xff] %v4125
      %4382 = vst [vmem:[%s5 + $0x3d0] sm:$0xff] %v4126
      %4383 = vst [vmem:[%s5 + $0x3d8] sm:$0xff] %v4127
      %4384 = vst [vmem:[%s5 + $0x3e0] sm:$0xff] %v4128
      %4385 = vst [vmem:[%s5 + $0x3e8] sm:$0xff] %v4129
      %4386 = vst [vmem:[%s5 + $0x3f0] sm:$0xff] %v4130
      %4387 = vst [vmem:[%s5 + $0x3f8] sm:$0xff] %v4131
      %4388 = vst [vmem:[%s5 + $0x400] sm:$0xff] %v4132
      %4389 = vst [vmem:[%s5 + $0x408] sm:$0xff] %v4133
      %4390 = vst [vmem:[%s5 + $0x410] sm:$0xff] %v4134
      %4391 = vst [vmem:[%s5 + $0x418] sm:$0xff] %v4135
      %4392 = vst [vmem:[%s5 + $0x420] sm:$0xff] %v4136
      %4393 = vst [vmem:[%s5 + $0x428] sm:$0xff] %v4137
      %4394 = vst [vmem:[%s5 + $0x430] sm:$0xff] %v4138
      %4395 = vst [vmem:[%s5 + $0x438] sm:$0xff] %v4139
      %4396 = vst [vmem:[%s5 + $0x440] sm:$0xff] %v4140
      %4397 = vst [vmem:[%s5 + $0x448] sm:$0xff] %v4141
      %4398 = vst [vmem:[%s5 + $0x450] sm:$0xff] %v4142
      %4399 = vst [vmem:[%s5 + $0x458] sm:$0xff] %v4143
      %4400 = vst [vmem:[%s5 + $0x460] sm:$0xff] %v4144
      %4401 = vst [vmem:[%s5 + $0x468] sm:$0xff] %v4145
      %4402 = vst [vmem:[%s5 + $0x470] sm:$0xff] %v4146
      %4403 = vst [vmem:[%s5 + $0x478] sm:$0xff] %v4147
      %4404 = vst [vmem:[%s5 + $0x480] sm:$0xff] %v4148
      %4405 = vst [vmem:[%s5 + $0x488] sm:$0xff] %v4149
      %4406 = vst [vmem:[%s5 + $0x490] sm:$0xff] %v4150
      %4407 = vst [vmem:[%s5 + $0x498] sm:$0xff] %v4151
      %4408 = vst [vmem:[%s5 + $0x4a0] sm:$0xff] %v4152
      %4409 = vst [vmem:[%s5 + $0x4a8] sm:$0xff] %v4153
      %4410 = vst [vmem:[%s5 + $0x4b0] sm:$0xff] %v4154
      %4411 = vst [vmem:[%s5 + $0x4b8] sm:$0xff] %v4155
      %4412 = vst [vmem:[%s5 + $0x4c0] sm:$0xff] %v4156
      %4413 = vst [vmem:[%s5 + $0x4c8] sm:$0xff] %v4157
      %4414 = vst [vmem:[%s5 + $0x4d0] sm:$0xff] %v4158
      %4415 = vst [vmem:[%s5 + $0x4d8] sm:$0xff] %v4159
      %4416 = vst [vmem:[%s5 + $0x4e0] sm:$0xff] %v4160
      %4417 = vst [vmem:[%s5 + $0x4e8] sm:$0xff] %v4161
      %4418 = vst [vmem:[%s5 + $0x4f0] sm:$0xff] %v4162
      %4419 = vst [vmem:[%s5 + $0x4f8] sm:$0xff] %v4163
      %4420 = vst [vmem:[%s5 + $0x500] sm:$0xff] %v4164
      %4421 = vst [vmem:[%s5 + $0x508] sm:$0xff] %v4165
      %4422 = vst [vmem:[%s5 + $0x510] sm:$0xff] %v4166
      %4423 = vst [vmem:[%s5 + $0x518] sm:$0xff] %v4167
      %4424 = vst [vmem:[%s5 + $0x520] sm:$0xff] %v4168
      %4425 = vst [vmem:[%s5 + $0x528] sm:$0xff] %v4169
      %4426 = vst [vmem:[%s5 + $0x530] sm:$0xff] %v4170
      %4427 = vst [vmem:[%s5 + $0x538] sm:$0xff] %v4171
      %4428 = vst [vmem:[%s5 + $0x540] sm:$0xff] %v4172
      %4429 = vst [vmem:[%s5 + $0x548] sm:$0xff] %v4173
      %4430 = vst [vmem:[%s5 + $0x550] sm:$0xff] %v4174
      %4431 = vst [vmem:[%s5 + $0x558] sm:$0xff] %v4175
      %4432 = vst [vmem:[%s5 + $0x560] sm:$0xff] %v4176
      %4433 = vst [vmem:[%s5 + $0x568] sm:$0xff] %v4177
      %4434 = vst [vmem:[%s5 + $0x570] sm:$0xff] %v4178
      %4435 = vst [vmem:[%s5 + $0x578] sm:$0xff] %v4179
      %4436 = vst [vmem:[%s5 + $0x580] sm:$0xff] %v4180
      %4437 = vst [vmem:[%s5 + $0x588] sm:$0xff] %v4181
      %4438 = vst [vmem:[%s5 + $0x590] sm:$0xff] %v4182
      %4439 = vst [vmem:[%s5 + $0x598] sm:$0xff] %v4183
      %4440 = vst [vmem:[%s5 + $0x5a0] sm:$0xff] %v4184
      %4441 = vst [vmem:[%s5 + $0x5a8] sm:$0xff] %v4185
      %4442 = vst [vmem:[%s5 + $0x5b0] sm:$0xff] %v4186
      %4443 = vst [vmem:[%s5 + $0x5b8] sm:$0xff] %v4187
      %4444 = vst [vmem:[%s5 + $0x5c0] sm:$0xff] %v4188
      %4445 = vst [vmem:[%s5 + $0x5c8] sm:$0xff] %v4189
      %4446 = vst [vmem:[%s5 + $0x5d0] sm:$0xff] %v4190
      %4447 = vst [vmem:[%s5 + $0x5d8] sm:$0xff] %v4191
      %4448 = vst [vmem:[%s5 + $0x5e0] sm:$0xff] %v4192
      %4449 = vst [vmem:[%s5 + $0x5e8] sm:$0xff] %v4193
      %4450 = vst [vmem:[%s5 + $0x5f0] sm:$0xff] %v4194
      %4451 = vst [vmem:[%s5 + $0x5f8] sm:$0xff] %v4195
      %4452 = vst [vmem:[%s5 + $0x600] sm:$0xff] %v4196
      %4453 = vst [vmem:[%s5 + $0x608] sm:$0xff] %v4197
      %4454 = vst [vmem:[%s5 + $0x610] sm:$0xff] %v4198
      %4455 = vst [vmem:[%s5 + $0x618] sm:$0xff] %v4199
      %4456 = vst [vmem:[%s5 + $0x620] sm:$0xff] %v4200
      %4457 = vst [vmem:[%s5 + $0x628] sm:$0xff] %v4201
      %4458 = vst [vmem:[%s5 + $0x630] sm:$0xff] %v4202
      %4459 = vst [vmem:[%s5 + $0x638] sm:$0xff] %v4203
      %4460 = vst [vmem:[%s5 + $0x640] sm:$0xff] %v4204
      %4461 = vst [vmem:[%s5 + $0x648] sm:$0xff] %v4205
      %4462 = vst [vmem:[%s5 + $0x650] sm:$0xff] %v4206
      %4463 = vst [vmem:[%s5 + $0x658] sm:$0xff] %v4207
      %4464 = vst [vmem:[%s5 + $0x660] sm:$0xff] %v4208
      %4465 = vst [vmem:[%s5 + $0x668] sm:$0xff] %v4209
      %4466 = vst [vmem:[%s5 + $0x670] sm:$0xff] %v4210
      %4467 = vst [vmem:[%s5 + $0x678] sm:$0xff] %v4211
      %4468 = vst [vmem:[%s5 + $0x680] sm:$0xff] %v4212
      %4469 = vst [vmem:[%s5 + $0x688] sm:$0xff] %v4213
      %4470 = vst [vmem:[%s5 + $0x690] sm:$0xff] %v4214
      %4471 = vst [vmem:[%s5 + $0x698] sm:$0xff] %v4215
      %4472 = vst [vmem:[%s5 + $0x6a0] sm:$0xff] %v4216
      %4473 = vst [vmem:[%s5 + $0x6a8] sm:$0xff] %v4217
      %4474 = vst [vmem:[%s5 + $0x6b0] sm:$0xff] %v4218
      %4475 = vst [vmem:[%s5 + $0x6b8] sm:$0xff] %v4219
      %4476 = vst [vmem:[%s5 + $0x6c0] sm:$0xff] %v4220
      %4477 = vst [vmem:[%s5 + $0x6c8] sm:$0xff] %v4221
      %4478 = vst [vmem:[%s5 + $0x6d0] sm:$0xff] %v4222
      %4479 = vst [vmem:[%s5 + $0x6d8] sm:$0xff] %v4223
      %4480 = vst [vmem:[%s5 + $0x6e0] sm:$0xff] %v4224
      %4481 = vst [vmem:[%s5 + $0x6e8] sm:$0xff] %v4225
      %4482 = vst [vmem:[%s5 + $0x6f0] sm:$0xff] %v4226
      %4483 = vst [vmem:[%s5 + $0x6f8] sm:$0xff] %v4227
      %4484 = vst [vmem:[%s5 + $0x700] sm:$0xff] %v4228
      %4485 = vst [vmem:[%s5 + $0x708] sm:$0xff] %v4229
      %4486 = vst [vmem:[%s5 + $0x710] sm:$0xff] %v4230
      %4487 = vst [vmem:[%s5 + $0x718] sm:$0xff] %v4231
      %4488 = vst [vmem:[%s5 + $0x720] sm:$0xff] %v4232
      %4489 = vst [vmem:[%s5 + $0x728] sm:$0xff] %v4233
      %4490 = vst [vmem:[%s5 + $0x730] sm:$0xff] %v4234
      %4491 = vst [vmem:[%s5 + $0x738] sm:$0xff] %v4235
      %4492 = vst [vmem:[%s5 + $0x740] sm:$0xff] %v4236
      %4493 = vst [vmem:[%s5 + $0x748] sm:$0xff] %v4237
      %4494 = vst [vmem:[%s5 + $0x750] sm:$0xff] %v4238
      %4495 = vst [vmem:[%s5 + $0x758] sm:$0xff] %v4239
      %4496 = vst [vmem:[%s5 + $0x760] sm:$0xff] %v4240
      %4497 = vst [vmem:[%s5 + $0x768] sm:$0xff] %v4241
      %4498 = vst [vmem:[%s5 + $0x770] sm:$0xff] %v4242
      %4499 = vst [vmem:[%s5 + $0x778] sm:$0xff] %v4243
      %4500 = vst [vmem:[%s5 + $0x780] sm:$0xff] %v4244
      %4501 = vst [vmem:[%s5 + $0x788] sm:$0xff] %v4245
      %4502 = vst [vmem:[%s5 + $0x790] sm:$0xff] %v4246
      %4503 = vst [vmem:[%s5 + $0x798] sm:$0xff] %v4247
      %4504 = vst [vmem:[%s5 + $0x7a0] sm:$0xff] %v4248
      %4505 = vst [vmem:[%s5 + $0x7a8] sm:$0xff] %v4249
      %4506 = vst [vmem:[%s5 + $0x7b0] sm:$0xff] %v4250
      %4507 = vst [vmem:[%s5 + $0x7b8] sm:$0xff] %v4251
      %4508 = vst [vmem:[%s5 + $0x7c0] sm:$0xff] %v4252
      %4509 = vst [vmem:[%s5 + $0x7c8] sm:$0xff] %v4253
      %4510 = vst [vmem:[%s5 + $0x7d0] sm:$0xff] %v4254
      %4511 = vst [vmem:[%s5 + $0x7d8] sm:$0xff] %v4255
      %4512 = vst [vmem:[%s5 + $0x7e0] sm:$0xff] %v4256
      %4513 = vst [vmem:[%s5 + $0x7e8] sm:$0xff] %v4257
      %4514 = vst [vmem:[%s5 + $0x7f0] sm:$0xff] %v4258
      %4515 = vst [vmem:[%s5 + $0x7f8] sm:$0xff] %v4259
    $region29: #{online_svgp_forward.3} parent=1 // pred_fallthru
      _
    %p4516 = scmp.ne.s32.totalorder 0, 0
    // Predicated region
    $region30: #{online_svgp_forward.3} parent=1 // pred_check
      %p4517 = pneg %p4516
    $region31: #{online_svgp_forward.3} parent=1 // pred_check_branch
      %4519 = sbr.rel (%p4517) target = $region33
    $region32: #{online_svgp_forward.3} parent=1 // pred_region
      %4520 = vst [vmem:[%s5] sm:$0xff] %v3162
      %4521 = vst [vmem:[%s5 + $0x8] sm:$0xff] %v3163
      %4522 = vst [vmem:[%s5 + $0x10] sm:$0xff] %v3164
      %4523 = vst [vmem:[%s5 + $0x18] sm:$0xff] %v3165
      %4524 = vst [vmem:[%s5 + $0x20] sm:$0xff] %v3166
      %4525 = vst [vmem:[%s5 + $0x28] sm:$0xff] %v3167
      %4526 = vst [vmem:[%s5 + $0x30] sm:$0xff] %v3168
      %4527 = vst [vmem:[%s5 + $0x38] sm:$0xff] %v3169
      %4528 = vst [vmem:[%s5 + $0x40] sm:$0xff] %v3170
      %4529 = vst [vmem:[%s5 + $0x48] sm:$0xff] %v3171
      %4530 = vst [vmem:[%s5 + $0x50] sm:$0xff] %v3172
      %4531 = vst [vmem:[%s5 + $0x58] sm:$0xff] %v3173
      %4532 = vst [vmem:[%s5 + $0x60] sm:$0xff] %v3174
      %4533 = vst [vmem:[%s5 + $0x68] sm:$0xff] %v3175
      %4534 = vst [vmem:[%s5 + $0x70] sm:$0xff] %v3176
      %4535 = vst [vmem:[%s5 + $0x78] sm:$0xff] %v3177
      %4536 = vst [vmem:[%s5 + $0x80] sm:$0xff] %v3178
      %4537 = vst [vmem:[%s5 + $0x88] sm:$0xff] %v3179
      %4538 = vst [vmem:[%s5 + $0x90] sm:$0xff] %v3180
      %4539 = vst [vmem:[%s5 + $0x98] sm:$0xff] %v3181
      %4540 = vst [vmem:[%s5 + $0xa0] sm:$0xff] %v3182
      %4541 = vst [vmem:[%s5 + $0xa8] sm:$0xff] %v3183
      %4542 = vst [vmem:[%s5 + $0xb0] sm:$0xff] %v3184
      %4543 = vst [vmem:[%s5 + $0xb8] sm:$0xff] %v3185
      %4544 = vst [vmem:[%s5 + $0xc0] sm:$0xff] %v3186
      %4545 = vst [vmem:[%s5 + $0xc8] sm:$0xff] %v3187
      %4546 = vst [vmem:[%s5 + $0xd0] sm:$0xff] %v3188
      %4547 = vst [vmem:[%s5 + $0xd8] sm:$0xff] %v3189
      %4548 = vst [vmem:[%s5 + $0xe0] sm:$0xff] %v3190
      %4549 = vst [vmem:[%s5 + $0xe8] sm:$0xff] %v3191
      %4550 = vst [vmem:[%s5 + $0xf0] sm:$0xff] %v3192
      %4551 = vst [vmem:[%s5 + $0xf8] sm:$0xff] %v3193
      %4552 = vst [vmem:[%s5 + $0x100] sm:$0xff] %v3194
      %4553 = vst [vmem:[%s5 + $0x108] sm:$0xff] %v3195
      %4554 = vst [vmem:[%s5 + $0x110] sm:$0xff] %v3196
      %4555 = vst [vmem:[%s5 + $0x118] sm:$0xff] %v3197
      %4556 = vst [vmem:[%s5 + $0x120] sm:$0xff] %v3198
      %4557 = vst [vmem:[%s5 + $0x128] sm:$0xff] %v3199
      %4558 = vst [vmem:[%s5 + $0x130] sm:$0xff] %v3200
      %4559 = vst [vmem:[%s5 + $0x138] sm:$0xff] %v3201
      %4560 = vst [vmem:[%s5 + $0x140] sm:$0xff] %v3202
      %4561 = vst [vmem:[%s5 + $0x148] sm:$0xff] %v3203
      %4562 = vst [vmem:[%s5 + $0x150] sm:$0xff] %v3204
      %4563 = vst [vmem:[%s5 + $0x158] sm:$0xff] %v3205
      %4564 = vst [vmem:[%s5 + $0x160] sm:$0xff] %v3206
      %4565 = vst [vmem:[%s5 + $0x168] sm:$0xff] %v3207
      %4566 = vst [vmem:[%s5 + $0x170] sm:$0xff] %v3208
      %4567 = vst [vmem:[%s5 + $0x178] sm:$0xff] %v3209
      %4568 = vst [vmem:[%s5 + $0x180] sm:$0xff] %v3210
      %4569 = vst [vmem:[%s5 + $0x188] sm:$0xff] %v3211
      %4570 = vst [vmem:[%s5 + $0x190] sm:$0xff] %v3212
      %4571 = vst [vmem:[%s5 + $0x198] sm:$0xff] %v3213
      %4572 = vst [vmem:[%s5 + $0x1a0] sm:$0xff] %v3214
      %4573 = vst [vmem:[%s5 + $0x1a8] sm:$0xff] %v3215
      %4574 = vst [vmem:[%s5 + $0x1b0] sm:$0xff] %v3216
      %4575 = vst [vmem:[%s5 + $0x1b8] sm:$0xff] %v3217
      %4576 = vst [vmem:[%s5 + $0x1c0] sm:$0xff] %v3218
      %4577 = vst [vmem:[%s5 + $0x1c8] sm:$0xff] %v3219
      %4578 = vst [vmem:[%s5 + $0x1d0] sm:$0xff] %v3220
      %4579 = vst [vmem:[%s5 + $0x1d8] sm:$0xff] %v3221
      %4580 = vst [vmem:[%s5 + $0x1e0] sm:$0xff] %v3222
      %4581 = vst [vmem:[%s5 + $0x1e8] sm:$0xff] %v3223
      %4582 = vst [vmem:[%s5 + $0x1f0] sm:$0xff] %v3224
      %4583 = vst [vmem:[%s5 + $0x1f8] sm:$0xff] %v3225
      %4584 = vst [vmem:[%s5 + $0x200] sm:$0xff] %v3226
      %4585 = vst [vmem:[%s5 + $0x208] sm:$0xff] %v3227
      %4586 = vst [vmem:[%s5 + $0x210] sm:$0xff] %v3228
      %4587 = vst [vmem:[%s5 + $0x218] sm:$0xff] %v3229
      %4588 = vst [vmem:[%s5 + $0x220] sm:$0xff] %v3230
      %4589 = vst [vmem:[%s5 + $0x228] sm:$0xff] %v3231
      %4590 = vst [vmem:[%s5 + $0x230] sm:$0xff] %v3232
      %4591 = vst [vmem:[%s5 + $0x238] sm:$0xff] %v3233
      %4592 = vst [vmem:[%s5 + $0x240] sm:$0xff] %v3234
      %4593 = vst [vmem:[%s5 + $0x248] sm:$0xff] %v3235
      %4594 = vst [vmem:[%s5 + $0x250] sm:$0xff] %v3236
      %4595 = vst [vmem:[%s5 + $0x258] sm:$0xff] %v3237
      %4596 = vst [vmem:[%s5 + $0x260] sm:$0xff] %v3238
      %4597 = vst [vmem:[%s5 + $0x268] sm:$0xff] %v3239
      %4598 = vst [vmem:[%s5 + $0x270] sm:$0xff] %v3240
      %4599 = vst [vmem:[%s5 + $0x278] sm:$0xff] %v3241
      %4600 = vst [vmem:[%s5 + $0x280] sm:$0xff] %v3242
      %4601 = vst [vmem:[%s5 + $0x288] sm:$0xff] %v3243
      %4602 = vst [vmem:[%s5 + $0x290] sm:$0xff] %v3244
      %4603 = vst [vmem:[%s5 + $0x298] sm:$0xff] %v3245
      %4604 = vst [vmem:[%s5 + $0x2a0] sm:$0xff] %v3246
      %4605 = vst [vmem:[%s5 + $0x2a8] sm:$0xff] %v3247
      %4606 = vst [vmem:[%s5 + $0x2b0] sm:$0xff] %v3248
      %4607 = vst [vmem:[%s5 + $0x2b8] sm:$0xff] %v3249
      %4608 = vst [vmem:[%s5 + $0x2c0] sm:$0xff] %v3250
      %4609 = vst [vmem:[%s5 + $0x2c8] sm:$0xff] %v3251
      %4610 = vst [vmem:[%s5 + $0x2d0] sm:$0xff] %v3252
      %4611 = vst [vmem:[%s5 + $0x2d8] sm:$0xff] %v3253
      %4612 = vst [vmem:[%s5 + $0x2e0] sm:$0xff] %v3254
      %4613 = vst [vmem:[%s5 + $0x2e8] sm:$0xff] %v3255
      %4614 = vst [vmem:[%s5 + $0x2f0] sm:$0xff] %v3256
      %4615 = vst [vmem:[%s5 + $0x2f8] sm:$0xff] %v3257
      %4616 = vst [vmem:[%s5 + $0x300] sm:$0xff] %v3258
      %4617 = vst [vmem:[%s5 + $0x308] sm:$0xff] %v3259
      %4618 = vst [vmem:[%s5 + $0x310] sm:$0xff] %v3260
      %4619 = vst [vmem:[%s5 + $0x318] sm:$0xff] %v3261
      %4620 = vst [vmem:[%s5 + $0x320] sm:$0xff] %v3262
      %4621 = vst [vmem:[%s5 + $0x328] sm:$0xff] %v3263
      %4622 = vst [vmem:[%s5 + $0x330] sm:$0xff] %v3264
      %4623 = vst [vmem:[%s5 + $0x338] sm:$0xff] %v3265
      %4624 = vst [vmem:[%s5 + $0x340] sm:$0xff] %v3266
      %4625 = vst [vmem:[%s5 + $0x348] sm:$0xff] %v3267
      %4626 = vst [vmem:[%s5 + $0x350] sm:$0xff] %v3268
      %4627 = vst [vmem:[%s5 + $0x358] sm:$0xff] %v3269
      %4628 = vst [vmem:[%s5 + $0x360] sm:$0xff] %v3270
      %4629 = vst [vmem:[%s5 + $0x368] sm:$0xff] %v3271
      %4630 = vst [vmem:[%s5 + $0x370] sm:$0xff] %v3272
      %4631 = vst [vmem:[%s5 + $0x378] sm:$0xff] %v3273
      %4632 = vst [vmem:[%s5 + $0x380] sm:$0xff] %v3274
      %4633 = vst [vmem:[%s5 + $0x388] sm:$0xff] %v3275
      %4634 = vst [vmem:[%s5 + $0x390] sm:$0xff] %v3276
      %4635 = vst [vmem:[%s5 + $0x398] sm:$0xff] %v3277
      %4636 = vst [vmem:[%s5 + $0x3a0] sm:$0xff] %v3278
      %4637 = vst [vmem:[%s5 + $0x3a8] sm:$0xff] %v3279
      %4638 = vst [vmem:[%s5 + $0x3b0] sm:$0xff] %v3280
      %4639 = vst [vmem:[%s5 + $0x3b8] sm:$0xff] %v3281
      %4640 = vst [vmem:[%s5 + $0x3c0] sm:$0xff] %v3282
      %4641 = vst [vmem:[%s5 + $0x3c8] sm:$0xff] %v3283
      %4642 = vst [vmem:[%s5 + $0x3d0] sm:$0xff] %v3284
      %4643 = vst [vmem:[%s5 + $0x3d8] sm:$0xff] %v3285
      %4644 = vst [vmem:[%s5 + $0x3e0] sm:$0xff] %v3286
      %4645 = vst [vmem:[%s5 + $0x3e8] sm:$0xff] %v3287
      %4646 = vst [vmem:[%s5 + $0x3f0] sm:$0xff] %v3288
      %4647 = vst [vmem:[%s5 + $0x3f8] sm:$0xff] %v3289
      %4648 = vst [vmem:[%s5 + $0x400] sm:$0xff] %v3290
      %4649 = vst [vmem:[%s5 + $0x408] sm:$0xff] %v3291
      %4650 = vst [vmem:[%s5 + $0x410] sm:$0xff] %v3292
      %4651 = vst [vmem:[%s5 + $0x418] sm:$0xff] %v3293
      %4652 = vst [vmem:[%s5 + $0x420] sm:$0xff] %v3294
      %4653 = vst [vmem:[%s5 + $0x428] sm:$0xff] %v3295
      %4654 = vst [vmem:[%s5 + $0x430] sm:$0xff] %v3296
      %4655 = vst [vmem:[%s5 + $0x438] sm:$0xff] %v3297
      %4656 = vst [vmem:[%s5 + $0x440] sm:$0xff] %v3298
      %4657 = vst [vmem:[%s5 + $0x448] sm:$0xff] %v3299
      %4658 = vst [vmem:[%s5 + $0x450] sm:$0xff] %v3300
      %4659 = vst [vmem:[%s5 + $0x458] sm:$0xff] %v3301
      %4660 = vst [vmem:[%s5 + $0x460] sm:$0xff] %v3302
      %4661 = vst [vmem:[%s5 + $0x468] sm:$0xff] %v3303
      %4662 = vst [vmem:[%s5 + $0x470] sm:$0xff] %v3304
      %4663 = vst [vmem:[%s5 + $0x478] sm:$0xff] %v3305
      %4664 = vst [vmem:[%s5 + $0x480] sm:$0xff] %v3306
      %4665 = vst [vmem:[%s5 + $0x488] sm:$0xff] %v3307
      %4666 = vst [vmem:[%s5 + $0x490] sm:$0xff] %v3308
      %4667 = vst [vmem:[%s5 + $0x498] sm:$0xff] %v3309
      %4668 = vst [vmem:[%s5 + $0x4a0] sm:$0xff] %v3310
      %4669 = vst [vmem:[%s5 + $0x4a8] sm:$0xff] %v3311
      %4670 = vst [vmem:[%s5 + $0x4b0] sm:$0xff] %v3312
      %4671 = vst [vmem:[%s5 + $0x4b8] sm:$0xff] %v3313
      %4672 = vst [vmem:[%s5 + $0x4c0] sm:$0xff] %v3314
      %4673 = vst [vmem:[%s5 + $0x4c8] sm:$0xff] %v3315
      %4674 = vst [vmem:[%s5 + $0x4d0] sm:$0xff] %v3316
      %4675 = vst [vmem:[%s5 + $0x4d8] sm:$0xff] %v3317
      %4676 = vst [vmem:[%s5 + $0x4e0] sm:$0xff] %v3318
      %4677 = vst [vmem:[%s5 + $0x4e8] sm:$0xff] %v3319
      %4678 = vst [vmem:[%s5 + $0x4f0] sm:$0xff] %v3320
      %4679 = vst [vmem:[%s5 + $0x4f8] sm:$0xff] %v3321
      %4680 = vst [vmem:[%s5 + $0x500] sm:$0xff] %v3322
      %4681 = vst [vmem:[%s5 + $0x508] sm:$0xff] %v3323
      %4682 = vst [vmem:[%s5 + $0x510] sm:$0xff] %v3324
      %4683 = vst [vmem:[%s5 + $0x518] sm:$0xff] %v3325
      %4684 = vst [vmem:[%s5 + $0x520] sm:$0xff] %v3326
      %4685 = vst [vmem:[%s5 + $0x528] sm:$0xff] %v3327
      %4686 = vst [vmem:[%s5 + $0x530] sm:$0xff] %v3328
      %4687 = vst [vmem:[%s5 + $0x538] sm:$0xff] %v3329
      %4688 = vst [vmem:[%s5 + $0x540] sm:$0xff] %v3330
      %4689 = vst [vmem:[%s5 + $0x548] sm:$0xff] %v3331
      %4690 = vst [vmem:[%s5 + $0x550] sm:$0xff] %v3332
      %4691 = vst [vmem:[%s5 + $0x558] sm:$0xff] %v3333
      %4692 = vst [vmem:[%s5 + $0x560] sm:$0xff] %v3334
      %4693 = vst [vmem:[%s5 + $0x568] sm:$0xff] %v3335
      %4694 = vst [vmem:[%s5 + $0x570] sm:$0xff] %v3336
      %4695 = vst [vmem:[%s5 + $0x578] sm:$0xff] %v3337
      %4696 = vst [vmem:[%s5 + $0x580] sm:$0xff] %v3338
      %4697 = vst [vmem:[%s5 + $0x588] sm:$0xff] %v3339
      %4698 = vst [vmem:[%s5 + $0x590] sm:$0xff] %v3340
      %4699 = vst [vmem:[%s5 + $0x598] sm:$0xff] %v3341
      %4700 = vst [vmem:[%s5 + $0x5a0] sm:$0xff] %v3342
      %4701 = vst [vmem:[%s5 + $0x5a8] sm:$0xff] %v3343
      %4702 = vst [vmem:[%s5 + $0x5b0] sm:$0xff] %v3344
      %4703 = vst [vmem:[%s5 + $0x5b8] sm:$0xff] %v3345
      %4704 = vst [vmem:[%s5 + $0x5c0] sm:$0xff] %v3346
      %4705 = vst [vmem:[%s5 + $0x5c8] sm:$0xff] %v3347
      %4706 = vst [vmem:[%s5 + $0x5d0] sm:$0xff] %v3348
      %4707 = vst [vmem:[%s5 + $0x5d8] sm:$0xff] %v3349
      %4708 = vst [vmem:[%s5 + $0x5e0] sm:$0xff] %v3350
      %4709 = vst [vmem:[%s5 + $0x5e8] sm:$0xff] %v3351
      %4710 = vst [vmem:[%s5 + $0x5f0] sm:$0xff] %v3352
      %4711 = vst [vmem:[%s5 + $0x5f8] sm:$0xff] %v3353
      %4712 = vst [vmem:[%s5 + $0x600] sm:$0xff] %v3354
      %4713 = vst [vmem:[%s5 + $0x608] sm:$0xff] %v3355
      %4714 = vst [vmem:[%s5 + $0x610] sm:$0xff] %v3356
      %4715 = vst [vmem:[%s5 + $0x618] sm:$0xff] %v3357
      %4716 = vst [vmem:[%s5 + $0x620] sm:$0xff] %v3358
      %4717 = vst [vmem:[%s5 + $0x628] sm:$0xff] %v3359
      %4718 = vst [vmem:[%s5 + $0x630] sm:$0xff] %v3360
      %4719 = vst [vmem:[%s5 + $0x638] sm:$0xff] %v3361
      %4720 = vst [vmem:[%s5 + $0x640] sm:$0xff] %v3362
      %4721 = vst [vmem:[%s5 + $0x648] sm:$0xff] %v3363
      %4722 = vst [vmem:[%s5 + $0x650] sm:$0xff] %v3364
      %4723 = vst [vmem:[%s5 + $0x658] sm:$0xff] %v3365
      %4724 = vst [vmem:[%s5 + $0x660] sm:$0xff] %v3366
      %4725 = vst [vmem:[%s5 + $0x668] sm:$0xff] %v3367
      %4726 = vst [vmem:[%s5 + $0x670] sm:$0xff] %v3368
      %4727 = vst [vmem:[%s5 + $0x678] sm:$0xff] %v3369
      %4728 = vst [vmem:[%s5 + $0x680] sm:$0xff] %v3370
      %4729 = vst [vmem:[%s5 + $0x688] sm:$0xff] %v3371
      %4730 = vst [vmem:[%s5 + $0x690] sm:$0xff] %v3372
      %4731 = vst [vmem:[%s5 + $0x698] sm:$0xff] %v3373
      %4732 = vst [vmem:[%s5 + $0x6a0] sm:$0xff] %v3374
      %4733 = vst [vmem:[%s5 + $0x6a8] sm:$0xff] %v3375
      %4734 = vst [vmem:[%s5 + $0x6b0] sm:$0xff] %v3376
      %4735 = vst [vmem:[%s5 + $0x6b8] sm:$0xff] %v3377
      %4736 = vst [vmem:[%s5 + $0x6c0] sm:$0xff] %v3378
      %4737 = vst [vmem:[%s5 + $0x6c8] sm:$0xff] %v3379
      %4738 = vst [vmem:[%s5 + $0x6d0] sm:$0xff] %v3380
      %4739 = vst [vmem:[%s5 + $0x6d8] sm:$0xff] %v3381
      %4740 = vst [vmem:[%s5 + $0x6e0] sm:$0xff] %v3382
      %4741 = vst [vmem:[%s5 + $0x6e8] sm:$0xff] %v3383
      %4742 = vst [vmem:[%s5 + $0x6f0] sm:$0xff] %v3384
      %4743 = vst [vmem:[%s5 + $0x6f8] sm:$0xff] %v3385
      %4744 = vst [vmem:[%s5 + $0x700] sm:$0xff] %v3386
      %4745 = vst [vmem:[%s5 + $0x708] sm:$0xff] %v3387
      %4746 = vst [vmem:[%s5 + $0x710] sm:$0xff] %v3388
      %4747 = vst [vmem:[%s5 + $0x718] sm:$0xff] %v3389
      %4748 = vst [vmem:[%s5 + $0x720] sm:$0xff] %v3390
      %4749 = vst [vmem:[%s5 + $0x728] sm:$0xff] %v3391
      %4750 = vst [vmem:[%s5 + $0x730] sm:$0xff] %v3392
      %4751 = vst [vmem:[%s5 + $0x738] sm:$0xff] %v3393
      %4752 = vst [vmem:[%s5 + $0x740] sm:$0xff] %v3394
      %4753 = vst [vmem:[%s5 + $0x748] sm:$0xff] %v3395
      %4754 = vst [vmem:[%s5 + $0x750] sm:$0xff] %v3396
      %4755 = vst [vmem:[%s5 + $0x758] sm:$0xff] %v3397
      %4756 = vst [vmem:[%s5 + $0x760] sm:$0xff] %v3398
      %4757 = vst [vmem:[%s5 + $0x768] sm:$0xff] %v3399
      %4758 = vst [vmem:[%s5 + $0x770] sm:$0xff] %v3400
      %4759 = vst [vmem:[%s5 + $0x778] sm:$0xff] %v3401
      %4760 = vst [vmem:[%s5 + $0x780] sm:$0xff] %v3402
      %4761 = vst [vmem:[%s5 + $0x788] sm:$0xff] %v3403
      %4762 = vst [vmem:[%s5 + $0x790] sm:$0xff] %v3404
      %4763 = vst [vmem:[%s5 + $0x798] sm:$0xff] %v3405
      %4764 = vst [vmem:[%s5 + $0x7a0] sm:$0xff] %v3406
      %4765 = vst [vmem:[%s5 + $0x7a8] sm:$0xff] %v3407
      %4766 = vst [vmem:[%s5 + $0x7b0] sm:$0xff] %v3408
      %4767 = vst [vmem:[%s5 + $0x7b8] sm:$0xff] %v3409
      %4768 = vst [vmem:[%s5 + $0x7c0] sm:$0xff] %v3410
      %4769 = vst [vmem:[%s5 + $0x7c8] sm:$0xff] %v3411
      %4770 = vst [vmem:[%s5 + $0x7d0] sm:$0xff] %v3412
      %4771 = vst [vmem:[%s5 + $0x7d8] sm:$0xff] %v3413
      %4772 = vst [vmem:[%s5 + $0x7e0] sm:$0xff] %v3414
      %4773 = vst [vmem:[%s5 + $0x7e8] sm:$0xff] %v3415
      %4774 = vst [vmem:[%s5 + $0x7f0] sm:$0xff] %v3416
      %4775 = vst [vmem:[%s5 + $0x7f8] sm:$0xff] %v3417
    $region33: #{online_svgp_forward.3} parent=1 // pred_fallthru
      _
    // Predicated region
    $region34: #{online_svgp_forward.3} parent=1 // pred_check
      _
    $region35: #{online_svgp_forward.3} parent=1 // pred_check_branch
      %4777 = sbr.rel (0) target = $region37
    $region36: #{online_svgp_forward.3} parent=1 // pred_region
      _
    $region37: #{online_svgp_forward.3} parent=1 // pred_fallthru
      _
    // Predicated region
    $region38: #{online_svgp_forward.3} parent=1 // pred_check
      _
    $region39: #{online_svgp_forward.3} parent=1 // pred_check_branch
      %4779 = sbr.rel (0) target = $region41
    $region40: #{online_svgp_forward.3} parent=1 // pred_region
      _
    $region41: #{online_svgp_forward.3} parent=1 // pred_fallthru
      _
    %4780 = vsyncpa [#allocation3], 1

</llo_original>
